<compile_context>
chip_gen: v6e
topology: v6e:2x2x1
jax: 0.10.0
libtpu: 0.0.40
codegen_flags: <defaults>
</compile_context>

<pallas_src>
import functools

import numpy as np
import jax
import jax.numpy as jnp
from jax.experimental import pallas as pl
from jax.experimental.pallas import tpu as pltpu

LANE = 128     # pad hidden/gate widths to this (lane-dense)
SUBLANE = 8    # pad batch to this (f32 sublanes)


def _round_up(x, m):
    return ((x + m - 1) // m) * m


def _sigmoid(x):
    # One EUP (tanh) push instead of a possible exp + divide lowering.
    return 0.5 * jnp.tanh(0.5 * x) + 0.5


# ---------------------------------------------------------------------------
# Fused Pallas kernel: (conv folded) LSTM1 + LSTM2 + LSTM3 + fc + ReLU
# ---------------------------------------------------------------------------
def _fused_kernel(x_ref, w1_ref, b1_ref, whh1_ref, h01_ref, c01_ref,
                  wih2_ref, b2_ref, whh2_ref, h02_ref, c02_ref,
                  wih3_ref, b3_ref, whh3_ref, h03_ref, c03_ref,
                  fc_w_ref, fc_b_ref,
                  out_ref,
                  act_sc, gx_sc, h_sc, c_sc,
                  *, T, Bp, HP, unroll):
    def mm(a, w):
        # Cast activations to the weight dtype (bf16 weights -> bf16 MXU on
        # v5e/v6e/v7x); always accumulate in f32. Elementwise state stays f32.
        return jnp.dot(a.astype(w.dtype), w, preferred_element_type=jnp.float32)

    def recurrence(whh_ref, h0_ref, c0_ref):
        # gx_sc already holds the hoisted input projection (+ bias) for ALL T
        # steps; only the recurrent matmul + gate math stay on the serial path.
        h_sc[...] = h0_ref[...]
        c_sc[...] = c0_ref[...]

        def step(t, carry):
            row = pl.multiple_of(t * Bp, Bp)
            gates = gx_sc[pl.ds(row, Bp), :] + mm(h_sc[...], whh_ref[...])
            # PyTorch gate order i, f, g, o; each gate occupies its own
            # 128-lane block (padded), so these slices are lane-aligned.
            i_g = _sigmoid(gates[:, 0 * HP:1 * HP])
            f_g = _sigmoid(gates[:, 1 * HP:2 * HP])
            g_g = jnp.tanh(gates[:, 2 * HP:3 * HP])
            o_g = _sigmoid(gates[:, 3 * HP:4 * HP])
            c_new = f_g * c_sc[...] + i_g * g_g
            h_new = o_g * jnp.tanh(c_new)
            c_sc[...] = c_new
            h_sc[...] = h_new
            act_sc[pl.ds(row, Bp), :] = h_new   # becomes next layer's input
            return carry

        jax.lax.fori_loop(0, T, step, 0, unroll=unroll)

    # Layer 1: conv is folded into w1/b1 -> project the raw input slab
    # directly to the layer-1 gate pre-activations (tiny K=C contraction).
    gx_sc[...] = mm(x_ref[...], w1_ref[...]) + b1_ref[...]
    recurrence(whh1_ref, h01_ref, c01_ref)

    # dropout(p=0.2) between layers: identity (eval semantics).

    # Layer 2.
    gx_sc[...] = mm(act_sc[...], wih2_ref[...]) + b2_ref[...]
    recurrence(whh2_ref, h02_ref, c02_ref)

    # Layer 3.
    gx_sc[...] = mm(act_sc[...], wih3_ref[...]) + b3_ref[...]
    recurrence(whh3_ref, h03_ref, c03_ref)

    # fc + ReLU on the whole sequence; output kept 128-lane dense (real 2
    # columns sliced out in the wrapper) -> unmasked stores.
    out_ref[...] = jnp.maximum(mm(act_sc[...], fc_w_ref[...]) + fc_b_ref[...], 0.0)


# ---------------------------------------------------------------------------
# Wrapper
# ---------------------------------------------------------------------------
def eeg_lstm_v3_forward(pp, x, hidden):
    """pp: padded/folded params from pad_params; x: (B, C, T) float32;
    hidden: PyTorch-style list of 6 arrays (1, B, H).  Returns (B, T, 2)."""
    B, C, T = x.shape
    HP = pp["w_hh1"].shape[0]
    Bp = _round_up(max(B, SUBLANE), SUBLANE)

    # NCT -> time-major (T, Bp, C) slab: the single layout change feeding the
    # whole fused kernel (no per-layer transposes).
    xt = jnp.transpose(x, (2, 0, 1))
    xt = jnp.pad(xt, ((0, 0), (0, Bp - B), (0, 0)))
    x_slab = xt.reshape(T * Bp, C).astype(jnp.float32)

    def pad_state(s):  # (1, B, H) -> (Bp, HP); padded lanes must be zero.
        s = jnp.asarray(s, jnp.float32)
        H = s.shape[-1]
        return jnp.zeros((Bp, HP), jnp.float32).at[:B, :H].set(s[0])

    h01, c01, h02, c02, h03, c03 = [pad_state(s) for s in hidden]

    operands = (x_slab,
                pp["w1"], pp["b1"], pp["w_hh1"], h01, c01,
                pp["w_ih2"], pp["b2"], pp["w_hh2"], h02, c02,
                pp["w_ih3"], pp["b3"], pp["w_hh3"], h03, c03,
                pp["fc_w"], pp["fc_b"])
    in_specs = [pl.BlockSpec(a.shape, lambda i: (0, 0)) for a in operands]

    # Explicit scoped-VMEM budget (feedback: default cap is well below
    # physical): inputs/outputs double-buffered + scratch + headroom.
    def nbytes(a):
        return int(np.prod(a.shape)) * np.dtype(a.dtype).itemsize
    out_bytes = T * Bp * HP * 4
    scratch_bytes = (T * Bp * HP + T * Bp * 4 * HP + 2 * Bp * HP) * 4
    vmem_bytes = (2 * sum(nbytes(a) for a in operands)
                  + 2 * out_bytes + scratch_bytes + (4 << 20))
    vmem_bytes = int(min(max(vmem_bytes, 16 << 20), 64 << 20))  # v7x-safe cap

    unroll = T if T <= 8 else 8
    out = pl.pallas_call(
        functools.partial(_fused_kernel, T=T, Bp=Bp, HP=HP, unroll=unroll),
        out_shape=jax.ShapeDtypeStruct((T * Bp, HP), jnp.float32),
        grid_spec=pltpu.PrefetchScalarGridSpec(
            num_scalar_prefetch=0,
            grid=(1,),
            in_specs=in_specs,
            out_specs=pl.BlockSpec((T * Bp, HP), lambda i: (0, 0)),
            scratch_shapes=[
                pltpu.VMEM((T * Bp, HP), jnp.float32),      # activation slab
                pltpu.VMEM((T * Bp, 4 * HP), jnp.float32),  # hoisted gates
                pltpu.VMEM((Bp, HP), jnp.float32),          # h state
                pltpu.VMEM((Bp, HP), jnp.float32),          # c state
            ]),
        compiler_params=pltpu.CompilerParams(
            dimension_semantics=("arbitrary",),
            vmem_limit_bytes=vmem_bytes),
    )(*operands)

    out = out.reshape(T, Bp, HP)[:, :B, :2]   # drop batch / lane padding
    return jnp.transpose(out, (1, 0, 2))      # (B, T, 2)


# ---------------------------------------------------------------------------
# Parameters (PyTorch-equivalent layout, transposed for x @ W)
# ---------------------------------------------------------------------------
def init_params(key, channels, h1, h2, h3):
    c_out = channels // 2
    ks = jax.random.split(key, 16)

    def u(k, shape, fan):
        lim = 1.0 / float(fan) ** 0.5
        return jax.random.uniform(k, shape, jnp.float32, -lim, lim)

    return {
        # Conv1d(channels, channels//2, kernel_size=1)
        "conv_w_t": u(ks[0], (channels, c_out), channels),
        "conv_b":   u(ks[1], (1, c_out), channels),
        # LSTM1 (input c_out -> h1); bias = b_ih + b_hh (sum of two uniforms)
        "w_ih1_t":  u(ks[2], (c_out, 4 * h1), h1),
        "w_hh1_t":  u(ks[3], (h1, 4 * h1), h1),
        "b1":       u(ks[4], (1, 4 * h1), h1) + u(ks[5], (1, 4 * h1), h1),
        # LSTM2 (h1 -> h2)
        "w_ih2_t":  u(ks[6], (h1, 4 * h2), h2),
        "w_hh2_t":  u(ks[7], (h2, 4 * h2), h2),
        "b2":       u(ks[8], (1, 4 * h2), h2) + u(ks[9], (1, 4 * h2), h2),
        # LSTM3 (h2 -> h3)
        "w_ih3_t":  u(ks[10], (h2, 4 * h3), h3),
        "w_hh3_t":  u(ks[11], (h3, 4 * h3), h3),
        "b3":       u(ks[12], (1, 4 * h3), h3) + u(ks[13], (1, 4 * h3), h3),
        # fc: Linear(h2, 2) applied to LSTM3 output (original module needs h3==h2)
        "fc_w_t":   u(ks[14], (h2, 2), h2),
        "fc_b":     u(ks[15], (1, 2), h2),
    }


def pad_params(params, *, matmul_dtype=jnp.bfloat16, hh_dtype=jnp.float32):
    """Fold the 1x1 conv into LSTM1's input projection and zero-pad every
    weight once to lane-dense widths (each gate gets its own 128-lane block).
    matmul_dtype applies to the big hoisted projections (W_ih2/3, fc);
    hh_dtype to the recurrent W_hh (f32 keeps serial-path numerics tight).
    Biases, states and the tiny folded layer-1 weight stay float32."""
    C, c_out = params["conv_w_t"].shape
    h1 = params["w_hh1_t"].shape[0]
    h2 = params["w_hh2_t"].shape[0]
    h3 = params["w_hh3_t"].shape[0]
    assert params["fc_w_t"].shape[0] == h3, "module requires hidden_size3 == hidden_size2"
    HP = _round_up(max(c_out, h1, h2, h3), LANE)

    # ---- conv folding (perf feedback): gx1 = x @ (conv_w @ W_ih1) + (conv_b @ W_ih1 + b1)
    w1_fold = params["conv_w_t"] @ params["w_ih1_t"]          # (C, 4*h1)
    b1_fold = params["conv_b"] @ params["w_ih1_t"] + params["b1"]  # (1, 4*h1)

    def pad2(a, shape, dtype):
        out = jnp.zeros(shape, jnp.float32).at[:a.shape[0], :a.shape[1]].set(a)
        return out.astype(dtype)

    def pad_gates_w(w_t, H, rows_out, dtype):   # (D, 4H) -> (rows_out, 4*HP)
        D = w_t.shape[0]
        out = jnp.zeros((rows_out, 4 * HP), jnp.float32)
        for g in range(4):
            out = out.at[:D, g * HP:g * HP + H].set(w_t[:, g * H:(g + 1) * H])
        return out.astype(dtype)

    def pad_gates_b(b, H):                      # (1, 4H) -> (1, 4*HP)
        out = jnp.zeros((1, 4 * HP), jnp.float32)
        for g in range(4):
            out = out.at[:, g * HP:g * HP + H].set(b[:, g * H:(g + 1) * H])
        return out

    pp = {
        # layer 1 (conv-folded); K=C is tiny, keep f32 (no bf16 packing worries)
        "w1":    pad_gates_w(w1_fold, h1, C, jnp.float32),
        "b1":    pad_gates_b(b1_fold, h1),
        "w_hh1": pad_gates_w(params["w_hh1_t"], h1, HP, hh_dtype),
        # layer 2
        "w_ih2": pad_gates_w(params["w_ih2_t"], h2, HP, matmul_dtype),
        "b2":    pad_gates_b(params["b2"], h2),
        "w_hh2": pad_gates_w(params["w_hh2_t"], h2, HP, hh_dtype),
        # layer 3
        "w_ih3": pad_gates_w(params["w_ih3_t"], h3, HP, matmul_dtype),
        "b3":    pad_gates_b(params["b3"], h3),
        "w_hh3": pad_gates_w(params["w_hh3_t"], h3, HP, hh_dtype),
        # fc
        "fc_w":  pad2(params["fc_w_t"], (HP, HP), matmul_dtype),
        "fc_b":  pad2(params["fc_b"], (1, HP), jnp.float32),
    }
    return pp


def init_hidden(batch_size, h1, h2, h3):
    z = lambda h: jnp.zeros((1, batch_size, h), jnp.float32)
    return [z(h1), z(h1), z(h2), z(h2), z(h3), z(h3)]


# ---------------------------------------------------------------------------
# Pure-JAX reference (mirrors the PyTorch module) for correctness checking
# ---------------------------------------------------------------------------
def _reference_forward(params, x, hidden):
    xt = jnp.transpose(x, (0, 2, 1))                                  # (B,T,C)
    seq = xt @ params["conv_w_t"] + params["conv_b"]                  # conv k=1

    def lstm(seq, w_ih_t, w_hh_t, b, h0, c0):
        H = h0.shape[-1]

        def step(carry, x_t):
            h, c = carry
            gates = x_t @ w_ih_t + h @ w_hh_t + b
            i = jax.nn.sigmoid(gates[:, 0 * H:1 * H])
            f = jax.nn.sigmoid(gates[:, 1 * H:2 * H])
            g = jnp.tanh(gates[:, 2 * H:3 * H])
            o = jax.nn.sigmoid(gates[:, 3 * H:4 * H])
            c = f * c + i * g
            h = o * jnp.tanh(c)
            return (h, c), h

        xs = jnp.transpose(seq, (1, 0, 2))
        _, hs = jax.lax.scan(step, (h0, c0), xs)
        return jnp.transpose(hs, (1, 0, 2))

    h = lstm(seq, params["w_ih1_t"], params["w_hh1_t"], params["b1"],
             hidden[0][0], hidden[1][0])
    h = lstm(h, params["w_ih2_t"], params["w_hh2_t"], params["b2"],
             hidden[2][0], hidden[3][0])
    h = lstm(h, params["w_ih3_t"], params["w_hh3_t"], params["b3"],
             hidden[4][0], hidden[5][0])
    out = h @ params["fc_w_t"] + params["fc_b"]
    return jnp.maximum(out, 0.0)


if __name__ == "__main__":
    batch_size = 2
    channels = 4          # conv reduces to 2 features per time step
    seq_len = 8
    h1, h2, h3 = 32, 32, 32   # h3 == h2 required by the original module's fc

    key = jax.random.PRNGKey(0)
    pkey, xkey = jax.random.split(key)
    params = init_params(pkey, channels, h1, h2, h3)
    # bf16 for the big hoisted projections / fc (MXU-native on all generations);
    # recurrent W_hh kept f32 for tight serial-path numerics.
    pp = pad_params(params, matmul_dtype=jnp.bfloat16, hh_dtype=jnp.float32)
    x = jax.random.normal(xkey, (batch_size, channels, seq_len), jnp.float32)
    hidden = init_hidden(batch_size, h1, h2, h3)

    fwd = jax.jit(eeg_lstm_v3_forward)
    out = jax.block_until_ready(fwd(pp, x, hidden))

    ref = jax.block_until_ready(jax.jit(_reference_forward)(params, x, hidden))

    assert out.shape == (batch_size, seq_len, 2), out.shape
    assert bool(jnp.all(jnp.isfinite(out)))
    assert bool(jnp.all(out >= 0.0))          # ReLU output
    max_err = float(jnp.max(jnp.abs(out - ref)))
    assert max_err < 3e-2, f"mismatch vs reference: {max_err}"
    print("KERNEL_OK")
</pallas_src>

<mosaic_0001>
module attributes {stable_mosaic.version = 11 : i64} {
  func.func @_fused_kernel(%arg0: i32, %arg1: memref<64x4xf32, #tpu.memory_space<vmem>>, %arg2: memref<4x512xf32, #tpu.memory_space<vmem>>, %arg3: memref<1x512xf32, #tpu.memory_space<vmem>>, %arg4: memref<128x512xf32, #tpu.memory_space<vmem>>, %arg5: memref<8x128xf32, #tpu.memory_space<vmem>>, %arg6: memref<8x128xf32, #tpu.memory_space<vmem>>, %arg7: memref<128x512xbf16, #tpu.memory_space<vmem>>, %arg8: memref<1x512xf32, #tpu.memory_space<vmem>>, %arg9: memref<128x512xf32, #tpu.memory_space<vmem>>, %arg10: memref<8x128xf32, #tpu.memory_space<vmem>>, %arg11: memref<8x128xf32, #tpu.memory_space<vmem>>, %arg12: memref<128x512xbf16, #tpu.memory_space<vmem>>, %arg13: memref<1x512xf32, #tpu.memory_space<vmem>>, %arg14: memref<128x512xf32, #tpu.memory_space<vmem>>, %arg15: memref<8x128xf32, #tpu.memory_space<vmem>>, %arg16: memref<8x128xf32, #tpu.memory_space<vmem>>, %arg17: memref<128x128xbf16, #tpu.memory_space<vmem>>, %arg18: memref<1x128xf32, #tpu.memory_space<vmem>>, %arg19: memref<64x128xf32, #tpu.memory_space<vmem>>, %arg20: memref<64x128xf32, #tpu.memory_space<vmem>>, %arg21: memref<64x512xf32, #tpu.memory_space<vmem>>, %arg22: memref<8x128xf32, #tpu.memory_space<vmem>>, %arg23: memref<8x128xf32, #tpu.memory_space<vmem>>) attributes {dimension_semantics = [#tpu.dimension_semantics<arbitrary>], iteration_bounds = array<i64: 1>, scalar_prefetch = 0 : i64, scratch_operands = 4 : i64, tpu.core_type = #tpu.core_type<tc>, window_params = [{pipeline_mode = #tpu.pipeline_mode<synchronous>, transform_indices = @transform_0, window_bounds = array<i64: 64, 4>}, {pipeline_mode = #tpu.pipeline_mode<synchronous>, transform_indices = @transform_1, window_bounds = array<i64: 4, 512>}, {pipeline_mode = #tpu.pipeline_mode<synchronous>, transform_indices = @transform_2, window_bounds = array<i64: 1, 512>}, {pipeline_mode = #tpu.pipeline_mode<synchronous>, transform_indices = @transform_3, window_bounds = array<i64: 128, 512>}, {pipeline_mode = #tpu.pipeline_mode<synchronous>, transform_indices = @transform_4, window_bounds = array<i64: 8, 128>}, {pipeline_mode = #tpu.pipeline_mode<synchronous>, transform_indices = @transform_5, window_bounds = array<i64: 8, 128>}, {pipeline_mode = #tpu.pipeline_mode<synchronous>, transform_indices = @transform_6, window_bounds = array<i64: 128, 512>}, {pipeline_mode = #tpu.pipeline_mode<synchronous>, transform_indices = @transform_7, window_bounds = array<i64: 1, 512>}, {pipeline_mode = #tpu.pipeline_mode<synchronous>, transform_indices = @transform_8, window_bounds = array<i64: 128, 512>}, {pipeline_mode = #tpu.pipeline_mode<synchronous>, transform_indices = @transform_9, window_bounds = array<i64: 8, 128>}, {pipeline_mode = #tpu.pipeline_mode<synchronous>, transform_indices = @transform_10, window_bounds = array<i64: 8, 128>}, {pipeline_mode = #tpu.pipeline_mode<synchronous>, transform_indices = @transform_11, window_bounds = array<i64: 128, 512>}, {pipeline_mode = #tpu.pipeline_mode<synchronous>, transform_indices = @transform_12, window_bounds = array<i64: 1, 512>}, {pipeline_mode = #tpu.pipeline_mode<synchronous>, transform_indices = @transform_13, window_bounds = array<i64: 128, 512>}, {pipeline_mode = #tpu.pipeline_mode<synchronous>, transform_indices = @transform_14, window_bounds = array<i64: 8, 128>}, {pipeline_mode = #tpu.pipeline_mode<synchronous>, transform_indices = @transform_15, window_bounds = array<i64: 8, 128>}, {pipeline_mode = #tpu.pipeline_mode<synchronous>, transform_indices = @transform_16, window_bounds = array<i64: 128, 128>}, {pipeline_mode = #tpu.pipeline_mode<synchronous>, transform_indices = @transform_17, window_bounds = array<i64: 1, 128>}, {pipeline_mode = #tpu.pipeline_mode<synchronous>, transform_indices = @transform_18, window_bounds = array<i64: 64, 128>}]} {
    %c0 = arith.constant 0 : index
    %c0_0 = arith.constant 0 : index
    %0 = vector.load %arg1[%c0, %c0_0] : memref<64x4xf32, #tpu.memory_space<vmem>>, vector<64x4xf32>
    %c0_1 = arith.constant 0 : index
    %c0_2 = arith.constant 0 : index
    %1 = vector.load %arg2[%c0_1, %c0_2] : memref<4x512xf32, #tpu.memory_space<vmem>>, vector<4x512xf32>
    %cst = arith.constant dense<0.000000e+00> : vector<64x512xf32>
    %2 = tpu.matmul %0, %1, %cst {dimension_numbers = #tpu.dot_dimension_numbers<[1], [0], [0], [1], [0, 0, 1, 1], [], []>} : vector<64x4xf32>, vector<4x512xf32>, vector<64x512xf32> -> vector<64x512xf32>
    %c0_3 = arith.constant 0 : index
    %c0_4 = arith.constant 0 : index
    %3 = vector.load %arg3[%c0_3, %c0_4] : memref<1x512xf32, #tpu.memory_space<vmem>>, vector<1x512xf32>
    %4 = vector.broadcast %3 : vector<1x512xf32> to vector<64x512xf32>
    %5 = arith.addf %2, %4 : vector<64x512xf32>
    %c0_5 = arith.constant 0 : index
    %c0_6 = arith.constant 0 : index
    %6 = vector.load %arg21[%c0_5, %c0_6] : memref<64x512xf32, #tpu.memory_space<vmem>>, vector<64x512xf32>
    tpu.vector_store %arg21[%c0_5, %c0_6], %5 {strides = array<i32>} : memref<64x512xf32, #tpu.memory_space<vmem>>, vector<64x512xf32>,
    %c0_7 = arith.constant 0 : index
    %c0_8 = arith.constant 0 : index
    %7 = vector.load %arg5[%c0_7, %c0_8] : memref<8x128xf32, #tpu.memory_space<vmem>>, vector<8x128xf32>
    %c0_9 = arith.constant 0 : index
    %c0_10 = arith.constant 0 : index
    %8 = vector.load %arg22[%c0_9, %c0_10] : memref<8x128xf32, #tpu.memory_space<vmem>>, vector<8x128xf32>
    tpu.vector_store %arg22[%c0_9, %c0_10], %7 {strides = array<i32>} : memref<8x128xf32, #tpu.memory_space<vmem>>, vector<8x128xf32>,
    %c0_11 = arith.constant 0 : index
    %c0_12 = arith.constant 0 : index
    %9 = vector.load %arg6[%c0_11, %c0_12] : memref<8x128xf32, #tpu.memory_space<vmem>>, vector<8x128xf32>
    %c0_13 = arith.constant 0 : index
    %c0_14 = arith.constant 0 : index
    %10 = vector.load %arg23[%c0_13, %c0_14] : memref<8x128xf32, #tpu.memory_space<vmem>>, vector<8x128xf32>
    tpu.vector_store %arg23[%c0_13, %c0_14], %9 {strides = array<i32>} : memref<8x128xf32, #tpu.memory_space<vmem>>, vector<8x128xf32>,
    %c0_i32 = arith.constant 0 : i32
    %c8_i32 = arith.constant 8 : i32
    %11 = arith.muli %c0_i32, %c8_i32 : i32
    %12 = tpu.assume_multiple %11, 8 : i32
    %13 = arith.index_cast %12 : i32 to index
    %c0_15 = arith.constant 0 : index
    %14 = vector.load %arg21[%13, %c0_15] : memref<64x512xf32, #tpu.memory_space<vmem>>, vector<8x512xf32>
    %c0_16 = arith.constant 0 : index
    %c0_17 = arith.constant 0 : index
    %15 = vector.load %arg22[%c0_16, %c0_17] : memref<8x128xf32, #tpu.memory_space<vmem>>, vector<8x128xf32>
    %c0_18 = arith.constant 0 : index
    %c0_19 = arith.constant 0 : index
    %16 = vector.load %arg4[%c0_18, %c0_19] : memref<128x512xf32, #tpu.memory_space<vmem>>, vector<128x512xf32>
    %cst_20 = arith.constant dense<0.000000e+00> : vector<8x512xf32>
    %17 = tpu.matmul %15, %16, %cst_20 {dimension_numbers = #tpu.dot_dimension_numbers<[1], [0], [0], [1], [0, 0, 1, 1], [], []>} : vector<8x128xf32>, vector<128x512xf32>, vector<8x512xf32> -> vector<8x512xf32>
    %18 = arith.addf %14, %17 : vector<8x512xf32>
    %19 = vector.extract_strided_slice %18 {offsets = [0, 0], sizes = [8, 128], strides = [1, 1]} : vector<8x512xf32> to vector<8x128xf32>
    %cst_21 = arith.constant 5.000000e-01 : f32
    %20 = vector.broadcast %cst_21 : f32 to vector<8x128xf32>
    %21 = arith.mulf %20, %19 : vector<8x128xf32>
    %22 = math.tanh %21 : vector<8x128xf32>
    %cst_22 = arith.constant 5.000000e-01 : f32
    %23 = vector.broadcast %cst_22 : f32 to vector<8x128xf32>
    %24 = arith.mulf %23, %22 : vector<8x128xf32>
    %cst_23 = arith.constant 5.000000e-01 : f32
    %25 = vector.broadcast %cst_23 : f32 to vector<8x128xf32>
    %26 = arith.addf %24, %25 : vector<8x128xf32>
    %27 = vector.extract_strided_slice %18 {offsets = [0, 128], sizes = [8, 128], strides = [1, 1]} : vector<8x512xf32> to vector<8x128xf32>
    %cst_24 = arith.constant 5.000000e-01 : f32
    %28 = vector.broadcast %cst_24 : f32 to vector<8x128xf32>
    %29 = arith.mulf %28, %27 : vector<8x128xf32>
    %30 = math.tanh %29 : vector<8x128xf32>
    %cst_25 = arith.constant 5.000000e-01 : f32
    %31 = vector.broadcast %cst_25 : f32 to vector<8x128xf32>
    %32 = arith.mulf %31, %30 : vector<8x128xf32>
    %cst_26 = arith.constant 5.000000e-01 : f32
    %33 = vector.broadcast %cst_26 : f32 to vector<8x128xf32>
    %34 = arith.addf %32, %33 : vector<8x128xf32>
    %35 = vector.extract_strided_slice %18 {offsets = [0, 256], sizes = [8, 128], strides = [1, 1]} : vector<8x512xf32> to vector<8x128xf32>
    %36 = math.tanh %35 : vector<8x128xf32>
    %37 = vector.extract_strided_slice %18 {offsets = [0, 384], sizes = [8, 128], strides = [1, 1]} : vector<8x512xf32> to vector<8x128xf32>
    %cst_27 = arith.constant 5.000000e-01 : f32
    %38 = vector.broadcast %cst_27 : f32 to vector<8x128xf32>
    %39 = arith.mulf %38, %37 : vector<8x128xf32>
    %40 = math.tanh %39 : vector<8x128xf32>
    %cst_28 = arith.constant 5.000000e-01 : f32
    %41 = vector.broadcast %cst_28 : f32 to vector<8x128xf32>
    %42 = arith.mulf %41, %40 : vector<8x128xf32>
    %cst_29 = arith.constant 5.000000e-01 : f32
    %43 = vector.broadcast %cst_29 : f32 to vector<8x128xf32>
    %44 = arith.addf %42, %43 : vector<8x128xf32>
    %c0_30 = arith.constant 0 : index
    %c0_31 = arith.constant 0 : index
    %45 = vector.load %arg23[%c0_30, %c0_31] : memref<8x128xf32, #tpu.memory_space<vmem>>, vector<8x128xf32>
    %46 = arith.mulf %34, %45 : vector<8x128xf32>
    %47 = arith.mulf %26, %36 : vector<8x128xf32>
    %48 = arith.addf %46, %47 : vector<8x128xf32>
    %49 = math.tanh %48 : vector<8x128xf32>
    %50 = arith.mulf %44, %49 : vector<8x128xf32>
    %c0_32 = arith.constant 0 : index
    %c0_33 = arith.constant 0 : index
    %51 = vector.load %arg23[%c0_32, %c0_33] : memref<8x128xf32, #tpu.memory_space<vmem>>, vector<8x128xf32>
    tpu.vector_store %arg23[%c0_32, %c0_33], %48 {strides = array<i32>} : memref<8x128xf32, #tpu.memory_space<vmem>>, vector<8x128xf32>,
    %c0_34 = arith.constant 0 : index
    %c0_35 = arith.constant 0 : index
    %52 = vector.load %arg22[%c0_34, %c0_35] : memref<8x128xf32, #tpu.memory_space<vmem>>, vector<8x128xf32>
    tpu.vector_store %arg22[%c0_34, %c0_35], %50 {strides = array<i32>} : memref<8x128xf32, #tpu.memory_space<vmem>>, vector<8x128xf32>,
    %53 = arith.index_cast %12 : i32 to index
    %c0_36 = arith.constant 0 : index
    %54 = vector.load %arg20[%53, %c0_36] : memref<64x128xf32, #tpu.memory_space<vmem>>, vector<8x128xf32>
    tpu.vector_store %arg20[%53, %c0_36], %50 {strides = array<i32>} : memref<64x128xf32, #tpu.memory_space<vmem>>, vector<8x128xf32>,
    %c1_i32 = arith.constant 1 : i32
    %c8_i32_37 = arith.constant 8 : i32
    %55 = arith.muli %c1_i32, %c8_i32_37 : i32
    %56 = tpu.assume_multiple %55, 8 : i32
    %57 = arith.index_cast %56 : i32 to index
    %c0_38 = arith.constant 0 : index
    %58 = vector.load %arg21[%57, %c0_38] : memref<64x512xf32, #tpu.memory_space<vmem>>, vector<8x512xf32>
    %c0_39 = arith.constant 0 : index
    %c0_40 = arith.constant 0 : index
    %59 = vector.load %arg22[%c0_39, %c0_40] : memref<8x128xf32, #tpu.memory_space<vmem>>, vector<8x128xf32>
    %c0_41 = arith.constant 0 : index
    %c0_42 = arith.constant 0 : index
    %60 = vector.load %arg4[%c0_41, %c0_42] : memref<128x512xf32, #tpu.memory_space<vmem>>, vector<128x512xf32>
    %cst_43 = arith.constant dense<0.000000e+00> : vector<8x512xf32>
    %61 = tpu.matmul %59, %60, %cst_43 {dimension_numbers = #tpu.dot_dimension_numbers<[1], [0], [0], [1], [0, 0, 1, 1], [], []>} : vector<8x128xf32>, vector<128x512xf32>, vector<8x512xf32> -> vector<8x512xf32>
    %62 = arith.addf %58, %61 : vector<8x512xf32>
    %63 = vector.extract_strided_slice %62 {offsets = [0, 0], sizes = [8, 128], strides = [1, 1]} : vector<8x512xf32> to vector<8x128xf32>
    %cst_44 = arith.constant 5.000000e-01 : f32
    %64 = vector.broadcast %cst_44 : f32 to vector<8x128xf32>
    %65 = arith.mulf %64, %63 : vector<8x128xf32>
    %66 = math.tanh %65 : vector<8x128xf32>
    %cst_45 = arith.constant 5.000000e-01 : f32
    %67 = vector.broadcast %cst_45 : f32 to vector<8x128xf32>
    %68 = arith.mulf %67, %66 : vector<8x128xf32>
    %cst_46 = arith.constant 5.000000e-01 : f32
    %69 = vector.broadcast %cst_46 : f32 to vector<8x128xf32>
    %70 = arith.addf %68, %69 : vector<8x128xf32>
    %71 = vector.extract_strided_slice %62 {offsets = [0, 128], sizes = [8, 128], strides = [1, 1]} : vector<8x512xf32> to vector<8x128xf32>
    %cst_47 = arith.constant 5.000000e-01 : f32
    %72 = vector.broadcast %cst_47 : f32 to vector<8x128xf32>
    %73 = arith.mulf %72, %71 : vector<8x128xf32>
    %74 = math.tanh %73 : vector<8x128xf32>
    %cst_48 = arith.constant 5.000000e-01 : f32
    %75 = vector.broadcast %cst_48 : f32 to vector<8x128xf32>
    %76 = arith.mulf %75, %74 : vector<8x128xf32>
    %cst_49 = arith.constant 5.000000e-01 : f32
    %77 = vector.broadcast %cst_49 : f32 to vector<8x128xf32>
    %78 = arith.addf %76, %77 : vector<8x128xf32>
    %79 = vector.extract_strided_slice %62 {offsets = [0, 256], sizes = [8, 128], strides = [1, 1]} : vector<8x512xf32> to vector<8x128xf32>
    %80 = math.tanh %79 : vector<8x128xf32>
    %81 = vector.extract_strided_slice %62 {offsets = [0, 384], sizes = [8, 128], strides = [1, 1]} : vector<8x512xf32> to vector<8x128xf32>
    %cst_50 = arith.constant 5.000000e-01 : f32
    %82 = vector.broadcast %cst_50 : f32 to vector<8x128xf32>
    %83 = arith.mulf %82, %81 : vector<8x128xf32>
    %84 = math.tanh %83 : vector<8x128xf32>
    %cst_51 = arith.constant 5.000000e-01 : f32
    %85 = vector.broadcast %cst_51 : f32 to vector<8x128xf32>
    %86 = arith.mulf %85, %84 : vector<8x128xf32>
    %cst_52 = arith.constant 5.000000e-01 : f32
    %87 = vector.broadcast %cst_52 : f32 to vector<8x128xf32>
    %88 = arith.addf %86, %87 : vector<8x128xf32>
    %c0_53 = arith.constant 0 : index
    %c0_54 = arith.constant 0 : index
    %89 = vector.load %arg23[%c0_53, %c0_54] : memref<8x128xf32, #tpu.memory_space<vmem>>, vector<8x128xf32>
    %90 = arith.mulf %78, %89 : vector<8x128xf32>
    %91 = arith.mulf %70, %80 : vector<8x128xf32>
    %92 = arith.addf %90, %91 : vector<8x128xf32>
    %93 = math.tanh %92 : vector<8x128xf32>
    %94 = arith.mulf %88, %93 : vector<8x128xf32>
    %c0_55 = arith.constant 0 : index
    %c0_56 = arith.constant 0 : index
    %95 = vector.load %arg23[%c0_55, %c0_56] : memref<8x128xf32, #tpu.memory_space<vmem>>, vector<8x128xf32>
    tpu.vector_store %arg23[%c0_55, %c0_56], %92 {strides = array<i32>} : memref<8x128xf32, #tpu.memory_space<vmem>>, vector<8x128xf32>,
    %c0_57 = arith.constant 0 : index
    %c0_58 = arith.constant 0 : index
    %96 = vector.load %arg22[%c0_57, %c0_58] : memref<8x128xf32, #tpu.memory_space<vmem>>, vector<8x128xf32>
    tpu.vector_store %arg22[%c0_57, %c0_58], %94 {strides = array<i32>} : memref<8x128xf32, #tpu.memory_space<vmem>>, vector<8x128xf32>,
    %97 = arith.index_cast %56 : i32 to index
    %c0_59 = arith.constant 0 : index
    %98 = vector.load %arg20[%97, %c0_59] : memref<64x128xf32, #tpu.memory_space<vmem>>, vector<8x128xf32>
    tpu.vector_store %arg20[%97, %c0_59], %94 {strides = array<i32>} : memref<64x128xf32, #tpu.memory_space<vmem>>, vector<8x128xf32>,
    %c2_i32 = arith.constant 2 : i32
    %c8_i32_60 = arith.constant 8 : i32
    %99 = arith.muli %c2_i32, %c8_i32_60 : i32
    %100 = tpu.assume_multiple %99, 8 : i32
    %101 = arith.index_cast %100 : i32 to index
    %c0_61 = arith.constant 0 : index
    %102 = vector.load %arg21[%101, %c0_61] : memref<64x512xf32, #tpu.memory_space<vmem>>, vector<8x512xf32>
    %c0_62 = arith.constant 0 : index
    %c0_63 = arith.constant 0 : index
    %103 = vector.load %arg22[%c0_62, %c0_63] : memref<8x128xf32, #tpu.memory_space<vmem>>, vector<8x128xf32>
    %c0_64 = arith.constant 0 : index
    %c0_65 = arith.constant 0 : index
    %104 = vector.load %arg4[%c0_64, %c0_65] : memref<128x512xf32, #tpu.memory_space<vmem>>, vector<128x512xf32>
    %cst_66 = arith.constant dense<0.000000e+00> : vector<8x512xf32>
    %105 = tpu.matmul %103, %104, %cst_66 {dimension_numbers = #tpu.dot_dimension_numbers<[1], [0], [0], [1], [0, 0, 1, 1], [], []>} : vector<8x128xf32>, vector<128x512xf32>, vector<8x512xf32> -> vector<8x512xf32>
    %106 = arith.addf %102, %105 : vector<8x512xf32>
    %107 = vector.extract_strided_slice %106 {offsets = [0, 0], sizes = [8, 128], strides = [1, 1]} : vector<8x512xf32> to vector<8x128xf32>
    %cst_67 = arith.constant 5.000000e-01 : f32
    %108 = vector.broadcast %cst_67 : f32 to vector<8x128xf32>
    %109 = arith.mulf %108, %107 : vector<8x128xf32>
    %110 = math.tanh %109 : vector<8x128xf32>
    %cst_68 = arith.constant 5.000000e-01 : f32
    %111 = vector.broadcast %cst_68 : f32 to vector<8x128xf32>
    %112 = arith.mulf %111, %110 : vector<8x128xf32>
    %cst_69 = arith.constant 5.000000e-01 : f32
    %113 = vector.broadcast %cst_69 : f32 to vector<8x128xf32>
    %114 = arith.addf %112, %113 : vector<8x128xf32>
    %115 = vector.extract_strided_slice %106 {offsets = [0, 128], sizes = [8, 128], strides = [1, 1]} : vector<8x512xf32> to vector<8x128xf32>
    %cst_70 = arith.constant 5.000000e-01 : f32
    %116 = vector.broadcast %cst_70 : f32 to vector<8x128xf32>
    %117 = arith.mulf %116, %115 : vector<8x128xf32>
    %118 = math.tanh %117 : vector<8x128xf32>
    %cst_71 = arith.constant 5.000000e-01 : f32
    %119 = vector.broadcast %cst_71 : f32 to vector<8x128xf32>
    %120 = arith.mulf %119, %118 : vector<8x128xf32>
    %cst_72 = arith.constant 5.000000e-01 : f32
    %121 = vector.broadcast %cst_72 : f32 to vector<8x128xf32>
    %122 = arith.addf %120, %121 : vector<8x128xf32>
    %123 = vector.extract_strided_slice %106 {offsets = [0, 256], sizes = [8, 128], strides = [1, 1]} : vector<8x512xf32> to vector<8x128xf32>
    %124 = math.tanh %123 : vector<8x128xf32>
    %125 = vector.extract_strided_slice %106 {offsets = [0, 384], sizes = [8, 128], strides = [1, 1]} : vector<8x512xf32> to vector<8x128xf32>
    %cst_73 = arith.constant 5.000000e-01 : f32
    %126 = vector.broadcast %cst_73 : f32 to vector<8x128xf32>
    %127 = arith.mulf %126, %125 : vector<8x128xf32>
    %128 = math.tanh %127 : vector<8x128xf32>
    %cst_74 = arith.constant 5.000000e-01 : f32
    %129 = vector.broadcast %cst_74 : f32 to vector<8x128xf32>
    %130 = arith.mulf %129, %128 : vector<8x128xf32>
    %cst_75 = arith.constant 5.000000e-01 : f32
    %131 = vector.broadcast %cst_75 : f32 to vector<8x128xf32>
    %132 = arith.addf %130, %131 : vector<8x128xf32>
    %c0_76 = arith.constant 0 : index
    %c0_77 = arith.constant 0 : index
    %133 = vector.load %arg23[%c0_76, %c0_77] : memref<8x128xf32, #tpu.memory_space<vmem>>, vector<8x128xf32>
    %134 = arith.mulf %122, %133 : vector<8x128xf32>
    %135 = arith.mulf %114, %124 : vector<8x128xf32>
    %136 = arith.addf %134, %135 : vector<8x128xf32>
    %137 = math.tanh %136 : vector<8x128xf32>
    %138 = arith.mulf %132, %137 : vector<8x128xf32>
    %c0_78 = arith.constant 0 : index
    %c0_79 = arith.constant 0 : index
    %139 = vector.load %arg23[%c0_78, %c0_79] : memref<8x128xf32, #tpu.memory_space<vmem>>, vector<8x128xf32>
    tpu.vector_store %arg23[%c0_78, %c0_79], %136 {strides = array<i32>} : memref<8x128xf32, #tpu.memory_space<vmem>>, vector<8x128xf32>,
    %c0_80 = arith.constant 0 : index
    %c0_81 = arith.constant 0 : index
    %140 = vector.load %arg22[%c0_80, %c0_81] : memref<8x128xf32, #tpu.memory_space<vmem>>, vector<8x128xf32>
    tpu.vector_store %arg22[%c0_80, %c0_81], %138 {strides = array<i32>} : memref<8x128xf32, #tpu.memory_space<vmem>>, vector<8x128xf32>,
    %141 = arith.index_cast %100 : i32 to index
    %c0_82 = arith.constant 0 : index
    %142 = vector.load %arg20[%141, %c0_82] : memref<64x128xf32, #tpu.memory_space<vmem>>, vector<8x128xf32>
    tpu.vector_store %arg20[%141, %c0_82], %138 {strides = array<i32>} : memref<64x128xf32, #tpu.memory_space<vmem>>, vector<8x128xf32>,
    %c3_i32 = arith.constant 3 : i32
    %c8_i32_83 = arith.constant 8 : i32
    %143 = arith.muli %c3_i32, %c8_i32_83 : i32
    %144 = tpu.assume_multiple %143, 8 : i32
    %145 = arith.index_cast %144 : i32 to index
    %c0_84 = arith.constant 0 : index
    %146 = vector.load %arg21[%145, %c0_84] : memref<64x512xf32, #tpu.memory_space<vmem>>, vector<8x512xf32>
    %c0_85 = arith.constant 0 : index
    %c0_86 = arith.constant 0 : index
    %147 = vector.load %arg22[%c0_85, %c0_86] : memref<8x128xf32, #tpu.memory_space<vmem>>, vector<8x128xf32>
    %c0_87 = arith.constant 0 : index
    %c0_88 = arith.constant 0 : index
    %148 = vector.load %arg4[%c0_87, %c0_88] : memref<128x512xf32, #tpu.memory_space<vmem>>, vector<128x512xf32>
    %cst_89 = arith.constant dense<0.000000e+00> : vector<8x512xf32>
    %149 = tpu.matmul %147, %148, %cst_89 {dimension_numbers = #tpu.dot_dimension_numbers<[1], [0], [0], [1], [0, 0, 1, 1], [], []>} : vector<8x128xf32>, vector<128x512xf32>, vector<8x512xf32> -> vector<8x512xf32>
    %150 = arith.addf %146, %149 : vector<8x512xf32>
    %151 = vector.extract_strided_slice %150 {offsets = [0, 0], sizes = [8, 128], strides = [1, 1]} : vector<8x512xf32> to vector<8x128xf32>
    %cst_90 = arith.constant 5.000000e-01 : f32
    %152 = vector.broadcast %cst_90 : f32 to vector<8x128xf32>
    %153 = arith.mulf %152, %151 : vector<8x128xf32>
    %154 = math.tanh %153 : vector<8x128xf32>
    %cst_91 = arith.constant 5.000000e-01 : f32
    %155 = vector.broadcast %cst_91 : f32 to vector<8x128xf32>
    %156 = arith.mulf %155, %154 : vector<8x128xf32>
    %cst_92 = arith.constant 5.000000e-01 : f32
    %157 = vector.broadcast %cst_92 : f32 to vector<8x128xf32>
    %158 = arith.addf %156, %157 : vector<8x128xf32>
    %159 = vector.extract_strided_slice %150 {offsets = [0, 128], sizes = [8, 128], strides = [1, 1]} : vector<8x512xf32> to vector<8x128xf32>
    %cst_93 = arith.constant 5.000000e-01 : f32
    %160 = vector.broadcast %cst_93 : f32 to vector<8x128xf32>
    %161 = arith.mulf %160, %159 : vector<8x128xf32>
    %162 = math.tanh %161 : vector<8x128xf32>
    %cst_94 = arith.constant 5.000000e-01 : f32
    %163 = vector.broadcast %cst_94 : f32 to vector<8x128xf32>
    %164 = arith.mulf %163, %162 : vector<8x128xf32>
    %cst_95 = arith.constant 5.000000e-01 : f32
    %165 = vector.broadcast %cst_95 : f32 to vector<8x128xf32>
    %166 = arith.addf %164, %165 : vector<8x128xf32>
    %167 = vector.extract_strided_slice %150 {offsets = [0, 256], sizes = [8, 128], strides = [1, 1]} : vector<8x512xf32> to vector<8x128xf32>
    %168 = math.tanh %167 : vector<8x128xf32>
    %169 = vector.extract_strided_slice %150 {offsets = [0, 384], sizes = [8, 128], strides = [1, 1]} : vector<8x512xf32> to vector<8x128xf32>
    %cst_96 = arith.constant 5.000000e-01 : f32
    %170 = vector.broadcast %cst_96 : f32 to vector<8x128xf32>
    %171 = arith.mulf %170, %169 : vector<8x128xf32>
    %172 = math.tanh %171 : vector<8x128xf32>
    %cst_97 = arith.constant 5.000000e-01 : f32
    %173 = vector.broadcast %cst_97 : f32 to vector<8x128xf32>
    %174 = arith.mulf %173, %172 : vector<8x128xf32>
    %cst_98 = arith.constant 5.000000e-01 : f32
    %175 = vector.broadcast %cst_98 : f32 to vector<8x128xf32>
    %176 = arith.addf %174, %175 : vector<8x128xf32>
    %c0_99 = arith.constant 0 : index
    %c0_100 = arith.constant 0 : index
    %177 = vector.load %arg23[%c0_99, %c0_100] : memref<8x128xf32, #tpu.memory_space<vmem>>, vector<8x128xf32>
    %178 = arith.mulf %166, %177 : vector<8x128xf32>
    %179 = arith.mulf %158, %168 : vector<8x128xf32>
    %180 = arith.addf %178, %179 : vector<8x128xf32>
    %181 = math.tanh %180 : vector<8x128xf32>
    %182 = arith.mulf %176, %181 : vector<8x128xf32>
    %c0_101 = arith.constant 0 : index
    %c0_102 = arith.constant 0 : index
    %183 = vector.load %arg23[%c0_101, %c0_102] : memref<8x128xf32, #tpu.memory_space<vmem>>, vector<8x128xf32>
    tpu.vector_store %arg23[%c0_101, %c0_102], %180 {strides = array<i32>} : memref<8x128xf32, #tpu.memory_space<vmem>>, vector<8x128xf32>,
    %c0_103 = arith.constant 0 : index
    %c0_104 = arith.constant 0 : index
    %184 = vector.load %arg22[%c0_103, %c0_104] : memref<8x128xf32, #tpu.memory_space<vmem>>, vector<8x128xf32>
    tpu.vector_store %arg22[%c0_103, %c0_104], %182 {strides = array<i32>} : memref<8x128xf32, #tpu.memory_space<vmem>>, vector<8x128xf32>,
    %185 = arith.index_cast %144 : i32 to index
    %c0_105 = arith.constant 0 : index
    %186 = vector.load %arg20[%185, %c0_105] : memref<64x128xf32, #tpu.memory_space<vmem>>, vector<8x128xf32>
    tpu.vector_store %arg20[%185, %c0_105], %182 {strides = array<i32>} : memref<64x128xf32, #tpu.memory_space<vmem>>, vector<8x128xf32>,
    %c4_i32 = arith.constant 4 : i32
    %c8_i32_106 = arith.constant 8 : i32
    %187 = arith.muli %c4_i32, %c8_i32_106 : i32
    %188 = tpu.assume_multiple %187, 8 : i32
    %189 = arith.index_cast %188 : i32 to index
    %c0_107 = arith.constant 0 : index
    %190 = vector.load %arg21[%189, %c0_107] : memref<64x512xf32, #tpu.memory_space<vmem>>, vector<8x512xf32>
    %c0_108 = arith.constant 0 : index
    %c0_109 = arith.constant 0 : index
    %191 = vector.load %arg22[%c0_108, %c0_109] : memref<8x128xf32, #tpu.memory_space<vmem>>, vector<8x128xf32>
    %c0_110 = arith.constant 0 : index
    %c0_111 = arith.constant 0 : index
    %192 = vector.load %arg4[%c0_110, %c0_111] : memref<128x512xf32, #tpu.memory_space<vmem>>, vector<128x512xf32>
    %cst_112 = arith.constant dense<0.000000e+00> : vector<8x512xf32>
    %193 = tpu.matmul %191, %192, %cst_112 {dimension_numbers = #tpu.dot_dimension_numbers<[1], [0], [0], [1], [0, 0, 1, 1], [], []>} : vector<8x128xf32>, vector<128x512xf32>, vector<8x512xf32> -> vector<8x512xf32>
    %194 = arith.addf %190, %193 : vector<8x512xf32>
    %195 = vector.extract_strided_slice %194 {offsets = [0, 0], sizes = [8, 128], strides = [1, 1]} : vector<8x512xf32> to vector<8x128xf32>
    %cst_113 = arith.constant 5.000000e-01 : f32
    %196 = vector.broadcast %cst_113 : f32 to vector<8x128xf32>
    %197 = arith.mulf %196, %195 : vector<8x128xf32>
    %198 = math.tanh %197 : vector<8x128xf32>
    %cst_114 = arith.constant 5.000000e-01 : f32
    %199 = vector.broadcast %cst_114 : f32 to vector<8x128xf32>
    %200 = arith.mulf %199, %198 : vector<8x128xf32>
    %cst_115 = arith.constant 5.000000e-01 : f32
    %201 = vector.broadcast %cst_115 : f32 to vector<8x128xf32>
    %202 = arith.addf %200, %201 : vector<8x128xf32>
    %203 = vector.extract_strided_slice %194 {offsets = [0, 128], sizes = [8, 128], strides = [1, 1]} : vector<8x512xf32> to vector<8x128xf32>
    %cst_116 = arith.constant 5.000000e-01 : f32
    %204 = vector.broadcast %cst_116 : f32 to vector<8x128xf32>
    %205 = arith.mulf %204, %203 : vector<8x128xf32>
    %206 = math.tanh %205 : vector<8x128xf32>
    %cst_117 = arith.constant 5.000000e-01 : f32
    %207 = vector.broadcast %cst_117 : f32 to vector<8x128xf32>
    %208 = arith.mulf %207, %206 : vector<8x128xf32>
    %cst_118 = arith.constant 5.000000e-01 : f32
    %209 = vector.broadcast %cst_118 : f32 to vector<8x128xf32>
    %210 = arith.addf %208, %209 : vector<8x128xf32>
    %211 = vector.extract_strided_slice %194 {offsets = [0, 256], sizes = [8, 128], strides = [1, 1]} : vector<8x512xf32> to vector<8x128xf32>
    %212 = math.tanh %211 : vector<8x128xf32>
    %213 = vector.extract_strided_slice %194 {offsets = [0, 384], sizes = [8, 128], strides = [1, 1]} : vector<8x512xf32> to vector<8x128xf32>
    %cst_119 = arith.constant 5.000000e-01 : f32
    %214 = vector.broadcast %cst_119 : f32 to vector<8x128xf32>
    %215 = arith.mulf %214, %213 : vector<8x128xf32>
    %216 = math.tanh %215 : vector<8x128xf32>
    %cst_120 = arith.constant 5.000000e-01 : f32
    %217 = vector.broadcast %cst_120 : f32 to vector<8x128xf32>
    %218 = arith.mulf %217, %216 : vector<8x128xf32>
    %cst_121 = arith.constant 5.000000e-01 : f32
    %219 = vector.broadcast %cst_121 : f32 to vector<8x128xf32>
    %220 = arith.addf %218, %219 : vector<8x128xf32>
    %c0_122 = arith.constant 0 : index
    %c0_123 = arith.constant 0 : index
    %221 = vector.load %arg23[%c0_122, %c0_123] : memref<8x128xf32, #tpu.memory_space<vmem>>, vector<8x128xf32>
    %222 = arith.mulf %210, %221 : vector<8x128xf32>
    %223 = arith.mulf %202, %212 : vector<8x128xf32>
    %224 = arith.addf %222, %223 : vector<8x128xf32>
    %225 = math.tanh %224 : vector<8x128xf32>
    %226 = arith.mulf %220, %225 : vector<8x128xf32>
    %c0_124 = arith.constant 0 : index
    %c0_125 = arith.constant 0 : index
    %227 = vector.load %arg23[%c0_124, %c0_125] : memref<8x128xf32, #tpu.memory_space<vmem>>, vector<8x128xf32>
    tpu.vector_store %arg23[%c0_124, %c0_125], %224 {strides = array<i32>} : memref<8x128xf32, #tpu.memory_space<vmem>>, vector<8x128xf32>,
    %c0_126 = arith.constant 0 : index
    %c0_127 = arith.constant 0 : index
    %228 = vector.load %arg22[%c0_126, %c0_127] : memref<8x128xf32, #tpu.memory_space<vmem>>, vector<8x128xf32>
    tpu.vector_store %arg22[%c0_126, %c0_127], %226 {strides = array<i32>} : memref<8x128xf32, #tpu.memory_space<vmem>>, vector<8x128xf32>,
    %229 = arith.index_cast %188 : i32 to index
    %c0_128 = arith.constant 0 : index
    %230 = vector.load %arg20[%229, %c0_128] : memref<64x128xf32, #tpu.memory_space<vmem>>, vector<8x128xf32>
    tpu.vector_store %arg20[%229, %c0_128], %226 {strides = array<i32>} : memref<64x128xf32, #tpu.memory_space<vmem>>, vector<8x128xf32>,
    %c5_i32 = arith.constant 5 : i32
    %c8_i32_129 = arith.constant 8 : i32
    %231 = arith.muli %c5_i32, %c8_i32_129 : i32
    %232 = tpu.assume_multiple %231, 8 : i32
    %233 = arith.index_cast %232 : i32 to index
    %c0_130 = arith.constant 0 : index
    %234 = vector.load %arg21[%233, %c0_130] : memref<64x512xf32, #tpu.memory_space<vmem>>, vector<8x512xf32>
    %c0_131 = arith.constant 0 : index
    %c0_132 = arith.constant 0 : index
    %235 = vector.load %arg22[%c0_131, %c0_132] : memref<8x128xf32, #tpu.memory_space<vmem>>, vector<8x128xf32>
    %c0_133 = arith.constant 0 : index
    %c0_134 = arith.constant 0 : index
    %236 = vector.load %arg4[%c0_133, %c0_134] : memref<128x512xf32, #tpu.memory_space<vmem>>, vector<128x512xf32>
    %cst_135 = arith.constant dense<0.000000e+00> : vector<8x512xf32>
    %237 = tpu.matmul %235, %236, %cst_135 {dimension_numbers = #tpu.dot_dimension_numbers<[1], [0], [0], [1], [0, 0, 1, 1], [], []>} : vector<8x128xf32>, vector<128x512xf32>, vector<8x512xf32> -> vector<8x512xf32>
    %238 = arith.addf %234, %237 : vector<8x512xf32>
    %239 = vector.extract_strided_slice %238 {offsets = [0, 0], sizes = [8, 128], strides = [1, 1]} : vector<8x512xf32> to vector<8x128xf32>
    %cst_136 = arith.constant 5.000000e-01 : f32
    %240 = vector.broadcast %cst_136 : f32 to vector<8x128xf32>
    %241 = arith.mulf %240, %239 : vector<8x128xf32>
    %242 = math.tanh %241 : vector<8x128xf32>
    %cst_137 = arith.constant 5.000000e-01 : f32
    %243 = vector.broadcast %cst_137 : f32 to vector<8x128xf32>
    %244 = arith.mulf %243, %242 : vector<8x128xf32>
    %cst_138 = arith.constant 5.000000e-01 : f32
    %245 = vector.broadcast %cst_138 : f32 to vector<8x128xf32>
    %246 = arith.addf %244, %245 : vector<8x128xf32>
    %247 = vector.extract_strided_slice %238 {offsets = [0, 128], sizes = [8, 128], strides = [1, 1]} : vector<8x512xf32> to vector<8x128xf32>
    %cst_139 = arith.constant 5.000000e-01 : f32
    %248 = vector.broadcast %cst_139 : f32 to vector<8x128xf32>
    %249 = arith.mulf %248, %247 : vector<8x128xf32>
    %250 = math.tanh %249 : vector<8x128xf32>
    %cst_140 = arith.constant 5.000000e-01 : f32
    %251 = vector.broadcast %cst_140 : f32 to vector<8x128xf32>
    %252 = arith.mulf %251, %250 : vector<8x128xf32>
    %cst_141 = arith.constant 5.000000e-01 : f32
    %253 = vector.broadcast %cst_141 : f32 to vector<8x128xf32>
    %254 = arith.addf %252, %253 : vector<8x128xf32>
    %255 = vector.extract_strided_slice %238 {offsets = [0, 256], sizes = [8, 128], strides = [1, 1]} : vector<8x512xf32> to vector<8x128xf32>
    %256 = math.tanh %255 : vector<8x128xf32>
    %257 = vector.extract_strided_slice %238 {offsets = [0, 384], sizes = [8, 128], strides = [1, 1]} : vector<8x512xf32> to vector<8x128xf32>
    %cst_142 = arith.constant 5.000000e-01 : f32
    %258 = vector.broadcast %cst_142 : f32 to vector<8x128xf32>
    %259 = arith.mulf %258, %257 : vector<8x128xf32>
    %260 = math.tanh %259 : vector<8x128xf32>
    %cst_143 = arith.constant 5.000000e-01 : f32
    %261 = vector.broadcast %cst_143 : f32 to vector<8x128xf32>
    %262 = arith.mulf %261, %260 : vector<8x128xf32>
    %cst_144 = arith.constant 5.000000e-01 : f32
    %263 = vector.broadcast %cst_144 : f32 to vector<8x128xf32>
    %264 = arith.addf %262, %263 : vector<8x128xf32>
    %c0_145 = arith.constant 0 : index
    %c0_146 = arith.constant 0 : index
    %265 = vector.load %arg23[%c0_145, %c0_146] : memref<8x128xf32, #tpu.memory_space<vmem>>, vector<8x128xf32>
    %266 = arith.mulf %254, %265 : vector<8x128xf32>
    %267 = arith.mulf %246, %256 : vector<8x128xf32>
    %268 = arith.addf %266, %267 : vector<8x128xf32>
    %269 = math.tanh %268 : vector<8x128xf32>
    %270 = arith.mulf %264, %269 : vector<8x128xf32>
    %c0_147 = arith.constant 0 : index
    %c0_148 = arith.constant 0 : index
    %271 = vector.load %arg23[%c0_147, %c0_148] : memref<8x128xf32, #tpu.memory_space<vmem>>, vector<8x128xf32>
    tpu.vector_store %arg23[%c0_147, %c0_148], %268 {strides = array<i32>} : memref<8x128xf32, #tpu.memory_space<vmem>>, vector<8x128xf32>,
    %c0_149 = arith.constant 0 : index
    %c0_150 = arith.constant 0 : index
    %272 = vector.load %arg22[%c0_149, %c0_150] : memref<8x128xf32, #tpu.memory_space<vmem>>, vector<8x128xf32>
    tpu.vector_store %arg22[%c0_149, %c0_150], %270 {strides = array<i32>} : memref<8x128xf32, #tpu.memory_space<vmem>>, vector<8x128xf32>,
    %273 = arith.index_cast %232 : i32 to index
    %c0_151 = arith.constant 0 : index
    %274 = vector.load %arg20[%273, %c0_151] : memref<64x128xf32, #tpu.memory_space<vmem>>, vector<8x128xf32>
    tpu.vector_store %arg20[%273, %c0_151], %270 {strides = array<i32>} : memref<64x128xf32, #tpu.memory_space<vmem>>, vector<8x128xf32>,
    %c6_i32 = arith.constant 6 : i32
    %c8_i32_152 = arith.constant 8 : i32
    %275 = arith.muli %c6_i32, %c8_i32_152 : i32
    %276 = tpu.assume_multiple %275, 8 : i32
    %277 = arith.index_cast %276 : i32 to index
    %c0_153 = arith.constant 0 : index
    %278 = vector.load %arg21[%277, %c0_153] : memref<64x512xf32, #tpu.memory_space<vmem>>, vector<8x512xf32>
    %c0_154 = arith.constant 0 : index
    %c0_155 = arith.constant 0 : index
    %279 = vector.load %arg22[%c0_154, %c0_155] : memref<8x128xf32, #tpu.memory_space<vmem>>, vector<8x128xf32>
    %c0_156 = arith.constant 0 : index
    %c0_157 = arith.constant 0 : index
    %280 = vector.load %arg4[%c0_156, %c0_157] : memref<128x512xf32, #tpu.memory_space<vmem>>, vector<128x512xf32>
    %cst_158 = arith.constant dense<0.000000e+00> : vector<8x512xf32>
    %281 = tpu.matmul %279, %280, %cst_158 {dimension_numbers = #tpu.dot_dimension_numbers<[1], [0], [0], [1], [0, 0, 1, 1], [], []>} : vector<8x128xf32>, vector<128x512xf32>, vector<8x512xf32> -> vector<8x512xf32>
    %282 = arith.addf %278, %281 : vector<8x512xf32>
    %283 = vector.extract_strided_slice %282 {offsets = [0, 0], sizes = [8, 128], strides = [1, 1]} : vector<8x512xf32> to vector<8x128xf32>
    %cst_159 = arith.constant 5.000000e-01 : f32
    %284 = vector.broadcast %cst_159 : f32 to vector<8x128xf32>
    %285 = arith.mulf %284, %283 : vector<8x128xf32>
    %286 = math.tanh %285 : vector<8x128xf32>
    %cst_160 = arith.constant 5.000000e-01 : f32
    %287 = vector.broadcast %cst_160 : f32 to vector<8x128xf32>
    %288 = arith.mulf %287, %286 : vector<8x128xf32>
    %cst_161 = arith.constant 5.000000e-01 : f32
    %289 = vector.broadcast %cst_161 : f32 to vector<8x128xf32>
    %290 = arith.addf %288, %289 : vector<8x128xf32>
    %291 = vector.extract_strided_slice %282 {offsets = [0, 128], sizes = [8, 128], strides = [1, 1]} : vector<8x512xf32> to vector<8x128xf32>
    %cst_162 = arith.constant 5.000000e-01 : f32
    %292 = vector.broadcast %cst_162 : f32 to vector<8x128xf32>
    %293 = arith.mulf %292, %291 : vector<8x128xf32>
    %294 = math.tanh %293 : vector<8x128xf32>
    %cst_163 = arith.constant 5.000000e-01 : f32
    %295 = vector.broadcast %cst_163 : f32 to vector<8x128xf32>
    %296 = arith.mulf %295, %294 : vector<8x128xf32>
    %cst_164 = arith.constant 5.000000e-01 : f32
    %297 = vector.broadcast %cst_164 : f32 to vector<8x128xf32>
    %298 = arith.addf %296, %297 : vector<8x128xf32>
    %299 = vector.extract_strided_slice %282 {offsets = [0, 256], sizes = [8, 128], strides = [1, 1]} : vector<8x512xf32> to vector<8x128xf32>
    %300 = math.tanh %299 : vector<8x128xf32>
    %301 = vector.extract_strided_slice %282 {offsets = [0, 384], sizes = [8, 128], strides = [1, 1]} : vector<8x512xf32> to vector<8x128xf32>
    %cst_165 = arith.constant 5.000000e-01 : f32
    %302 = vector.broadcast %cst_165 : f32 to vector<8x128xf32>
    %303 = arith.mulf %302, %301 : vector<8x128xf32>
    %304 = math.tanh %303 : vector<8x128xf32>
    %cst_166 = arith.constant 5.000000e-01 : f32
    %305 = vector.broadcast %cst_166 : f32 to vector<8x128xf32>
    %306 = arith.mulf %305, %304 : vector<8x128xf32>
    %cst_167 = arith.constant 5.000000e-01 : f32
    %307 = vector.broadcast %cst_167 : f32 to vector<8x128xf32>
    %308 = arith.addf %306, %307 : vector<8x128xf32>
    %c0_168 = arith.constant 0 : index
    %c0_169 = arith.constant 0 : index
    %309 = vector.load %arg23[%c0_168, %c0_169] : memref<8x128xf32, #tpu.memory_space<vmem>>, vector<8x128xf32>
    %310 = arith.mulf %298, %309 : vector<8x128xf32>
    %311 = arith.mulf %290, %300 : vector<8x128xf32>
    %312 = arith.addf %310, %311 : vector<8x128xf32>
    %313 = math.tanh %312 : vector<8x128xf32>
    %314 = arith.mulf %308, %313 : vector<8x128xf32>
    %c0_170 = arith.constant 0 : index
    %c0_171 = arith.constant 0 : index
    %315 = vector.load %arg23[%c0_170, %c0_171] : memref<8x128xf32, #tpu.memory_space<vmem>>, vector<8x128xf32>
    tpu.vector_store %arg23[%c0_170, %c0_171], %312 {strides = array<i32>} : memref<8x128xf32, #tpu.memory_space<vmem>>, vector<8x128xf32>,
    %c0_172 = arith.constant 0 : index
    %c0_173 = arith.constant 0 : index
    %316 = vector.load %arg22[%c0_172, %c0_173] : memref<8x128xf32, #tpu.memory_space<vmem>>, vector<8x128xf32>
    tpu.vector_store %arg22[%c0_172, %c0_173], %314 {strides = array<i32>} : memref<8x128xf32, #tpu.memory_space<vmem>>, vector<8x128xf32>,
    %317 = arith.index_cast %276 : i32 to index
    %c0_174 = arith.constant 0 : index
    %318 = vector.load %arg20[%317, %c0_174] : memref<64x128xf32, #tpu.memory_space<vmem>>, vector<8x128xf32>
    tpu.vector_store %arg20[%317, %c0_174], %314 {strides = array<i32>} : memref<64x128xf32, #tpu.memory_space<vmem>>, vector<8x128xf32>,
    %c7_i32 = arith.constant 7 : i32
    %c8_i32_175 = arith.constant 8 : i32
    %319 = arith.muli %c7_i32, %c8_i32_175 : i32
    %320 = tpu.assume_multiple %319, 8 : i32
    %321 = arith.index_cast %320 : i32 to index
    %c0_176 = arith.constant 0 : index
    %322 = vector.load %arg21[%321, %c0_176] : memref<64x512xf32, #tpu.memory_space<vmem>>, vector<8x512xf32>
    %c0_177 = arith.constant 0 : index
    %c0_178 = arith.constant 0 : index
    %323 = vector.load %arg22[%c0_177, %c0_178] : memref<8x128xf32, #tpu.memory_space<vmem>>, vector<8x128xf32>
    %c0_179 = arith.constant 0 : index
    %c0_180 = arith.constant 0 : index
    %324 = vector.load %arg4[%c0_179, %c0_180] : memref<128x512xf32, #tpu.memory_space<vmem>>, vector<128x512xf32>
    %cst_181 = arith.constant dense<0.000000e+00> : vector<8x512xf32>
    %325 = tpu.matmul %323, %324, %cst_181 {dimension_numbers = #tpu.dot_dimension_numbers<[1], [0], [0], [1], [0, 0, 1, 1], [], []>} : vector<8x128xf32>, vector<128x512xf32>, vector<8x512xf32> -> vector<8x512xf32>
    %326 = arith.addf %322, %325 : vector<8x512xf32>
    %327 = vector.extract_strided_slice %326 {offsets = [0, 0], sizes = [8, 128], strides = [1, 1]} : vector<8x512xf32> to vector<8x128xf32>
    %cst_182 = arith.constant 5.000000e-01 : f32
    %328 = vector.broadcast %cst_182 : f32 to vector<8x128xf32>
    %329 = arith.mulf %328, %327 : vector<8x128xf32>
    %330 = math.tanh %329 : vector<8x128xf32>
    %cst_183 = arith.constant 5.000000e-01 : f32
    %331 = vector.broadcast %cst_183 : f32 to vector<8x128xf32>
    %332 = arith.mulf %331, %330 : vector<8x128xf32>
    %cst_184 = arith.constant 5.000000e-01 : f32
    %333 = vector.broadcast %cst_184 : f32 to vector<8x128xf32>
    %334 = arith.addf %332, %333 : vector<8x128xf32>
    %335 = vector.extract_strided_slice %326 {offsets = [0, 128], sizes = [8, 128], strides = [1, 1]} : vector<8x512xf32> to vector<8x128xf32>
    %cst_185 = arith.constant 5.000000e-01 : f32
    %336 = vector.broadcast %cst_185 : f32 to vector<8x128xf32>
    %337 = arith.mulf %336, %335 : vector<8x128xf32>
    %338 = math.tanh %337 : vector<8x128xf32>
    %cst_186 = arith.constant 5.000000e-01 : f32
    %339 = vector.broadcast %cst_186 : f32 to vector<8x128xf32>
    %340 = arith.mulf %339, %338 : vector<8x128xf32>
    %cst_187 = arith.constant 5.000000e-01 : f32
    %341 = vector.broadcast %cst_187 : f32 to vector<8x128xf32>
    %342 = arith.addf %340, %341 : vector<8x128xf32>
    %343 = vector.extract_strided_slice %326 {offsets = [0, 256], sizes = [8, 128], strides = [1, 1]} : vector<8x512xf32> to vector<8x128xf32>
    %344 = math.tanh %343 : vector<8x128xf32>
    %345 = vector.extract_strided_slice %326 {offsets = [0, 384], sizes = [8, 128], strides = [1, 1]} : vector<8x512xf32> to vector<8x128xf32>
    %cst_188 = arith.constant 5.000000e-01 : f32
    %346 = vector.broadcast %cst_188 : f32 to vector<8x128xf32>
    %347 = arith.mulf %346, %345 : vector<8x128xf32>
    %348 = math.tanh %347 : vector<8x128xf32>
    %cst_189 = arith.constant 5.000000e-01 : f32
    %349 = vector.broadcast %cst_189 : f32 to vector<8x128xf32>
    %350 = arith.mulf %349, %348 : vector<8x128xf32>
    %cst_190 = arith.constant 5.000000e-01 : f32
    %351 = vector.broadcast %cst_190 : f32 to vector<8x128xf32>
    %352 = arith.addf %350, %351 : vector<8x128xf32>
    %c0_191 = arith.constant 0 : index
    %c0_192 = arith.constant 0 : index
    %353 = vector.load %arg23[%c0_191, %c0_192] : memref<8x128xf32, #tpu.memory_space<vmem>>, vector<8x128xf32>
    %354 = arith.mulf %342, %353 : vector<8x128xf32>
    %355 = arith.mulf %334, %344 : vector<8x128xf32>
    %356 = arith.addf %354, %355 : vector<8x128xf32>
    %357 = math.tanh %356 : vector<8x128xf32>
    %358 = arith.mulf %352, %357 : vector<8x128xf32>
    %c0_193 = arith.constant 0 : index
    %c0_194 = arith.constant 0 : index
    %359 = vector.load %arg23[%c0_193, %c0_194] : memref<8x128xf32, #tpu.memory_space<vmem>>, vector<8x128xf32>
    tpu.vector_store %arg23[%c0_193, %c0_194], %356 {strides = array<i32>} : memref<8x128xf32, #tpu.memory_space<vmem>>, vector<8x128xf32>,
    %c0_195 = arith.constant 0 : index
    %c0_196 = arith.constant 0 : index
    %360 = vector.load %arg22[%c0_195, %c0_196] : memref<8x128xf32, #tpu.memory_space<vmem>>, vector<8x128xf32>
    tpu.vector_store %arg22[%c0_195, %c0_196], %358 {strides = array<i32>} : memref<8x128xf32, #tpu.memory_space<vmem>>, vector<8x128xf32>,
    %361 = arith.index_cast %320 : i32 to index
    %c0_197 = arith.constant 0 : index
    %362 = vector.load %arg20[%361, %c0_197] : memref<64x128xf32, #tpu.memory_space<vmem>>, vector<8x128xf32>
    tpu.vector_store %arg20[%361, %c0_197], %358 {strides = array<i32>} : memref<64x128xf32, #tpu.memory_space<vmem>>, vector<8x128xf32>,
    %c8_i32_198 = arith.constant 8 : i32
    %c0_199 = arith.constant 0 : index
    %c0_200 = arith.constant 0 : index
    %363 = vector.load %arg20[%c0_199, %c0_200] : memref<64x128xf32, #tpu.memory_space<vmem>>, vector<64x128xf32>
    %c0_201 = arith.constant 0 : index
    %c0_202 = arith.constant 0 : index
    %364 = vector.load %arg7[%c0_201, %c0_202] : memref<128x512xbf16, #tpu.memory_space<vmem>>, vector<128x512xbf16>
    %365 = arith.truncf %363 : vector<64x128xf32> to vector<64x128xbf16>
    %cst_203 = arith.constant dense<0.000000e+00> : vector<64x512xf32>
    %366 = tpu.matmul %365, %364, %cst_203 {dimension_numbers = #tpu.dot_dimension_numbers<[1], [0], [0], [1], [0, 0, 1, 1], [], []>} : vector<64x128xbf16>, vector<128x512xbf16>, vector<64x512xf32> -> vector<64x512xf32>
    %c0_204 = arith.constant 0 : index
    %c0_205 = arith.constant 0 : index
    %367 = vector.load %arg8[%c0_204, %c0_205] : memref<1x512xf32, #tpu.memory_space<vmem>>, vector<1x512xf32>
    %368 = vector.broadcast %367 : vector<1x512xf32> to vector<64x512xf32>
    %369 = arith.addf %366, %368 : vector<64x512xf32>
    %c0_206 = arith.constant 0 : index
    %c0_207 = arith.constant 0 : index
    %370 = vector.load %arg21[%c0_206, %c0_207] : memref<64x512xf32, #tpu.memory_space<vmem>>, vector<64x512xf32>
    tpu.vector_store %arg21[%c0_206, %c0_207], %369 {strides = array<i32>} : memref<64x512xf32, #tpu.memory_space<vmem>>, vector<64x512xf32>,
    %c0_208 = arith.constant 0 : index
    %c0_209 = arith.constant 0 : index
    %371 = vector.load %arg10[%c0_208, %c0_209] : memref<8x128xf32, #tpu.memory_space<vmem>>, vector<8x128xf32>
    %c0_210 = arith.constant 0 : index
    %c0_211 = arith.constant 0 : index
    %372 = vector.load %arg22[%c0_210, %c0_211] : memref<8x128xf32, #tpu.memory_space<vmem>>, vector<8x128xf32>
    tpu.vector_store %arg22[%c0_210, %c0_211], %371 {strides = array<i32>} : memref<8x128xf32, #tpu.memory_space<vmem>>, vector<8x128xf32>,
    %c0_212 = arith.constant 0 : index
    %c0_213 = arith.constant 0 : index
    %373 = vector.load %arg11[%c0_212, %c0_213] : memref<8x128xf32, #tpu.memory_space<vmem>>, vector<8x128xf32>
    %c0_214 = arith.constant 0 : index
    %c0_215 = arith.constant 0 : index
    %374 = vector.load %arg23[%c0_214, %c0_215] : memref<8x128xf32, #tpu.memory_space<vmem>>, vector<8x128xf32>
    tpu.vector_store %arg23[%c0_214, %c0_215], %373 {strides = array<i32>} : memref<8x128xf32, #tpu.memory_space<vmem>>, vector<8x128xf32>,
    %c0_i32_216 = arith.constant 0 : i32
    %c8_i32_217 = arith.constant 8 : i32
    %375 = arith.muli %c0_i32_216, %c8_i32_217 : i32
    %376 = tpu.assume_multiple %375, 8 : i32
    %377 = arith.index_cast %376 : i32 to index
    %c0_218 = arith.constant 0 : index
    %378 = vector.load %arg21[%377, %c0_218] : memref<64x512xf32, #tpu.memory_space<vmem>>, vector<8x512xf32>
    %c0_219 = arith.constant 0 : index
    %c0_220 = arith.constant 0 : index
    %379 = vector.load %arg22[%c0_219, %c0_220] : memref<8x128xf32, #tpu.memory_space<vmem>>, vector<8x128xf32>
    %c0_221 = arith.constant 0 : index
    %c0_222 = arith.constant 0 : index
    %380 = vector.load %arg9[%c0_221, %c0_222] : memref<128x512xf32, #tpu.memory_space<vmem>>, vector<128x512xf32>
    %cst_223 = arith.constant dense<0.000000e+00> : vector<8x512xf32>
    %381 = tpu.matmul %379, %380, %cst_223 {dimension_numbers = #tpu.dot_dimension_numbers<[1], [0], [0], [1], [0, 0, 1, 1], [], []>} : vector<8x128xf32>, vector<128x512xf32>, vector<8x512xf32> -> vector<8x512xf32>
    %382 = arith.addf %378, %381 : vector<8x512xf32>
    %383 = vector.extract_strided_slice %382 {offsets = [0, 0], sizes = [8, 128], strides = [1, 1]} : vector<8x512xf32> to vector<8x128xf32>
    %cst_224 = arith.constant 5.000000e-01 : f32
    %384 = vector.broadcast %cst_224 : f32 to vector<8x128xf32>
    %385 = arith.mulf %384, %383 : vector<8x128xf32>
    %386 = math.tanh %385 : vector<8x128xf32>
    %cst_225 = arith.constant 5.000000e-01 : f32
    %387 = vector.broadcast %cst_225 : f32 to vector<8x128xf32>
    %388 = arith.mulf %387, %386 : vector<8x128xf32>
    %cst_226 = arith.constant 5.000000e-01 : f32
    %389 = vector.broadcast %cst_226 : f32 to vector<8x128xf32>
    %390 = arith.addf %388, %389 : vector<8x128xf32>
    %391 = vector.extract_strided_slice %382 {offsets = [0, 128], sizes = [8, 128], strides = [1, 1]} : vector<8x512xf32> to vector<8x128xf32>
    %cst_227 = arith.constant 5.000000e-01 : f32
    %392 = vector.broadcast %cst_227 : f32 to vector<8x128xf32>
    %393 = arith.mulf %392, %391 : vector<8x128xf32>
    %394 = math.tanh %393 : vector<8x128xf32>
    %cst_228 = arith.constant 5.000000e-01 : f32
    %395 = vector.broadcast %cst_228 : f32 to vector<8x128xf32>
    %396 = arith.mulf %395, %394 : vector<8x128xf32>
    %cst_229 = arith.constant 5.000000e-01 : f32
    %397 = vector.broadcast %cst_229 : f32 to vector<8x128xf32>
    %398 = arith.addf %396, %397 : vector<8x128xf32>
    %399 = vector.extract_strided_slice %382 {offsets = [0, 256], sizes = [8, 128], strides = [1, 1]} : vector<8x512xf32> to vector<8x128xf32>
    %400 = math.tanh %399 : vector<8x128xf32>
    %401 = vector.extract_strided_slice %382 {offsets = [0, 384], sizes = [8, 128], strides = [1, 1]} : vector<8x512xf32> to vector<8x128xf32>
    %cst_230 = arith.constant 5.000000e-01 : f32
    %402 = vector.broadcast %cst_230 : f32 to vector<8x128xf32>
    %403 = arith.mulf %402, %401 : vector<8x128xf32>
    %404 = math.tanh %403 : vector<8x128xf32>
    %cst_231 = arith.constant 5.000000e-01 : f32
    %405 = vector.broadcast %cst_231 : f32 to vector<8x128xf32>
    %406 = arith.mulf %405, %404 : vector<8x128xf32>
    %cst_232 = arith.constant 5.000000e-01 : f32
    %407 = vector.broadcast %cst_232 : f32 to vector<8x128xf32>
    %408 = arith.addf %406, %407 : vector<8x128xf32>
    %c0_233 = arith.constant 0 : index
    %c0_234 = arith.constant 0 : index
    %409 = vector.load %arg23[%c0_233, %c0_234] : memref<8x128xf32, #tpu.memory_space<vmem>>, vector<8x128xf32>
    %410 = arith.mulf %398, %409 : vector<8x128xf32>
    %411 = arith.mulf %390, %400 : vector<8x128xf32>
    %412 = arith.addf %410, %411 : vector<8x128xf32>
    %413 = math.tanh %412 : vector<8x128xf32>
    %414 = arith.mulf %408, %413 : vector<8x128xf32>
    %c0_235 = arith.constant 0 : index
    %c0_236 = arith.constant 0 : index
    %415 = vector.load %arg23[%c0_235, %c0_236] : memref<8x128xf32, #tpu.memory_space<vmem>>, vector<8x128xf32>
    tpu.vector_store %arg23[%c0_235, %c0_236], %412 {strides = array<i32>} : memref<8x128xf32, #tpu.memory_space<vmem>>, vector<8x128xf32>,
    %c0_237 = arith.constant 0 : index
    %c0_238 = arith.constant 0 : index
    %416 = vector.load %arg22[%c0_237, %c0_238] : memref<8x128xf32, #tpu.memory_space<vmem>>, vector<8x128xf32>
    tpu.vector_store %arg22[%c0_237, %c0_238], %414 {strides = array<i32>} : memref<8x128xf32, #tpu.memory_space<vmem>>, vector<8x128xf32>,
    %417 = arith.index_cast %376 : i32 to index
    %c0_239 = arith.constant 0 : index
    %418 = vector.load %arg20[%417, %c0_239] : memref<64x128xf32, #tpu.memory_space<vmem>>, vector<8x128xf32>
    tpu.vector_store %arg20[%417, %c0_239], %414 {strides = array<i32>} : memref<64x128xf32, #tpu.memory_space<vmem>>, vector<8x128xf32>,
    %c1_i32_240 = arith.constant 1 : i32
    %c8_i32_241 = arith.constant 8 : i32
    %419 = arith.muli %c1_i32_240, %c8_i32_241 : i32
    %420 = tpu.assume_multiple %419, 8 : i32
    %421 = arith.index_cast %420 : i32 to index
    %c0_242 = arith.constant 0 : index
    %422 = vector.load %arg21[%421, %c0_242] : memref<64x512xf32, #tpu.memory_space<vmem>>, vector<8x512xf32>
    %c0_243 = arith.constant 0 : index
    %c0_244 = arith.constant 0 : index
    %423 = vector.load %arg22[%c0_243, %c0_244] : memref<8x128xf32, #tpu.memory_space<vmem>>, vector<8x128xf32>
    %c0_245 = arith.constant 0 : index
    %c0_246 = arith.constant 0 : index
    %424 = vector.load %arg9[%c0_245, %c0_246] : memref<128x512xf32, #tpu.memory_space<vmem>>, vector<128x512xf32>
    %cst_247 = arith.constant dense<0.000000e+00> : vector<8x512xf32>
    %425 = tpu.matmul %423, %424, %cst_247 {dimension_numbers = #tpu.dot_dimension_numbers<[1], [0], [0], [1], [0, 0, 1, 1], [], []>} : vector<8x128xf32>, vector<128x512xf32>, vector<8x512xf32> -> vector<8x512xf32>
    %426 = arith.addf %422, %425 : vector<8x512xf32>
    %427 = vector.extract_strided_slice %426 {offsets = [0, 0], sizes = [8, 128], strides = [1, 1]} : vector<8x512xf32> to vector<8x128xf32>
    %cst_248 = arith.constant 5.000000e-01 : f32
    %428 = vector.broadcast %cst_248 : f32 to vector<8x128xf32>
    %429 = arith.mulf %428, %427 : vector<8x128xf32>
    %430 = math.tanh %429 : vector<8x128xf32>
    %cst_249 = arith.constant 5.000000e-01 : f32
    %431 = vector.broadcast %cst_249 : f32 to vector<8x128xf32>
    %432 = arith.mulf %431, %430 : vector<8x128xf32>
    %cst_250 = arith.constant 5.000000e-01 : f32
    %433 = vector.broadcast %cst_250 : f32 to vector<8x128xf32>
    %434 = arith.addf %432, %433 : vector<8x128xf32>
    %435 = vector.extract_strided_slice %426 {offsets = [0, 128], sizes = [8, 128], strides = [1, 1]} : vector<8x512xf32> to vector<8x128xf32>
    %cst_251 = arith.constant 5.000000e-01 : f32
    %436 = vector.broadcast %cst_251 : f32 to vector<8x128xf32>
    %437 = arith.mulf %436, %435 : vector<8x128xf32>
    %438 = math.tanh %437 : vector<8x128xf32>
    %cst_252 = arith.constant 5.000000e-01 : f32
    %439 = vector.broadcast %cst_252 : f32 to vector<8x128xf32>
    %440 = arith.mulf %439, %438 : vector<8x128xf32>
    %cst_253 = arith.constant 5.000000e-01 : f32
    %441 = vector.broadcast %cst_253 : f32 to vector<8x128xf32>
    %442 = arith.addf %440, %441 : vector<8x128xf32>
    %443 = vector.extract_strided_slice %426 {offsets = [0, 256], sizes = [8, 128], strides = [1, 1]} : vector<8x512xf32> to vector<8x128xf32>
    %444 = math.tanh %443 : vector<8x128xf32>
    %445 = vector.extract_strided_slice %426 {offsets = [0, 384], sizes = [8, 128], strides = [1, 1]} : vector<8x512xf32> to vector<8x128xf32>
    %cst_254 = arith.constant 5.000000e-01 : f32
    %446 = vector.broadcast %cst_254 : f32 to vector<8x128xf32>
    %447 = arith.mulf %446, %445 : vector<8x128xf32>
    %448 = math.tanh %447 : vector<8x128xf32>
    %cst_255 = arith.constant 5.000000e-01 : f32
    %449 = vector.broadcast %cst_255 : f32 to vector<8x128xf32>
    %450 = arith.mulf %449, %448 : vector<8x128xf32>
    %cst_256 = arith.constant 5.000000e-01 : f32
    %451 = vector.broadcast %cst_256 : f32 to vector<8x128xf32>
    %452 = arith.addf %450, %451 : vector<8x128xf32>
    %c0_257 = arith.constant 0 : index
    %c0_258 = arith.constant 0 : index
    %453 = vector.load %arg23[%c0_257, %c0_258] : memref<8x128xf32, #tpu.memory_space<vmem>>, vector<8x128xf32>
    %454 = arith.mulf %442, %453 : vector<8x128xf32>
    %455 = arith.mulf %434, %444 : vector<8x128xf32>
    %456 = arith.addf %454, %455 : vector<8x128xf32>
    %457 = math.tanh %456 : vector<8x128xf32>
    %458 = arith.mulf %452, %457 : vector<8x128xf32>
    %c0_259 = arith.constant 0 : index
    %c0_260 = arith.constant 0 : index
    %459 = vector.load %arg23[%c0_259, %c0_260] : memref<8x128xf32, #tpu.memory_space<vmem>>, vector<8x128xf32>
    tpu.vector_store %arg23[%c0_259, %c0_260], %456 {strides = array<i32>} : memref<8x128xf32, #tpu.memory_space<vmem>>, vector<8x128xf32>,
    %c0_261 = arith.constant 0 : index
    %c0_262 = arith.constant 0 : index
    %460 = vector.load %arg22[%c0_261, %c0_262] : memref<8x128xf32, #tpu.memory_space<vmem>>, vector<8x128xf32>
    tpu.vector_store %arg22[%c0_261, %c0_262], %458 {strides = array<i32>} : memref<8x128xf32, #tpu.memory_space<vmem>>, vector<8x128xf32>,
    %461 = arith.index_cast %420 : i32 to index
    %c0_263 = arith.constant 0 : index
    %462 = vector.load %arg20[%461, %c0_263] : memref<64x128xf32, #tpu.memory_space<vmem>>, vector<8x128xf32>
    tpu.vector_store %arg20[%461, %c0_263], %458 {strides = array<i32>} : memref<64x128xf32, #tpu.memory_space<vmem>>, vector<8x128xf32>,
    %c2_i32_264 = arith.constant 2 : i32
    %c8_i32_265 = arith.constant 8 : i32
    %463 = arith.muli %c2_i32_264, %c8_i32_265 : i32
    %464 = tpu.assume_multiple %463, 8 : i32
    %465 = arith.index_cast %464 : i32 to index
    %c0_266 = arith.constant 0 : index
    %466 = vector.load %arg21[%465, %c0_266] : memref<64x512xf32, #tpu.memory_space<vmem>>, vector<8x512xf32>
    %c0_267 = arith.constant 0 : index
    %c0_268 = arith.constant 0 : index
    %467 = vector.load %arg22[%c0_267, %c0_268] : memref<8x128xf32, #tpu.memory_space<vmem>>, vector<8x128xf32>
    %c0_269 = arith.constant 0 : index
    %c0_270 = arith.constant 0 : index
    %468 = vector.load %arg9[%c0_269, %c0_270] : memref<128x512xf32, #tpu.memory_space<vmem>>, vector<128x512xf32>
    %cst_271 = arith.constant dense<0.000000e+00> : vector<8x512xf32>
    %469 = tpu.matmul %467, %468, %cst_271 {dimension_numbers = #tpu.dot_dimension_numbers<[1], [0], [0], [1], [0, 0, 1, 1], [], []>} : vector<8x128xf32>, vector<128x512xf32>, vector<8x512xf32> -> vector<8x512xf32>
    %470 = arith.addf %466, %469 : vector<8x512xf32>
    %471 = vector.extract_strided_slice %470 {offsets = [0, 0], sizes = [8, 128], strides = [1, 1]} : vector<8x512xf32> to vector<8x128xf32>
    %cst_272 = arith.constant 5.000000e-01 : f32
    %472 = vector.broadcast %cst_272 : f32 to vector<8x128xf32>
    %473 = arith.mulf %472, %471 : vector<8x128xf32>
    %474 = math.tanh %473 : vector<8x128xf32>
    %cst_273 = arith.constant 5.000000e-01 : f32
    %475 = vector.broadcast %cst_273 : f32 to vector<8x128xf32>
    %476 = arith.mulf %475, %474 : vector<8x128xf32>
    %cst_274 = arith.constant 5.000000e-01 : f32
    %477 = vector.broadcast %cst_274 : f32 to vector<8x128xf32>
    %478 = arith.addf %476, %477 : vector<8x128xf32>
    %479 = vector.extract_strided_slice %470 {offsets = [0, 128], sizes = [8, 128], strides = [1, 1]} : vector<8x512xf32> to vector<8x128xf32>
    %cst_275 = arith.constant 5.000000e-01 : f32
    %480 = vector.broadcast %cst_275 : f32 to vector<8x128xf32>
    %481 = arith.mulf %480, %479 : vector<8x128xf32>
    %482 = math.tanh %481 : vector<8x128xf32>
    %cst_276 = arith.constant 5.000000e-01 : f32
    %483 = vector.broadcast %cst_276 : f32 to vector<8x128xf32>
    %484 = arith.mulf %483, %482 : vector<8x128xf32>
    %cst_277 = arith.constant 5.000000e-01 : f32
    %485 = vector.broadcast %cst_277 : f32 to vector<8x128xf32>
    %486 = arith.addf %484, %485 : vector<8x128xf32>
    %487 = vector.extract_strided_slice %470 {offsets = [0, 256], sizes = [8, 128], strides = [1, 1]} : vector<8x512xf32> to vector<8x128xf32>
    %488 = math.tanh %487 : vector<8x128xf32>
    %489 = vector.extract_strided_slice %470 {offsets = [0, 384], sizes = [8, 128], strides = [1, 1]} : vector<8x512xf32> to vector<8x128xf32>
    %cst_278 = arith.constant 5.000000e-01 : f32
    %490 = vector.broadcast %cst_278 : f32 to vector<8x128xf32>
    %491 = arith.mulf %490, %489 : vector<8x128xf32>
    %492 = math.tanh %491 : vector<8x128xf32>
    %cst_279 = arith.constant 5.000000e-01 : f32
    %493 = vector.broadcast %cst_279 : f32 to vector<8x128xf32>
    %494 = arith.mulf %493, %492 : vector<8x128xf32>
    %cst_280 = arith.constant 5.000000e-01 : f32
    %495 = vector.broadcast %cst_280 : f32 to vector<8x128xf32>
    %496 = arith.addf %494, %495 : vector<8x128xf32>
    %c0_281 = arith.constant 0 : index
    %c0_282 = arith.constant 0 : index
    %497 = vector.load %arg23[%c0_281, %c0_282] : memref<8x128xf32, #tpu.memory_space<vmem>>, vector<8x128xf32>
    %498 = arith.mulf %486, %497 : vector<8x128xf32>
    %499 = arith.mulf %478, %488 : vector<8x128xf32>
    %500 = arith.addf %498, %499 : vector<8x128xf32>
    %501 = math.tanh %500 : vector<8x128xf32>
    %502 = arith.mulf %496, %501 : vector<8x128xf32>
    %c0_283 = arith.constant 0 : index
    %c0_284 = arith.constant 0 : index
    %503 = vector.load %arg23[%c0_283, %c0_284] : memref<8x128xf32, #tpu.memory_space<vmem>>, vector<8x128xf32>
    tpu.vector_store %arg23[%c0_283, %c0_284], %500 {strides = array<i32>} : memref<8x128xf32, #tpu.memory_space<vmem>>, vector<8x128xf32>,
    %c0_285 = arith.constant 0 : index
    %c0_286 = arith.constant 0 : index
    %504 = vector.load %arg22[%c0_285, %c0_286] : memref<8x128xf32, #tpu.memory_space<vmem>>, vector<8x128xf32>
    tpu.vector_store %arg22[%c0_285, %c0_286], %502 {strides = array<i32>} : memref<8x128xf32, #tpu.memory_space<vmem>>, vector<8x128xf32>,
    %505 = arith.index_cast %464 : i32 to index
    %c0_287 = arith.constant 0 : index
    %506 = vector.load %arg20[%505, %c0_287] : memref<64x128xf32, #tpu.memory_space<vmem>>, vector<8x128xf32>
    tpu.vector_store %arg20[%505, %c0_287], %502 {strides = array<i32>} : memref<64x128xf32, #tpu.memory_space<vmem>>, vector<8x128xf32>,
    %c3_i32_288 = arith.constant 3 : i32
    %c8_i32_289 = arith.constant 8 : i32
    %507 = arith.muli %c3_i32_288, %c8_i32_289 : i32
    %508 = tpu.assume_multiple %507, 8 : i32
    %509 = arith.index_cast %508 : i32 to index
    %c0_290 = arith.constant 0 : index
    %510 = vector.load %arg21[%509, %c0_290] : memref<64x512xf32, #tpu.memory_space<vmem>>, vector<8x512xf32>
    %c0_291 = arith.constant 0 : index
    %c0_292 = arith.constant 0 : index
    %511 = vector.load %arg22[%c0_291, %c0_292] : memref<8x128xf32, #tpu.memory_space<vmem>>, vector<8x128xf32>
    %c0_293 = arith.constant 0 : index
    %c0_294 = arith.constant 0 : index
    %512 = vector.load %arg9[%c0_293, %c0_294] : memref<128x512xf32, #tpu.memory_space<vmem>>, vector<128x512xf32>
    %cst_295 = arith.constant dense<0.000000e+00> : vector<8x512xf32>
    %513 = tpu.matmul %511, %512, %cst_295 {dimension_numbers = #tpu.dot_dimension_numbers<[1], [0], [0], [1], [0, 0, 1, 1], [], []>} : vector<8x128xf32>, vector<128x512xf32>, vector<8x512xf32> -> vector<8x512xf32>
    %514 = arith.addf %510, %513 : vector<8x512xf32>
    %515 = vector.extract_strided_slice %514 {offsets = [0, 0], sizes = [8, 128], strides = [1, 1]} : vector<8x512xf32> to vector<8x128xf32>
    %cst_296 = arith.constant 5.000000e-01 : f32
    %516 = vector.broadcast %cst_296 : f32 to vector<8x128xf32>
    %517 = arith.mulf %516, %515 : vector<8x128xf32>
    %518 = math.tanh %517 : vector<8x128xf32>
    %cst_297 = arith.constant 5.000000e-01 : f32
    %519 = vector.broadcast %cst_297 : f32 to vector<8x128xf32>
    %520 = arith.mulf %519, %518 : vector<8x128xf32>
    %cst_298 = arith.constant 5.000000e-01 : f32
    %521 = vector.broadcast %cst_298 : f32 to vector<8x128xf32>
    %522 = arith.addf %520, %521 : vector<8x128xf32>
    %523 = vector.extract_strided_slice %514 {offsets = [0, 128], sizes = [8, 128], strides = [1, 1]} : vector<8x512xf32> to vector<8x128xf32>
    %cst_299 = arith.constant 5.000000e-01 : f32
    %524 = vector.broadcast %cst_299 : f32 to vector<8x128xf32>
    %525 = arith.mulf %524, %523 : vector<8x128xf32>
    %526 = math.tanh %525 : vector<8x128xf32>
    %cst_300 = arith.constant 5.000000e-01 : f32
    %527 = vector.broadcast %cst_300 : f32 to vector<8x128xf32>
    %528 = arith.mulf %527, %526 : vector<8x128xf32>
    %cst_301 = arith.constant 5.000000e-01 : f32
    %529 = vector.broadcast %cst_301 : f32 to vector<8x128xf32>
    %530 = arith.addf %528, %529 : vector<8x128xf32>
    %531 = vector.extract_strided_slice %514 {offsets = [0, 256], sizes = [8, 128], strides = [1, 1]} : vector<8x512xf32> to vector<8x128xf32>
    %532 = math.tanh %531 : vector<8x128xf32>
    %533 = vector.extract_strided_slice %514 {offsets = [0, 384], sizes = [8, 128], strides = [1, 1]} : vector<8x512xf32> to vector<8x128xf32>
    %cst_302 = arith.constant 5.000000e-01 : f32
    %534 = vector.broadcast %cst_302 : f32 to vector<8x128xf32>
    %535 = arith.mulf %534, %533 : vector<8x128xf32>
    %536 = math.tanh %535 : vector<8x128xf32>
    %cst_303 = arith.constant 5.000000e-01 : f32
    %537 = vector.broadcast %cst_303 : f32 to vector<8x128xf32>
    %538 = arith.mulf %537, %536 : vector<8x128xf32>
    %cst_304 = arith.constant 5.000000e-01 : f32
    %539 = vector.broadcast %cst_304 : f32 to vector<8x128xf32>
    %540 = arith.addf %538, %539 : vector<8x128xf32>
    %c0_305 = arith.constant 0 : index
    %c0_306 = arith.constant 0 : index
    %541 = vector.load %arg23[%c0_305, %c0_306] : memref<8x128xf32, #tpu.memory_space<vmem>>, vector<8x128xf32>
    %542 = arith.mulf %530, %541 : vector<8x128xf32>
    %543 = arith.mulf %522, %532 : vector<8x128xf32>
    %544 = arith.addf %542, %543 : vector<8x128xf32>
    %545 = math.tanh %544 : vector<8x128xf32>
    %546 = arith.mulf %540, %545 : vector<8x128xf32>
    %c0_307 = arith.constant 0 : index
    %c0_308 = arith.constant 0 : index
    %547 = vector.load %arg23[%c0_307, %c0_308] : memref<8x128xf32, #tpu.memory_space<vmem>>, vector<8x128xf32>
    tpu.vector_store %arg23[%c0_307, %c0_308], %544 {strides = array<i32>} : memref<8x128xf32, #tpu.memory_space<vmem>>, vector<8x128xf32>,
    %c0_309 = arith.constant 0 : index
    %c0_310 = arith.constant 0 : index
    %548 = vector.load %arg22[%c0_309, %c0_310] : memref<8x128xf32, #tpu.memory_space<vmem>>, vector<8x128xf32>
    tpu.vector_store %arg22[%c0_309, %c0_310], %546 {strides = array<i32>} : memref<8x128xf32, #tpu.memory_space<vmem>>, vector<8x128xf32>,
    %549 = arith.index_cast %508 : i32 to index
    %c0_311 = arith.constant 0 : index
    %550 = vector.load %arg20[%549, %c0_311] : memref<64x128xf32, #tpu.memory_space<vmem>>, vector<8x128xf32>
    tpu.vector_store %arg20[%549, %c0_311], %546 {strides = array<i32>} : memref<64x128xf32, #tpu.memory_space<vmem>>, vector<8x128xf32>,
    %c4_i32_312 = arith.constant 4 : i32
    %c8_i32_313 = arith.constant 8 : i32
    %551 = arith.muli %c4_i32_312, %c8_i32_313 : i32
    %552 = tpu.assume_multiple %551, 8 : i32
    %553 = arith.index_cast %552 : i32 to index
    %c0_314 = arith.constant 0 : index
    %554 = vector.load %arg21[%553, %c0_314] : memref<64x512xf32, #tpu.memory_space<vmem>>, vector<8x512xf32>
    %c0_315 = arith.constant 0 : index
    %c0_316 = arith.constant 0 : index
    %555 = vector.load %arg22[%c0_315, %c0_316] : memref<8x128xf32, #tpu.memory_space<vmem>>, vector<8x128xf32>
    %c0_317 = arith.constant 0 : index
    %c0_318 = arith.constant 0 : index
    %556 = vector.load %arg9[%c0_317, %c0_318] : memref<128x512xf32, #tpu.memory_space<vmem>>, vector<128x512xf32>
    %cst_319 = arith.constant dense<0.000000e+00> : vector<8x512xf32>
    %557 = tpu.matmul %555, %556, %cst_319 {dimension_numbers = #tpu.dot_dimension_numbers<[1], [0], [0], [1], [0, 0, 1, 1], [], []>} : vector<8x128xf32>, vector<128x512xf32>, vector<8x512xf32> -> vector<8x512xf32>
    %558 = arith.addf %554, %557 : vector<8x512xf32>
    %559 = vector.extract_strided_slice %558 {offsets = [0, 0], sizes = [8, 128], strides = [1, 1]} : vector<8x512xf32> to vector<8x128xf32>
    %cst_320 = arith.constant 5.000000e-01 : f32
    %560 = vector.broadcast %cst_320 : f32 to vector<8x128xf32>
    %561 = arith.mulf %560, %559 : vector<8x128xf32>
    %562 = math.tanh %561 : vector<8x128xf32>
    %cst_321 = arith.constant 5.000000e-01 : f32
    %563 = vector.broadcast %cst_321 : f32 to vector<8x128xf32>
    %564 = arith.mulf %563, %562 : vector<8x128xf32>
    %cst_322 = arith.constant 5.000000e-01 : f32
    %565 = vector.broadcast %cst_322 : f32 to vector<8x128xf32>
    %566 = arith.addf %564, %565 : vector<8x128xf32>
    %567 = vector.extract_strided_slice %558 {offsets = [0, 128], sizes = [8, 128], strides = [1, 1]} : vector<8x512xf32> to vector<8x128xf32>
    %cst_323 = arith.constant 5.000000e-01 : f32
    %568 = vector.broadcast %cst_323 : f32 to vector<8x128xf32>
    %569 = arith.mulf %568, %567 : vector<8x128xf32>
    %570 = math.tanh %569 : vector<8x128xf32>
    %cst_324 = arith.constant 5.000000e-01 : f32
    %571 = vector.broadcast %cst_324 : f32 to vector<8x128xf32>
    %572 = arith.mulf %571, %570 : vector<8x128xf32>
    %cst_325 = arith.constant 5.000000e-01 : f32
    %573 = vector.broadcast %cst_325 : f32 to vector<8x128xf32>
    %574 = arith.addf %572, %573 : vector<8x128xf32>
    %575 = vector.extract_strided_slice %558 {offsets = [0, 256], sizes = [8, 128], strides = [1, 1]} : vector<8x512xf32> to vector<8x128xf32>
    %576 = math.tanh %575 : vector<8x128xf32>
    %577 = vector.extract_strided_slice %558 {offsets = [0, 384], sizes = [8, 128], strides = [1, 1]} : vector<8x512xf32> to vector<8x128xf32>
    %cst_326 = arith.constant 5.000000e-01 : f32
    %578 = vector.broadcast %cst_326 : f32 to vector<8x128xf32>
    %579 = arith.mulf %578, %577 : vector<8x128xf32>
    %580 = math.tanh %579 : vector<8x128xf32>
    %cst_327 = arith.constant 5.000000e-01 : f32
    %581 = vector.broadcast %cst_327 : f32 to vector<8x128xf32>
    %582 = arith.mulf %581, %580 : vector<8x128xf32>
    %cst_328 = arith.constant 5.000000e-01 : f32
    %583 = vector.broadcast %cst_328 : f32 to vector<8x128xf32>
    %584 = arith.addf %582, %583 : vector<8x128xf32>
    %c0_329 = arith.constant 0 : index
    %c0_330 = arith.constant 0 : index
    %585 = vector.load %arg23[%c0_329, %c0_330] : memref<8x128xf32, #tpu.memory_space<vmem>>, vector<8x128xf32>
    %586 = arith.mulf %574, %585 : vector<8x128xf32>
    %587 = arith.mulf %566, %576 : vector<8x128xf32>
    %588 = arith.addf %586, %587 : vector<8x128xf32>
    %589 = math.tanh %588 : vector<8x128xf32>
    %590 = arith.mulf %584, %589 : vector<8x128xf32>
    %c0_331 = arith.constant 0 : index
    %c0_332 = arith.constant 0 : index
    %591 = vector.load %arg23[%c0_331, %c0_332] : memref<8x128xf32, #tpu.memory_space<vmem>>, vector<8x128xf32>
    tpu.vector_store %arg23[%c0_331, %c0_332], %588 {strides = array<i32>} : memref<8x128xf32, #tpu.memory_space<vmem>>, vector<8x128xf32>,
    %c0_333 = arith.constant 0 : index
    %c0_334 = arith.constant 0 : index
    %592 = vector.load %arg22[%c0_333, %c0_334] : memref<8x128xf32, #tpu.memory_space<vmem>>, vector<8x128xf32>
    tpu.vector_store %arg22[%c0_333, %c0_334], %590 {strides = array<i32>} : memref<8x128xf32, #tpu.memory_space<vmem>>, vector<8x128xf32>,
    %593 = arith.index_cast %552 : i32 to index
    %c0_335 = arith.constant 0 : index
    %594 = vector.load %arg20[%593, %c0_335] : memref<64x128xf32, #tpu.memory_space<vmem>>, vector<8x128xf32>
    tpu.vector_store %arg20[%593, %c0_335], %590 {strides = array<i32>} : memref<64x128xf32, #tpu.memory_space<vmem>>, vector<8x128xf32>,
    %c5_i32_336 = arith.constant 5 : i32
    %c8_i32_337 = arith.constant 8 : i32
    %595 = arith.muli %c5_i32_336, %c8_i32_337 : i32
    %596 = tpu.assume_multiple %595, 8 : i32
    %597 = arith.index_cast %596 : i32 to index
    %c0_338 = arith.constant 0 : index
    %598 = vector.load %arg21[%597, %c0_338] : memref<64x512xf32, #tpu.memory_space<vmem>>, vector<8x512xf32>
    %c0_339 = arith.constant 0 : index
    %c0_340 = arith.constant 0 : index
    %599 = vector.load %arg22[%c0_339, %c0_340] : memref<8x128xf32, #tpu.memory_space<vmem>>, vector<8x128xf32>
    %c0_341 = arith.constant 0 : index
    %c0_342 = arith.constant 0 : index
    %600 = vector.load %arg9[%c0_341, %c0_342] : memref<128x512xf32, #tpu.memory_space<vmem>>, vector<128x512xf32>
    %cst_343 = arith.constant dense<0.000000e+00> : vector<8x512xf32>
    %601 = tpu.matmul %599, %600, %cst_343 {dimension_numbers = #tpu.dot_dimension_numbers<[1], [0], [0], [1], [0, 0, 1, 1], [], []>} : vector<8x128xf32>, vector<128x512xf32>, vector<8x512xf32> -> vector<8x512xf32>
    %602 = arith.addf %598, %601 : vector<8x512xf32>
    %603 = vector.extract_strided_slice %602 {offsets = [0, 0], sizes = [8, 128], strides = [1, 1]} : vector<8x512xf32> to vector<8x128xf32>
    %cst_344 = arith.constant 5.000000e-01 : f32
    %604 = vector.broadcast %cst_344 : f32 to vector<8x128xf32>
    %605 = arith.mulf %604, %603 : vector<8x128xf32>
    %606 = math.tanh %605 : vector<8x128xf32>
    %cst_345 = arith.constant 5.000000e-01 : f32
    %607 = vector.broadcast %cst_345 : f32 to vector<8x128xf32>
    %608 = arith.mulf %607, %606 : vector<8x128xf32>
    %cst_346 = arith.constant 5.000000e-01 : f32
    %609 = vector.broadcast %cst_346 : f32 to vector<8x128xf32>
    %610 = arith.addf %608, %609 : vector<8x128xf32>
    %611 = vector.extract_strided_slice %602 {offsets = [0, 128], sizes = [8, 128], strides = [1, 1]} : vector<8x512xf32> to vector<8x128xf32>
    %cst_347 = arith.constant 5.000000e-01 : f32
    %612 = vector.broadcast %cst_347 : f32 to vector<8x128xf32>
    %613 = arith.mulf %612, %611 : vector<8x128xf32>
    %614 = math.tanh %613 : vector<8x128xf32>
    %cst_348 = arith.constant 5.000000e-01 : f32
    %615 = vector.broadcast %cst_348 : f32 to vector<8x128xf32>
    %616 = arith.mulf %615, %614 : vector<8x128xf32>
    %cst_349 = arith.constant 5.000000e-01 : f32
    %617 = vector.broadcast %cst_349 : f32 to vector<8x128xf32>
    %618 = arith.addf %616, %617 : vector<8x128xf32>
    %619 = vector.extract_strided_slice %602 {offsets = [0, 256], sizes = [8, 128], strides = [1, 1]} : vector<8x512xf32> to vector<8x128xf32>
    %620 = math.tanh %619 : vector<8x128xf32>
    %621 = vector.extract_strided_slice %602 {offsets = [0, 384], sizes = [8, 128], strides = [1, 1]} : vector<8x512xf32> to vector<8x128xf32>
    %cst_350 = arith.constant 5.000000e-01 : f32
    %622 = vector.broadcast %cst_350 : f32 to vector<8x128xf32>
    %623 = arith.mulf %622, %621 : vector<8x128xf32>
    %624 = math.tanh %623 : vector<8x128xf32>
    %cst_351 = arith.constant 5.000000e-01 : f32
    %625 = vector.broadcast %cst_351 : f32 to vector<8x128xf32>
    %626 = arith.mulf %625, %624 : vector<8x128xf32>
    %cst_352 = arith.constant 5.000000e-01 : f32
    %627 = vector.broadcast %cst_352 : f32 to vector<8x128xf32>
    %628 = arith.addf %626, %627 : vector<8x128xf32>
    %c0_353 = arith.constant 0 : index
    %c0_354 = arith.constant 0 : index
    %629 = vector.load %arg23[%c0_353, %c0_354] : memref<8x128xf32, #tpu.memory_space<vmem>>, vector<8x128xf32>
    %630 = arith.mulf %618, %629 : vector<8x128xf32>
    %631 = arith.mulf %610, %620 : vector<8x128xf32>
    %632 = arith.addf %630, %631 : vector<8x128xf32>
    %633 = math.tanh %632 : vector<8x128xf32>
    %634 = arith.mulf %628, %633 : vector<8x128xf32>
    %c0_355 = arith.constant 0 : index
    %c0_356 = arith.constant 0 : index
    %635 = vector.load %arg23[%c0_355, %c0_356] : memref<8x128xf32, #tpu.memory_space<vmem>>, vector<8x128xf32>
    tpu.vector_store %arg23[%c0_355, %c0_356], %632 {strides = array<i32>} : memref<8x128xf32, #tpu.memory_space<vmem>>, vector<8x128xf32>,
    %c0_357 = arith.constant 0 : index
    %c0_358 = arith.constant 0 : index
    %636 = vector.load %arg22[%c0_357, %c0_358] : memref<8x128xf32, #tpu.memory_space<vmem>>, vector<8x128xf32>
    tpu.vector_store %arg22[%c0_357, %c0_358], %634 {strides = array<i32>} : memref<8x128xf32, #tpu.memory_space<vmem>>, vector<8x128xf32>,
    %637 = arith.index_cast %596 : i32 to index
    %c0_359 = arith.constant 0 : index
    %638 = vector.load %arg20[%637, %c0_359] : memref<64x128xf32, #tpu.memory_space<vmem>>, vector<8x128xf32>
    tpu.vector_store %arg20[%637, %c0_359], %634 {strides = array<i32>} : memref<64x128xf32, #tpu.memory_space<vmem>>, vector<8x128xf32>,
    %c6_i32_360 = arith.constant 6 : i32
    %c8_i32_361 = arith.constant 8 : i32
    %639 = arith.muli %c6_i32_360, %c8_i32_361 : i32
    %640 = tpu.assume_multiple %639, 8 : i32
    %641 = arith.index_cast %640 : i32 to index
    %c0_362 = arith.constant 0 : index
    %642 = vector.load %arg21[%641, %c0_362] : memref<64x512xf32, #tpu.memory_space<vmem>>, vector<8x512xf32>
    %c0_363 = arith.constant 0 : index
    %c0_364 = arith.constant 0 : index
    %643 = vector.load %arg22[%c0_363, %c0_364] : memref<8x128xf32, #tpu.memory_space<vmem>>, vector<8x128xf32>
    %c0_365 = arith.constant 0 : index
    %c0_366 = arith.constant 0 : index
    %644 = vector.load %arg9[%c0_365, %c0_366] : memref<128x512xf32, #tpu.memory_space<vmem>>, vector<128x512xf32>
    %cst_367 = arith.constant dense<0.000000e+00> : vector<8x512xf32>
    %645 = tpu.matmul %643, %644, %cst_367 {dimension_numbers = #tpu.dot_dimension_numbers<[1], [0], [0], [1], [0, 0, 1, 1], [], []>} : vector<8x128xf32>, vector<128x512xf32>, vector<8x512xf32> -> vector<8x512xf32>
    %646 = arith.addf %642, %645 : vector<8x512xf32>
    %647 = vector.extract_strided_slice %646 {offsets = [0, 0], sizes = [8, 128], strides = [1, 1]} : vector<8x512xf32> to vector<8x128xf32>
    %cst_368 = arith.constant 5.000000e-01 : f32
    %648 = vector.broadcast %cst_368 : f32 to vector<8x128xf32>
    %649 = arith.mulf %648, %647 : vector<8x128xf32>
    %650 = math.tanh %649 : vector<8x128xf32>
    %cst_369 = arith.constant 5.000000e-01 : f32
    %651 = vector.broadcast %cst_369 : f32 to vector<8x128xf32>
    %652 = arith.mulf %651, %650 : vector<8x128xf32>
    %cst_370 = arith.constant 5.000000e-01 : f32
    %653 = vector.broadcast %cst_370 : f32 to vector<8x128xf32>
    %654 = arith.addf %652, %653 : vector<8x128xf32>
    %655 = vector.extract_strided_slice %646 {offsets = [0, 128], sizes = [8, 128], strides = [1, 1]} : vector<8x512xf32> to vector<8x128xf32>
    %cst_371 = arith.constant 5.000000e-01 : f32
    %656 = vector.broadcast %cst_371 : f32 to vector<8x128xf32>
    %657 = arith.mulf %656, %655 : vector<8x128xf32>
    %658 = math.tanh %657 : vector<8x128xf32>
    %cst_372 = arith.constant 5.000000e-01 : f32
    %659 = vector.broadcast %cst_372 : f32 to vector<8x128xf32>
    %660 = arith.mulf %659, %658 : vector<8x128xf32>
    %cst_373 = arith.constant 5.000000e-01 : f32
    %661 = vector.broadcast %cst_373 : f32 to vector<8x128xf32>
    %662 = arith.addf %660, %661 : vector<8x128xf32>
    %663 = vector.extract_strided_slice %646 {offsets = [0, 256], sizes = [8, 128], strides = [1, 1]} : vector<8x512xf32> to vector<8x128xf32>
    %664 = math.tanh %663 : vector<8x128xf32>
    %665 = vector.extract_strided_slice %646 {offsets = [0, 384], sizes = [8, 128], strides = [1, 1]} : vector<8x512xf32> to vector<8x128xf32>
    %cst_374 = arith.constant 5.000000e-01 : f32
    %666 = vector.broadcast %cst_374 : f32 to vector<8x128xf32>
    %667 = arith.mulf %666, %665 : vector<8x128xf32>
    %668 = math.tanh %667 : vector<8x128xf32>
    %cst_375 = arith.constant 5.000000e-01 : f32
    %669 = vector.broadcast %cst_375 : f32 to vector<8x128xf32>
    %670 = arith.mulf %669, %668 : vector<8x128xf32>
    %cst_376 = arith.constant 5.000000e-01 : f32
    %671 = vector.broadcast %cst_376 : f32 to vector<8x128xf32>
    %672 = arith.addf %670, %671 : vector<8x128xf32>
    %c0_377 = arith.constant 0 : index
    %c0_378 = arith.constant 0 : index
    %673 = vector.load %arg23[%c0_377, %c0_378] : memref<8x128xf32, #tpu.memory_space<vmem>>, vector<8x128xf32>
    %674 = arith.mulf %662, %673 : vector<8x128xf32>
    %675 = arith.mulf %654, %664 : vector<8x128xf32>
    %676 = arith.addf %674, %675 : vector<8x128xf32>
    %677 = math.tanh %676 : vector<8x128xf32>
    %678 = arith.mulf %672, %677 : vector<8x128xf32>
    %c0_379 = arith.constant 0 : index
    %c0_380 = arith.constant 0 : index
    %679 = vector.load %arg23[%c0_379, %c0_380] : memref<8x128xf32, #tpu.memory_space<vmem>>, vector<8x128xf32>
    tpu.vector_store %arg23[%c0_379, %c0_380], %676 {strides = array<i32>} : memref<8x128xf32, #tpu.memory_space<vmem>>, vector<8x128xf32>,
    %c0_381 = arith.constant 0 : index
    %c0_382 = arith.constant 0 : index
    %680 = vector.load %arg22[%c0_381, %c0_382] : memref<8x128xf32, #tpu.memory_space<vmem>>, vector<8x128xf32>
    tpu.vector_store %arg22[%c0_381, %c0_382], %678 {strides = array<i32>} : memref<8x128xf32, #tpu.memory_space<vmem>>, vector<8x128xf32>,
    %681 = arith.index_cast %640 : i32 to index
    %c0_383 = arith.constant 0 : index
    %682 = vector.load %arg20[%681, %c0_383] : memref<64x128xf32, #tpu.memory_space<vmem>>, vector<8x128xf32>
    tpu.vector_store %arg20[%681, %c0_383], %678 {strides = array<i32>} : memref<64x128xf32, #tpu.memory_space<vmem>>, vector<8x128xf32>,
    %c7_i32_384 = arith.constant 7 : i32
    %c8_i32_385 = arith.constant 8 : i32
    %683 = arith.muli %c7_i32_384, %c8_i32_385 : i32
    %684 = tpu.assume_multiple %683, 8 : i32
    %685 = arith.index_cast %684 : i32 to index
    %c0_386 = arith.constant 0 : index
    %686 = vector.load %arg21[%685, %c0_386] : memref<64x512xf32, #tpu.memory_space<vmem>>, vector<8x512xf32>
    %c0_387 = arith.constant 0 : index
    %c0_388 = arith.constant 0 : index
    %687 = vector.load %arg22[%c0_387, %c0_388] : memref<8x128xf32, #tpu.memory_space<vmem>>, vector<8x128xf32>
    %c0_389 = arith.constant 0 : index
    %c0_390 = arith.constant 0 : index
    %688 = vector.load %arg9[%c0_389, %c0_390] : memref<128x512xf32, #tpu.memory_space<vmem>>, vector<128x512xf32>
    %cst_391 = arith.constant dense<0.000000e+00> : vector<8x512xf32>
    %689 = tpu.matmul %687, %688, %cst_391 {dimension_numbers = #tpu.dot_dimension_numbers<[1], [0], [0], [1], [0, 0, 1, 1], [], []>} : vector<8x128xf32>, vector<128x512xf32>, vector<8x512xf32> -> vector<8x512xf32>
    %690 = arith.addf %686, %689 : vector<8x512xf32>
    %691 = vector.extract_strided_slice %690 {offsets = [0, 0], sizes = [8, 128], strides = [1, 1]} : vector<8x512xf32> to vector<8x128xf32>
    %cst_392 = arith.constant 5.000000e-01 : f32
    %692 = vector.broadcast %cst_392 : f32 to vector<8x128xf32>
    %693 = arith.mulf %692, %691 : vector<8x128xf32>
    %694 = math.tanh %693 : vector<8x128xf32>
    %cst_393 = arith.constant 5.000000e-01 : f32
    %695 = vector.broadcast %cst_393 : f32 to vector<8x128xf32>
    %696 = arith.mulf %695, %694 : vector<8x128xf32>
    %cst_394 = arith.constant 5.000000e-01 : f32
    %697 = vector.broadcast %cst_394 : f32 to vector<8x128xf32>
    %698 = arith.addf %696, %697 : vector<8x128xf32>
    %699 = vector.extract_strided_slice %690 {offsets = [0, 128], sizes = [8, 128], strides = [1, 1]} : vector<8x512xf32> to vector<8x128xf32>
    %cst_395 = arith.constant 5.000000e-01 : f32
    %700 = vector.broadcast %cst_395 : f32 to vector<8x128xf32>
    %701 = arith.mulf %700, %699 : vector<8x128xf32>
    %702 = math.tanh %701 : vector<8x128xf32>
    %cst_396 = arith.constant 5.000000e-01 : f32
    %703 = vector.broadcast %cst_396 : f32 to vector<8x128xf32>
    %704 = arith.mulf %703, %702 : vector<8x128xf32>
    %cst_397 = arith.constant 5.000000e-01 : f32
    %705 = vector.broadcast %cst_397 : f32 to vector<8x128xf32>
    %706 = arith.addf %704, %705 : vector<8x128xf32>
    %707 = vector.extract_strided_slice %690 {offsets = [0, 256], sizes = [8, 128], strides = [1, 1]} : vector<8x512xf32> to vector<8x128xf32>
    %708 = math.tanh %707 : vector<8x128xf32>
    %709 = vector.extract_strided_slice %690 {offsets = [0, 384], sizes = [8, 128], strides = [1, 1]} : vector<8x512xf32> to vector<8x128xf32>
    %cst_398 = arith.constant 5.000000e-01 : f32
    %710 = vector.broadcast %cst_398 : f32 to vector<8x128xf32>
    %711 = arith.mulf %710, %709 : vector<8x128xf32>
    %712 = math.tanh %711 : vector<8x128xf32>
    %cst_399 = arith.constant 5.000000e-01 : f32
    %713 = vector.broadcast %cst_399 : f32 to vector<8x128xf32>
    %714 = arith.mulf %713, %712 : vector<8x128xf32>
    %cst_400 = arith.constant 5.000000e-01 : f32
    %715 = vector.broadcast %cst_400 : f32 to vector<8x128xf32>
    %716 = arith.addf %714, %715 : vector<8x128xf32>
    %c0_401 = arith.constant 0 : index
    %c0_402 = arith.constant 0 : index
    %717 = vector.load %arg23[%c0_401, %c0_402] : memref<8x128xf32, #tpu.memory_space<vmem>>, vector<8x128xf32>
    %718 = arith.mulf %706, %717 : vector<8x128xf32>
    %719 = arith.mulf %698, %708 : vector<8x128xf32>
    %720 = arith.addf %718, %719 : vector<8x128xf32>
    %721 = math.tanh %720 : vector<8x128xf32>
    %722 = arith.mulf %716, %721 : vector<8x128xf32>
    %c0_403 = arith.constant 0 : index
    %c0_404 = arith.constant 0 : index
    %723 = vector.load %arg23[%c0_403, %c0_404] : memref<8x128xf32, #tpu.memory_space<vmem>>, vector<8x128xf32>
    tpu.vector_store %arg23[%c0_403, %c0_404], %720 {strides = array<i32>} : memref<8x128xf32, #tpu.memory_space<vmem>>, vector<8x128xf32>,
    %c0_405 = arith.constant 0 : index
    %c0_406 = arith.constant 0 : index
    %724 = vector.load %arg22[%c0_405, %c0_406] : memref<8x128xf32, #tpu.memory_space<vmem>>, vector<8x128xf32>
    tpu.vector_store %arg22[%c0_405, %c0_406], %722 {strides = array<i32>} : memref<8x128xf32, #tpu.memory_space<vmem>>, vector<8x128xf32>,
    %725 = arith.index_cast %684 : i32 to index
    %c0_407 = arith.constant 0 : index
    %726 = vector.load %arg20[%725, %c0_407] : memref<64x128xf32, #tpu.memory_space<vmem>>, vector<8x128xf32>
    tpu.vector_store %arg20[%725, %c0_407], %722 {strides = array<i32>} : memref<64x128xf32, #tpu.memory_space<vmem>>, vector<8x128xf32>,
    %c8_i32_408 = arith.constant 8 : i32
    %c0_409 = arith.constant 0 : index
    %c0_410 = arith.constant 0 : index
    %727 = vector.load %arg20[%c0_409, %c0_410] : memref<64x128xf32, #tpu.memory_space<vmem>>, vector<64x128xf32>
    %c0_411 = arith.constant 0 : index
    %c0_412 = arith.constant 0 : index
    %728 = vector.load %arg12[%c0_411, %c0_412] : memref<128x512xbf16, #tpu.memory_space<vmem>>, vector<128x512xbf16>
    %729 = arith.truncf %727 : vector<64x128xf32> to vector<64x128xbf16>
    %cst_413 = arith.constant dense<0.000000e+00> : vector<64x512xf32>
    %730 = tpu.matmul %729, %728, %cst_413 {dimension_numbers = #tpu.dot_dimension_numbers<[1], [0], [0], [1], [0, 0, 1, 1], [], []>} : vector<64x128xbf16>, vector<128x512xbf16>, vector<64x512xf32> -> vector<64x512xf32>
    %c0_414 = arith.constant 0 : index
    %c0_415 = arith.constant 0 : index
    %731 = vector.load %arg13[%c0_414, %c0_415] : memref<1x512xf32, #tpu.memory_space<vmem>>, vector<1x512xf32>
    %732 = vector.broadcast %731 : vector<1x512xf32> to vector<64x512xf32>
    %733 = arith.addf %730, %732 : vector<64x512xf32>
    %c0_416 = arith.constant 0 : index
    %c0_417 = arith.constant 0 : index
    %734 = vector.load %arg21[%c0_416, %c0_417] : memref<64x512xf32, #tpu.memory_space<vmem>>, vector<64x512xf32>
    tpu.vector_store %arg21[%c0_416, %c0_417], %733 {strides = array<i32>} : memref<64x512xf32, #tpu.memory_space<vmem>>, vector<64x512xf32>,
    %c0_418 = arith.constant 0 : index
    %c0_419 = arith.constant 0 : index
    %735 = vector.load %arg15[%c0_418, %c0_419] : memref<8x128xf32, #tpu.memory_space<vmem>>, vector<8x128xf32>
    %c0_420 = arith.constant 0 : index
    %c0_421 = arith.constant 0 : index
    %736 = vector.load %arg22[%c0_420, %c0_421] : memref<8x128xf32, #tpu.memory_space<vmem>>, vector<8x128xf32>
    tpu.vector_store %arg22[%c0_420, %c0_421], %735 {strides = array<i32>} : memref<8x128xf32, #tpu.memory_space<vmem>>, vector<8x128xf32>,
    %c0_422 = arith.constant 0 : index
    %c0_423 = arith.constant 0 : index
    %737 = vector.load %arg16[%c0_422, %c0_423] : memref<8x128xf32, #tpu.memory_space<vmem>>, vector<8x128xf32>
    %c0_424 = arith.constant 0 : index
    %c0_425 = arith.constant 0 : index
    %738 = vector.load %arg23[%c0_424, %c0_425] : memref<8x128xf32, #tpu.memory_space<vmem>>, vector<8x128xf32>
    tpu.vector_store %arg23[%c0_424, %c0_425], %737 {strides = array<i32>} : memref<8x128xf32, #tpu.memory_space<vmem>>, vector<8x128xf32>,
    %c0_i32_426 = arith.constant 0 : i32
    %c8_i32_427 = arith.constant 8 : i32
    %739 = arith.muli %c0_i32_426, %c8_i32_427 : i32
    %740 = tpu.assume_multiple %739, 8 : i32
    %741 = arith.index_cast %740 : i32 to index
    %c0_428 = arith.constant 0 : index
    %742 = vector.load %arg21[%741, %c0_428] : memref<64x512xf32, #tpu.memory_space<vmem>>, vector<8x512xf32>
    %c0_429 = arith.constant 0 : index
    %c0_430 = arith.constant 0 : index
    %743 = vector.load %arg22[%c0_429, %c0_430] : memref<8x128xf32, #tpu.memory_space<vmem>>, vector<8x128xf32>
    %c0_431 = arith.constant 0 : index
    %c0_432 = arith.constant 0 : index
    %744 = vector.load %arg14[%c0_431, %c0_432] : memref<128x512xf32, #tpu.memory_space<vmem>>, vector<128x512xf32>
    %cst_433 = arith.constant dense<0.000000e+00> : vector<8x512xf32>
    %745 = tpu.matmul %743, %744, %cst_433 {dimension_numbers = #tpu.dot_dimension_numbers<[1], [0], [0], [1], [0, 0, 1, 1], [], []>} : vector<8x128xf32>, vector<128x512xf32>, vector<8x512xf32> -> vector<8x512xf32>
    %746 = arith.addf %742, %745 : vector<8x512xf32>
    %747 = vector.extract_strided_slice %746 {offsets = [0, 0], sizes = [8, 128], strides = [1, 1]} : vector<8x512xf32> to vector<8x128xf32>
    %cst_434 = arith.constant 5.000000e-01 : f32
    %748 = vector.broadcast %cst_434 : f32 to vector<8x128xf32>
    %749 = arith.mulf %748, %747 : vector<8x128xf32>
    %750 = math.tanh %749 : vector<8x128xf32>
    %cst_435 = arith.constant 5.000000e-01 : f32
    %751 = vector.broadcast %cst_435 : f32 to vector<8x128xf32>
    %752 = arith.mulf %751, %750 : vector<8x128xf32>
    %cst_436 = arith.constant 5.000000e-01 : f32
    %753 = vector.broadcast %cst_436 : f32 to vector<8x128xf32>
    %754 = arith.addf %752, %753 : vector<8x128xf32>
    %755 = vector.extract_strided_slice %746 {offsets = [0, 128], sizes = [8, 128], strides = [1, 1]} : vector<8x512xf32> to vector<8x128xf32>
    %cst_437 = arith.constant 5.000000e-01 : f32
    %756 = vector.broadcast %cst_437 : f32 to vector<8x128xf32>
    %757 = arith.mulf %756, %755 : vector<8x128xf32>
    %758 = math.tanh %757 : vector<8x128xf32>
    %cst_438 = arith.constant 5.000000e-01 : f32
    %759 = vector.broadcast %cst_438 : f32 to vector<8x128xf32>
    %760 = arith.mulf %759, %758 : vector<8x128xf32>
    %cst_439 = arith.constant 5.000000e-01 : f32
    %761 = vector.broadcast %cst_439 : f32 to vector<8x128xf32>
    %762 = arith.addf %760, %761 : vector<8x128xf32>
    %763 = vector.extract_strided_slice %746 {offsets = [0, 256], sizes = [8, 128], strides = [1, 1]} : vector<8x512xf32> to vector<8x128xf32>
    %764 = math.tanh %763 : vector<8x128xf32>
    %765 = vector.extract_strided_slice %746 {offsets = [0, 384], sizes = [8, 128], strides = [1, 1]} : vector<8x512xf32> to vector<8x128xf32>
    %cst_440 = arith.constant 5.000000e-01 : f32
    %766 = vector.broadcast %cst_440 : f32 to vector<8x128xf32>
    %767 = arith.mulf %766, %765 : vector<8x128xf32>
    %768 = math.tanh %767 : vector<8x128xf32>
    %cst_441 = arith.constant 5.000000e-01 : f32
    %769 = vector.broadcast %cst_441 : f32 to vector<8x128xf32>
    %770 = arith.mulf %769, %768 : vector<8x128xf32>
    %cst_442 = arith.constant 5.000000e-01 : f32
    %771 = vector.broadcast %cst_442 : f32 to vector<8x128xf32>
    %772 = arith.addf %770, %771 : vector<8x128xf32>
    %c0_443 = arith.constant 0 : index
    %c0_444 = arith.constant 0 : index
    %773 = vector.load %arg23[%c0_443, %c0_444] : memref<8x128xf32, #tpu.memory_space<vmem>>, vector<8x128xf32>
    %774 = arith.mulf %762, %773 : vector<8x128xf32>
    %775 = arith.mulf %754, %764 : vector<8x128xf32>
    %776 = arith.addf %774, %775 : vector<8x128xf32>
    %777 = math.tanh %776 : vector<8x128xf32>
    %778 = arith.mulf %772, %777 : vector<8x128xf32>
    %c0_445 = arith.constant 0 : index
    %c0_446 = arith.constant 0 : index
    %779 = vector.load %arg23[%c0_445, %c0_446] : memref<8x128xf32, #tpu.memory_space<vmem>>, vector<8x128xf32>
    tpu.vector_store %arg23[%c0_445, %c0_446], %776 {strides = array<i32>} : memref<8x128xf32, #tpu.memory_space<vmem>>, vector<8x128xf32>,
    %c0_447 = arith.constant 0 : index
    %c0_448 = arith.constant 0 : index
    %780 = vector.load %arg22[%c0_447, %c0_448] : memref<8x128xf32, #tpu.memory_space<vmem>>, vector<8x128xf32>
    tpu.vector_store %arg22[%c0_447, %c0_448], %778 {strides = array<i32>} : memref<8x128xf32, #tpu.memory_space<vmem>>, vector<8x128xf32>,
    %781 = arith.index_cast %740 : i32 to index
    %c0_449 = arith.constant 0 : index
    %782 = vector.load %arg20[%781, %c0_449] : memref<64x128xf32, #tpu.memory_space<vmem>>, vector<8x128xf32>
    tpu.vector_store %arg20[%781, %c0_449], %778 {strides = array<i32>} : memref<64x128xf32, #tpu.memory_space<vmem>>, vector<8x128xf32>,
    %c1_i32_450 = arith.constant 1 : i32
    %c8_i32_451 = arith.constant 8 : i32
    %783 = arith.muli %c1_i32_450, %c8_i32_451 : i32
    %784 = tpu.assume_multiple %783, 8 : i32
    %785 = arith.index_cast %784 : i32 to index
    %c0_452 = arith.constant 0 : index
    %786 = vector.load %arg21[%785, %c0_452] : memref<64x512xf32, #tpu.memory_space<vmem>>, vector<8x512xf32>
    %c0_453 = arith.constant 0 : index
    %c0_454 = arith.constant 0 : index
    %787 = vector.load %arg22[%c0_453, %c0_454] : memref<8x128xf32, #tpu.memory_space<vmem>>, vector<8x128xf32>
    %c0_455 = arith.constant 0 : index
    %c0_456 = arith.constant 0 : index
    %788 = vector.load %arg14[%c0_455, %c0_456] : memref<128x512xf32, #tpu.memory_space<vmem>>, vector<128x512xf32>
    %cst_457 = arith.constant dense<0.000000e+00> : vector<8x512xf32>
    %789 = tpu.matmul %787, %788, %cst_457 {dimension_numbers = #tpu.dot_dimension_numbers<[1], [0], [0], [1], [0, 0, 1, 1], [], []>} : vector<8x128xf32>, vector<128x512xf32>, vector<8x512xf32> -> vector<8x512xf32>
    %790 = arith.addf %786, %789 : vector<8x512xf32>
    %791 = vector.extract_strided_slice %790 {offsets = [0, 0], sizes = [8, 128], strides = [1, 1]} : vector<8x512xf32> to vector<8x128xf32>
    %cst_458 = arith.constant 5.000000e-01 : f32
    %792 = vector.broadcast %cst_458 : f32 to vector<8x128xf32>
    %793 = arith.mulf %792, %791 : vector<8x128xf32>
    %794 = math.tanh %793 : vector<8x128xf32>
    %cst_459 = arith.constant 5.000000e-01 : f32
    %795 = vector.broadcast %cst_459 : f32 to vector<8x128xf32>
    %796 = arith.mulf %795, %794 : vector<8x128xf32>
    %cst_460 = arith.constant 5.000000e-01 : f32
    %797 = vector.broadcast %cst_460 : f32 to vector<8x128xf32>
    %798 = arith.addf %796, %797 : vector<8x128xf32>
    %799 = vector.extract_strided_slice %790 {offsets = [0, 128], sizes = [8, 128], strides = [1, 1]} : vector<8x512xf32> to vector<8x128xf32>
    %cst_461 = arith.constant 5.000000e-01 : f32
    %800 = vector.broadcast %cst_461 : f32 to vector<8x128xf32>
    %801 = arith.mulf %800, %799 : vector<8x128xf32>
    %802 = math.tanh %801 : vector<8x128xf32>
    %cst_462 = arith.constant 5.000000e-01 : f32
    %803 = vector.broadcast %cst_462 : f32 to vector<8x128xf32>
    %804 = arith.mulf %803, %802 : vector<8x128xf32>
    %cst_463 = arith.constant 5.000000e-01 : f32
    %805 = vector.broadcast %cst_463 : f32 to vector<8x128xf32>
    %806 = arith.addf %804, %805 : vector<8x128xf32>
    %807 = vector.extract_strided_slice %790 {offsets = [0, 256], sizes = [8, 128], strides = [1, 1]} : vector<8x512xf32> to vector<8x128xf32>
    %808 = math.tanh %807 : vector<8x128xf32>
    %809 = vector.extract_strided_slice %790 {offsets = [0, 384], sizes = [8, 128], strides = [1, 1]} : vector<8x512xf32> to vector<8x128xf32>
    %cst_464 = arith.constant 5.000000e-01 : f32
    %810 = vector.broadcast %cst_464 : f32 to vector<8x128xf32>
    %811 = arith.mulf %810, %809 : vector<8x128xf32>
    %812 = math.tanh %811 : vector<8x128xf32>
    %cst_465 = arith.constant 5.000000e-01 : f32
    %813 = vector.broadcast %cst_465 : f32 to vector<8x128xf32>
    %814 = arith.mulf %813, %812 : vector<8x128xf32>
    %cst_466 = arith.constant 5.000000e-01 : f32
    %815 = vector.broadcast %cst_466 : f32 to vector<8x128xf32>
    %816 = arith.addf %814, %815 : vector<8x128xf32>
    %c0_467 = arith.constant 0 : index
    %c0_468 = arith.constant 0 : index
    %817 = vector.load %arg23[%c0_467, %c0_468] : memref<8x128xf32, #tpu.memory_space<vmem>>, vector<8x128xf32>
    %818 = arith.mulf %806, %817 : vector<8x128xf32>
    %819 = arith.mulf %798, %808 : vector<8x128xf32>
    %820 = arith.addf %818, %819 : vector<8x128xf32>
    %821 = math.tanh %820 : vector<8x128xf32>
    %822 = arith.mulf %816, %821 : vector<8x128xf32>
    %c0_469 = arith.constant 0 : index
    %c0_470 = arith.constant 0 : index
    %823 = vector.load %arg23[%c0_469, %c0_470] : memref<8x128xf32, #tpu.memory_space<vmem>>, vector<8x128xf32>
    tpu.vector_store %arg23[%c0_469, %c0_470], %820 {strides = array<i32>} : memref<8x128xf32, #tpu.memory_space<vmem>>, vector<8x128xf32>,
    %c0_471 = arith.constant 0 : index
    %c0_472 = arith.constant 0 : index
    %824 = vector.load %arg22[%c0_471, %c0_472] : memref<8x128xf32, #tpu.memory_space<vmem>>, vector<8x128xf32>
    tpu.vector_store %arg22[%c0_471, %c0_472], %822 {strides = array<i32>} : memref<8x128xf32, #tpu.memory_space<vmem>>, vector<8x128xf32>,
    %825 = arith.index_cast %784 : i32 to index
    %c0_473 = arith.constant 0 : index
    %826 = vector.load %arg20[%825, %c0_473] : memref<64x128xf32, #tpu.memory_space<vmem>>, vector<8x128xf32>
    tpu.vector_store %arg20[%825, %c0_473], %822 {strides = array<i32>} : memref<64x128xf32, #tpu.memory_space<vmem>>, vector<8x128xf32>,
    %c2_i32_474 = arith.constant 2 : i32
    %c8_i32_475 = arith.constant 8 : i32
    %827 = arith.muli %c2_i32_474, %c8_i32_475 : i32
    %828 = tpu.assume_multiple %827, 8 : i32
    %829 = arith.index_cast %828 : i32 to index
    %c0_476 = arith.constant 0 : index
    %830 = vector.load %arg21[%829, %c0_476] : memref<64x512xf32, #tpu.memory_space<vmem>>, vector<8x512xf32>
    %c0_477 = arith.constant 0 : index
    %c0_478 = arith.constant 0 : index
    %831 = vector.load %arg22[%c0_477, %c0_478] : memref<8x128xf32, #tpu.memory_space<vmem>>, vector<8x128xf32>
    %c0_479 = arith.constant 0 : index
    %c0_480 = arith.constant 0 : index
    %832 = vector.load %arg14[%c0_479, %c0_480] : memref<128x512xf32, #tpu.memory_space<vmem>>, vector<128x512xf32>
    %cst_481 = arith.constant dense<0.000000e+00> : vector<8x512xf32>
    %833 = tpu.matmul %831, %832, %cst_481 {dimension_numbers = #tpu.dot_dimension_numbers<[1], [0], [0], [1], [0, 0, 1, 1], [], []>} : vector<8x128xf32>, vector<128x512xf32>, vector<8x512xf32> -> vector<8x512xf32>
    %834 = arith.addf %830, %833 : vector<8x512xf32>
    %835 = vector.extract_strided_slice %834 {offsets = [0, 0], sizes = [8, 128], strides = [1, 1]} : vector<8x512xf32> to vector<8x128xf32>
    %cst_482 = arith.constant 5.000000e-01 : f32
    %836 = vector.broadcast %cst_482 : f32 to vector<8x128xf32>
    %837 = arith.mulf %836, %835 : vector<8x128xf32>
    %838 = math.tanh %837 : vector<8x128xf32>
    %cst_483 = arith.constant 5.000000e-01 : f32
    %839 = vector.broadcast %cst_483 : f32 to vector<8x128xf32>
    %840 = arith.mulf %839, %838 : vector<8x128xf32>
    %cst_484 = arith.constant 5.000000e-01 : f32
    %841 = vector.broadcast %cst_484 : f32 to vector<8x128xf32>
    %842 = arith.addf %840, %841 : vector<8x128xf32>
    %843 = vector.extract_strided_slice %834 {offsets = [0, 128], sizes = [8, 128], strides = [1, 1]} : vector<8x512xf32> to vector<8x128xf32>
    %cst_485 = arith.constant 5.000000e-01 : f32
    %844 = vector.broadcast %cst_485 : f32 to vector<8x128xf32>
    %845 = arith.mulf %844, %843 : vector<8x128xf32>
    %846 = math.tanh %845 : vector<8x128xf32>
    %cst_486 = arith.constant 5.000000e-01 : f32
    %847 = vector.broadcast %cst_486 : f32 to vector<8x128xf32>
    %848 = arith.mulf %847, %846 : vector<8x128xf32>
    %cst_487 = arith.constant 5.000000e-01 : f32
    %849 = vector.broadcast %cst_487 : f32 to vector<8x128xf32>
    %850 = arith.addf %848, %849 : vector<8x128xf32>
    %851 = vector.extract_strided_slice %834 {offsets = [0, 256], sizes = [8, 128], strides = [1, 1]} : vector<8x512xf32> to vector<8x128xf32>
    %852 = math.tanh %851 : vector<8x128xf32>
    %853 = vector.extract_strided_slice %834 {offsets = [0, 384], sizes = [8, 128], strides = [1, 1]} : vector<8x512xf32> to vector<8x128xf32>
    %cst_488 = arith.constant 5.000000e-01 : f32
    %854 = vector.broadcast %cst_488 : f32 to vector<8x128xf32>
    %855 = arith.mulf %854, %853 : vector<8x128xf32>
    %856 = math.tanh %855 : vector<8x128xf32>
    %cst_489 = arith.constant 5.000000e-01 : f32
    %857 = vector.broadcast %cst_489 : f32 to vector<8x128xf32>
    %858 = arith.mulf %857, %856 : vector<8x128xf32>
    %cst_490 = arith.constant 5.000000e-01 : f32
    %859 = vector.broadcast %cst_490 : f32 to vector<8x128xf32>
    %860 = arith.addf %858, %859 : vector<8x128xf32>
    %c0_491 = arith.constant 0 : index
    %c0_492 = arith.constant 0 : index
    %861 = vector.load %arg23[%c0_491, %c0_492] : memref<8x128xf32, #tpu.memory_space<vmem>>, vector<8x128xf32>
    %862 = arith.mulf %850, %861 : vector<8x128xf32>
    %863 = arith.mulf %842, %852 : vector<8x128xf32>
    %864 = arith.addf %862, %863 : vector<8x128xf32>
    %865 = math.tanh %864 : vector<8x128xf32>
    %866 = arith.mulf %860, %865 : vector<8x128xf32>
    %c0_493 = arith.constant 0 : index
    %c0_494 = arith.constant 0 : index
    %867 = vector.load %arg23[%c0_493, %c0_494] : memref<8x128xf32, #tpu.memory_space<vmem>>, vector<8x128xf32>
    tpu.vector_store %arg23[%c0_493, %c0_494], %864 {strides = array<i32>} : memref<8x128xf32, #tpu.memory_space<vmem>>, vector<8x128xf32>,
    %c0_495 = arith.constant 0 : index
    %c0_496 = arith.constant 0 : index
    %868 = vector.load %arg22[%c0_495, %c0_496] : memref<8x128xf32, #tpu.memory_space<vmem>>, vector<8x128xf32>
    tpu.vector_store %arg22[%c0_495, %c0_496], %866 {strides = array<i32>} : memref<8x128xf32, #tpu.memory_space<vmem>>, vector<8x128xf32>,
    %869 = arith.index_cast %828 : i32 to index
    %c0_497 = arith.constant 0 : index
    %870 = vector.load %arg20[%869, %c0_497] : memref<64x128xf32, #tpu.memory_space<vmem>>, vector<8x128xf32>
    tpu.vector_store %arg20[%869, %c0_497], %866 {strides = array<i32>} : memref<64x128xf32, #tpu.memory_space<vmem>>, vector<8x128xf32>,
    %c3_i32_498 = arith.constant 3 : i32
    %c8_i32_499 = arith.constant 8 : i32
    %871 = arith.muli %c3_i32_498, %c8_i32_499 : i32
    %872 = tpu.assume_multiple %871, 8 : i32
    %873 = arith.index_cast %872 : i32 to index
    %c0_500 = arith.constant 0 : index
    %874 = vector.load %arg21[%873, %c0_500] : memref<64x512xf32, #tpu.memory_space<vmem>>, vector<8x512xf32>
    %c0_501 = arith.constant 0 : index
    %c0_502 = arith.constant 0 : index
    %875 = vector.load %arg22[%c0_501, %c0_502] : memref<8x128xf32, #tpu.memory_space<vmem>>, vector<8x128xf32>
    %c0_503 = arith.constant 0 : index
    %c0_504 = arith.constant 0 : index
    %876 = vector.load %arg14[%c0_503, %c0_504] : memref<128x512xf32, #tpu.memory_space<vmem>>, vector<128x512xf32>
    %cst_505 = arith.constant dense<0.000000e+00> : vector<8x512xf32>
    %877 = tpu.matmul %875, %876, %cst_505 {dimension_numbers = #tpu.dot_dimension_numbers<[1], [0], [0], [1], [0, 0, 1, 1], [], []>} : vector<8x128xf32>, vector<128x512xf32>, vector<8x512xf32> -> vector<8x512xf32>
    %878 = arith.addf %874, %877 : vector<8x512xf32>
    %879 = vector.extract_strided_slice %878 {offsets = [0, 0], sizes = [8, 128], strides = [1, 1]} : vector<8x512xf32> to vector<8x128xf32>
    %cst_506 = arith.constant 5.000000e-01 : f32
    %880 = vector.broadcast %cst_506 : f32 to vector<8x128xf32>
    %881 = arith.mulf %880, %879 : vector<8x128xf32>
    %882 = math.tanh %881 : vector<8x128xf32>
    %cst_507 = arith.constant 5.000000e-01 : f32
    %883 = vector.broadcast %cst_507 : f32 to vector<8x128xf32>
    %884 = arith.mulf %883, %882 : vector<8x128xf32>
    %cst_508 = arith.constant 5.000000e-01 : f32
    %885 = vector.broadcast %cst_508 : f32 to vector<8x128xf32>
    %886 = arith.addf %884, %885 : vector<8x128xf32>
    %887 = vector.extract_strided_slice %878 {offsets = [0, 128], sizes = [8, 128], strides = [1, 1]} : vector<8x512xf32> to vector<8x128xf32>
    %cst_509 = arith.constant 5.000000e-01 : f32
    %888 = vector.broadcast %cst_509 : f32 to vector<8x128xf32>
    %889 = arith.mulf %888, %887 : vector<8x128xf32>
    %890 = math.tanh %889 : vector<8x128xf32>
    %cst_510 = arith.constant 5.000000e-01 : f32
    %891 = vector.broadcast %cst_510 : f32 to vector<8x128xf32>
    %892 = arith.mulf %891, %890 : vector<8x128xf32>
    %cst_511 = arith.constant 5.000000e-01 : f32
    %893 = vector.broadcast %cst_511 : f32 to vector<8x128xf32>
    %894 = arith.addf %892, %893 : vector<8x128xf32>
    %895 = vector.extract_strided_slice %878 {offsets = [0, 256], sizes = [8, 128], strides = [1, 1]} : vector<8x512xf32> to vector<8x128xf32>
    %896 = math.tanh %895 : vector<8x128xf32>
    %897 = vector.extract_strided_slice %878 {offsets = [0, 384], sizes = [8, 128], strides = [1, 1]} : vector<8x512xf32> to vector<8x128xf32>
    %cst_512 = arith.constant 5.000000e-01 : f32
    %898 = vector.broadcast %cst_512 : f32 to vector<8x128xf32>
    %899 = arith.mulf %898, %897 : vector<8x128xf32>
    %900 = math.tanh %899 : vector<8x128xf32>
    %cst_513 = arith.constant 5.000000e-01 : f32
    %901 = vector.broadcast %cst_513 : f32 to vector<8x128xf32>
    %902 = arith.mulf %901, %900 : vector<8x128xf32>
    %cst_514 = arith.constant 5.000000e-01 : f32
    %903 = vector.broadcast %cst_514 : f32 to vector<8x128xf32>
    %904 = arith.addf %902, %903 : vector<8x128xf32>
    %c0_515 = arith.constant 0 : index
    %c0_516 = arith.constant 0 : index
    %905 = vector.load %arg23[%c0_515, %c0_516] : memref<8x128xf32, #tpu.memory_space<vmem>>, vector<8x128xf32>
    %906 = arith.mulf %894, %905 : vector<8x128xf32>
    %907 = arith.mulf %886, %896 : vector<8x128xf32>
    %908 = arith.addf %906, %907 : vector<8x128xf32>
    %909 = math.tanh %908 : vector<8x128xf32>
    %910 = arith.mulf %904, %909 : vector<8x128xf32>
    %c0_517 = arith.constant 0 : index
    %c0_518 = arith.constant 0 : index
    %911 = vector.load %arg23[%c0_517, %c0_518] : memref<8x128xf32, #tpu.memory_space<vmem>>, vector<8x128xf32>
    tpu.vector_store %arg23[%c0_517, %c0_518], %908 {strides = array<i32>} : memref<8x128xf32, #tpu.memory_space<vmem>>, vector<8x128xf32>,
    %c0_519 = arith.constant 0 : index
    %c0_520 = arith.constant 0 : index
    %912 = vector.load %arg22[%c0_519, %c0_520] : memref<8x128xf32, #tpu.memory_space<vmem>>, vector<8x128xf32>
    tpu.vector_store %arg22[%c0_519, %c0_520], %910 {strides = array<i32>} : memref<8x128xf32, #tpu.memory_space<vmem>>, vector<8x128xf32>,
    %913 = arith.index_cast %872 : i32 to index
    %c0_521 = arith.constant 0 : index
    %914 = vector.load %arg20[%913, %c0_521] : memref<64x128xf32, #tpu.memory_space<vmem>>, vector<8x128xf32>
    tpu.vector_store %arg20[%913, %c0_521], %910 {strides = array<i32>} : memref<64x128xf32, #tpu.memory_space<vmem>>, vector<8x128xf32>,
    %c4_i32_522 = arith.constant 4 : i32
    %c8_i32_523 = arith.constant 8 : i32
    %915 = arith.muli %c4_i32_522, %c8_i32_523 : i32
    %916 = tpu.assume_multiple %915, 8 : i32
    %917 = arith.index_cast %916 : i32 to index
    %c0_524 = arith.constant 0 : index
    %918 = vector.load %arg21[%917, %c0_524] : memref<64x512xf32, #tpu.memory_space<vmem>>, vector<8x512xf32>
    %c0_525 = arith.constant 0 : index
    %c0_526 = arith.constant 0 : index
    %919 = vector.load %arg22[%c0_525, %c0_526] : memref<8x128xf32, #tpu.memory_space<vmem>>, vector<8x128xf32>
    %c0_527 = arith.constant 0 : index
    %c0_528 = arith.constant 0 : index
    %920 = vector.load %arg14[%c0_527, %c0_528] : memref<128x512xf32, #tpu.memory_space<vmem>>, vector<128x512xf32>
    %cst_529 = arith.constant dense<0.000000e+00> : vector<8x512xf32>
    %921 = tpu.matmul %919, %920, %cst_529 {dimension_numbers = #tpu.dot_dimension_numbers<[1], [0], [0], [1], [0, 0, 1, 1], [], []>} : vector<8x128xf32>, vector<128x512xf32>, vector<8x512xf32> -> vector<8x512xf32>
    %922 = arith.addf %918, %921 : vector<8x512xf32>
    %923 = vector.extract_strided_slice %922 {offsets = [0, 0], sizes = [8, 128], strides = [1, 1]} : vector<8x512xf32> to vector<8x128xf32>
    %cst_530 = arith.constant 5.000000e-01 : f32
    %924 = vector.broadcast %cst_530 : f32 to vector<8x128xf32>
    %925 = arith.mulf %924, %923 : vector<8x128xf32>
    %926 = math.tanh %925 : vector<8x128xf32>
    %cst_531 = arith.constant 5.000000e-01 : f32
    %927 = vector.broadcast %cst_531 : f32 to vector<8x128xf32>
    %928 = arith.mulf %927, %926 : vector<8x128xf32>
    %cst_532 = arith.constant 5.000000e-01 : f32
    %929 = vector.broadcast %cst_532 : f32 to vector<8x128xf32>
    %930 = arith.addf %928, %929 : vector<8x128xf32>
    %931 = vector.extract_strided_slice %922 {offsets = [0, 128], sizes = [8, 128], strides = [1, 1]} : vector<8x512xf32> to vector<8x128xf32>
    %cst_533 = arith.constant 5.000000e-01 : f32
    %932 = vector.broadcast %cst_533 : f32 to vector<8x128xf32>
    %933 = arith.mulf %932, %931 : vector<8x128xf32>
    %934 = math.tanh %933 : vector<8x128xf32>
    %cst_534 = arith.constant 5.000000e-01 : f32
    %935 = vector.broadcast %cst_534 : f32 to vector<8x128xf32>
    %936 = arith.mulf %935, %934 : vector<8x128xf32>
    %cst_535 = arith.constant 5.000000e-01 : f32
    %937 = vector.broadcast %cst_535 : f32 to vector<8x128xf32>
    %938 = arith.addf %936, %937 : vector<8x128xf32>
    %939 = vector.extract_strided_slice %922 {offsets = [0, 256], sizes = [8, 128], strides = [1, 1]} : vector<8x512xf32> to vector<8x128xf32>
    %940 = math.tanh %939 : vector<8x128xf32>
    %941 = vector.extract_strided_slice %922 {offsets = [0, 384], sizes = [8, 128], strides = [1, 1]} : vector<8x512xf32> to vector<8x128xf32>
    %cst_536 = arith.constant 5.000000e-01 : f32
    %942 = vector.broadcast %cst_536 : f32 to vector<8x128xf32>
    %943 = arith.mulf %942, %941 : vector<8x128xf32>
    %944 = math.tanh %943 : vector<8x128xf32>
    %cst_537 = arith.constant 5.000000e-01 : f32
    %945 = vector.broadcast %cst_537 : f32 to vector<8x128xf32>
    %946 = arith.mulf %945, %944 : vector<8x128xf32>
    %cst_538 = arith.constant 5.000000e-01 : f32
    %947 = vector.broadcast %cst_538 : f32 to vector<8x128xf32>
    %948 = arith.addf %946, %947 : vector<8x128xf32>
    %c0_539 = arith.constant 0 : index
    %c0_540 = arith.constant 0 : index
    %949 = vector.load %arg23[%c0_539, %c0_540] : memref<8x128xf32, #tpu.memory_space<vmem>>, vector<8x128xf32>
    %950 = arith.mulf %938, %949 : vector<8x128xf32>
    %951 = arith.mulf %930, %940 : vector<8x128xf32>
    %952 = arith.addf %950, %951 : vector<8x128xf32>
    %953 = math.tanh %952 : vector<8x128xf32>
    %954 = arith.mulf %948, %953 : vector<8x128xf32>
    %c0_541 = arith.constant 0 : index
    %c0_542 = arith.constant 0 : index
    %955 = vector.load %arg23[%c0_541, %c0_542] : memref<8x128xf32, #tpu.memory_space<vmem>>, vector<8x128xf32>
    tpu.vector_store %arg23[%c0_541, %c0_542], %952 {strides = array<i32>} : memref<8x128xf32, #tpu.memory_space<vmem>>, vector<8x128xf32>,
    %c0_543 = arith.constant 0 : index
    %c0_544 = arith.constant 0 : index
    %956 = vector.load %arg22[%c0_543, %c0_544] : memref<8x128xf32, #tpu.memory_space<vmem>>, vector<8x128xf32>
    tpu.vector_store %arg22[%c0_543, %c0_544], %954 {strides = array<i32>} : memref<8x128xf32, #tpu.memory_space<vmem>>, vector<8x128xf32>,
    %957 = arith.index_cast %916 : i32 to index
    %c0_545 = arith.constant 0 : index
    %958 = vector.load %arg20[%957, %c0_545] : memref<64x128xf32, #tpu.memory_space<vmem>>, vector<8x128xf32>
    tpu.vector_store %arg20[%957, %c0_545], %954 {strides = array<i32>} : memref<64x128xf32, #tpu.memory_space<vmem>>, vector<8x128xf32>,
    %c5_i32_546 = arith.constant 5 : i32
    %c8_i32_547 = arith.constant 8 : i32
    %959 = arith.muli %c5_i32_546, %c8_i32_547 : i32
    %960 = tpu.assume_multiple %959, 8 : i32
    %961 = arith.index_cast %960 : i32 to index
    %c0_548 = arith.constant 0 : index
    %962 = vector.load %arg21[%961, %c0_548] : memref<64x512xf32, #tpu.memory_space<vmem>>, vector<8x512xf32>
    %c0_549 = arith.constant 0 : index
    %c0_550 = arith.constant 0 : index
    %963 = vector.load %arg22[%c0_549, %c0_550] : memref<8x128xf32, #tpu.memory_space<vmem>>, vector<8x128xf32>
    %c0_551 = arith.constant 0 : index
    %c0_552 = arith.constant 0 : index
    %964 = vector.load %arg14[%c0_551, %c0_552] : memref<128x512xf32, #tpu.memory_space<vmem>>, vector<128x512xf32>
    %cst_553 = arith.constant dense<0.000000e+00> : vector<8x512xf32>
    %965 = tpu.matmul %963, %964, %cst_553 {dimension_numbers = #tpu.dot_dimension_numbers<[1], [0], [0], [1], [0, 0, 1, 1], [], []>} : vector<8x128xf32>, vector<128x512xf32>, vector<8x512xf32> -> vector<8x512xf32>
    %966 = arith.addf %962, %965 : vector<8x512xf32>
    %967 = vector.extract_strided_slice %966 {offsets = [0, 0], sizes = [8, 128], strides = [1, 1]} : vector<8x512xf32> to vector<8x128xf32>
    %cst_554 = arith.constant 5.000000e-01 : f32
    %968 = vector.broadcast %cst_554 : f32 to vector<8x128xf32>
    %969 = arith.mulf %968, %967 : vector<8x128xf32>
    %970 = math.tanh %969 : vector<8x128xf32>
    %cst_555 = arith.constant 5.000000e-01 : f32
    %971 = vector.broadcast %cst_555 : f32 to vector<8x128xf32>
    %972 = arith.mulf %971, %970 : vector<8x128xf32>
    %cst_556 = arith.constant 5.000000e-01 : f32
    %973 = vector.broadcast %cst_556 : f32 to vector<8x128xf32>
    %974 = arith.addf %972, %973 : vector<8x128xf32>
    %975 = vector.extract_strided_slice %966 {offsets = [0, 128], sizes = [8, 128], strides = [1, 1]} : vector<8x512xf32> to vector<8x128xf32>
    %cst_557 = arith.constant 5.000000e-01 : f32
    %976 = vector.broadcast %cst_557 : f32 to vector<8x128xf32>
    %977 = arith.mulf %976, %975 : vector<8x128xf32>
    %978 = math.tanh %977 : vector<8x128xf32>
    %cst_558 = arith.constant 5.000000e-01 : f32
    %979 = vector.broadcast %cst_558 : f32 to vector<8x128xf32>
    %980 = arith.mulf %979, %978 : vector<8x128xf32>
    %cst_559 = arith.constant 5.000000e-01 : f32
    %981 = vector.broadcast %cst_559 : f32 to vector<8x128xf32>
    %982 = arith.addf %980, %981 : vector<8x128xf32>
    %983 = vector.extract_strided_slice %966 {offsets = [0, 256], sizes = [8, 128], strides = [1, 1]} : vector<8x512xf32> to vector<8x128xf32>
    %984 = math.tanh %983 : vector<8x128xf32>
    %985 = vector.extract_strided_slice %966 {offsets = [0, 384], sizes = [8, 128], strides = [1, 1]} : vector<8x512xf32> to vector<8x128xf32>
    %cst_560 = arith.constant 5.000000e-01 : f32
    %986 = vector.broadcast %cst_560 : f32 to vector<8x128xf32>
    %987 = arith.mulf %986, %985 : vector<8x128xf32>
    %988 = math.tanh %987 : vector<8x128xf32>
    %cst_561 = arith.constant 5.000000e-01 : f32
    %989 = vector.broadcast %cst_561 : f32 to vector<8x128xf32>
    %990 = arith.mulf %989, %988 : vector<8x128xf32>
    %cst_562 = arith.constant 5.000000e-01 : f32
    %991 = vector.broadcast %cst_562 : f32 to vector<8x128xf32>
    %992 = arith.addf %990, %991 : vector<8x128xf32>
    %c0_563 = arith.constant 0 : index
    %c0_564 = arith.constant 0 : index
    %993 = vector.load %arg23[%c0_563, %c0_564] : memref<8x128xf32, #tpu.memory_space<vmem>>, vector<8x128xf32>
    %994 = arith.mulf %982, %993 : vector<8x128xf32>
    %995 = arith.mulf %974, %984 : vector<8x128xf32>
    %996 = arith.addf %994, %995 : vector<8x128xf32>
    %997 = math.tanh %996 : vector<8x128xf32>
    %998 = arith.mulf %992, %997 : vector<8x128xf32>
    %c0_565 = arith.constant 0 : index
    %c0_566 = arith.constant 0 : index
    %999 = vector.load %arg23[%c0_565, %c0_566] : memref<8x128xf32, #tpu.memory_space<vmem>>, vector<8x128xf32>
    tpu.vector_store %arg23[%c0_565, %c0_566], %996 {strides = array<i32>} : memref<8x128xf32, #tpu.memory_space<vmem>>, vector<8x128xf32>,
    %c0_567 = arith.constant 0 : index
    %c0_568 = arith.constant 0 : index
    %1000 = vector.load %arg22[%c0_567, %c0_568] : memref<8x128xf32, #tpu.memory_space<vmem>>, vector<8x128xf32>
    tpu.vector_store %arg22[%c0_567, %c0_568], %998 {strides = array<i32>} : memref<8x128xf32, #tpu.memory_space<vmem>>, vector<8x128xf32>,
    %1001 = arith.index_cast %960 : i32 to index
    %c0_569 = arith.constant 0 : index
    %1002 = vector.load %arg20[%1001, %c0_569] : memref<64x128xf32, #tpu.memory_space<vmem>>, vector<8x128xf32>
    tpu.vector_store %arg20[%1001, %c0_569], %998 {strides = array<i32>} : memref<64x128xf32, #tpu.memory_space<vmem>>, vector<8x128xf32>,
    %c6_i32_570 = arith.constant 6 : i32
    %c8_i32_571 = arith.constant 8 : i32
    %1003 = arith.muli %c6_i32_570, %c8_i32_571 : i32
    %1004 = tpu.assume_multiple %1003, 8 : i32
    %1005 = arith.index_cast %1004 : i32 to index
    %c0_572 = arith.constant 0 : index
    %1006 = vector.load %arg21[%1005, %c0_572] : memref<64x512xf32, #tpu.memory_space<vmem>>, vector<8x512xf32>
    %c0_573 = arith.constant 0 : index
    %c0_574 = arith.constant 0 : index
    %1007 = vector.load %arg22[%c0_573, %c0_574] : memref<8x128xf32, #tpu.memory_space<vmem>>, vector<8x128xf32>
    %c0_575 = arith.constant 0 : index
    %c0_576 = arith.constant 0 : index
    %1008 = vector.load %arg14[%c0_575, %c0_576] : memref<128x512xf32, #tpu.memory_space<vmem>>, vector<128x512xf32>
    %cst_577 = arith.constant dense<0.000000e+00> : vector<8x512xf32>
    %1009 = tpu.matmul %1007, %1008, %cst_577 {dimension_numbers = #tpu.dot_dimension_numbers<[1], [0], [0], [1], [0, 0, 1, 1], [], []>} : vector<8x128xf32>, vector<128x512xf32>, vector<8x512xf32> -> vector<8x512xf32>
    %1010 = arith.addf %1006, %1009 : vector<8x512xf32>
    %1011 = vector.extract_strided_slice %1010 {offsets = [0, 0], sizes = [8, 128], strides = [1, 1]} : vector<8x512xf32> to vector<8x128xf32>
    %cst_578 = arith.constant 5.000000e-01 : f32
    %1012 = vector.broadcast %cst_578 : f32 to vector<8x128xf32>
    %1013 = arith.mulf %1012, %1011 : vector<8x128xf32>
    %1014 = math.tanh %1013 : vector<8x128xf32>
    %cst_579 = arith.constant 5.000000e-01 : f32
    %1015 = vector.broadcast %cst_579 : f32 to vector<8x128xf32>
    %1016 = arith.mulf %1015, %1014 : vector<8x128xf32>
    %cst_580 = arith.constant 5.000000e-01 : f32
    %1017 = vector.broadcast %cst_580 : f32 to vector<8x128xf32>
    %1018 = arith.addf %1016, %1017 : vector<8x128xf32>
    %1019 = vector.extract_strided_slice %1010 {offsets = [0, 128], sizes = [8, 128], strides = [1, 1]} : vector<8x512xf32> to vector<8x128xf32>
    %cst_581 = arith.constant 5.000000e-01 : f32
    %1020 = vector.broadcast %cst_581 : f32 to vector<8x128xf32>
    %1021 = arith.mulf %1020, %1019 : vector<8x128xf32>
    %1022 = math.tanh %1021 : vector<8x128xf32>
    %cst_582 = arith.constant 5.000000e-01 : f32
    %1023 = vector.broadcast %cst_582 : f32 to vector<8x128xf32>
    %1024 = arith.mulf %1023, %1022 : vector<8x128xf32>
    %cst_583 = arith.constant 5.000000e-01 : f32
    %1025 = vector.broadcast %cst_583 : f32 to vector<8x128xf32>
    %1026 = arith.addf %1024, %1025 : vector<8x128xf32>
    %1027 = vector.extract_strided_slice %1010 {offsets = [0, 256], sizes = [8, 128], strides = [1, 1]} : vector<8x512xf32> to vector<8x128xf32>
    %1028 = math.tanh %1027 : vector<8x128xf32>
    %1029 = vector.extract_strided_slice %1010 {offsets = [0, 384], sizes = [8, 128], strides = [1, 1]} : vector<8x512xf32> to vector<8x128xf32>
    %cst_584 = arith.constant 5.000000e-01 : f32
    %1030 = vector.broadcast %cst_584 : f32 to vector<8x128xf32>
    %1031 = arith.mulf %1030, %1029 : vector<8x128xf32>
    %1032 = math.tanh %1031 : vector<8x128xf32>
    %cst_585 = arith.constant 5.000000e-01 : f32
    %1033 = vector.broadcast %cst_585 : f32 to vector<8x128xf32>
    %1034 = arith.mulf %1033, %1032 : vector<8x128xf32>
    %cst_586 = arith.constant 5.000000e-01 : f32
    %1035 = vector.broadcast %cst_586 : f32 to vector<8x128xf32>
    %1036 = arith.addf %1034, %1035 : vector<8x128xf32>
    %c0_587 = arith.constant 0 : index
    %c0_588 = arith.constant 0 : index
    %1037 = vector.load %arg23[%c0_587, %c0_588] : memref<8x128xf32, #tpu.memory_space<vmem>>, vector<8x128xf32>
    %1038 = arith.mulf %1026, %1037 : vector<8x128xf32>
    %1039 = arith.mulf %1018, %1028 : vector<8x128xf32>
    %1040 = arith.addf %1038, %1039 : vector<8x128xf32>
    %1041 = math.tanh %1040 : vector<8x128xf32>
    %1042 = arith.mulf %1036, %1041 : vector<8x128xf32>
    %c0_589 = arith.constant 0 : index
    %c0_590 = arith.constant 0 : index
    %1043 = vector.load %arg23[%c0_589, %c0_590] : memref<8x128xf32, #tpu.memory_space<vmem>>, vector<8x128xf32>
    tpu.vector_store %arg23[%c0_589, %c0_590], %1040 {strides = array<i32>} : memref<8x128xf32, #tpu.memory_space<vmem>>, vector<8x128xf32>,
    %c0_591 = arith.constant 0 : index
    %c0_592 = arith.constant 0 : index
    %1044 = vector.load %arg22[%c0_591, %c0_592] : memref<8x128xf32, #tpu.memory_space<vmem>>, vector<8x128xf32>
    tpu.vector_store %arg22[%c0_591, %c0_592], %1042 {strides = array<i32>} : memref<8x128xf32, #tpu.memory_space<vmem>>, vector<8x128xf32>,
    %1045 = arith.index_cast %1004 : i32 to index
    %c0_593 = arith.constant 0 : index
    %1046 = vector.load %arg20[%1045, %c0_593] : memref<64x128xf32, #tpu.memory_space<vmem>>, vector<8x128xf32>
    tpu.vector_store %arg20[%1045, %c0_593], %1042 {strides = array<i32>} : memref<64x128xf32, #tpu.memory_space<vmem>>, vector<8x128xf32>,
    %c7_i32_594 = arith.constant 7 : i32
    %c8_i32_595 = arith.constant 8 : i32
    %1047 = arith.muli %c7_i32_594, %c8_i32_595 : i32
    %1048 = tpu.assume_multiple %1047, 8 : i32
    %1049 = arith.index_cast %1048 : i32 to index
    %c0_596 = arith.constant 0 : index
    %1050 = vector.load %arg21[%1049, %c0_596] : memref<64x512xf32, #tpu.memory_space<vmem>>, vector<8x512xf32>
    %c0_597 = arith.constant 0 : index
    %c0_598 = arith.constant 0 : index
    %1051 = vector.load %arg22[%c0_597, %c0_598] : memref<8x128xf32, #tpu.memory_space<vmem>>, vector<8x128xf32>
    %c0_599 = arith.constant 0 : index
    %c0_600 = arith.constant 0 : index
    %1052 = vector.load %arg14[%c0_599, %c0_600] : memref<128x512xf32, #tpu.memory_space<vmem>>, vector<128x512xf32>
    %cst_601 = arith.constant dense<0.000000e+00> : vector<8x512xf32>
    %1053 = tpu.matmul %1051, %1052, %cst_601 {dimension_numbers = #tpu.dot_dimension_numbers<[1], [0], [0], [1], [0, 0, 1, 1], [], []>} : vector<8x128xf32>, vector<128x512xf32>, vector<8x512xf32> -> vector<8x512xf32>
    %1054 = arith.addf %1050, %1053 : vector<8x512xf32>
    %1055 = vector.extract_strided_slice %1054 {offsets = [0, 0], sizes = [8, 128], strides = [1, 1]} : vector<8x512xf32> to vector<8x128xf32>
    %cst_602 = arith.constant 5.000000e-01 : f32
    %1056 = vector.broadcast %cst_602 : f32 to vector<8x128xf32>
    %1057 = arith.mulf %1056, %1055 : vector<8x128xf32>
    %1058 = math.tanh %1057 : vector<8x128xf32>
    %cst_603 = arith.constant 5.000000e-01 : f32
    %1059 = vector.broadcast %cst_603 : f32 to vector<8x128xf32>
    %1060 = arith.mulf %1059, %1058 : vector<8x128xf32>
    %cst_604 = arith.constant 5.000000e-01 : f32
    %1061 = vector.broadcast %cst_604 : f32 to vector<8x128xf32>
    %1062 = arith.addf %1060, %1061 : vector<8x128xf32>
    %1063 = vector.extract_strided_slice %1054 {offsets = [0, 128], sizes = [8, 128], strides = [1, 1]} : vector<8x512xf32> to vector<8x128xf32>
    %cst_605 = arith.constant 5.000000e-01 : f32
    %1064 = vector.broadcast %cst_605 : f32 to vector<8x128xf32>
    %1065 = arith.mulf %1064, %1063 : vector<8x128xf32>
    %1066 = math.tanh %1065 : vector<8x128xf32>
    %cst_606 = arith.constant 5.000000e-01 : f32
    %1067 = vector.broadcast %cst_606 : f32 to vector<8x128xf32>
    %1068 = arith.mulf %1067, %1066 : vector<8x128xf32>
    %cst_607 = arith.constant 5.000000e-01 : f32
    %1069 = vector.broadcast %cst_607 : f32 to vector<8x128xf32>
    %1070 = arith.addf %1068, %1069 : vector<8x128xf32>
    %1071 = vector.extract_strided_slice %1054 {offsets = [0, 256], sizes = [8, 128], strides = [1, 1]} : vector<8x512xf32> to vector<8x128xf32>
    %1072 = math.tanh %1071 : vector<8x128xf32>
    %1073 = vector.extract_strided_slice %1054 {offsets = [0, 384], sizes = [8, 128], strides = [1, 1]} : vector<8x512xf32> to vector<8x128xf32>
    %cst_608 = arith.constant 5.000000e-01 : f32
    %1074 = vector.broadcast %cst_608 : f32 to vector<8x128xf32>
    %1075 = arith.mulf %1074, %1073 : vector<8x128xf32>
    %1076 = math.tanh %1075 : vector<8x128xf32>
    %cst_609 = arith.constant 5.000000e-01 : f32
    %1077 = vector.broadcast %cst_609 : f32 to vector<8x128xf32>
    %1078 = arith.mulf %1077, %1076 : vector<8x128xf32>
    %cst_610 = arith.constant 5.000000e-01 : f32
    %1079 = vector.broadcast %cst_610 : f32 to vector<8x128xf32>
    %1080 = arith.addf %1078, %1079 : vector<8x128xf32>
    %c0_611 = arith.constant 0 : index
    %c0_612 = arith.constant 0 : index
    %1081 = vector.load %arg23[%c0_611, %c0_612] : memref<8x128xf32, #tpu.memory_space<vmem>>, vector<8x128xf32>
    %1082 = arith.mulf %1070, %1081 : vector<8x128xf32>
    %1083 = arith.mulf %1062, %1072 : vector<8x128xf32>
    %1084 = arith.addf %1082, %1083 : vector<8x128xf32>
    %1085 = math.tanh %1084 : vector<8x128xf32>
    %1086 = arith.mulf %1080, %1085 : vector<8x128xf32>
    %c0_613 = arith.constant 0 : index
    %c0_614 = arith.constant 0 : index
    %1087 = vector.load %arg23[%c0_613, %c0_614] : memref<8x128xf32, #tpu.memory_space<vmem>>, vector<8x128xf32>
    tpu.vector_store %arg23[%c0_613, %c0_614], %1084 {strides = array<i32>} : memref<8x128xf32, #tpu.memory_space<vmem>>, vector<8x128xf32>,
    %c0_615 = arith.constant 0 : index
    %c0_616 = arith.constant 0 : index
    %1088 = vector.load %arg22[%c0_615, %c0_616] : memref<8x128xf32, #tpu.memory_space<vmem>>, vector<8x128xf32>
    tpu.vector_store %arg22[%c0_615, %c0_616], %1086 {strides = array<i32>} : memref<8x128xf32, #tpu.memory_space<vmem>>, vector<8x128xf32>,
    %1089 = arith.index_cast %1048 : i32 to index
    %c0_617 = arith.constant 0 : index
    %1090 = vector.load %arg20[%1089, %c0_617] : memref<64x128xf32, #tpu.memory_space<vmem>>, vector<8x128xf32>
    tpu.vector_store %arg20[%1089, %c0_617], %1086 {strides = array<i32>} : memref<64x128xf32, #tpu.memory_space<vmem>>, vector<8x128xf32>,
    %c8_i32_618 = arith.constant 8 : i32
    %c0_619 = arith.constant 0 : index
    %c0_620 = arith.constant 0 : index
    %1091 = vector.load %arg20[%c0_619, %c0_620] : memref<64x128xf32, #tpu.memory_space<vmem>>, vector<64x128xf32>
    %c0_621 = arith.constant 0 : index
    %c0_622 = arith.constant 0 : index
    %1092 = vector.load %arg17[%c0_621, %c0_622] : memref<128x128xbf16, #tpu.memory_space<vmem>>, vector<128x128xbf16>
    %1093 = arith.truncf %1091 : vector<64x128xf32> to vector<64x128xbf16>
    %cst_623 = arith.constant dense<0.000000e+00> : vector<64x128xf32>
    %1094 = tpu.matmul %1093, %1092, %cst_623 {dimension_numbers = #tpu.dot_dimension_numbers<[1], [0], [0], [1], [0, 0, 1, 1], [], []>} : vector<64x128xbf16>, vector<128x128xbf16>, vector<64x128xf32> -> vector<64x128xf32>
    %c0_624 = arith.constant 0 : index
    %c0_625 = arith.constant 0 : index
    %1095 = vector.load %arg18[%c0_624, %c0_625] : memref<1x128xf32, #tpu.memory_space<vmem>>, vector<1x128xf32>
    %1096 = vector.broadcast %1095 : vector<1x128xf32> to vector<64x128xf32>
    %1097 = arith.addf %1094, %1096 : vector<64x128xf32>
    %cst_626 = arith.constant 0.000000e+00 : f32
    %1098 = vector.broadcast %cst_626 : f32 to vector<64x128xf32>
    %1099 = arith.maximumf %1097, %1098 : vector<64x128xf32>
    %c0_627 = arith.constant 0 : index
    %c0_628 = arith.constant 0 : index
    %1100 = vector.load %arg19[%c0_627, %c0_628] : memref<64x128xf32, #tpu.memory_space<vmem>>, vector<64x128xf32>
    tpu.vector_store %arg19[%c0_627, %c0_628], %1099 {strides = array<i32>} : memref<64x128xf32, #tpu.memory_space<vmem>>, vector<64x128xf32>,
    return
  }
  func.func @transform_0(%arg0: i32) -> (i32, i32) {
    %c0_i32 = arith.constant 0 : i32
    %c0_i32_0 = arith.constant 0 : i32
    %c0_i32_1 = arith.constant 0 : i32
    return %c0_i32, %c0_i32_0 : i32, i32
  }
  func.func @transform_1(%arg0: i32) -> (i32, i32) {
    %c0_i32 = arith.constant 0 : i32
    %c0_i32_0 = arith.constant 0 : i32
    %c0_i32_1 = arith.constant 0 : i32
    return %c0_i32, %c0_i32_0 : i32, i32
  }
  func.func @transform_2(%arg0: i32) -> (i32, i32) {
    %c0_i32 = arith.constant 0 : i32
    %c0_i32_0 = arith.constant 0 : i32
    %c0_i32_1 = arith.constant 0 : i32
    return %c0_i32, %c0_i32_0 : i32, i32
  }
  func.func @transform_3(%arg0: i32) -> (i32, i32) {
    %c0_i32 = arith.constant 0 : i32
    %c0_i32_0 = arith.constant 0 : i32
    %c0_i32_1 = arith.constant 0 : i32
    return %c0_i32, %c0_i32_0 : i32, i32
  }
  func.func @transform_4(%arg0: i32) -> (i32, i32) {
    %c0_i32 = arith.constant 0 : i32
    %c0_i32_0 = arith.constant 0 : i32
    %c0_i32_1 = arith.constant 0 : i32
    return %c0_i32, %c0_i32_0 : i32, i32
  }
  func.func @transform_5(%arg0: i32) -> (i32, i32) {
    %c0_i32 = arith.constant 0 : i32
    %c0_i32_0 = arith.constant 0 : i32
    %c0_i32_1 = arith.constant 0 : i32
    return %c0_i32, %c0_i32_0 : i32, i32
  }
  func.func @transform_6(%arg0: i32) -> (i32, i32) {
    %c0_i32 = arith.constant 0 : i32
    %c0_i32_0 = arith.constant 0 : i32
    %c0_i32_1 = arith.constant 0 : i32
    return %c0_i32, %c0_i32_0 : i32, i32
  }
  func.func @transform_7(%arg0: i32) -> (i32, i32) {
    %c0_i32 = arith.constant 0 : i32
    %c0_i32_0 = arith.constant 0 : i32
    %c0_i32_1 = arith.constant 0 : i32
    return %c0_i32, %c0_i32_0 : i32, i32
  }
  func.func @transform_8(%arg0: i32) -> (i32, i32) {
    %c0_i32 = arith.constant 0 : i32
    %c0_i32_0 = arith.constant 0 : i32
    %c0_i32_1 = arith.constant 0 : i32
    return %c0_i32, %c0_i32_0 : i32, i32
  }
  func.func @transform_9(%arg0: i32) -> (i32, i32) {
    %c0_i32 = arith.constant 0 : i32
    %c0_i32_0 = arith.constant 0 : i32
    %c0_i32_1 = arith.constant 0 : i32
    return %c0_i32, %c0_i32_0 : i32, i32
  }
  func.func @transform_10(%arg0: i32) -> (i32, i32) {
    %c0_i32 = arith.constant 0 : i32
    %c0_i32_0 = arith.constant 0 : i32
    %c0_i32_1 = arith.constant 0 : i32
    return %c0_i32, %c0_i32_0 : i32, i32
  }
  func.func @transform_11(%arg0: i32) -> (i32, i32) {
    %c0_i32 = arith.constant 0 : i32
    %c0_i32_0 = arith.constant 0 : i32
    %c0_i32_1 = arith.constant 0 : i32
    return %c0_i32, %c0_i32_0 : i32, i32
  }
  func.func @transform_12(%arg0: i32) -> (i32, i32) {
    %c0_i32 = arith.constant 0 : i32
    %c0_i32_0 = arith.constant 0 : i32
    %c0_i32_1 = arith.constant 0 : i32
    return %c0_i32, %c0_i32_0 : i32, i32
  }
  func.func @transform_13(%arg0: i32) -> (i32, i32) {
    %c0_i32 = arith.constant 0 : i32
    %c0_i32_0 = arith.constant 0 : i32
    %c0_i32_1 = arith.constant 0 : i32
    return %c0_i32, %c0_i32_0 : i32, i32
  }
  func.func @transform_14(%arg0: i32) -> (i32, i32) {
    %c0_i32 = arith.constant 0 : i32
    %c0_i32_0 = arith.constant 0 : i32
    %c0_i32_1 = arith.constant 0 : i32
    return %c0_i32, %c0_i32_0 : i32, i32
  }
  func.func @transform_15(%arg0: i32) -> (i32, i32) {
    %c0_i32 = arith.constant 0 : i32
    %c0_i32_0 = arith.constant 0 : i32
    %c0_i32_1 = arith.constant 0 : i32
    return %c0_i32, %c0_i32_0 : i32, i32
  }
  func.func @transform_16(%arg0: i32) -> (i32, i32) {
    %c0_i32 = arith.constant 0 : i32
    %c0_i32_0 = arith.constant 0 : i32
    %c0_i32_1 = arith.constant 0 : i32
    return %c0_i32, %c0_i32_0 : i32, i32
  }
  func.func @transform_17(%arg0: i32) -> (i32, i32) {
    %c0_i32 = arith.constant 0 : i32
    %c0_i32_0 = arith.constant 0 : i32
    %c0_i32_1 = arith.constant 0 : i32
    return %c0_i32, %c0_i32_0 : i32, i32
  }
  func.func @transform_18(%arg0: i32) -> (i32, i32) {
    %c0_i32 = arith.constant 0 : i32
    %c0_i32_0 = arith.constant 0 : i32
    %c0_i32_1 = arith.constant 0 : i32
    return %c0_i32, %c0_i32_0 : i32, i32
  }
}

</mosaic_0001>

<llo_original>
// kernel: eeg_lstm_v3_forward.1
$region0: #{eeg_lstm_v3_forward.1}
  #allocation0 [shape = 'u32[]', space=smem, size = 0x4, offset = 0x4, fixed_abs, tag = 'smem constant byte address 0x4 - core index']
  #allocation1 [shape = 'u32[144,128]{1,0:T(1,128)}', space=vmem, size = 0x12000, scoped, tag = 'internal scratch']
  #allocation2 [shape = 'f32[64,128]{1,0:T(8,128)}', space=vmem, size = 0x8000, scoped, tag = 'scratch operand']
  #allocation3 [shape = 'f32[64,512]{1,0:T(8,128)}', space=vmem, size = 0x20000, scoped, tag = 'scratch operand']
  #allocation4 [shape = 'f32[8,128]{1,0:T(8,128)}', space=vmem, size = 0x1000, scoped, tag = 'scratch operand']
  #allocation5 [shape = 'f32[8,128]{1,0:T(8,128)}', space=vmem, size = 0x1000, scoped, tag = 'scratch operand']
  %s0 = inlined_call_operand.vmem [shape: f32[64,4], index: 0, kind: input, shape index: {}]
  %s1 = inlined_call_operand.vmem [shape: f32[4,512], index: 1, kind: input, shape index: {}]
  %s2 = inlined_call_operand.vmem [shape: f32[1,512], index: 2, kind: input, shape index: {}]
  %s3 = inlined_call_operand.hbm [shape: f32[128,512], index: 3, kind: input, shape index: {}]
  %s4 = inlined_call_operand.vmem [shape: f32[8,128], index: 4, kind: input, shape index: {}]
  %s5 = inlined_call_operand.vmem [shape: f32[8,128], index: 5, kind: input, shape index: {}]
  %s6 = inlined_call_operand.hbm [shape: bf16[128,512], index: 6, kind: input, shape index: {}]
  %s7 = inlined_call_operand.vmem [shape: f32[1,512], index: 7, kind: input, shape index: {}]
  %s8 = inlined_call_operand.hbm [shape: f32[128,512], index: 8, kind: input, shape index: {}]
  %s9 = inlined_call_operand.vmem [shape: f32[8,128], index: 9, kind: input, shape index: {}]
  %s10 = inlined_call_operand.vmem [shape: f32[8,128], index: 10, kind: input, shape index: {}]
  %s11 = inlined_call_operand.hbm [shape: bf16[128,512], index: 11, kind: input, shape index: {}]
  %s12 = inlined_call_operand.vmem [shape: f32[1,512], index: 12, kind: input, shape index: {}]
  %s13 = inlined_call_operand.hbm [shape: f32[128,512], index: 13, kind: input, shape index: {}]
  %s14 = inlined_call_operand.vmem [shape: f32[8,128], index: 14, kind: input, shape index: {}]
  %s15 = inlined_call_operand.vmem [shape: f32[8,128], index: 15, kind: input, shape index: {}]
  %s16 = inlined_call_operand.vmem [shape: bf16[128,128], index: 16, kind: input, shape index: {}]
  %s17 = inlined_call_operand.vmem [shape: f32[1,128], index: 17, kind: input, shape index: {}]
  %s18 = inlined_call_operand.vmem [shape: f32[64,128], index: 18, kind: output, shape index: {}]
  %s19 = sld [smem:[#allocation0]]
  $region102: #{eeg_lstm_v3_forward.1} parent=0
    _
  %s21 = ssub.s32 1, %s19
  %s22 = scalar_select 0, %s21, %s19
  $region1: #{eeg_lstm_v3_forward.1} parent=0
    #allocation6 [shape = 'u8[262144]{0}', space=vmem, size = 0x40000, scoped, tag = 'input window, operand 3, single buffered']
    #allocation7 [shape = 's32[1]{0}', space=sflag, size = 0x4, scoped, tag = 'scoped memory for eeg_lstm_v3_forward.1']
    #allocation8 [shape = 'u8[131072]{0}', space=vmem, size = 0x20000, scoped, tag = 'input window, operand 6, single buffered']
    #allocation9 [shape = 's32[1]{0}', space=sflag, size = 0x4, scoped, tag = 'scoped memory for eeg_lstm_v3_forward.1']
    #allocation10 [shape = 'u8[262144]{0}', space=vmem, size = 0x40000, scoped, tag = 'input window, operand 8, single buffered']
    #allocation11 [shape = 'u8[131072]{0}', space=vmem, size = 0x20000, scoped, tag = 'input window, operand 11, single buffered']
    #allocation12 [shape = 's32[1]{0}', space=sflag, size = 0x4, scoped, tag = 'scoped memory for eeg_lstm_v3_forward.1']
    #allocation13 [shape = 'u8[262144]{0}', space=vmem, size = 0x40000, scoped, tag = 'input window, operand 13, single buffered']
    %23 = vsyncpa [#allocation7], 0
    %24 = vsyncpa [#allocation9], 0
    %25 = vsyncpa [#allocation12], 0
    // Predicated region
    $region2: #{eeg_lstm_v3_forward.1} parent=1 // pred_check
      _
    $region3: #{eeg_lstm_v3_forward.1} parent=1 // pred_check_branch
      %27 = sbr.rel (0) target = $region5
    $region4: #{eeg_lstm_v3_forward.1} parent=1 // pred_region
      _
    $region5: #{eeg_lstm_v3_forward.1} parent=1 // pred_fallthru
      _
    // Predicated region
    $region6: #{eeg_lstm_v3_forward.1} parent=1 // pred_check
      _
    $region7: #{eeg_lstm_v3_forward.1} parent=1 // pred_check_branch
      %29 = sbr.rel (0) target = $region9
    $region8: #{eeg_lstm_v3_forward.1} parent=1 // pred_region
      _
    $region9: #{eeg_lstm_v3_forward.1} parent=1 // pred_fallthru
      _
    // Predicated region
    $region10: #{eeg_lstm_v3_forward.1} parent=1 // pred_check
      _
    $region11: #{eeg_lstm_v3_forward.1} parent=1 // pred_check_branch
      %31 = sbr.rel (0) target = $region13
    $region12: #{eeg_lstm_v3_forward.1} parent=1 // pred_region
      _
    $region13: #{eeg_lstm_v3_forward.1} parent=1 // pred_fallthru
      _
    // Predicated region
    $region14: #{eeg_lstm_v3_forward.1} parent=1 // pred_check
      _
    $region15: #{eeg_lstm_v3_forward.1} parent=1 // pred_check_branch
      %33 = sbr.rel (0) target = $region17
    $region16: #{eeg_lstm_v3_forward.1} parent=1 // pred_region
      %s35 = ssub.s32 8192, 8192
      %36 = vsyncadd [#allocation7], %s35
      %s37 = sshll.u32 [#allocation6], 4
      %s38 = int_to_ptr.vmem [resolvable:$true] %s37
      %43 = dma.hbm_to_vmem [thread:$0]  %s3, 8192, %s38, [#allocation7], 512, 512, 32
    $region17: #{eeg_lstm_v3_forward.1} parent=1 // pred_fallthru
      _
    // Predicated region
    $region18: #{eeg_lstm_v3_forward.1} parent=1 // pred_check
      _
    $region19: #{eeg_lstm_v3_forward.1} parent=1 // pred_check_branch
      %45 = sbr.rel (0) target = $region21
    $region20: #{eeg_lstm_v3_forward.1} parent=1 // pred_region
      _
    $region21: #{eeg_lstm_v3_forward.1} parent=1 // pred_fallthru
      _
    // Predicated region
    $region22: #{eeg_lstm_v3_forward.1} parent=1 // pred_check
      _
    $region23: #{eeg_lstm_v3_forward.1} parent=1 // pred_check_branch
      %47 = sbr.rel (0) target = $region25
    $region24: #{eeg_lstm_v3_forward.1} parent=1 // pred_region
      _
    $region25: #{eeg_lstm_v3_forward.1} parent=1 // pred_fallthru
      _
    // Predicated region
    $region26: #{eeg_lstm_v3_forward.1} parent=1 // pred_check
      _
    $region27: #{eeg_lstm_v3_forward.1} parent=1 // pred_check_branch
      %49 = sbr.rel (0) target = $region29
    $region28: #{eeg_lstm_v3_forward.1} parent=1 // pred_region
      %s51 = ssub.s32 4096, 4096
      %52 = vsyncadd [#allocation9], %s51
      %s53 = sshll.u32 [#allocation8], 4
      %s54 = int_to_ptr.vmem [resolvable:$true] %s53
      %59 = dma.hbm_to_vmem [thread:$0]  %s6, 4096, %s54, [#allocation9], 256, 256, 16
    $region29: #{eeg_lstm_v3_forward.1} parent=1 // pred_fallthru
      _
    // Predicated region
    $region30: #{eeg_lstm_v3_forward.1} parent=1 // pred_check
      _
    $region31: #{eeg_lstm_v3_forward.1} parent=1 // pred_check_branch
      %61 = sbr.rel (0) target = $region33
    $region32: #{eeg_lstm_v3_forward.1} parent=1 // pred_region
      _
    $region33: #{eeg_lstm_v3_forward.1} parent=1 // pred_fallthru
      _
    // Predicated region
    $region34: #{eeg_lstm_v3_forward.1} parent=1 // pred_check
      _
    $region35: #{eeg_lstm_v3_forward.1} parent=1 // pred_check_branch
      %63 = sbr.rel (0) target = $region37
    $region36: #{eeg_lstm_v3_forward.1} parent=1 // pred_region
      %s65 = ssub.s32 8192, 8192
      %66 = vsyncadd [#allocation9], %s65
      %s67 = sshll.u32 [#allocation10], 4
      %s68 = int_to_ptr.vmem [resolvable:$true] %s67
      %73 = dma.hbm_to_vmem [thread:$0]  %s8, 8192, %s68, [#allocation9], 512, 512, 32
    $region37: #{eeg_lstm_v3_forward.1} parent=1 // pred_fallthru
      _
    // Predicated region
    $region38: #{eeg_lstm_v3_forward.1} parent=1 // pred_check
      _
    $region39: #{eeg_lstm_v3_forward.1} parent=1 // pred_check_branch
      %75 = sbr.rel (0) target = $region41
    $region40: #{eeg_lstm_v3_forward.1} parent=1 // pred_region
      _
    $region41: #{eeg_lstm_v3_forward.1} parent=1 // pred_fallthru
      _
    // Predicated region
    $region42: #{eeg_lstm_v3_forward.1} parent=1 // pred_check
      _
    $region43: #{eeg_lstm_v3_forward.1} parent=1 // pred_check_branch
      %77 = sbr.rel (0) target = $region45
    $region44: #{eeg_lstm_v3_forward.1} parent=1 // pred_region
      _
    $region45: #{eeg_lstm_v3_forward.1} parent=1 // pred_fallthru
      _
    // Predicated region
    $region46: #{eeg_lstm_v3_forward.1} parent=1 // pred_check
      _
    $region47: #{eeg_lstm_v3_forward.1} parent=1 // pred_check_branch
      %79 = sbr.rel (0) target = $region49
    $region48: #{eeg_lstm_v3_forward.1} parent=1 // pred_region
      %s81 = ssub.s32 4096, 4096
      %82 = vsyncadd [#allocation12], %s81
      %s83 = sshll.u32 [#allocation11], 4
      %s84 = int_to_ptr.vmem [resolvable:$true] %s83
      %89 = dma.hbm_to_vmem [thread:$0]  %s11, 4096, %s84, [#allocation12], 256, 256, 16
    $region49: #{eeg_lstm_v3_forward.1} parent=1 // pred_fallthru
      _
    // Predicated region
    $region50: #{eeg_lstm_v3_forward.1} parent=1 // pred_check
      _
    $region51: #{eeg_lstm_v3_forward.1} parent=1 // pred_check_branch
      %91 = sbr.rel (0) target = $region53
    $region52: #{eeg_lstm_v3_forward.1} parent=1 // pred_region
      _
    $region53: #{eeg_lstm_v3_forward.1} parent=1 // pred_fallthru
      _
    // Predicated region
    $region54: #{eeg_lstm_v3_forward.1} parent=1 // pred_check
      _
    $region55: #{eeg_lstm_v3_forward.1} parent=1 // pred_check_branch
      %93 = sbr.rel (0) target = $region57
    $region56: #{eeg_lstm_v3_forward.1} parent=1 // pred_region
      %s95 = ssub.s32 8192, 8192
      %96 = vsyncadd [#allocation12], %s95
      %s97 = sshll.u32 [#allocation13], 4
      %s98 = int_to_ptr.vmem [resolvable:$true] %s97
      %103 = dma.hbm_to_vmem [thread:$0]  %s13, 8192, %s98, [#allocation12], 512, 512, 32
    $region57: #{eeg_lstm_v3_forward.1} parent=1 // pred_fallthru
      _
    // Predicated region
    $region58: #{eeg_lstm_v3_forward.1} parent=1 // pred_check
      _
    $region59: #{eeg_lstm_v3_forward.1} parent=1 // pred_check_branch
      %105 = sbr.rel (0) target = $region61
    $region60: #{eeg_lstm_v3_forward.1} parent=1 // pred_region
      _
    $region61: #{eeg_lstm_v3_forward.1} parent=1 // pred_fallthru
      _
    // Predicated region
    $region62: #{eeg_lstm_v3_forward.1} parent=1 // pred_check
      _
    $region63: #{eeg_lstm_v3_forward.1} parent=1 // pred_check_branch
      %107 = sbr.rel (0) target = $region65
    $region64: #{eeg_lstm_v3_forward.1} parent=1 // pred_region
      _
    $region65: #{eeg_lstm_v3_forward.1} parent=1 // pred_fallthru
      _
    // Predicated region
    $region66: #{eeg_lstm_v3_forward.1} parent=1 // pred_check
      _
    $region67: #{eeg_lstm_v3_forward.1} parent=1 // pred_check_branch
      %109 = sbr.rel (0) target = $region69
    $region68: #{eeg_lstm_v3_forward.1} parent=1 // pred_region
      _
    $region69: #{eeg_lstm_v3_forward.1} parent=1 // pred_fallthru
      _
    // Predicated region
    $region70: #{eeg_lstm_v3_forward.1} parent=1 // pred_check
      _
    $region71: #{eeg_lstm_v3_forward.1} parent=1 // pred_check_branch
      %111 = sbr.rel (0) target = $region73
    $region72: #{eeg_lstm_v3_forward.1} parent=1 // pred_region
      _
    $region73: #{eeg_lstm_v3_forward.1} parent=1 // pred_fallthru
      _
    // Predicated region
    $region74: #{eeg_lstm_v3_forward.1} parent=1 // pred_check
      _
    $region75: #{eeg_lstm_v3_forward.1} parent=1 // pred_check_branch
      %113 = sbr.rel (0) target = $region77
    $region76: #{eeg_lstm_v3_forward.1} parent=1 // pred_region
      %114 = dma.done [#allocation7], 8192
    $region77: #{eeg_lstm_v3_forward.1} parent=1 // pred_fallthru
      _
    // Predicated region
    $region78: #{eeg_lstm_v3_forward.1} parent=1 // pred_check
      _
    $region79: #{eeg_lstm_v3_forward.1} parent=1 // pred_check_branch
      %116 = sbr.rel (0) target = $region81
    $region80: #{eeg_lstm_v3_forward.1} parent=1 // pred_region
      %117 = dma.done [#allocation9], 4096
    $region81: #{eeg_lstm_v3_forward.1} parent=1 // pred_fallthru
      _
    // Predicated region
    $region82: #{eeg_lstm_v3_forward.1} parent=1 // pred_check
      _
    $region83: #{eeg_lstm_v3_forward.1} parent=1 // pred_check_branch
      %119 = sbr.rel (0) target = $region85
    $region84: #{eeg_lstm_v3_forward.1} parent=1 // pred_region
      %120 = dma.done [#allocation9], 8192
    $region85: #{eeg_lstm_v3_forward.1} parent=1 // pred_fallthru
      _
    // Predicated region
    $region86: #{eeg_lstm_v3_forward.1} parent=1 // pred_check
      _
    $region87: #{eeg_lstm_v3_forward.1} parent=1 // pred_check_branch
      %122 = sbr.rel (0) target = $region89
    $region88: #{eeg_lstm_v3_forward.1} parent=1 // pred_region
      %123 = dma.done [#allocation12], 4096
    $region89: #{eeg_lstm_v3_forward.1} parent=1 // pred_fallthru
      _
    // Predicated region
    $region90: #{eeg_lstm_v3_forward.1} parent=1 // pred_check
      _
    $region91: #{eeg_lstm_v3_forward.1} parent=1 // pred_check_branch
      %125 = sbr.rel (0) target = $region93
    $region92: #{eeg_lstm_v3_forward.1} parent=1 // pred_region
      %126 = dma.done [#allocation12], 8192
    $region93: #{eeg_lstm_v3_forward.1} parent=1 // pred_fallthru
      _
    %v128 = vld [vmem:[%s0] sm:$0xff]
    %v129 = vld [vmem:[%s0 + $0x8] sm:$0xff]
    %v130 = vld [vmem:[%s0 + $0x10] sm:$0xff]
    %v131 = vld [vmem:[%s0 + $0x18] sm:$0xff]
    %v132 = vld [vmem:[%s0 + $0x20] sm:$0xff]
    %v133 = vld [vmem:[%s0 + $0x28] sm:$0xff]
    %v134 = vld [vmem:[%s0 + $0x30] sm:$0xff]
    %v135 = vld [vmem:[%s0 + $0x38] sm:$0xff]
    %v136 = vld [vmem:[%s1] sm:$0xff]
    %v137 = vld [vmem:[%s1 + $0x8] sm:$0xff]
    %v138 = vld [vmem:[%s2] sm:$0xf]
    %v140 = vlaneseq
    %v141 = vshrl.u32 %v140, 7
    %v142 = vsub.s32 0, %v141
    %v143 = vrot.slane %v138, %v142
    %v144 = vlaneseq
    %v145 = vshrl.u32 %v144, 7
    %v146 = vsub.s32 1, %v145
    %v147 = vrot.slane %v138, %v146
    %v148 = vlaneseq
    %v149 = vshrl.u32 %v148, 7
    %v150 = vsub.s32 2, %v149
    %v151 = vrot.slane %v138, %v150
    %v152 = vlaneseq
    %v153 = vshrl.u32 %v152, 7
    %v154 = vsub.s32 3, %v153
    %v155 = vrot.slane %v138, %v154
    %v162 = vcombine.high %v136, %v136
    %v163 = vcombine.high %v137, %v137
    %vm164 = vcmask 31744
    %v166 = vsel %vm164, %v128, 0
    %v169 = vsel %vm164, %v129, 0
    %v172 = vsel %vm164, %v130, 0
    %v175 = vsel %vm164, %v131, 0
    %v178 = vsel %vm164, %v132, 0
    %v181 = vsel %vm164, %v133, 0
    %v184 = vsel %vm164, %v134, 0
    %v187 = vsel %vm164, %v135, 0
    %vm189 = vcmask 1043456
    %v190 = vsel %vm189, %v136, 0
    %v192 = vsel %vm189, %v162, 0
    %v194 = vsel %vm189, %v137, 0
    %v196 = vsel %vm189, %v163, 0
    %198 = vmatprep.subr.mxu0 0.0
    %199 = vmatpush1.msra.mxu0 0.0
    %200 = vmatprep.subr.mxu0 0.0
    %201 = vmatpush1.msra.mxu0 0.0
    %202 = vmatprep.subr.mxu0 0.0
    %203 = vmatpush1.msra.mxu0 0.0
    %204 = vmatprep.subr.mxu0 0.0
    %205 = vmatpush1.msra.mxu0 0.0
    %206 = vmatprep.subr.mxu0 0.0
    %207 = vmatpush1.msra.mxu0 0.0
    %208 = vmatprep.subr.mxu0 0.0
    %209 = vmatpush1.msra.mxu0 0.0
    %210 = vmatprep.subr.mxu0 0.0
    %211 = vmatpush1.msra.mxu0 0.0
    %212 = vmatprep.subr.mxu0 0.0
    %213 = vmatpush1.msra.mxu0 0.0
    %214 = vmatprep.subr.mxu0 0.0
    %215 = vmatpush1.msra.mxu0 0.0
    %216 = vmatprep.subr.mxu0 0.0
    %217 = vmatpush1.msra.mxu0 0.0
    %218 = vmatprep.subr.mxu0 0.0
    %219 = vmatpush1.msra.mxu0 0.0
    %220 = vmatprep.subr.mxu0 0.0
    %221 = vmatpush1.msra.mxu0 0.0
    %222 = vmatprep.subr.mxu0 0.0
    %223 = vmatpush1.msra.mxu0 0.0
    %224 = vmatprep.subr.mxu0 0.0
    %225 = vmatpush1.msra.mxu0 0.0
    %226 = vmatprep.subr.mxu0 0.0
    %227 = vmatpush1.msra.mxu0 0.0
    %228 = vmatprep.subr.mxu0 %v192
    %229 = vmatpush1.msra.mxu0 %v190
    %230 = vmatprep.subr.mxu0 0.0
    %231 = vmatpush2.msra.mxu0 0.0
    %232 = vmatprep.subr.mxu0 0.0
    %233 = vmatpush2.msra.mxu0 0.0
    %234 = vmatprep.subr.mxu0 0.0
    %235 = vmatpush2.msra.mxu0 0.0
    %236 = vmatprep.subr.mxu0 0.0
    %237 = vmatpush2.msra.mxu0 0.0
    %238 = vmatprep.subr.mxu0 0.0
    %239 = vmatpush2.msra.mxu0 0.0
    %240 = vmatprep.subr.mxu0 0.0
    %241 = vmatpush2.msra.mxu0 0.0
    %242 = vmatprep.subr.mxu0 0.0
    %243 = vmatpush2.msra.mxu0 0.0
    %244 = vmatprep.subr.mxu0 0.0
    %245 = vmatpush2.msra.mxu0 0.0
    %246 = vmatprep.subr.mxu0 0.0
    %247 = vmatpush2.msra.mxu0 0.0
    %248 = vmatprep.subr.mxu0 0.0
    %249 = vmatpush2.msra.mxu0 0.0
    %250 = vmatprep.subr.mxu0 0.0
    %251 = vmatpush2.msra.mxu0 0.0
    %252 = vmatprep.subr.mxu0 0.0
    %253 = vmatpush2.msra.mxu0 0.0
    %254 = vmatprep.subr.mxu0 0.0
    %255 = vmatpush2.msra.mxu0 0.0
    %256 = vmatprep.subr.mxu0 0.0
    %257 = vmatpush2.msra.mxu0 0.0
    %258 = vmatprep.subr.mxu0 0.0
    %259 = vmatpush2.msra.mxu0 0.0
    %260 = vmatprep.subr.mxu0 0.0
    %261 = vmatpush2.msra.mxu0 0.0
    %262 = vmatprep.mubr.f32.mxu0 0.0
    %263 = vmatmul.mubr.f32.gmra.mxu0 %v166
    %v264 = vpop.f32.mrf.mxu0
    %v265 = vadd.f32 %v143, %v264
    %v266 = vpop.f32.mrf.mxu0
    %v267 = vadd.f32 %v147, %v266
    %268 = vmatprep.mubr.f32.mxu0 0.0
    %269 = vmatmul.mubr.f32.gmra.mxu0 %v169
    %v270 = vpop.f32.mrf.mxu0
    %v271 = vadd.f32 %v143, %v270
    %v272 = vpop.f32.mrf.mxu0
    %v273 = vadd.f32 %v147, %v272
    %274 = vmatprep.mubr.f32.mxu0 0.0
    %275 = vmatmul.mubr.f32.gmra.mxu0 %v172
    %v276 = vpop.f32.mrf.mxu0
    %v277 = vadd.f32 %v143, %v276
    %v278 = vpop.f32.mrf.mxu0
    %v279 = vadd.f32 %v147, %v278
    %280 = vmatprep.mubr.f32.mxu0 0.0
    %281 = vmatmul.mubr.f32.gmra.mxu0 %v175
    %v282 = vpop.f32.mrf.mxu0
    %v283 = vadd.f32 %v143, %v282
    %v284 = vpop.f32.mrf.mxu0
    %v285 = vadd.f32 %v147, %v284
    %286 = vmatprep.mubr.f32.mxu0 0.0
    %287 = vmatmul.mubr.f32.gmra.mxu0 %v178
    %v288 = vpop.f32.mrf.mxu0
    %v289 = vadd.f32 %v143, %v288
    %v290 = vpop.f32.mrf.mxu0
    %v291 = vadd.f32 %v147, %v290
    %292 = vmatprep.mubr.f32.mxu0 0.0
    %293 = vmatmul.mubr.f32.gmra.mxu0 %v181
    %v294 = vpop.f32.mrf.mxu0
    %v295 = vadd.f32 %v143, %v294
    %v296 = vpop.f32.mrf.mxu0
    %v297 = vadd.f32 %v147, %v296
    %298 = vmatprep.mubr.f32.mxu0 0.0
    %299 = vmatmul.mubr.f32.gmra.mxu0 %v184
    %v300 = vpop.f32.mrf.mxu0
    %v301 = vadd.f32 %v143, %v300
    %v302 = vpop.f32.mrf.mxu0
    %v303 = vadd.f32 %v147, %v302
    %304 = vmatprep.mubr.f32.mxu0 0.0
    %305 = vmatmul.mubr.f32.gmra.mxu0 %v187
    %v306 = vpop.f32.mrf.mxu0
    %v307 = vadd.f32 %v143, %v306
    %v308 = vpop.f32.mrf.mxu0
    %v309 = vadd.f32 %v147, %v308
    %310 = vdwg.mxu0
    %311 = vmatprep.subr.mxu0 0.0
    %312 = vmatpush1.msra.mxu0 0.0
    %313 = vmatprep.subr.mxu0 0.0
    %314 = vmatpush1.msra.mxu0 0.0
    %315 = vmatprep.subr.mxu0 0.0
    %316 = vmatpush1.msra.mxu0 0.0
    %317 = vmatprep.subr.mxu0 0.0
    %318 = vmatpush1.msra.mxu0 0.0
    %319 = vmatprep.subr.mxu0 0.0
    %320 = vmatpush1.msra.mxu0 0.0
    %321 = vmatprep.subr.mxu0 0.0
    %322 = vmatpush1.msra.mxu0 0.0
    %323 = vmatprep.subr.mxu0 0.0
    %324 = vmatpush1.msra.mxu0 0.0
    %325 = vmatprep.subr.mxu0 0.0
    %326 = vmatpush1.msra.mxu0 0.0
    %327 = vmatprep.subr.mxu0 0.0
    %328 = vmatpush1.msra.mxu0 0.0
    %329 = vmatprep.subr.mxu0 0.0
    %330 = vmatpush1.msra.mxu0 0.0
    %331 = vmatprep.subr.mxu0 0.0
    %332 = vmatpush1.msra.mxu0 0.0
    %333 = vmatprep.subr.mxu0 0.0
    %334 = vmatpush1.msra.mxu0 0.0
    %335 = vmatprep.subr.mxu0 0.0
    %336 = vmatpush1.msra.mxu0 0.0
    %337 = vmatprep.subr.mxu0 0.0
    %338 = vmatpush1.msra.mxu0 0.0
    %339 = vmatprep.subr.mxu0 0.0
    %340 = vmatpush1.msra.mxu0 0.0
    %341 = vmatprep.subr.mxu0 %v196
    %342 = vmatpush1.msra.mxu0 %v194
    %343 = vmatprep.subr.mxu0 0.0
    %344 = vmatpush2.msra.mxu0 0.0
    %345 = vmatprep.subr.mxu0 0.0
    %346 = vmatpush2.msra.mxu0 0.0
    %347 = vmatprep.subr.mxu0 0.0
    %348 = vmatpush2.msra.mxu0 0.0
    %349 = vmatprep.subr.mxu0 0.0
    %350 = vmatpush2.msra.mxu0 0.0
    %351 = vmatprep.subr.mxu0 0.0
    %352 = vmatpush2.msra.mxu0 0.0
    %353 = vmatprep.subr.mxu0 0.0
    %354 = vmatpush2.msra.mxu0 0.0
    %355 = vmatprep.subr.mxu0 0.0
    %356 = vmatpush2.msra.mxu0 0.0
    %357 = vmatprep.subr.mxu0 0.0
    %358 = vmatpush2.msra.mxu0 0.0
    %359 = vmatprep.subr.mxu0 0.0
    %360 = vmatpush2.msra.mxu0 0.0
    %361 = vmatprep.subr.mxu0 0.0
    %362 = vmatpush2.msra.mxu0 0.0
    %363 = vmatprep.subr.mxu0 0.0
    %364 = vmatpush2.msra.mxu0 0.0
    %365 = vmatprep.subr.mxu0 0.0
    %366 = vmatpush2.msra.mxu0 0.0
    %367 = vmatprep.subr.mxu0 0.0
    %368 = vmatpush2.msra.mxu0 0.0
    %369 = vmatprep.subr.mxu0 0.0
    %370 = vmatpush2.msra.mxu0 0.0
    %371 = vmatprep.subr.mxu0 0.0
    %372 = vmatpush2.msra.mxu0 0.0
    %373 = vmatprep.subr.mxu0 0.0
    %374 = vmatpush2.msra.mxu0 0.0
    %375 = vmatprep.mubr.f32.mxu0 0.0
    %376 = vmatmul.mubr.f32.gmra.mxu0 %v166
    %v377 = vpop.f32.mrf.mxu0
    %v378 = vadd.f32 %v151, %v377
    %v379 = vpop.f32.mrf.mxu0
    %v380 = vadd.f32 %v155, %v379
    %381 = vmatprep.mubr.f32.mxu0 0.0
    %382 = vmatmul.mubr.f32.gmra.mxu0 %v169
    %v383 = vpop.f32.mrf.mxu0
    %v384 = vadd.f32 %v151, %v383
    %v385 = vpop.f32.mrf.mxu0
    %v386 = vadd.f32 %v155, %v385
    %387 = vmatprep.mubr.f32.mxu0 0.0
    %388 = vmatmul.mubr.f32.gmra.mxu0 %v172
    %v389 = vpop.f32.mrf.mxu0
    %v390 = vadd.f32 %v151, %v389
    %v391 = vpop.f32.mrf.mxu0
    %v392 = vadd.f32 %v155, %v391
    %393 = vmatprep.mubr.f32.mxu0 0.0
    %394 = vmatmul.mubr.f32.gmra.mxu0 %v175
    %v395 = vpop.f32.mrf.mxu0
    %v396 = vadd.f32 %v151, %v395
    %v397 = vpop.f32.mrf.mxu0
    %v398 = vadd.f32 %v155, %v397
    %399 = vmatprep.mubr.f32.mxu0 0.0
    %400 = vmatmul.mubr.f32.gmra.mxu0 %v178
    %v401 = vpop.f32.mrf.mxu0
    %v402 = vadd.f32 %v151, %v401
    %v403 = vpop.f32.mrf.mxu0
    %v404 = vadd.f32 %v155, %v403
    %405 = vmatprep.mubr.f32.mxu0 0.0
    %406 = vmatmul.mubr.f32.gmra.mxu0 %v181
    %v407 = vpop.f32.mrf.mxu0
    %v408 = vadd.f32 %v151, %v407
    %v409 = vpop.f32.mrf.mxu0
    %v410 = vadd.f32 %v155, %v409
    %411 = vmatprep.mubr.f32.mxu0 0.0
    %412 = vmatmul.mubr.f32.gmra.mxu0 %v184
    %v413 = vpop.f32.mrf.mxu0
    %v414 = vadd.f32 %v151, %v413
    %v415 = vpop.f32.mrf.mxu0
    %v416 = vadd.f32 %v155, %v415
    %417 = vmatprep.mubr.f32.mxu0 0.0
    %418 = vmatmul.mubr.f32.gmra.mxu0 %v187
    %v419 = vpop.f32.mrf.mxu0
    %v420 = vadd.f32 %v151, %v419
    %v421 = vpop.f32.mrf.mxu0
    %v422 = vadd.f32 %v155, %v421
    %423 = vdwg.mxu0
    %424 = vst [vmem:[#allocation3] sm:$0xff] %v265
    %425 = vst [vmem:[#allocation3 + $0x8] sm:$0xff] %v267
    %426 = vst [vmem:[#allocation3 + $0x10] sm:$0xff] %v378
    %427 = vst [vmem:[#allocation3 + $0x18] sm:$0xff] %v380
    %428 = vst [vmem:[#allocation3 + $0x20] sm:$0xff] %v271
    %429 = vst [vmem:[#allocation3 + $0x28] sm:$0xff] %v273
    %430 = vst [vmem:[#allocation3 + $0x30] sm:$0xff] %v384
    %431 = vst [vmem:[#allocation3 + $0x38] sm:$0xff] %v386
    %432 = vst [vmem:[#allocation3 + $0x40] sm:$0xff] %v277
    %433 = vst [vmem:[#allocation3 + $0x48] sm:$0xff] %v279
    %434 = vst [vmem:[#allocation3 + $0x50] sm:$0xff] %v390
    %435 = vst [vmem:[#allocation3 + $0x58] sm:$0xff] %v392
    %436 = vst [vmem:[#allocation3 + $0x60] sm:$0xff] %v283
    %437 = vst [vmem:[#allocation3 + $0x68] sm:$0xff] %v285
    %438 = vst [vmem:[#allocation3 + $0x70] sm:$0xff] %v396
    %439 = vst [vmem:[#allocation3 + $0x78] sm:$0xff] %v398
    %440 = vst [vmem:[#allocation3 + $0x80] sm:$0xff] %v289
    %441 = vst [vmem:[#allocation3 + $0x88] sm:$0xff] %v291
    %442 = vst [vmem:[#allocation3 + $0x90] sm:$0xff] %v402
    %443 = vst [vmem:[#allocation3 + $0x98] sm:$0xff] %v404
    %444 = vst [vmem:[#allocation3 + $0xa0] sm:$0xff] %v295
    %445 = vst [vmem:[#allocation3 + $0xa8] sm:$0xff] %v297
    %446 = vst [vmem:[#allocation3 + $0xb0] sm:$0xff] %v408
    %447 = vst [vmem:[#allocation3 + $0xb8] sm:$0xff] %v410
    %448 = vst [vmem:[#allocation3 + $0xc0] sm:$0xff] %v301
    %449 = vst [vmem:[#allocation3 + $0xc8] sm:$0xff] %v303
    %450 = vst [vmem:[#allocation3 + $0xd0] sm:$0xff] %v414
    %451 = vst [vmem:[#allocation3 + $0xd8] sm:$0xff] %v416
    %452 = vst [vmem:[#allocation3 + $0xe0] sm:$0xff] %v307
    %453 = vst [vmem:[#allocation3 + $0xe8] sm:$0xff] %v309
    %454 = vst [vmem:[#allocation3 + $0xf0] sm:$0xff] %v420
    %455 = vst [vmem:[#allocation3 + $0xf8] sm:$0xff] %v422
    %v456 = vld [vmem:[%s4] sm:$0xff]
    %457 = vst [vmem:[#allocation4] sm:$0xff] %v456
    %v458 = vld [vmem:[%s5] sm:$0xff]
    %459 = vst [vmem:[#allocation5] sm:$0xff] %v458
    %s460 = smul.u32 0, 4
    %s461 = smul.addr %s460, 8
    %s462 = scalar_lea.vmem [#allocation3], %s461
    %v463 = vld [vmem:[%s462] sm:$0xff]
    %v464 = vld [vmem:[%s462 + $0x8] sm:$0xff]
    %v465 = vld [vmem:[%s462 + $0x10] sm:$0xff]
    %v466 = vld [vmem:[%s462 + $0x18] sm:$0xff]
    %v467 = vld [vmem:[#allocation4] sm:$0xff]
    %v468 = vld [vmem:[#allocation6] sm:$0xff]
    %v469 = vld [vmem:[#allocation6 + $0x8] sm:$0xff]
    %v470 = vld [vmem:[#allocation6 + $0x10] sm:$0xff]
    %v471 = vld [vmem:[#allocation6 + $0x18] sm:$0xff]
    %v472 = vld [vmem:[#allocation6 + $0x20] sm:$0xff]
    %v473 = vld [vmem:[#allocation6 + $0x28] sm:$0xff]
    %v474 = vld [vmem:[#allocation6 + $0x30] sm:$0xff]
    %v475 = vld [vmem:[#allocation6 + $0x38] sm:$0xff]
    %v476 = vld [vmem:[#allocation6 + $0x40] sm:$0xff]
    %v477 = vld [vmem:[#allocation6 + $0x48] sm:$0xff]
    %v478 = vld [vmem:[#allocation6 + $0x50] sm:$0xff]
    %v479 = vld [vmem:[#allocation6 + $0x58] sm:$0xff]
    %v480 = vld [vmem:[#allocation6 + $0x60] sm:$0xff]
    %v481 = vld [vmem:[#allocation6 + $0x68] sm:$0xff]
    %v482 = vld [vmem:[#allocation6 + $0x70] sm:$0xff]
    %v483 = vld [vmem:[#allocation6 + $0x78] sm:$0xff]
    %v484 = vld [vmem:[#allocation6 + $0x80] sm:$0xff]
    %v485 = vld [vmem:[#allocation6 + $0x88] sm:$0xff]
    %v486 = vld [vmem:[#allocation6 + $0x90] sm:$0xff]
    %v487 = vld [vmem:[#allocation6 + $0x98] sm:$0xff]
    %v488 = vld [vmem:[#allocation6 + $0xa0] sm:$0xff]
    %v489 = vld [vmem:[#allocation6 + $0xa8] sm:$0xff]
    %v490 = vld [vmem:[#allocation6 + $0xb0] sm:$0xff]
    %v491 = vld [vmem:[#allocation6 + $0xb8] sm:$0xff]
    %v492 = vld [vmem:[#allocation6 + $0xc0] sm:$0xff]
    %v493 = vld [vmem:[#allocation6 + $0xc8] sm:$0xff]
    %v494 = vld [vmem:[#allocation6 + $0xd0] sm:$0xff]
    %v495 = vld [vmem:[#allocation6 + $0xd8] sm:$0xff]
    %v496 = vld [vmem:[#allocation6 + $0xe0] sm:$0xff]
    %v497 = vld [vmem:[#allocation6 + $0xe8] sm:$0xff]
    %v498 = vld [vmem:[#allocation6 + $0xf0] sm:$0xff]
    %v499 = vld [vmem:[#allocation6 + $0xf8] sm:$0xff]
    %v500 = vld [vmem:[#allocation6 + $0x100] sm:$0xff]
    %v501 = vld [vmem:[#allocation6 + $0x108] sm:$0xff]
    %v502 = vld [vmem:[#allocation6 + $0x110] sm:$0xff]
    %v503 = vld [vmem:[#allocation6 + $0x118] sm:$0xff]
    %v504 = vld [vmem:[#allocation6 + $0x120] sm:$0xff]
    %v505 = vld [vmem:[#allocation6 + $0x128] sm:$0xff]
    %v506 = vld [vmem:[#allocation6 + $0x130] sm:$0xff]
    %v507 = vld [vmem:[#allocation6 + $0x138] sm:$0xff]
    %v508 = vld [vmem:[#allocation6 + $0x140] sm:$0xff]
    %v509 = vld [vmem:[#allocation6 + $0x148] sm:$0xff]
    %v510 = vld [vmem:[#allocation6 + $0x150] sm:$0xff]
    %v511 = vld [vmem:[#allocation6 + $0x158] sm:$0xff]
    %v512 = vld [vmem:[#allocation6 + $0x160] sm:$0xff]
    %v513 = vld [vmem:[#allocation6 + $0x168] sm:$0xff]
    %v514 = vld [vmem:[#allocation6 + $0x170] sm:$0xff]
    %v515 = vld [vmem:[#allocation6 + $0x178] sm:$0xff]
    %v516 = vld [vmem:[#allocation6 + $0x180] sm:$0xff]
    %v517 = vld [vmem:[#allocation6 + $0x188] sm:$0xff]
    %v518 = vld [vmem:[#allocation6 + $0x190] sm:$0xff]
    %v519 = vld [vmem:[#allocation6 + $0x198] sm:$0xff]
    %v520 = vld [vmem:[#allocation6 + $0x1a0] sm:$0xff]
    %v521 = vld [vmem:[#allocation6 + $0x1a8] sm:$0xff]
    %v522 = vld [vmem:[#allocation6 + $0x1b0] sm:$0xff]
    %v523 = vld [vmem:[#allocation6 + $0x1b8] sm:$0xff]
    %v524 = vld [vmem:[#allocation6 + $0x1c0] sm:$0xff]
    %v525 = vld [vmem:[#allocation6 + $0x1c8] sm:$0xff]
    %v526 = vld [vmem:[#allocation6 + $0x1d0] sm:$0xff]
    %v527 = vld [vmem:[#allocation6 + $0x1d8] sm:$0xff]
    %v528 = vld [vmem:[#allocation6 + $0x1e0] sm:$0xff]
    %v529 = vld [vmem:[#allocation6 + $0x1e8] sm:$0xff]
    %v530 = vld [vmem:[#allocation6 + $0x1f0] sm:$0xff]
    %v531 = vld [vmem:[#allocation6 + $0x1f8] sm:$0xff]
    %532 = vmatprep.subr.mxu0 %v529
    %533 = vmatpush1.msra.mxu0 %v528
    %534 = vmatprep.subr.mxu0 %v525
    %535 = vmatpush1.msra.mxu0 %v524
    %536 = vmatprep.subr.mxu0 %v521
    %537 = vmatpush1.msra.mxu0 %v520
    %538 = vmatprep.subr.mxu0 %v517
    %539 = vmatpush1.msra.mxu0 %v516
    %540 = vmatprep.subr.mxu0 %v513
    %541 = vmatpush1.msra.mxu0 %v512
    %542 = vmatprep.subr.mxu0 %v509
    %543 = vmatpush1.msra.mxu0 %v508
    %544 = vmatprep.subr.mxu0 %v505
    %545 = vmatpush1.msra.mxu0 %v504
    %546 = vmatprep.subr.mxu0 %v501
    %547 = vmatpush1.msra.mxu0 %v500
    %548 = vmatprep.subr.mxu0 %v497
    %549 = vmatpush1.msra.mxu0 %v496
    %550 = vmatprep.subr.mxu0 %v493
    %551 = vmatpush1.msra.mxu0 %v492
    %552 = vmatprep.subr.mxu0 %v489
    %553 = vmatpush1.msra.mxu0 %v488
    %554 = vmatprep.subr.mxu0 %v485
    %555 = vmatpush1.msra.mxu0 %v484
    %556 = vmatprep.subr.mxu0 %v481
    %557 = vmatpush1.msra.mxu0 %v480
    %558 = vmatprep.subr.mxu0 %v477
    %559 = vmatpush1.msra.mxu0 %v476
    %560 = vmatprep.subr.mxu0 %v473
    %561 = vmatpush1.msra.mxu0 %v472
    %562 = vmatprep.subr.mxu0 %v469
    %563 = vmatpush1.msra.mxu0 %v468
    %564 = vmatprep.subr.mxu0 0.0
    %565 = vmatpush2.msra.mxu0 0.0
    %566 = vmatprep.subr.mxu0 0.0
    %567 = vmatpush2.msra.mxu0 0.0
    %568 = vmatprep.subr.mxu0 0.0
    %569 = vmatpush2.msra.mxu0 0.0
    %570 = vmatprep.subr.mxu0 0.0
    %571 = vmatpush2.msra.mxu0 0.0
    %572 = vmatprep.subr.mxu0 0.0
    %573 = vmatpush2.msra.mxu0 0.0
    %574 = vmatprep.subr.mxu0 0.0
    %575 = vmatpush2.msra.mxu0 0.0
    %576 = vmatprep.subr.mxu0 0.0
    %577 = vmatpush2.msra.mxu0 0.0
    %578 = vmatprep.subr.mxu0 0.0
    %579 = vmatpush2.msra.mxu0 0.0
    %580 = vmatprep.subr.mxu0 0.0
    %581 = vmatpush2.msra.mxu0 0.0
    %582 = vmatprep.subr.mxu0 0.0
    %583 = vmatpush2.msra.mxu0 0.0
    %584 = vmatprep.subr.mxu0 0.0
    %585 = vmatpush2.msra.mxu0 0.0
    %586 = vmatprep.subr.mxu0 0.0
    %587 = vmatpush2.msra.mxu0 0.0
    %588 = vmatprep.subr.mxu0 0.0
    %589 = vmatpush2.msra.mxu0 0.0
    %590 = vmatprep.subr.mxu0 0.0
    %591 = vmatpush2.msra.mxu0 0.0
    %592 = vmatprep.subr.mxu0 0.0
    %593 = vmatpush2.msra.mxu0 0.0
    %594 = vmatprep.subr.mxu0 0.0
    %595 = vmatpush2.msra.mxu0 0.0
    %596 = vmatprep.mubr.f32.mxu0 0.0
    %597 = vmatmul.mubr.f32.gmra.mxu0 %v467
    %v598 = vpop.f32.mrf.mxu0
    %v599 = vadd.f32 0.0, %v598
    %v600 = vpop.f32.mrf.mxu0
    %v601 = vadd.f32 0.0, %v600
    %602 = vdwg.mxu0
    %603 = vmatprep.subr.mxu0 %v531
    %604 = vmatpush1.msra.mxu0 %v530
    %605 = vmatprep.subr.mxu0 %v527
    %606 = vmatpush1.msra.mxu0 %v526
    %607 = vmatprep.subr.mxu0 %v523
    %608 = vmatpush1.msra.mxu0 %v522
    %609 = vmatprep.subr.mxu0 %v519
    %610 = vmatpush1.msra.mxu0 %v518
    %611 = vmatprep.subr.mxu0 %v515
    %612 = vmatpush1.msra.mxu0 %v514
    %613 = vmatprep.subr.mxu0 %v511
    %614 = vmatpush1.msra.mxu0 %v510
    %615 = vmatprep.subr.mxu0 %v507
    %616 = vmatpush1.msra.mxu0 %v506
    %617 = vmatprep.subr.mxu0 %v503
    %618 = vmatpush1.msra.mxu0 %v502
    %619 = vmatprep.subr.mxu0 %v499
    %620 = vmatpush1.msra.mxu0 %v498
    %621 = vmatprep.subr.mxu0 %v495
    %622 = vmatpush1.msra.mxu0 %v494
    %623 = vmatprep.subr.mxu0 %v491
    %624 = vmatpush1.msra.mxu0 %v490
    %625 = vmatprep.subr.mxu0 %v487
    %626 = vmatpush1.msra.mxu0 %v486
    %627 = vmatprep.subr.mxu0 %v483
    %628 = vmatpush1.msra.mxu0 %v482
    %629 = vmatprep.subr.mxu0 %v479
    %630 = vmatpush1.msra.mxu0 %v478
    %631 = vmatprep.subr.mxu0 %v475
    %632 = vmatpush1.msra.mxu0 %v474
    %633 = vmatprep.subr.mxu0 %v471
    %634 = vmatpush1.msra.mxu0 %v470
    %635 = vmatprep.subr.mxu0 0.0
    %636 = vmatpush2.msra.mxu0 0.0
    %637 = vmatprep.subr.mxu0 0.0
    %638 = vmatpush2.msra.mxu0 0.0
    %639 = vmatprep.subr.mxu0 0.0
    %640 = vmatpush2.msra.mxu0 0.0
    %641 = vmatprep.subr.mxu0 0.0
    %642 = vmatpush2.msra.mxu0 0.0
    %643 = vmatprep.subr.mxu0 0.0
    %644 = vmatpush2.msra.mxu0 0.0
    %645 = vmatprep.subr.mxu0 0.0
    %646 = vmatpush2.msra.mxu0 0.0
    %647 = vmatprep.subr.mxu0 0.0
    %648 = vmatpush2.msra.mxu0 0.0
    %649 = vmatprep.subr.mxu0 0.0
    %650 = vmatpush2.msra.mxu0 0.0
    %651 = vmatprep.subr.mxu0 0.0
    %652 = vmatpush2.msra.mxu0 0.0
    %653 = vmatprep.subr.mxu0 0.0
    %654 = vmatpush2.msra.mxu0 0.0
    %655 = vmatprep.subr.mxu0 0.0
    %656 = vmatpush2.msra.mxu0 0.0
    %657 = vmatprep.subr.mxu0 0.0
    %658 = vmatpush2.msra.mxu0 0.0
    %659 = vmatprep.subr.mxu0 0.0
    %660 = vmatpush2.msra.mxu0 0.0
    %661 = vmatprep.subr.mxu0 0.0
    %662 = vmatpush2.msra.mxu0 0.0
    %663 = vmatprep.subr.mxu0 0.0
    %664 = vmatpush2.msra.mxu0 0.0
    %665 = vmatprep.subr.mxu0 0.0
    %666 = vmatpush2.msra.mxu0 0.0
    %667 = vmatprep.mubr.f32.mxu0 0.0
    %668 = vmatmul.mubr.f32.gmra.mxu0 %v467
    %v669 = vpop.f32.mrf.mxu0
    %v670 = vadd.f32 0.0, %v669
    %v671 = vpop.f32.mrf.mxu0
    %v672 = vadd.f32 0.0, %v671
    %673 = vdwg.mxu0
    %v674 = vadd.f32 %v463, %v599
    %v675 = vadd.f32 %v464, %v601
    %v676 = vadd.f32 %v465, %v670
    %v677 = vadd.f32 %v466, %v672
    %v678 = vmul.f32 %v674, 0.5
    %v679 = vtanh.pop %v678
    %v680 = vmul.f32 %v679, 0.5
    %v681 = vadd.f32 %v680, 0.5
    %v682 = vmul.f32 %v675, 0.5
    %v683 = vtanh.pop %v682
    %v684 = vmul.f32 %v683, 0.5
    %v685 = vadd.f32 %v684, 0.5
    %v686 = vtanh.pop %v676
    %v687 = vmul.f32 %v677, 0.5
    %v688 = vtanh.pop %v687
    %v689 = vmul.f32 %v688, 0.5
    %v690 = vadd.f32 %v689, 0.5
    %v691 = vld [vmem:[#allocation5] sm:$0xff]
    %v692 = vmul.f32 %v685, %v691
    %v693 = vmul.f32 %v681, %v686
    %v694 = vadd.f32 %v692, %v693
    %v695 = vtanh.pop %v694
    %v696 = vmul.f32 %v690, %v695
    %697 = vst [vmem:[#allocation5] sm:$0xff] %v694
    %698 = vst [vmem:[#allocation4] sm:$0xff] %v696
    %699 = vst [vmem:[#allocation2] sm:$0xff] %v696
    %s700 = smul.u32 1, 4
    %s701 = smul.addr %s700, 8
    %s702 = scalar_lea.vmem [#allocation3], %s701
    %v703 = vld [vmem:[%s702] sm:$0xff]
    %v704 = vld [vmem:[%s702 + $0x8] sm:$0xff]
    %v705 = vld [vmem:[%s702 + $0x10] sm:$0xff]
    %v706 = vld [vmem:[%s702 + $0x18] sm:$0xff]
    %v707 = vld [vmem:[#allocation4] sm:$0xff]
    %v708 = vld [vmem:[#allocation6] sm:$0xff]
    %v709 = vld [vmem:[#allocation6 + $0x8] sm:$0xff]
    %v710 = vld [vmem:[#allocation6 + $0x10] sm:$0xff]
    %v711 = vld [vmem:[#allocation6 + $0x18] sm:$0xff]
    %v712 = vld [vmem:[#allocation6 + $0x20] sm:$0xff]
    %v713 = vld [vmem:[#allocation6 + $0x28] sm:$0xff]
    %v714 = vld [vmem:[#allocation6 + $0x30] sm:$0xff]
    %v715 = vld [vmem:[#allocation6 + $0x38] sm:$0xff]
    %v716 = vld [vmem:[#allocation6 + $0x40] sm:$0xff]
    %v717 = vld [vmem:[#allocation6 + $0x48] sm:$0xff]
    %v718 = vld [vmem:[#allocation6 + $0x50] sm:$0xff]
    %v719 = vld [vmem:[#allocation6 + $0x58] sm:$0xff]
    %v720 = vld [vmem:[#allocation6 + $0x60] sm:$0xff]
    %v721 = vld [vmem:[#allocation6 + $0x68] sm:$0xff]
    %v722 = vld [vmem:[#allocation6 + $0x70] sm:$0xff]
    %v723 = vld [vmem:[#allocation6 + $0x78] sm:$0xff]
    %v724 = vld [vmem:[#allocation6 + $0x80] sm:$0xff]
    %v725 = vld [vmem:[#allocation6 + $0x88] sm:$0xff]
    %v726 = vld [vmem:[#allocation6 + $0x90] sm:$0xff]
    %v727 = vld [vmem:[#allocation6 + $0x98] sm:$0xff]
    %v728 = vld [vmem:[#allocation6 + $0xa0] sm:$0xff]
    %v729 = vld [vmem:[#allocation6 + $0xa8] sm:$0xff]
    %v730 = vld [vmem:[#allocation6 + $0xb0] sm:$0xff]
    %v731 = vld [vmem:[#allocation6 + $0xb8] sm:$0xff]
    %v732 = vld [vmem:[#allocation6 + $0xc0] sm:$0xff]
    %v733 = vld [vmem:[#allocation6 + $0xc8] sm:$0xff]
    %v734 = vld [vmem:[#allocation6 + $0xd0] sm:$0xff]
    %v735 = vld [vmem:[#allocation6 + $0xd8] sm:$0xff]
    %v736 = vld [vmem:[#allocation6 + $0xe0] sm:$0xff]
    %v737 = vld [vmem:[#allocation6 + $0xe8] sm:$0xff]
    %v738 = vld [vmem:[#allocation6 + $0xf0] sm:$0xff]
    %v739 = vld [vmem:[#allocation6 + $0xf8] sm:$0xff]
    %v740 = vld [vmem:[#allocation6 + $0x100] sm:$0xff]
    %v741 = vld [vmem:[#allocation6 + $0x108] sm:$0xff]
    %v742 = vld [vmem:[#allocation6 + $0x110] sm:$0xff]
    %v743 = vld [vmem:[#allocation6 + $0x118] sm:$0xff]
    %v744 = vld [vmem:[#allocation6 + $0x120] sm:$0xff]
    %v745 = vld [vmem:[#allocation6 + $0x128] sm:$0xff]
    %v746 = vld [vmem:[#allocation6 + $0x130] sm:$0xff]
    %v747 = vld [vmem:[#allocation6 + $0x138] sm:$0xff]
    %v748 = vld [vmem:[#allocation6 + $0x140] sm:$0xff]
    %v749 = vld [vmem:[#allocation6 + $0x148] sm:$0xff]
    %v750 = vld [vmem:[#allocation6 + $0x150] sm:$0xff]
    %v751 = vld [vmem:[#allocation6 + $0x158] sm:$0xff]
    %v752 = vld [vmem:[#allocation6 + $0x160] sm:$0xff]
    %v753 = vld [vmem:[#allocation6 + $0x168] sm:$0xff]
    %v754 = vld [vmem:[#allocation6 + $0x170] sm:$0xff]
    %v755 = vld [vmem:[#allocation6 + $0x178] sm:$0xff]
    %v756 = vld [vmem:[#allocation6 + $0x180] sm:$0xff]
    %v757 = vld [vmem:[#allocation6 + $0x188] sm:$0xff]
    %v758 = vld [vmem:[#allocation6 + $0x190] sm:$0xff]
    %v759 = vld [vmem:[#allocation6 + $0x198] sm:$0xff]
    %v760 = vld [vmem:[#allocation6 + $0x1a0] sm:$0xff]
    %v761 = vld [vmem:[#allocation6 + $0x1a8] sm:$0xff]
    %v762 = vld [vmem:[#allocation6 + $0x1b0] sm:$0xff]
    %v763 = vld [vmem:[#allocation6 + $0x1b8] sm:$0xff]
    %v764 = vld [vmem:[#allocation6 + $0x1c0] sm:$0xff]
    %v765 = vld [vmem:[#allocation6 + $0x1c8] sm:$0xff]
    %v766 = vld [vmem:[#allocation6 + $0x1d0] sm:$0xff]
    %v767 = vld [vmem:[#allocation6 + $0x1d8] sm:$0xff]
    %v768 = vld [vmem:[#allocation6 + $0x1e0] sm:$0xff]
    %v769 = vld [vmem:[#allocation6 + $0x1e8] sm:$0xff]
    %v770 = vld [vmem:[#allocation6 + $0x1f0] sm:$0xff]
    %v771 = vld [vmem:[#allocation6 + $0x1f8] sm:$0xff]
    %772 = vmatprep.subr.mxu0 %v769
    %773 = vmatpush1.msra.mxu0 %v768
    %774 = vmatprep.subr.mxu0 %v765
    %775 = vmatpush1.msra.mxu0 %v764
    %776 = vmatprep.subr.mxu0 %v761
    %777 = vmatpush1.msra.mxu0 %v760
    %778 = vmatprep.subr.mxu0 %v757
    %779 = vmatpush1.msra.mxu0 %v756
    %780 = vmatprep.subr.mxu0 %v753
    %781 = vmatpush1.msra.mxu0 %v752
    %782 = vmatprep.subr.mxu0 %v749
    %783 = vmatpush1.msra.mxu0 %v748
    %784 = vmatprep.subr.mxu0 %v745
    %785 = vmatpush1.msra.mxu0 %v744
    %786 = vmatprep.subr.mxu0 %v741
    %787 = vmatpush1.msra.mxu0 %v740
    %788 = vmatprep.subr.mxu0 %v737
    %789 = vmatpush1.msra.mxu0 %v736
    %790 = vmatprep.subr.mxu0 %v733
    %791 = vmatpush1.msra.mxu0 %v732
    %792 = vmatprep.subr.mxu0 %v729
    %793 = vmatpush1.msra.mxu0 %v728
    %794 = vmatprep.subr.mxu0 %v725
    %795 = vmatpush1.msra.mxu0 %v724
    %796 = vmatprep.subr.mxu0 %v721
    %797 = vmatpush1.msra.mxu0 %v720
    %798 = vmatprep.subr.mxu0 %v717
    %799 = vmatpush1.msra.mxu0 %v716
    %800 = vmatprep.subr.mxu0 %v713
    %801 = vmatpush1.msra.mxu0 %v712
    %802 = vmatprep.subr.mxu0 %v709
    %803 = vmatpush1.msra.mxu0 %v708
    %804 = vmatprep.subr.mxu0 0.0
    %805 = vmatpush2.msra.mxu0 0.0
    %806 = vmatprep.subr.mxu0 0.0
    %807 = vmatpush2.msra.mxu0 0.0
    %808 = vmatprep.subr.mxu0 0.0
    %809 = vmatpush2.msra.mxu0 0.0
    %810 = vmatprep.subr.mxu0 0.0
    %811 = vmatpush2.msra.mxu0 0.0
    %812 = vmatprep.subr.mxu0 0.0
    %813 = vmatpush2.msra.mxu0 0.0
    %814 = vmatprep.subr.mxu0 0.0
    %815 = vmatpush2.msra.mxu0 0.0
    %816 = vmatprep.subr.mxu0 0.0
    %817 = vmatpush2.msra.mxu0 0.0
    %818 = vmatprep.subr.mxu0 0.0
    %819 = vmatpush2.msra.mxu0 0.0
    %820 = vmatprep.subr.mxu0 0.0
    %821 = vmatpush2.msra.mxu0 0.0
    %822 = vmatprep.subr.mxu0 0.0
    %823 = vmatpush2.msra.mxu0 0.0
    %824 = vmatprep.subr.mxu0 0.0
    %825 = vmatpush2.msra.mxu0 0.0
    %826 = vmatprep.subr.mxu0 0.0
    %827 = vmatpush2.msra.mxu0 0.0
    %828 = vmatprep.subr.mxu0 0.0
    %829 = vmatpush2.msra.mxu0 0.0
    %830 = vmatprep.subr.mxu0 0.0
    %831 = vmatpush2.msra.mxu0 0.0
    %832 = vmatprep.subr.mxu0 0.0
    %833 = vmatpush2.msra.mxu0 0.0
    %834 = vmatprep.subr.mxu0 0.0
    %835 = vmatpush2.msra.mxu0 0.0
    %836 = vmatprep.mubr.f32.mxu0 0.0
    %837 = vmatmul.mubr.f32.gmra.mxu0 %v707
    %v838 = vpop.f32.mrf.mxu0
    %v839 = vadd.f32 0.0, %v838
    %v840 = vpop.f32.mrf.mxu0
    %v841 = vadd.f32 0.0, %v840
    %842 = vdwg.mxu0
    %843 = vmatprep.subr.mxu0 %v771
    %844 = vmatpush1.msra.mxu0 %v770
    %845 = vmatprep.subr.mxu0 %v767
    %846 = vmatpush1.msra.mxu0 %v766
    %847 = vmatprep.subr.mxu0 %v763
    %848 = vmatpush1.msra.mxu0 %v762
    %849 = vmatprep.subr.mxu0 %v759
    %850 = vmatpush1.msra.mxu0 %v758
    %851 = vmatprep.subr.mxu0 %v755
    %852 = vmatpush1.msra.mxu0 %v754
    %853 = vmatprep.subr.mxu0 %v751
    %854 = vmatpush1.msra.mxu0 %v750
    %855 = vmatprep.subr.mxu0 %v747
    %856 = vmatpush1.msra.mxu0 %v746
    %857 = vmatprep.subr.mxu0 %v743
    %858 = vmatpush1.msra.mxu0 %v742
    %859 = vmatprep.subr.mxu0 %v739
    %860 = vmatpush1.msra.mxu0 %v738
    %861 = vmatprep.subr.mxu0 %v735
    %862 = vmatpush1.msra.mxu0 %v734
    %863 = vmatprep.subr.mxu0 %v731
    %864 = vmatpush1.msra.mxu0 %v730
    %865 = vmatprep.subr.mxu0 %v727
    %866 = vmatpush1.msra.mxu0 %v726
    %867 = vmatprep.subr.mxu0 %v723
    %868 = vmatpush1.msra.mxu0 %v722
    %869 = vmatprep.subr.mxu0 %v719
    %870 = vmatpush1.msra.mxu0 %v718
    %871 = vmatprep.subr.mxu0 %v715
    %872 = vmatpush1.msra.mxu0 %v714
    %873 = vmatprep.subr.mxu0 %v711
    %874 = vmatpush1.msra.mxu0 %v710
    %875 = vmatprep.subr.mxu0 0.0
    %876 = vmatpush2.msra.mxu0 0.0
    %877 = vmatprep.subr.mxu0 0.0
    %878 = vmatpush2.msra.mxu0 0.0
    %879 = vmatprep.subr.mxu0 0.0
    %880 = vmatpush2.msra.mxu0 0.0
    %881 = vmatprep.subr.mxu0 0.0
    %882 = vmatpush2.msra.mxu0 0.0
    %883 = vmatprep.subr.mxu0 0.0
    %884 = vmatpush2.msra.mxu0 0.0
    %885 = vmatprep.subr.mxu0 0.0
    %886 = vmatpush2.msra.mxu0 0.0
    %887 = vmatprep.subr.mxu0 0.0
    %888 = vmatpush2.msra.mxu0 0.0
    %889 = vmatprep.subr.mxu0 0.0
    %890 = vmatpush2.msra.mxu0 0.0
    %891 = vmatprep.subr.mxu0 0.0
    %892 = vmatpush2.msra.mxu0 0.0
    %893 = vmatprep.subr.mxu0 0.0
    %894 = vmatpush2.msra.mxu0 0.0
    %895 = vmatprep.subr.mxu0 0.0
    %896 = vmatpush2.msra.mxu0 0.0
    %897 = vmatprep.subr.mxu0 0.0
    %898 = vmatpush2.msra.mxu0 0.0
    %899 = vmatprep.subr.mxu0 0.0
    %900 = vmatpush2.msra.mxu0 0.0
    %901 = vmatprep.subr.mxu0 0.0
    %902 = vmatpush2.msra.mxu0 0.0
    %903 = vmatprep.subr.mxu0 0.0
    %904 = vmatpush2.msra.mxu0 0.0
    %905 = vmatprep.subr.mxu0 0.0
    %906 = vmatpush2.msra.mxu0 0.0
    %907 = vmatprep.mubr.f32.mxu0 0.0
    %908 = vmatmul.mubr.f32.gmra.mxu0 %v707
    %v909 = vpop.f32.mrf.mxu0
    %v910 = vadd.f32 0.0, %v909
    %v911 = vpop.f32.mrf.mxu0
    %v912 = vadd.f32 0.0, %v911
    %913 = vdwg.mxu0
    %v914 = vadd.f32 %v703, %v839
    %v915 = vadd.f32 %v704, %v841
    %v916 = vadd.f32 %v705, %v910
    %v917 = vadd.f32 %v706, %v912
    %v918 = vmul.f32 %v914, 0.5
    %v919 = vtanh.pop %v918
    %v920 = vmul.f32 %v919, 0.5
    %v921 = vadd.f32 %v920, 0.5
    %v922 = vmul.f32 %v915, 0.5
    %v923 = vtanh.pop %v922
    %v924 = vmul.f32 %v923, 0.5
    %v925 = vadd.f32 %v924, 0.5
    %v926 = vtanh.pop %v916
    %v927 = vmul.f32 %v917, 0.5
    %v928 = vtanh.pop %v927
    %v929 = vmul.f32 %v928, 0.5
    %v930 = vadd.f32 %v929, 0.5
    %v931 = vld [vmem:[#allocation5] sm:$0xff]
    %v932 = vmul.f32 %v925, %v931
    %v933 = vmul.f32 %v921, %v926
    %v934 = vadd.f32 %v932, %v933
    %v935 = vtanh.pop %v934
    %v936 = vmul.f32 %v930, %v935
    %937 = vst [vmem:[#allocation5] sm:$0xff] %v934
    %938 = vst [vmem:[#allocation4] sm:$0xff] %v936
    %s939 = scalar_lea.vmem [#allocation2], 8
    %940 = vst [vmem:[%s939] sm:$0xff] %v936
    %s941 = smul.u32 2, 4
    %s942 = smul.addr %s941, 8
    %s943 = scalar_lea.vmem [#allocation3], %s942
    %v944 = vld [vmem:[%s943] sm:$0xff]
    %v945 = vld [vmem:[%s943 + $0x8] sm:$0xff]
    %v946 = vld [vmem:[%s943 + $0x10] sm:$0xff]
    %v947 = vld [vmem:[%s943 + $0x18] sm:$0xff]
    %v948 = vld [vmem:[#allocation4] sm:$0xff]
    %v949 = vld [vmem:[#allocation6] sm:$0xff]
    %v950 = vld [vmem:[#allocation6 + $0x8] sm:$0xff]
    %v951 = vld [vmem:[#allocation6 + $0x10] sm:$0xff]
    %v952 = vld [vmem:[#allocation6 + $0x18] sm:$0xff]
    %v953 = vld [vmem:[#allocation6 + $0x20] sm:$0xff]
    %v954 = vld [vmem:[#allocation6 + $0x28] sm:$0xff]
    %v955 = vld [vmem:[#allocation6 + $0x30] sm:$0xff]
    %v956 = vld [vmem:[#allocation6 + $0x38] sm:$0xff]
    %v957 = vld [vmem:[#allocation6 + $0x40] sm:$0xff]
    %v958 = vld [vmem:[#allocation6 + $0x48] sm:$0xff]
    %v959 = vld [vmem:[#allocation6 + $0x50] sm:$0xff]
    %v960 = vld [vmem:[#allocation6 + $0x58] sm:$0xff]
    %v961 = vld [vmem:[#allocation6 + $0x60] sm:$0xff]
    %v962 = vld [vmem:[#allocation6 + $0x68] sm:$0xff]
    %v963 = vld [vmem:[#allocation6 + $0x70] sm:$0xff]
    %v964 = vld [vmem:[#allocation6 + $0x78] sm:$0xff]
    %v965 = vld [vmem:[#allocation6 + $0x80] sm:$0xff]
    %v966 = vld [vmem:[#allocation6 + $0x88] sm:$0xff]
    %v967 = vld [vmem:[#allocation6 + $0x90] sm:$0xff]
    %v968 = vld [vmem:[#allocation6 + $0x98] sm:$0xff]
    %v969 = vld [vmem:[#allocation6 + $0xa0] sm:$0xff]
    %v970 = vld [vmem:[#allocation6 + $0xa8] sm:$0xff]
    %v971 = vld [vmem:[#allocation6 + $0xb0] sm:$0xff]
    %v972 = vld [vmem:[#allocation6 + $0xb8] sm:$0xff]
    %v973 = vld [vmem:[#allocation6 + $0xc0] sm:$0xff]
    %v974 = vld [vmem:[#allocation6 + $0xc8] sm:$0xff]
    %v975 = vld [vmem:[#allocation6 + $0xd0] sm:$0xff]
    %v976 = vld [vmem:[#allocation6 + $0xd8] sm:$0xff]
    %v977 = vld [vmem:[#allocation6 + $0xe0] sm:$0xff]
    %v978 = vld [vmem:[#allocation6 + $0xe8] sm:$0xff]
    %v979 = vld [vmem:[#allocation6 + $0xf0] sm:$0xff]
    %v980 = vld [vmem:[#allocation6 + $0xf8] sm:$0xff]
    %v981 = vld [vmem:[#allocation6 + $0x100] sm:$0xff]
    %v982 = vld [vmem:[#allocation6 + $0x108] sm:$0xff]
    %v983 = vld [vmem:[#allocation6 + $0x110] sm:$0xff]
    %v984 = vld [vmem:[#allocation6 + $0x118] sm:$0xff]
    %v985 = vld [vmem:[#allocation6 + $0x120] sm:$0xff]
    %v986 = vld [vmem:[#allocation6 + $0x128] sm:$0xff]
    %v987 = vld [vmem:[#allocation6 + $0x130] sm:$0xff]
    %v988 = vld [vmem:[#allocation6 + $0x138] sm:$0xff]
    %v989 = vld [vmem:[#allocation6 + $0x140] sm:$0xff]
    %v990 = vld [vmem:[#allocation6 + $0x148] sm:$0xff]
    %v991 = vld [vmem:[#allocation6 + $0x150] sm:$0xff]
    %v992 = vld [vmem:[#allocation6 + $0x158] sm:$0xff]
    %v993 = vld [vmem:[#allocation6 + $0x160] sm:$0xff]
    %v994 = vld [vmem:[#allocation6 + $0x168] sm:$0xff]
    %v995 = vld [vmem:[#allocation6 + $0x170] sm:$0xff]
    %v996 = vld [vmem:[#allocation6 + $0x178] sm:$0xff]
    %v997 = vld [vmem:[#allocation6 + $0x180] sm:$0xff]
    %v998 = vld [vmem:[#allocation6 + $0x188] sm:$0xff]
    %v999 = vld [vmem:[#allocation6 + $0x190] sm:$0xff]
    %v1000 = vld [vmem:[#allocation6 + $0x198] sm:$0xff]
    %v1001 = vld [vmem:[#allocation6 + $0x1a0] sm:$0xff]
    %v1002 = vld [vmem:[#allocation6 + $0x1a8] sm:$0xff]
    %v1003 = vld [vmem:[#allocation6 + $0x1b0] sm:$0xff]
    %v1004 = vld [vmem:[#allocation6 + $0x1b8] sm:$0xff]
    %v1005 = vld [vmem:[#allocation6 + $0x1c0] sm:$0xff]
    %v1006 = vld [vmem:[#allocation6 + $0x1c8] sm:$0xff]
    %v1007 = vld [vmem:[#allocation6 + $0x1d0] sm:$0xff]
    %v1008 = vld [vmem:[#allocation6 + $0x1d8] sm:$0xff]
    %v1009 = vld [vmem:[#allocation6 + $0x1e0] sm:$0xff]
    %v1010 = vld [vmem:[#allocation6 + $0x1e8] sm:$0xff]
    %v1011 = vld [vmem:[#allocation6 + $0x1f0] sm:$0xff]
    %v1012 = vld [vmem:[#allocation6 + $0x1f8] sm:$0xff]
    %1013 = vmatprep.subr.mxu0 %v1010
    %1014 = vmatpush1.msra.mxu0 %v1009
    %1015 = vmatprep.subr.mxu0 %v1006
    %1016 = vmatpush1.msra.mxu0 %v1005
    %1017 = vmatprep.subr.mxu0 %v1002
    %1018 = vmatpush1.msra.mxu0 %v1001
    %1019 = vmatprep.subr.mxu0 %v998
    %1020 = vmatpush1.msra.mxu0 %v997
    %1021 = vmatprep.subr.mxu0 %v994
    %1022 = vmatpush1.msra.mxu0 %v993
    %1023 = vmatprep.subr.mxu0 %v990
    %1024 = vmatpush1.msra.mxu0 %v989
    %1025 = vmatprep.subr.mxu0 %v986
    %1026 = vmatpush1.msra.mxu0 %v985
    %1027 = vmatprep.subr.mxu0 %v982
    %1028 = vmatpush1.msra.mxu0 %v981
    %1029 = vmatprep.subr.mxu0 %v978
    %1030 = vmatpush1.msra.mxu0 %v977
    %1031 = vmatprep.subr.mxu0 %v974
    %1032 = vmatpush1.msra.mxu0 %v973
    %1033 = vmatprep.subr.mxu0 %v970
    %1034 = vmatpush1.msra.mxu0 %v969
    %1035 = vmatprep.subr.mxu0 %v966
    %1036 = vmatpush1.msra.mxu0 %v965
    %1037 = vmatprep.subr.mxu0 %v962
    %1038 = vmatpush1.msra.mxu0 %v961
    %1039 = vmatprep.subr.mxu0 %v958
    %1040 = vmatpush1.msra.mxu0 %v957
    %1041 = vmatprep.subr.mxu0 %v954
    %1042 = vmatpush1.msra.mxu0 %v953
    %1043 = vmatprep.subr.mxu0 %v950
    %1044 = vmatpush1.msra.mxu0 %v949
    %1045 = vmatprep.subr.mxu0 0.0
    %1046 = vmatpush2.msra.mxu0 0.0
    %1047 = vmatprep.subr.mxu0 0.0
    %1048 = vmatpush2.msra.mxu0 0.0
    %1049 = vmatprep.subr.mxu0 0.0
    %1050 = vmatpush2.msra.mxu0 0.0
    %1051 = vmatprep.subr.mxu0 0.0
    %1052 = vmatpush2.msra.mxu0 0.0
    %1053 = vmatprep.subr.mxu0 0.0
    %1054 = vmatpush2.msra.mxu0 0.0
    %1055 = vmatprep.subr.mxu0 0.0
    %1056 = vmatpush2.msra.mxu0 0.0
    %1057 = vmatprep.subr.mxu0 0.0
    %1058 = vmatpush2.msra.mxu0 0.0
    %1059 = vmatprep.subr.mxu0 0.0
    %1060 = vmatpush2.msra.mxu0 0.0
    %1061 = vmatprep.subr.mxu0 0.0
    %1062 = vmatpush2.msra.mxu0 0.0
    %1063 = vmatprep.subr.mxu0 0.0
    %1064 = vmatpush2.msra.mxu0 0.0
    %1065 = vmatprep.subr.mxu0 0.0
    %1066 = vmatpush2.msra.mxu0 0.0
    %1067 = vmatprep.subr.mxu0 0.0
    %1068 = vmatpush2.msra.mxu0 0.0
    %1069 = vmatprep.subr.mxu0 0.0
    %1070 = vmatpush2.msra.mxu0 0.0
    %1071 = vmatprep.subr.mxu0 0.0
    %1072 = vmatpush2.msra.mxu0 0.0
    %1073 = vmatprep.subr.mxu0 0.0
    %1074 = vmatpush2.msra.mxu0 0.0
    %1075 = vmatprep.subr.mxu0 0.0
    %1076 = vmatpush2.msra.mxu0 0.0
    %1077 = vmatprep.mubr.f32.mxu0 0.0
    %1078 = vmatmul.mubr.f32.gmra.mxu0 %v948
    %v1079 = vpop.f32.mrf.mxu0
    %v1080 = vadd.f32 0.0, %v1079
    %v1081 = vpop.f32.mrf.mxu0
    %v1082 = vadd.f32 0.0, %v1081
    %1083 = vdwg.mxu0
    %1084 = vmatprep.subr.mxu0 %v1012
    %1085 = vmatpush1.msra.mxu0 %v1011
    %1086 = vmatprep.subr.mxu0 %v1008
    %1087 = vmatpush1.msra.mxu0 %v1007
    %1088 = vmatprep.subr.mxu0 %v1004
    %1089 = vmatpush1.msra.mxu0 %v1003
    %1090 = vmatprep.subr.mxu0 %v1000
    %1091 = vmatpush1.msra.mxu0 %v999
    %1092 = vmatprep.subr.mxu0 %v996
    %1093 = vmatpush1.msra.mxu0 %v995
    %1094 = vmatprep.subr.mxu0 %v992
    %1095 = vmatpush1.msra.mxu0 %v991
    %1096 = vmatprep.subr.mxu0 %v988
    %1097 = vmatpush1.msra.mxu0 %v987
    %1098 = vmatprep.subr.mxu0 %v984
    %1099 = vmatpush1.msra.mxu0 %v983
    %1100 = vmatprep.subr.mxu0 %v980
    %1101 = vmatpush1.msra.mxu0 %v979
    %1102 = vmatprep.subr.mxu0 %v976
    %1103 = vmatpush1.msra.mxu0 %v975
    %1104 = vmatprep.subr.mxu0 %v972
    %1105 = vmatpush1.msra.mxu0 %v971
    %1106 = vmatprep.subr.mxu0 %v968
    %1107 = vmatpush1.msra.mxu0 %v967
    %1108 = vmatprep.subr.mxu0 %v964
    %1109 = vmatpush1.msra.mxu0 %v963
    %1110 = vmatprep.subr.mxu0 %v960
    %1111 = vmatpush1.msra.mxu0 %v959
    %1112 = vmatprep.subr.mxu0 %v956
    %1113 = vmatpush1.msra.mxu0 %v955
    %1114 = vmatprep.subr.mxu0 %v952
    %1115 = vmatpush1.msra.mxu0 %v951
    %1116 = vmatprep.subr.mxu0 0.0
    %1117 = vmatpush2.msra.mxu0 0.0
    %1118 = vmatprep.subr.mxu0 0.0
    %1119 = vmatpush2.msra.mxu0 0.0
    %1120 = vmatprep.subr.mxu0 0.0
    %1121 = vmatpush2.msra.mxu0 0.0
    %1122 = vmatprep.subr.mxu0 0.0
    %1123 = vmatpush2.msra.mxu0 0.0
    %1124 = vmatprep.subr.mxu0 0.0
    %1125 = vmatpush2.msra.mxu0 0.0
    %1126 = vmatprep.subr.mxu0 0.0
    %1127 = vmatpush2.msra.mxu0 0.0
    %1128 = vmatprep.subr.mxu0 0.0
    %1129 = vmatpush2.msra.mxu0 0.0
    %1130 = vmatprep.subr.mxu0 0.0
    %1131 = vmatpush2.msra.mxu0 0.0
    %1132 = vmatprep.subr.mxu0 0.0
    %1133 = vmatpush2.msra.mxu0 0.0
    %1134 = vmatprep.subr.mxu0 0.0
    %1135 = vmatpush2.msra.mxu0 0.0
    %1136 = vmatprep.subr.mxu0 0.0
    %1137 = vmatpush2.msra.mxu0 0.0
    %1138 = vmatprep.subr.mxu0 0.0
    %1139 = vmatpush2.msra.mxu0 0.0
    %1140 = vmatprep.subr.mxu0 0.0
    %1141 = vmatpush2.msra.mxu0 0.0
    %1142 = vmatprep.subr.mxu0 0.0
    %1143 = vmatpush2.msra.mxu0 0.0
    %1144 = vmatprep.subr.mxu0 0.0
    %1145 = vmatpush2.msra.mxu0 0.0
    %1146 = vmatprep.subr.mxu0 0.0
    %1147 = vmatpush2.msra.mxu0 0.0
    %1148 = vmatprep.mubr.f32.mxu0 0.0
    %1149 = vmatmul.mubr.f32.gmra.mxu0 %v948
    %v1150 = vpop.f32.mrf.mxu0
    %v1151 = vadd.f32 0.0, %v1150
    %v1152 = vpop.f32.mrf.mxu0
    %v1153 = vadd.f32 0.0, %v1152
    %1154 = vdwg.mxu0
    %v1155 = vadd.f32 %v944, %v1080
    %v1156 = vadd.f32 %v945, %v1082
    %v1157 = vadd.f32 %v946, %v1151
    %v1158 = vadd.f32 %v947, %v1153
    %v1159 = vmul.f32 %v1155, 0.5
    %v1160 = vtanh.pop %v1159
    %v1161 = vmul.f32 %v1160, 0.5
    %v1162 = vadd.f32 %v1161, 0.5
    %v1163 = vmul.f32 %v1156, 0.5
    %v1164 = vtanh.pop %v1163
    %v1165 = vmul.f32 %v1164, 0.5
    %v1166 = vadd.f32 %v1165, 0.5
    %v1167 = vtanh.pop %v1157
    %v1168 = vmul.f32 %v1158, 0.5
    %v1169 = vtanh.pop %v1168
    %v1170 = vmul.f32 %v1169, 0.5
    %v1171 = vadd.f32 %v1170, 0.5
    %v1172 = vld [vmem:[#allocation5] sm:$0xff]
    %v1173 = vmul.f32 %v1166, %v1172
    %v1174 = vmul.f32 %v1162, %v1167
    %v1175 = vadd.f32 %v1173, %v1174
    %v1176 = vtanh.pop %v1175
    %v1177 = vmul.f32 %v1171, %v1176
    %1178 = vst [vmem:[#allocation5] sm:$0xff] %v1175
    %1179 = vst [vmem:[#allocation4] sm:$0xff] %v1177
    %s1180 = scalar_lea.vmem [#allocation2], 16
    %1181 = vst [vmem:[%s1180] sm:$0xff] %v1177
    %s1182 = smul.u32 3, 4
    %s1183 = smul.addr %s1182, 8
    %s1184 = scalar_lea.vmem [#allocation3], %s1183
    %v1185 = vld [vmem:[%s1184] sm:$0xff]
    %v1186 = vld [vmem:[%s1184 + $0x8] sm:$0xff]
    %v1187 = vld [vmem:[%s1184 + $0x10] sm:$0xff]
    %v1188 = vld [vmem:[%s1184 + $0x18] sm:$0xff]
    %v1189 = vld [vmem:[#allocation4] sm:$0xff]
    %v1190 = vld [vmem:[#allocation6] sm:$0xff]
    %v1191 = vld [vmem:[#allocation6 + $0x8] sm:$0xff]
    %v1192 = vld [vmem:[#allocation6 + $0x10] sm:$0xff]
    %v1193 = vld [vmem:[#allocation6 + $0x18] sm:$0xff]
    %v1194 = vld [vmem:[#allocation6 + $0x20] sm:$0xff]
    %v1195 = vld [vmem:[#allocation6 + $0x28] sm:$0xff]
    %v1196 = vld [vmem:[#allocation6 + $0x30] sm:$0xff]
    %v1197 = vld [vmem:[#allocation6 + $0x38] sm:$0xff]
    %v1198 = vld [vmem:[#allocation6 + $0x40] sm:$0xff]
    %v1199 = vld [vmem:[#allocation6 + $0x48] sm:$0xff]
    %v1200 = vld [vmem:[#allocation6 + $0x50] sm:$0xff]
    %v1201 = vld [vmem:[#allocation6 + $0x58] sm:$0xff]
    %v1202 = vld [vmem:[#allocation6 + $0x60] sm:$0xff]
    %v1203 = vld [vmem:[#allocation6 + $0x68] sm:$0xff]
    %v1204 = vld [vmem:[#allocation6 + $0x70] sm:$0xff]
    %v1205 = vld [vmem:[#allocation6 + $0x78] sm:$0xff]
    %v1206 = vld [vmem:[#allocation6 + $0x80] sm:$0xff]
    %v1207 = vld [vmem:[#allocation6 + $0x88] sm:$0xff]
    %v1208 = vld [vmem:[#allocation6 + $0x90] sm:$0xff]
    %v1209 = vld [vmem:[#allocation6 + $0x98] sm:$0xff]
    %v1210 = vld [vmem:[#allocation6 + $0xa0] sm:$0xff]
    %v1211 = vld [vmem:[#allocation6 + $0xa8] sm:$0xff]
    %v1212 = vld [vmem:[#allocation6 + $0xb0] sm:$0xff]
    %v1213 = vld [vmem:[#allocation6 + $0xb8] sm:$0xff]
    %v1214 = vld [vmem:[#allocation6 + $0xc0] sm:$0xff]
    %v1215 = vld [vmem:[#allocation6 + $0xc8] sm:$0xff]
    %v1216 = vld [vmem:[#allocation6 + $0xd0] sm:$0xff]
    %v1217 = vld [vmem:[#allocation6 + $0xd8] sm:$0xff]
    %v1218 = vld [vmem:[#allocation6 + $0xe0] sm:$0xff]
    %v1219 = vld [vmem:[#allocation6 + $0xe8] sm:$0xff]
    %v1220 = vld [vmem:[#allocation6 + $0xf0] sm:$0xff]
    %v1221 = vld [vmem:[#allocation6 + $0xf8] sm:$0xff]
    %v1222 = vld [vmem:[#allocation6 + $0x100] sm:$0xff]
    %v1223 = vld [vmem:[#allocation6 + $0x108] sm:$0xff]
    %v1224 = vld [vmem:[#allocation6 + $0x110] sm:$0xff]
    %v1225 = vld [vmem:[#allocation6 + $0x118] sm:$0xff]
    %v1226 = vld [vmem:[#allocation6 + $0x120] sm:$0xff]
    %v1227 = vld [vmem:[#allocation6 + $0x128] sm:$0xff]
    %v1228 = vld [vmem:[#allocation6 + $0x130] sm:$0xff]
    %v1229 = vld [vmem:[#allocation6 + $0x138] sm:$0xff]
    %v1230 = vld [vmem:[#allocation6 + $0x140] sm:$0xff]
    %v1231 = vld [vmem:[#allocation6 + $0x148] sm:$0xff]
    %v1232 = vld [vmem:[#allocation6 + $0x150] sm:$0xff]
    %v1233 = vld [vmem:[#allocation6 + $0x158] sm:$0xff]
    %v1234 = vld [vmem:[#allocation6 + $0x160] sm:$0xff]
    %v1235 = vld [vmem:[#allocation6 + $0x168] sm:$0xff]
    %v1236 = vld [vmem:[#allocation6 + $0x170] sm:$0xff]
    %v1237 = vld [vmem:[#allocation6 + $0x178] sm:$0xff]
    %v1238 = vld [vmem:[#allocation6 + $0x180] sm:$0xff]
    %v1239 = vld [vmem:[#allocation6 + $0x188] sm:$0xff]
    %v1240 = vld [vmem:[#allocation6 + $0x190] sm:$0xff]
    %v1241 = vld [vmem:[#allocation6 + $0x198] sm:$0xff]
    %v1242 = vld [vmem:[#allocation6 + $0x1a0] sm:$0xff]
    %v1243 = vld [vmem:[#allocation6 + $0x1a8] sm:$0xff]
    %v1244 = vld [vmem:[#allocation6 + $0x1b0] sm:$0xff]
    %v1245 = vld [vmem:[#allocation6 + $0x1b8] sm:$0xff]
    %v1246 = vld [vmem:[#allocation6 + $0x1c0] sm:$0xff]
    %v1247 = vld [vmem:[#allocation6 + $0x1c8] sm:$0xff]
    %v1248 = vld [vmem:[#allocation6 + $0x1d0] sm:$0xff]
    %v1249 = vld [vmem:[#allocation6 + $0x1d8] sm:$0xff]
    %v1250 = vld [vmem:[#allocation6 + $0x1e0] sm:$0xff]
    %v1251 = vld [vmem:[#allocation6 + $0x1e8] sm:$0xff]
    %v1252 = vld [vmem:[#allocation6 + $0x1f0] sm:$0xff]
    %v1253 = vld [vmem:[#allocation6 + $0x1f8] sm:$0xff]
    %1254 = vmatprep.subr.mxu0 %v1251
    %1255 = vmatpush1.msra.mxu0 %v1250
    %1256 = vmatprep.subr.mxu0 %v1247
    %1257 = vmatpush1.msra.mxu0 %v1246
    %1258 = vmatprep.subr.mxu0 %v1243
    %1259 = vmatpush1.msra.mxu0 %v1242
    %1260 = vmatprep.subr.mxu0 %v1239
    %1261 = vmatpush1.msra.mxu0 %v1238
    %1262 = vmatprep.subr.mxu0 %v1235
    %1263 = vmatpush1.msra.mxu0 %v1234
    %1264 = vmatprep.subr.mxu0 %v1231
    %1265 = vmatpush1.msra.mxu0 %v1230
    %1266 = vmatprep.subr.mxu0 %v1227
    %1267 = vmatpush1.msra.mxu0 %v1226
    %1268 = vmatprep.subr.mxu0 %v1223
    %1269 = vmatpush1.msra.mxu0 %v1222
    %1270 = vmatprep.subr.mxu0 %v1219
    %1271 = vmatpush1.msra.mxu0 %v1218
    %1272 = vmatprep.subr.mxu0 %v1215
    %1273 = vmatpush1.msra.mxu0 %v1214
    %1274 = vmatprep.subr.mxu0 %v1211
    %1275 = vmatpush1.msra.mxu0 %v1210
    %1276 = vmatprep.subr.mxu0 %v1207
    %1277 = vmatpush1.msra.mxu0 %v1206
    %1278 = vmatprep.subr.mxu0 %v1203
    %1279 = vmatpush1.msra.mxu0 %v1202
    %1280 = vmatprep.subr.mxu0 %v1199
    %1281 = vmatpush1.msra.mxu0 %v1198
    %1282 = vmatprep.subr.mxu0 %v1195
    %1283 = vmatpush1.msra.mxu0 %v1194
    %1284 = vmatprep.subr.mxu0 %v1191
    %1285 = vmatpush1.msra.mxu0 %v1190
    %1286 = vmatprep.subr.mxu0 0.0
    %1287 = vmatpush2.msra.mxu0 0.0
    %1288 = vmatprep.subr.mxu0 0.0
    %1289 = vmatpush2.msra.mxu0 0.0
    %1290 = vmatprep.subr.mxu0 0.0
    %1291 = vmatpush2.msra.mxu0 0.0
    %1292 = vmatprep.subr.mxu0 0.0
    %1293 = vmatpush2.msra.mxu0 0.0
    %1294 = vmatprep.subr.mxu0 0.0
    %1295 = vmatpush2.msra.mxu0 0.0
    %1296 = vmatprep.subr.mxu0 0.0
    %1297 = vmatpush2.msra.mxu0 0.0
    %1298 = vmatprep.subr.mxu0 0.0
    %1299 = vmatpush2.msra.mxu0 0.0
    %1300 = vmatprep.subr.mxu0 0.0
    %1301 = vmatpush2.msra.mxu0 0.0
    %1302 = vmatprep.subr.mxu0 0.0
    %1303 = vmatpush2.msra.mxu0 0.0
    %1304 = vmatprep.subr.mxu0 0.0
    %1305 = vmatpush2.msra.mxu0 0.0
    %1306 = vmatprep.subr.mxu0 0.0
    %1307 = vmatpush2.msra.mxu0 0.0
    %1308 = vmatprep.subr.mxu0 0.0
    %1309 = vmatpush2.msra.mxu0 0.0
    %1310 = vmatprep.subr.mxu0 0.0
    %1311 = vmatpush2.msra.mxu0 0.0
    %1312 = vmatprep.subr.mxu0 0.0
    %1313 = vmatpush2.msra.mxu0 0.0
    %1314 = vmatprep.subr.mxu0 0.0
    %1315 = vmatpush2.msra.mxu0 0.0
    %1316 = vmatprep.subr.mxu0 0.0
    %1317 = vmatpush2.msra.mxu0 0.0
    %1318 = vmatprep.mubr.f32.mxu0 0.0
    %1319 = vmatmul.mubr.f32.gmra.mxu0 %v1189
    %v1320 = vpop.f32.mrf.mxu0
    %v1321 = vadd.f32 0.0, %v1320
    %v1322 = vpop.f32.mrf.mxu0
    %v1323 = vadd.f32 0.0, %v1322
    %1324 = vdwg.mxu0
    %1325 = vmatprep.subr.mxu0 %v1253
    %1326 = vmatpush1.msra.mxu0 %v1252
    %1327 = vmatprep.subr.mxu0 %v1249
    %1328 = vmatpush1.msra.mxu0 %v1248
    %1329 = vmatprep.subr.mxu0 %v1245
    %1330 = vmatpush1.msra.mxu0 %v1244
    %1331 = vmatprep.subr.mxu0 %v1241
    %1332 = vmatpush1.msra.mxu0 %v1240
    %1333 = vmatprep.subr.mxu0 %v1237
    %1334 = vmatpush1.msra.mxu0 %v1236
    %1335 = vmatprep.subr.mxu0 %v1233
    %1336 = vmatpush1.msra.mxu0 %v1232
    %1337 = vmatprep.subr.mxu0 %v1229
    %1338 = vmatpush1.msra.mxu0 %v1228
    %1339 = vmatprep.subr.mxu0 %v1225
    %1340 = vmatpush1.msra.mxu0 %v1224
    %1341 = vmatprep.subr.mxu0 %v1221
    %1342 = vmatpush1.msra.mxu0 %v1220
    %1343 = vmatprep.subr.mxu0 %v1217
    %1344 = vmatpush1.msra.mxu0 %v1216
    %1345 = vmatprep.subr.mxu0 %v1213
    %1346 = vmatpush1.msra.mxu0 %v1212
    %1347 = vmatprep.subr.mxu0 %v1209
    %1348 = vmatpush1.msra.mxu0 %v1208
    %1349 = vmatprep.subr.mxu0 %v1205
    %1350 = vmatpush1.msra.mxu0 %v1204
    %1351 = vmatprep.subr.mxu0 %v1201
    %1352 = vmatpush1.msra.mxu0 %v1200
    %1353 = vmatprep.subr.mxu0 %v1197
    %1354 = vmatpush1.msra.mxu0 %v1196
    %1355 = vmatprep.subr.mxu0 %v1193
    %1356 = vmatpush1.msra.mxu0 %v1192
    %1357 = vmatprep.subr.mxu0 0.0
    %1358 = vmatpush2.msra.mxu0 0.0
    %1359 = vmatprep.subr.mxu0 0.0
    %1360 = vmatpush2.msra.mxu0 0.0
    %1361 = vmatprep.subr.mxu0 0.0
    %1362 = vmatpush2.msra.mxu0 0.0
    %1363 = vmatprep.subr.mxu0 0.0
    %1364 = vmatpush2.msra.mxu0 0.0
    %1365 = vmatprep.subr.mxu0 0.0
    %1366 = vmatpush2.msra.mxu0 0.0
    %1367 = vmatprep.subr.mxu0 0.0
    %1368 = vmatpush2.msra.mxu0 0.0
    %1369 = vmatprep.subr.mxu0 0.0
    %1370 = vmatpush2.msra.mxu0 0.0
    %1371 = vmatprep.subr.mxu0 0.0
    %1372 = vmatpush2.msra.mxu0 0.0
    %1373 = vmatprep.subr.mxu0 0.0
    %1374 = vmatpush2.msra.mxu0 0.0
    %1375 = vmatprep.subr.mxu0 0.0
    %1376 = vmatpush2.msra.mxu0 0.0
    %1377 = vmatprep.subr.mxu0 0.0
    %1378 = vmatpush2.msra.mxu0 0.0
    %1379 = vmatprep.subr.mxu0 0.0
    %1380 = vmatpush2.msra.mxu0 0.0
    %1381 = vmatprep.subr.mxu0 0.0
    %1382 = vmatpush2.msra.mxu0 0.0
    %1383 = vmatprep.subr.mxu0 0.0
    %1384 = vmatpush2.msra.mxu0 0.0
    %1385 = vmatprep.subr.mxu0 0.0
    %1386 = vmatpush2.msra.mxu0 0.0
    %1387 = vmatprep.subr.mxu0 0.0
    %1388 = vmatpush2.msra.mxu0 0.0
    %1389 = vmatprep.mubr.f32.mxu0 0.0
    %1390 = vmatmul.mubr.f32.gmra.mxu0 %v1189
    %v1391 = vpop.f32.mrf.mxu0
    %v1392 = vadd.f32 0.0, %v1391
    %v1393 = vpop.f32.mrf.mxu0
    %v1394 = vadd.f32 0.0, %v1393
    %1395 = vdwg.mxu0
    %v1396 = vadd.f32 %v1185, %v1321
    %v1397 = vadd.f32 %v1186, %v1323
    %v1398 = vadd.f32 %v1187, %v1392
    %v1399 = vadd.f32 %v1188, %v1394
    %v1400 = vmul.f32 %v1396, 0.5
    %v1401 = vtanh.pop %v1400
    %v1402 = vmul.f32 %v1401, 0.5
    %v1403 = vadd.f32 %v1402, 0.5
    %v1404 = vmul.f32 %v1397, 0.5
    %v1405 = vtanh.pop %v1404
    %v1406 = vmul.f32 %v1405, 0.5
    %v1407 = vadd.f32 %v1406, 0.5
    %v1408 = vtanh.pop %v1398
    %v1409 = vmul.f32 %v1399, 0.5
    %v1410 = vtanh.pop %v1409
    %v1411 = vmul.f32 %v1410, 0.5
    %v1412 = vadd.f32 %v1411, 0.5
    %v1413 = vld [vmem:[#allocation5] sm:$0xff]
    %v1414 = vmul.f32 %v1407, %v1413
    %v1415 = vmul.f32 %v1403, %v1408
    %v1416 = vadd.f32 %v1414, %v1415
    %v1417 = vtanh.pop %v1416
    %v1418 = vmul.f32 %v1412, %v1417
    %1419 = vst [vmem:[#allocation5] sm:$0xff] %v1416
    %1420 = vst [vmem:[#allocation4] sm:$0xff] %v1418
    %s1421 = scalar_lea.vmem [#allocation2], 24
    %1422 = vst [vmem:[%s1421] sm:$0xff] %v1418
    %s1423 = smul.u32 4, 4
    %s1424 = smul.addr %s1423, 8
    %s1425 = scalar_lea.vmem [#allocation3], %s1424
    %v1426 = vld [vmem:[%s1425] sm:$0xff]
    %v1427 = vld [vmem:[%s1425 + $0x8] sm:$0xff]
    %v1428 = vld [vmem:[%s1425 + $0x10] sm:$0xff]
    %v1429 = vld [vmem:[%s1425 + $0x18] sm:$0xff]
    %v1430 = vld [vmem:[#allocation4] sm:$0xff]
    %v1431 = vld [vmem:[#allocation6] sm:$0xff]
    %v1432 = vld [vmem:[#allocation6 + $0x8] sm:$0xff]
    %v1433 = vld [vmem:[#allocation6 + $0x10] sm:$0xff]
    %v1434 = vld [vmem:[#allocation6 + $0x18] sm:$0xff]
    %v1435 = vld [vmem:[#allocation6 + $0x20] sm:$0xff]
    %v1436 = vld [vmem:[#allocation6 + $0x28] sm:$0xff]
    %v1437 = vld [vmem:[#allocation6 + $0x30] sm:$0xff]
    %v1438 = vld [vmem:[#allocation6 + $0x38] sm:$0xff]
    %v1439 = vld [vmem:[#allocation6 + $0x40] sm:$0xff]
    %v1440 = vld [vmem:[#allocation6 + $0x48] sm:$0xff]
    %v1441 = vld [vmem:[#allocation6 + $0x50] sm:$0xff]
    %v1442 = vld [vmem:[#allocation6 + $0x58] sm:$0xff]
    %v1443 = vld [vmem:[#allocation6 + $0x60] sm:$0xff]
    %v1444 = vld [vmem:[#allocation6 + $0x68] sm:$0xff]
    %v1445 = vld [vmem:[#allocation6 + $0x70] sm:$0xff]
    %v1446 = vld [vmem:[#allocation6 + $0x78] sm:$0xff]
    %v1447 = vld [vmem:[#allocation6 + $0x80] sm:$0xff]
    %v1448 = vld [vmem:[#allocation6 + $0x88] sm:$0xff]
    %v1449 = vld [vmem:[#allocation6 + $0x90] sm:$0xff]
    %v1450 = vld [vmem:[#allocation6 + $0x98] sm:$0xff]
    %v1451 = vld [vmem:[#allocation6 + $0xa0] sm:$0xff]
    %v1452 = vld [vmem:[#allocation6 + $0xa8] sm:$0xff]
    %v1453 = vld [vmem:[#allocation6 + $0xb0] sm:$0xff]
    %v1454 = vld [vmem:[#allocation6 + $0xb8] sm:$0xff]
    %v1455 = vld [vmem:[#allocation6 + $0xc0] sm:$0xff]
    %v1456 = vld [vmem:[#allocation6 + $0xc8] sm:$0xff]
    %v1457 = vld [vmem:[#allocation6 + $0xd0] sm:$0xff]
    %v1458 = vld [vmem:[#allocation6 + $0xd8] sm:$0xff]
    %v1459 = vld [vmem:[#allocation6 + $0xe0] sm:$0xff]
    %v1460 = vld [vmem:[#allocation6 + $0xe8] sm:$0xff]
    %v1461 = vld [vmem:[#allocation6 + $0xf0] sm:$0xff]
    %v1462 = vld [vmem:[#allocation6 + $0xf8] sm:$0xff]
    %v1463 = vld [vmem:[#allocation6 + $0x100] sm:$0xff]
    %v1464 = vld [vmem:[#allocation6 + $0x108] sm:$0xff]
    %v1465 = vld [vmem:[#allocation6 + $0x110] sm:$0xff]
    %v1466 = vld [vmem:[#allocation6 + $0x118] sm:$0xff]
    %v1467 = vld [vmem:[#allocation6 + $0x120] sm:$0xff]
    %v1468 = vld [vmem:[#allocation6 + $0x128] sm:$0xff]
    %v1469 = vld [vmem:[#allocation6 + $0x130] sm:$0xff]
    %v1470 = vld [vmem:[#allocation6 + $0x138] sm:$0xff]
    %v1471 = vld [vmem:[#allocation6 + $0x140] sm:$0xff]
    %v1472 = vld [vmem:[#allocation6 + $0x148] sm:$0xff]
    %v1473 = vld [vmem:[#allocation6 + $0x150] sm:$0xff]
    %v1474 = vld [vmem:[#allocation6 + $0x158] sm:$0xff]
    %v1475 = vld [vmem:[#allocation6 + $0x160] sm:$0xff]
    %v1476 = vld [vmem:[#allocation6 + $0x168] sm:$0xff]
    %v1477 = vld [vmem:[#allocation6 + $0x170] sm:$0xff]
    %v1478 = vld [vmem:[#allocation6 + $0x178] sm:$0xff]
    %v1479 = vld [vmem:[#allocation6 + $0x180] sm:$0xff]
    %v1480 = vld [vmem:[#allocation6 + $0x188] sm:$0xff]
    %v1481 = vld [vmem:[#allocation6 + $0x190] sm:$0xff]
    %v1482 = vld [vmem:[#allocation6 + $0x198] sm:$0xff]
    %v1483 = vld [vmem:[#allocation6 + $0x1a0] sm:$0xff]
    %v1484 = vld [vmem:[#allocation6 + $0x1a8] sm:$0xff]
    %v1485 = vld [vmem:[#allocation6 + $0x1b0] sm:$0xff]
    %v1486 = vld [vmem:[#allocation6 + $0x1b8] sm:$0xff]
    %v1487 = vld [vmem:[#allocation6 + $0x1c0] sm:$0xff]
    %v1488 = vld [vmem:[#allocation6 + $0x1c8] sm:$0xff]
    %v1489 = vld [vmem:[#allocation6 + $0x1d0] sm:$0xff]
    %v1490 = vld [vmem:[#allocation6 + $0x1d8] sm:$0xff]
    %v1491 = vld [vmem:[#allocation6 + $0x1e0] sm:$0xff]
    %v1492 = vld [vmem:[#allocation6 + $0x1e8] sm:$0xff]
    %v1493 = vld [vmem:[#allocation6 + $0x1f0] sm:$0xff]
    %v1494 = vld [vmem:[#allocation6 + $0x1f8] sm:$0xff]
    %1495 = vmatprep.subr.mxu0 %v1492
    %1496 = vmatpush1.msra.mxu0 %v1491
    %1497 = vmatprep.subr.mxu0 %v1488
    %1498 = vmatpush1.msra.mxu0 %v1487
    %1499 = vmatprep.subr.mxu0 %v1484
    %1500 = vmatpush1.msra.mxu0 %v1483
    %1501 = vmatprep.subr.mxu0 %v1480
    %1502 = vmatpush1.msra.mxu0 %v1479
    %1503 = vmatprep.subr.mxu0 %v1476
    %1504 = vmatpush1.msra.mxu0 %v1475
    %1505 = vmatprep.subr.mxu0 %v1472
    %1506 = vmatpush1.msra.mxu0 %v1471
    %1507 = vmatprep.subr.mxu0 %v1468
    %1508 = vmatpush1.msra.mxu0 %v1467
    %1509 = vmatprep.subr.mxu0 %v1464
    %1510 = vmatpush1.msra.mxu0 %v1463
    %1511 = vmatprep.subr.mxu0 %v1460
    %1512 = vmatpush1.msra.mxu0 %v1459
    %1513 = vmatprep.subr.mxu0 %v1456
    %1514 = vmatpush1.msra.mxu0 %v1455
    %1515 = vmatprep.subr.mxu0 %v1452
    %1516 = vmatpush1.msra.mxu0 %v1451
    %1517 = vmatprep.subr.mxu0 %v1448
    %1518 = vmatpush1.msra.mxu0 %v1447
    %1519 = vmatprep.subr.mxu0 %v1444
    %1520 = vmatpush1.msra.mxu0 %v1443
    %1521 = vmatprep.subr.mxu0 %v1440
    %1522 = vmatpush1.msra.mxu0 %v1439
    %1523 = vmatprep.subr.mxu0 %v1436
    %1524 = vmatpush1.msra.mxu0 %v1435
    %1525 = vmatprep.subr.mxu0 %v1432
    %1526 = vmatpush1.msra.mxu0 %v1431
    %1527 = vmatprep.subr.mxu0 0.0
    %1528 = vmatpush2.msra.mxu0 0.0
    %1529 = vmatprep.subr.mxu0 0.0
    %1530 = vmatpush2.msra.mxu0 0.0
    %1531 = vmatprep.subr.mxu0 0.0
    %1532 = vmatpush2.msra.mxu0 0.0
    %1533 = vmatprep.subr.mxu0 0.0
    %1534 = vmatpush2.msra.mxu0 0.0
    %1535 = vmatprep.subr.mxu0 0.0
    %1536 = vmatpush2.msra.mxu0 0.0
    %1537 = vmatprep.subr.mxu0 0.0
    %1538 = vmatpush2.msra.mxu0 0.0
    %1539 = vmatprep.subr.mxu0 0.0
    %1540 = vmatpush2.msra.mxu0 0.0
    %1541 = vmatprep.subr.mxu0 0.0
    %1542 = vmatpush2.msra.mxu0 0.0
    %1543 = vmatprep.subr.mxu0 0.0
    %1544 = vmatpush2.msra.mxu0 0.0
    %1545 = vmatprep.subr.mxu0 0.0
    %1546 = vmatpush2.msra.mxu0 0.0
    %1547 = vmatprep.subr.mxu0 0.0
    %1548 = vmatpush2.msra.mxu0 0.0
    %1549 = vmatprep.subr.mxu0 0.0
    %1550 = vmatpush2.msra.mxu0 0.0
    %1551 = vmatprep.subr.mxu0 0.0
    %1552 = vmatpush2.msra.mxu0 0.0
    %1553 = vmatprep.subr.mxu0 0.0
    %1554 = vmatpush2.msra.mxu0 0.0
    %1555 = vmatprep.subr.mxu0 0.0
    %1556 = vmatpush2.msra.mxu0 0.0
    %1557 = vmatprep.subr.mxu0 0.0
    %1558 = vmatpush2.msra.mxu0 0.0
    %1559 = vmatprep.mubr.f32.mxu0 0.0
    %1560 = vmatmul.mubr.f32.gmra.mxu0 %v1430
    %v1561 = vpop.f32.mrf.mxu0
    %v1562 = vadd.f32 0.0, %v1561
    %v1563 = vpop.f32.mrf.mxu0
    %v1564 = vadd.f32 0.0, %v1563
    %1565 = vdwg.mxu0
    %1566 = vmatprep.subr.mxu0 %v1494
    %1567 = vmatpush1.msra.mxu0 %v1493
    %1568 = vmatprep.subr.mxu0 %v1490
    %1569 = vmatpush1.msra.mxu0 %v1489
    %1570 = vmatprep.subr.mxu0 %v1486
    %1571 = vmatpush1.msra.mxu0 %v1485
    %1572 = vmatprep.subr.mxu0 %v1482
    %1573 = vmatpush1.msra.mxu0 %v1481
    %1574 = vmatprep.subr.mxu0 %v1478
    %1575 = vmatpush1.msra.mxu0 %v1477
    %1576 = vmatprep.subr.mxu0 %v1474
    %1577 = vmatpush1.msra.mxu0 %v1473
    %1578 = vmatprep.subr.mxu0 %v1470
    %1579 = vmatpush1.msra.mxu0 %v1469
    %1580 = vmatprep.subr.mxu0 %v1466
    %1581 = vmatpush1.msra.mxu0 %v1465
    %1582 = vmatprep.subr.mxu0 %v1462
    %1583 = vmatpush1.msra.mxu0 %v1461
    %1584 = vmatprep.subr.mxu0 %v1458
    %1585 = vmatpush1.msra.mxu0 %v1457
    %1586 = vmatprep.subr.mxu0 %v1454
    %1587 = vmatpush1.msra.mxu0 %v1453
    %1588 = vmatprep.subr.mxu0 %v1450
    %1589 = vmatpush1.msra.mxu0 %v1449
    %1590 = vmatprep.subr.mxu0 %v1446
    %1591 = vmatpush1.msra.mxu0 %v1445
    %1592 = vmatprep.subr.mxu0 %v1442
    %1593 = vmatpush1.msra.mxu0 %v1441
    %1594 = vmatprep.subr.mxu0 %v1438
    %1595 = vmatpush1.msra.mxu0 %v1437
    %1596 = vmatprep.subr.mxu0 %v1434
    %1597 = vmatpush1.msra.mxu0 %v1433
    %1598 = vmatprep.subr.mxu0 0.0
    %1599 = vmatpush2.msra.mxu0 0.0
    %1600 = vmatprep.subr.mxu0 0.0
    %1601 = vmatpush2.msra.mxu0 0.0
    %1602 = vmatprep.subr.mxu0 0.0
    %1603 = vmatpush2.msra.mxu0 0.0
    %1604 = vmatprep.subr.mxu0 0.0
    %1605 = vmatpush2.msra.mxu0 0.0
    %1606 = vmatprep.subr.mxu0 0.0
    %1607 = vmatpush2.msra.mxu0 0.0
    %1608 = vmatprep.subr.mxu0 0.0
    %1609 = vmatpush2.msra.mxu0 0.0
    %1610 = vmatprep.subr.mxu0 0.0
    %1611 = vmatpush2.msra.mxu0 0.0
    %1612 = vmatprep.subr.mxu0 0.0
    %1613 = vmatpush2.msra.mxu0 0.0
    %1614 = vmatprep.subr.mxu0 0.0
    %1615 = vmatpush2.msra.mxu0 0.0
    %1616 = vmatprep.subr.mxu0 0.0
    %1617 = vmatpush2.msra.mxu0 0.0
    %1618 = vmatprep.subr.mxu0 0.0
    %1619 = vmatpush2.msra.mxu0 0.0
    %1620 = vmatprep.subr.mxu0 0.0
    %1621 = vmatpush2.msra.mxu0 0.0
    %1622 = vmatprep.subr.mxu0 0.0
    %1623 = vmatpush2.msra.mxu0 0.0
    %1624 = vmatprep.subr.mxu0 0.0
    %1625 = vmatpush2.msra.mxu0 0.0
    %1626 = vmatprep.subr.mxu0 0.0
    %1627 = vmatpush2.msra.mxu0 0.0
    %1628 = vmatprep.subr.mxu0 0.0
    %1629 = vmatpush2.msra.mxu0 0.0
    %1630 = vmatprep.mubr.f32.mxu0 0.0
    %1631 = vmatmul.mubr.f32.gmra.mxu0 %v1430
    %v1632 = vpop.f32.mrf.mxu0
    %v1633 = vadd.f32 0.0, %v1632
    %v1634 = vpop.f32.mrf.mxu0
    %v1635 = vadd.f32 0.0, %v1634
    %1636 = vdwg.mxu0
    %v1637 = vadd.f32 %v1426, %v1562
    %v1638 = vadd.f32 %v1427, %v1564
    %v1639 = vadd.f32 %v1428, %v1633
    %v1640 = vadd.f32 %v1429, %v1635
    %v1641 = vmul.f32 %v1637, 0.5
    %v1642 = vtanh.pop %v1641
    %v1643 = vmul.f32 %v1642, 0.5
    %v1644 = vadd.f32 %v1643, 0.5
    %v1645 = vmul.f32 %v1638, 0.5
    %v1646 = vtanh.pop %v1645
    %v1647 = vmul.f32 %v1646, 0.5
    %v1648 = vadd.f32 %v1647, 0.5
    %v1649 = vtanh.pop %v1639
    %v1650 = vmul.f32 %v1640, 0.5
    %v1651 = vtanh.pop %v1650
    %v1652 = vmul.f32 %v1651, 0.5
    %v1653 = vadd.f32 %v1652, 0.5
    %v1654 = vld [vmem:[#allocation5] sm:$0xff]
    %v1655 = vmul.f32 %v1648, %v1654
    %v1656 = vmul.f32 %v1644, %v1649
    %v1657 = vadd.f32 %v1655, %v1656
    %v1658 = vtanh.pop %v1657
    %v1659 = vmul.f32 %v1653, %v1658
    %1660 = vst [vmem:[#allocation5] sm:$0xff] %v1657
    %1661 = vst [vmem:[#allocation4] sm:$0xff] %v1659
    %s1662 = scalar_lea.vmem [#allocation2], 32
    %1663 = vst [vmem:[%s1662] sm:$0xff] %v1659
    %s1664 = smul.u32 5, 4
    %s1665 = smul.addr %s1664, 8
    %s1666 = scalar_lea.vmem [#allocation3], %s1665
    %v1667 = vld [vmem:[%s1666] sm:$0xff]
    %v1668 = vld [vmem:[%s1666 + $0x8] sm:$0xff]
    %v1669 = vld [vmem:[%s1666 + $0x10] sm:$0xff]
    %v1670 = vld [vmem:[%s1666 + $0x18] sm:$0xff]
    %v1671 = vld [vmem:[#allocation4] sm:$0xff]
    %v1672 = vld [vmem:[#allocation6] sm:$0xff]
    %v1673 = vld [vmem:[#allocation6 + $0x8] sm:$0xff]
    %v1674 = vld [vmem:[#allocation6 + $0x10] sm:$0xff]
    %v1675 = vld [vmem:[#allocation6 + $0x18] sm:$0xff]
    %v1676 = vld [vmem:[#allocation6 + $0x20] sm:$0xff]
    %v1677 = vld [vmem:[#allocation6 + $0x28] sm:$0xff]
    %v1678 = vld [vmem:[#allocation6 + $0x30] sm:$0xff]
    %v1679 = vld [vmem:[#allocation6 + $0x38] sm:$0xff]
    %v1680 = vld [vmem:[#allocation6 + $0x40] sm:$0xff]
    %v1681 = vld [vmem:[#allocation6 + $0x48] sm:$0xff]
    %v1682 = vld [vmem:[#allocation6 + $0x50] sm:$0xff]
    %v1683 = vld [vmem:[#allocation6 + $0x58] sm:$0xff]
    %v1684 = vld [vmem:[#allocation6 + $0x60] sm:$0xff]
    %v1685 = vld [vmem:[#allocation6 + $0x68] sm:$0xff]
    %v1686 = vld [vmem:[#allocation6 + $0x70] sm:$0xff]
    %v1687 = vld [vmem:[#allocation6 + $0x78] sm:$0xff]
    %v1688 = vld [vmem:[#allocation6 + $0x80] sm:$0xff]
    %v1689 = vld [vmem:[#allocation6 + $0x88] sm:$0xff]
    %v1690 = vld [vmem:[#allocation6 + $0x90] sm:$0xff]
    %v1691 = vld [vmem:[#allocation6 + $0x98] sm:$0xff]
    %v1692 = vld [vmem:[#allocation6 + $0xa0] sm:$0xff]
    %v1693 = vld [vmem:[#allocation6 + $0xa8] sm:$0xff]
    %v1694 = vld [vmem:[#allocation6 + $0xb0] sm:$0xff]
    %v1695 = vld [vmem:[#allocation6 + $0xb8] sm:$0xff]
    %v1696 = vld [vmem:[#allocation6 + $0xc0] sm:$0xff]
    %v1697 = vld [vmem:[#allocation6 + $0xc8] sm:$0xff]
    %v1698 = vld [vmem:[#allocation6 + $0xd0] sm:$0xff]
    %v1699 = vld [vmem:[#allocation6 + $0xd8] sm:$0xff]
    %v1700 = vld [vmem:[#allocation6 + $0xe0] sm:$0xff]
    %v1701 = vld [vmem:[#allocation6 + $0xe8] sm:$0xff]
    %v1702 = vld [vmem:[#allocation6 + $0xf0] sm:$0xff]
    %v1703 = vld [vmem:[#allocation6 + $0xf8] sm:$0xff]
    %v1704 = vld [vmem:[#allocation6 + $0x100] sm:$0xff]
    %v1705 = vld [vmem:[#allocation6 + $0x108] sm:$0xff]
    %v1706 = vld [vmem:[#allocation6 + $0x110] sm:$0xff]
    %v1707 = vld [vmem:[#allocation6 + $0x118] sm:$0xff]
    %v1708 = vld [vmem:[#allocation6 + $0x120] sm:$0xff]
    %v1709 = vld [vmem:[#allocation6 + $0x128] sm:$0xff]
    %v1710 = vld [vmem:[#allocation6 + $0x130] sm:$0xff]
    %v1711 = vld [vmem:[#allocation6 + $0x138] sm:$0xff]
    %v1712 = vld [vmem:[#allocation6 + $0x140] sm:$0xff]
    %v1713 = vld [vmem:[#allocation6 + $0x148] sm:$0xff]
    %v1714 = vld [vmem:[#allocation6 + $0x150] sm:$0xff]
    %v1715 = vld [vmem:[#allocation6 + $0x158] sm:$0xff]
    %v1716 = vld [vmem:[#allocation6 + $0x160] sm:$0xff]
    %v1717 = vld [vmem:[#allocation6 + $0x168] sm:$0xff]
    %v1718 = vld [vmem:[#allocation6 + $0x170] sm:$0xff]
    %v1719 = vld [vmem:[#allocation6 + $0x178] sm:$0xff]
    %v1720 = vld [vmem:[#allocation6 + $0x180] sm:$0xff]
    %v1721 = vld [vmem:[#allocation6 + $0x188] sm:$0xff]
    %v1722 = vld [vmem:[#allocation6 + $0x190] sm:$0xff]
    %v1723 = vld [vmem:[#allocation6 + $0x198] sm:$0xff]
    %v1724 = vld [vmem:[#allocation6 + $0x1a0] sm:$0xff]
    %v1725 = vld [vmem:[#allocation6 + $0x1a8] sm:$0xff]
    %v1726 = vld [vmem:[#allocation6 + $0x1b0] sm:$0xff]
    %v1727 = vld [vmem:[#allocation6 + $0x1b8] sm:$0xff]
    %v1728 = vld [vmem:[#allocation6 + $0x1c0] sm:$0xff]
    %v1729 = vld [vmem:[#allocation6 + $0x1c8] sm:$0xff]
    %v1730 = vld [vmem:[#allocation6 + $0x1d0] sm:$0xff]
    %v1731 = vld [vmem:[#allocation6 + $0x1d8] sm:$0xff]
    %v1732 = vld [vmem:[#allocation6 + $0x1e0] sm:$0xff]
    %v1733 = vld [vmem:[#allocation6 + $0x1e8] sm:$0xff]
    %v1734 = vld [vmem:[#allocation6 + $0x1f0] sm:$0xff]
    %v1735 = vld [vmem:[#allocation6 + $0x1f8] sm:$0xff]
    %1736 = vmatprep.subr.mxu0 %v1733
    %1737 = vmatpush1.msra.mxu0 %v1732
    %1738 = vmatprep.subr.mxu0 %v1729
    %1739 = vmatpush1.msra.mxu0 %v1728
    %1740 = vmatprep.subr.mxu0 %v1725
    %1741 = vmatpush1.msra.mxu0 %v1724
    %1742 = vmatprep.subr.mxu0 %v1721
    %1743 = vmatpush1.msra.mxu0 %v1720
    %1744 = vmatprep.subr.mxu0 %v1717
    %1745 = vmatpush1.msra.mxu0 %v1716
    %1746 = vmatprep.subr.mxu0 %v1713
    %1747 = vmatpush1.msra.mxu0 %v1712
    %1748 = vmatprep.subr.mxu0 %v1709
    %1749 = vmatpush1.msra.mxu0 %v1708
    %1750 = vmatprep.subr.mxu0 %v1705
    %1751 = vmatpush1.msra.mxu0 %v1704
    %1752 = vmatprep.subr.mxu0 %v1701
    %1753 = vmatpush1.msra.mxu0 %v1700
    %1754 = vmatprep.subr.mxu0 %v1697
    %1755 = vmatpush1.msra.mxu0 %v1696
    %1756 = vmatprep.subr.mxu0 %v1693
    %1757 = vmatpush1.msra.mxu0 %v1692
    %1758 = vmatprep.subr.mxu0 %v1689
    %1759 = vmatpush1.msra.mxu0 %v1688
    %1760 = vmatprep.subr.mxu0 %v1685
    %1761 = vmatpush1.msra.mxu0 %v1684
    %1762 = vmatprep.subr.mxu0 %v1681
    %1763 = vmatpush1.msra.mxu0 %v1680
    %1764 = vmatprep.subr.mxu0 %v1677
    %1765 = vmatpush1.msra.mxu0 %v1676
    %1766 = vmatprep.subr.mxu0 %v1673
    %1767 = vmatpush1.msra.mxu0 %v1672
    %1768 = vmatprep.subr.mxu0 0.0
    %1769 = vmatpush2.msra.mxu0 0.0
    %1770 = vmatprep.subr.mxu0 0.0
    %1771 = vmatpush2.msra.mxu0 0.0
    %1772 = vmatprep.subr.mxu0 0.0
    %1773 = vmatpush2.msra.mxu0 0.0
    %1774 = vmatprep.subr.mxu0 0.0
    %1775 = vmatpush2.msra.mxu0 0.0
    %1776 = vmatprep.subr.mxu0 0.0
    %1777 = vmatpush2.msra.mxu0 0.0
    %1778 = vmatprep.subr.mxu0 0.0
    %1779 = vmatpush2.msra.mxu0 0.0
    %1780 = vmatprep.subr.mxu0 0.0
    %1781 = vmatpush2.msra.mxu0 0.0
    %1782 = vmatprep.subr.mxu0 0.0
    %1783 = vmatpush2.msra.mxu0 0.0
    %1784 = vmatprep.subr.mxu0 0.0
    %1785 = vmatpush2.msra.mxu0 0.0
    %1786 = vmatprep.subr.mxu0 0.0
    %1787 = vmatpush2.msra.mxu0 0.0
    %1788 = vmatprep.subr.mxu0 0.0
    %1789 = vmatpush2.msra.mxu0 0.0
    %1790 = vmatprep.subr.mxu0 0.0
    %1791 = vmatpush2.msra.mxu0 0.0
    %1792 = vmatprep.subr.mxu0 0.0
    %1793 = vmatpush2.msra.mxu0 0.0
    %1794 = vmatprep.subr.mxu0 0.0
    %1795 = vmatpush2.msra.mxu0 0.0
    %1796 = vmatprep.subr.mxu0 0.0
    %1797 = vmatpush2.msra.mxu0 0.0
    %1798 = vmatprep.subr.mxu0 0.0
    %1799 = vmatpush2.msra.mxu0 0.0
    %1800 = vmatprep.mubr.f32.mxu0 0.0
    %1801 = vmatmul.mubr.f32.gmra.mxu0 %v1671
    %v1802 = vpop.f32.mrf.mxu0
    %v1803 = vadd.f32 0.0, %v1802
    %v1804 = vpop.f32.mrf.mxu0
    %v1805 = vadd.f32 0.0, %v1804
    %1806 = vdwg.mxu0
    %1807 = vmatprep.subr.mxu0 %v1735
    %1808 = vmatpush1.msra.mxu0 %v1734
    %1809 = vmatprep.subr.mxu0 %v1731
    %1810 = vmatpush1.msra.mxu0 %v1730
    %1811 = vmatprep.subr.mxu0 %v1727
    %1812 = vmatpush1.msra.mxu0 %v1726
    %1813 = vmatprep.subr.mxu0 %v1723
    %1814 = vmatpush1.msra.mxu0 %v1722
    %1815 = vmatprep.subr.mxu0 %v1719
    %1816 = vmatpush1.msra.mxu0 %v1718
    %1817 = vmatprep.subr.mxu0 %v1715
    %1818 = vmatpush1.msra.mxu0 %v1714
    %1819 = vmatprep.subr.mxu0 %v1711
    %1820 = vmatpush1.msra.mxu0 %v1710
    %1821 = vmatprep.subr.mxu0 %v1707
    %1822 = vmatpush1.msra.mxu0 %v1706
    %1823 = vmatprep.subr.mxu0 %v1703
    %1824 = vmatpush1.msra.mxu0 %v1702
    %1825 = vmatprep.subr.mxu0 %v1699
    %1826 = vmatpush1.msra.mxu0 %v1698
    %1827 = vmatprep.subr.mxu0 %v1695
    %1828 = vmatpush1.msra.mxu0 %v1694
    %1829 = vmatprep.subr.mxu0 %v1691
    %1830 = vmatpush1.msra.mxu0 %v1690
    %1831 = vmatprep.subr.mxu0 %v1687
    %1832 = vmatpush1.msra.mxu0 %v1686
    %1833 = vmatprep.subr.mxu0 %v1683
    %1834 = vmatpush1.msra.mxu0 %v1682
    %1835 = vmatprep.subr.mxu0 %v1679
    %1836 = vmatpush1.msra.mxu0 %v1678
    %1837 = vmatprep.subr.mxu0 %v1675
    %1838 = vmatpush1.msra.mxu0 %v1674
    %1839 = vmatprep.subr.mxu0 0.0
    %1840 = vmatpush2.msra.mxu0 0.0
    %1841 = vmatprep.subr.mxu0 0.0
    %1842 = vmatpush2.msra.mxu0 0.0
    %1843 = vmatprep.subr.mxu0 0.0
    %1844 = vmatpush2.msra.mxu0 0.0
    %1845 = vmatprep.subr.mxu0 0.0
    %1846 = vmatpush2.msra.mxu0 0.0
    %1847 = vmatprep.subr.mxu0 0.0
    %1848 = vmatpush2.msra.mxu0 0.0
    %1849 = vmatprep.subr.mxu0 0.0
    %1850 = vmatpush2.msra.mxu0 0.0
    %1851 = vmatprep.subr.mxu0 0.0
    %1852 = vmatpush2.msra.mxu0 0.0
    %1853 = vmatprep.subr.mxu0 0.0
    %1854 = vmatpush2.msra.mxu0 0.0
    %1855 = vmatprep.subr.mxu0 0.0
    %1856 = vmatpush2.msra.mxu0 0.0
    %1857 = vmatprep.subr.mxu0 0.0
    %1858 = vmatpush2.msra.mxu0 0.0
    %1859 = vmatprep.subr.mxu0 0.0
    %1860 = vmatpush2.msra.mxu0 0.0
    %1861 = vmatprep.subr.mxu0 0.0
    %1862 = vmatpush2.msra.mxu0 0.0
    %1863 = vmatprep.subr.mxu0 0.0
    %1864 = vmatpush2.msra.mxu0 0.0
    %1865 = vmatprep.subr.mxu0 0.0
    %1866 = vmatpush2.msra.mxu0 0.0
    %1867 = vmatprep.subr.mxu0 0.0
    %1868 = vmatpush2.msra.mxu0 0.0
    %1869 = vmatprep.subr.mxu0 0.0
    %1870 = vmatpush2.msra.mxu0 0.0
    %1871 = vmatprep.mubr.f32.mxu0 0.0
    %1872 = vmatmul.mubr.f32.gmra.mxu0 %v1671
    %v1873 = vpop.f32.mrf.mxu0
    %v1874 = vadd.f32 0.0, %v1873
    %v1875 = vpop.f32.mrf.mxu0
    %v1876 = vadd.f32 0.0, %v1875
    %1877 = vdwg.mxu0
    %v1878 = vadd.f32 %v1667, %v1803
    %v1879 = vadd.f32 %v1668, %v1805
    %v1880 = vadd.f32 %v1669, %v1874
    %v1881 = vadd.f32 %v1670, %v1876
    %v1882 = vmul.f32 %v1878, 0.5
    %v1883 = vtanh.pop %v1882
    %v1884 = vmul.f32 %v1883, 0.5
    %v1885 = vadd.f32 %v1884, 0.5
    %v1886 = vmul.f32 %v1879, 0.5
    %v1887 = vtanh.pop %v1886
    %v1888 = vmul.f32 %v1887, 0.5
    %v1889 = vadd.f32 %v1888, 0.5
    %v1890 = vtanh.pop %v1880
    %v1891 = vmul.f32 %v1881, 0.5
    %v1892 = vtanh.pop %v1891
    %v1893 = vmul.f32 %v1892, 0.5
    %v1894 = vadd.f32 %v1893, 0.5
    %v1895 = vld [vmem:[#allocation5] sm:$0xff]
    %v1896 = vmul.f32 %v1889, %v1895
    %v1897 = vmul.f32 %v1885, %v1890
    %v1898 = vadd.f32 %v1896, %v1897
    %v1899 = vtanh.pop %v1898
    %v1900 = vmul.f32 %v1894, %v1899
    %1901 = vst [vmem:[#allocation5] sm:$0xff] %v1898
    %1902 = vst [vmem:[#allocation4] sm:$0xff] %v1900
    %s1903 = scalar_lea.vmem [#allocation2], 40
    %1904 = vst [vmem:[%s1903] sm:$0xff] %v1900
    %s1905 = smul.u32 6, 4
    %s1906 = smul.addr %s1905, 8
    %s1907 = scalar_lea.vmem [#allocation3], %s1906
    %v1908 = vld [vmem:[%s1907] sm:$0xff]
    %v1909 = vld [vmem:[%s1907 + $0x8] sm:$0xff]
    %v1910 = vld [vmem:[%s1907 + $0x10] sm:$0xff]
    %v1911 = vld [vmem:[%s1907 + $0x18] sm:$0xff]
    %v1912 = vld [vmem:[#allocation4] sm:$0xff]
    %v1913 = vld [vmem:[#allocation6] sm:$0xff]
    %v1914 = vld [vmem:[#allocation6 + $0x8] sm:$0xff]
    %v1915 = vld [vmem:[#allocation6 + $0x10] sm:$0xff]
    %v1916 = vld [vmem:[#allocation6 + $0x18] sm:$0xff]
    %v1917 = vld [vmem:[#allocation6 + $0x20] sm:$0xff]
    %v1918 = vld [vmem:[#allocation6 + $0x28] sm:$0xff]
    %v1919 = vld [vmem:[#allocation6 + $0x30] sm:$0xff]
    %v1920 = vld [vmem:[#allocation6 + $0x38] sm:$0xff]
    %v1921 = vld [vmem:[#allocation6 + $0x40] sm:$0xff]
    %v1922 = vld [vmem:[#allocation6 + $0x48] sm:$0xff]
    %v1923 = vld [vmem:[#allocation6 + $0x50] sm:$0xff]
    %v1924 = vld [vmem:[#allocation6 + $0x58] sm:$0xff]
    %v1925 = vld [vmem:[#allocation6 + $0x60] sm:$0xff]
    %v1926 = vld [vmem:[#allocation6 + $0x68] sm:$0xff]
    %v1927 = vld [vmem:[#allocation6 + $0x70] sm:$0xff]
    %v1928 = vld [vmem:[#allocation6 + $0x78] sm:$0xff]
    %v1929 = vld [vmem:[#allocation6 + $0x80] sm:$0xff]
    %v1930 = vld [vmem:[#allocation6 + $0x88] sm:$0xff]
    %v1931 = vld [vmem:[#allocation6 + $0x90] sm:$0xff]
    %v1932 = vld [vmem:[#allocation6 + $0x98] sm:$0xff]
    %v1933 = vld [vmem:[#allocation6 + $0xa0] sm:$0xff]
    %v1934 = vld [vmem:[#allocation6 + $0xa8] sm:$0xff]
    %v1935 = vld [vmem:[#allocation6 + $0xb0] sm:$0xff]
    %v1936 = vld [vmem:[#allocation6 + $0xb8] sm:$0xff]
    %v1937 = vld [vmem:[#allocation6 + $0xc0] sm:$0xff]
    %v1938 = vld [vmem:[#allocation6 + $0xc8] sm:$0xff]
    %v1939 = vld [vmem:[#allocation6 + $0xd0] sm:$0xff]
    %v1940 = vld [vmem:[#allocation6 + $0xd8] sm:$0xff]
    %v1941 = vld [vmem:[#allocation6 + $0xe0] sm:$0xff]
    %v1942 = vld [vmem:[#allocation6 + $0xe8] sm:$0xff]
    %v1943 = vld [vmem:[#allocation6 + $0xf0] sm:$0xff]
    %v1944 = vld [vmem:[#allocation6 + $0xf8] sm:$0xff]
    %v1945 = vld [vmem:[#allocation6 + $0x100] sm:$0xff]
    %v1946 = vld [vmem:[#allocation6 + $0x108] sm:$0xff]
    %v1947 = vld [vmem:[#allocation6 + $0x110] sm:$0xff]
    %v1948 = vld [vmem:[#allocation6 + $0x118] sm:$0xff]
    %v1949 = vld [vmem:[#allocation6 + $0x120] sm:$0xff]
    %v1950 = vld [vmem:[#allocation6 + $0x128] sm:$0xff]
    %v1951 = vld [vmem:[#allocation6 + $0x130] sm:$0xff]
    %v1952 = vld [vmem:[#allocation6 + $0x138] sm:$0xff]
    %v1953 = vld [vmem:[#allocation6 + $0x140] sm:$0xff]
    %v1954 = vld [vmem:[#allocation6 + $0x148] sm:$0xff]
    %v1955 = vld [vmem:[#allocation6 + $0x150] sm:$0xff]
    %v1956 = vld [vmem:[#allocation6 + $0x158] sm:$0xff]
    %v1957 = vld [vmem:[#allocation6 + $0x160] sm:$0xff]
    %v1958 = vld [vmem:[#allocation6 + $0x168] sm:$0xff]
    %v1959 = vld [vmem:[#allocation6 + $0x170] sm:$0xff]
    %v1960 = vld [vmem:[#allocation6 + $0x178] sm:$0xff]
    %v1961 = vld [vmem:[#allocation6 + $0x180] sm:$0xff]
    %v1962 = vld [vmem:[#allocation6 + $0x188] sm:$0xff]
    %v1963 = vld [vmem:[#allocation6 + $0x190] sm:$0xff]
    %v1964 = vld [vmem:[#allocation6 + $0x198] sm:$0xff]
    %v1965 = vld [vmem:[#allocation6 + $0x1a0] sm:$0xff]
    %v1966 = vld [vmem:[#allocation6 + $0x1a8] sm:$0xff]
    %v1967 = vld [vmem:[#allocation6 + $0x1b0] sm:$0xff]
    %v1968 = vld [vmem:[#allocation6 + $0x1b8] sm:$0xff]
    %v1969 = vld [vmem:[#allocation6 + $0x1c0] sm:$0xff]
    %v1970 = vld [vmem:[#allocation6 + $0x1c8] sm:$0xff]
    %v1971 = vld [vmem:[#allocation6 + $0x1d0] sm:$0xff]
    %v1972 = vld [vmem:[#allocation6 + $0x1d8] sm:$0xff]
    %v1973 = vld [vmem:[#allocation6 + $0x1e0] sm:$0xff]
    %v1974 = vld [vmem:[#allocation6 + $0x1e8] sm:$0xff]
    %v1975 = vld [vmem:[#allocation6 + $0x1f0] sm:$0xff]
    %v1976 = vld [vmem:[#allocation6 + $0x1f8] sm:$0xff]
    %1977 = vmatprep.subr.mxu0 %v1974
    %1978 = vmatpush1.msra.mxu0 %v1973
    %1979 = vmatprep.subr.mxu0 %v1970
    %1980 = vmatpush1.msra.mxu0 %v1969
    %1981 = vmatprep.subr.mxu0 %v1966
    %1982 = vmatpush1.msra.mxu0 %v1965
    %1983 = vmatprep.subr.mxu0 %v1962
    %1984 = vmatpush1.msra.mxu0 %v1961
    %1985 = vmatprep.subr.mxu0 %v1958
    %1986 = vmatpush1.msra.mxu0 %v1957
    %1987 = vmatprep.subr.mxu0 %v1954
    %1988 = vmatpush1.msra.mxu0 %v1953
    %1989 = vmatprep.subr.mxu0 %v1950
    %1990 = vmatpush1.msra.mxu0 %v1949
    %1991 = vmatprep.subr.mxu0 %v1946
    %1992 = vmatpush1.msra.mxu0 %v1945
    %1993 = vmatprep.subr.mxu0 %v1942
    %1994 = vmatpush1.msra.mxu0 %v1941
    %1995 = vmatprep.subr.mxu0 %v1938
    %1996 = vmatpush1.msra.mxu0 %v1937
    %1997 = vmatprep.subr.mxu0 %v1934
    %1998 = vmatpush1.msra.mxu0 %v1933
    %1999 = vmatprep.subr.mxu0 %v1930
    %2000 = vmatpush1.msra.mxu0 %v1929
    %2001 = vmatprep.subr.mxu0 %v1926
    %2002 = vmatpush1.msra.mxu0 %v1925
    %2003 = vmatprep.subr.mxu0 %v1922
    %2004 = vmatpush1.msra.mxu0 %v1921
    %2005 = vmatprep.subr.mxu0 %v1918
    %2006 = vmatpush1.msra.mxu0 %v1917
    %2007 = vmatprep.subr.mxu0 %v1914
    %2008 = vmatpush1.msra.mxu0 %v1913
    %2009 = vmatprep.subr.mxu0 0.0
    %2010 = vmatpush2.msra.mxu0 0.0
    %2011 = vmatprep.subr.mxu0 0.0
    %2012 = vmatpush2.msra.mxu0 0.0
    %2013 = vmatprep.subr.mxu0 0.0
    %2014 = vmatpush2.msra.mxu0 0.0
    %2015 = vmatprep.subr.mxu0 0.0
    %2016 = vmatpush2.msra.mxu0 0.0
    %2017 = vmatprep.subr.mxu0 0.0
    %2018 = vmatpush2.msra.mxu0 0.0
    %2019 = vmatprep.subr.mxu0 0.0
    %2020 = vmatpush2.msra.mxu0 0.0
    %2021 = vmatprep.subr.mxu0 0.0
    %2022 = vmatpush2.msra.mxu0 0.0
    %2023 = vmatprep.subr.mxu0 0.0
    %2024 = vmatpush2.msra.mxu0 0.0
    %2025 = vmatprep.subr.mxu0 0.0
    %2026 = vmatpush2.msra.mxu0 0.0
    %2027 = vmatprep.subr.mxu0 0.0
    %2028 = vmatpush2.msra.mxu0 0.0
    %2029 = vmatprep.subr.mxu0 0.0
    %2030 = vmatpush2.msra.mxu0 0.0
    %2031 = vmatprep.subr.mxu0 0.0
    %2032 = vmatpush2.msra.mxu0 0.0
    %2033 = vmatprep.subr.mxu0 0.0
    %2034 = vmatpush2.msra.mxu0 0.0
    %2035 = vmatprep.subr.mxu0 0.0
    %2036 = vmatpush2.msra.mxu0 0.0
    %2037 = vmatprep.subr.mxu0 0.0
    %2038 = vmatpush2.msra.mxu0 0.0
    %2039 = vmatprep.subr.mxu0 0.0
    %2040 = vmatpush2.msra.mxu0 0.0
    %2041 = vmatprep.mubr.f32.mxu0 0.0
    %2042 = vmatmul.mubr.f32.gmra.mxu0 %v1912
    %v2043 = vpop.f32.mrf.mxu0
    %v2044 = vadd.f32 0.0, %v2043
    %v2045 = vpop.f32.mrf.mxu0
    %v2046 = vadd.f32 0.0, %v2045
    %2047 = vdwg.mxu0
    %2048 = vmatprep.subr.mxu0 %v1976
    %2049 = vmatpush1.msra.mxu0 %v1975
    %2050 = vmatprep.subr.mxu0 %v1972
    %2051 = vmatpush1.msra.mxu0 %v1971
    %2052 = vmatprep.subr.mxu0 %v1968
    %2053 = vmatpush1.msra.mxu0 %v1967
    %2054 = vmatprep.subr.mxu0 %v1964
    %2055 = vmatpush1.msra.mxu0 %v1963
    %2056 = vmatprep.subr.mxu0 %v1960
    %2057 = vmatpush1.msra.mxu0 %v1959
    %2058 = vmatprep.subr.mxu0 %v1956
    %2059 = vmatpush1.msra.mxu0 %v1955
    %2060 = vmatprep.subr.mxu0 %v1952
    %2061 = vmatpush1.msra.mxu0 %v1951
    %2062 = vmatprep.subr.mxu0 %v1948
    %2063 = vmatpush1.msra.mxu0 %v1947
    %2064 = vmatprep.subr.mxu0 %v1944
    %2065 = vmatpush1.msra.mxu0 %v1943
    %2066 = vmatprep.subr.mxu0 %v1940
    %2067 = vmatpush1.msra.mxu0 %v1939
    %2068 = vmatprep.subr.mxu0 %v1936
    %2069 = vmatpush1.msra.mxu0 %v1935
    %2070 = vmatprep.subr.mxu0 %v1932
    %2071 = vmatpush1.msra.mxu0 %v1931
    %2072 = vmatprep.subr.mxu0 %v1928
    %2073 = vmatpush1.msra.mxu0 %v1927
    %2074 = vmatprep.subr.mxu0 %v1924
    %2075 = vmatpush1.msra.mxu0 %v1923
    %2076 = vmatprep.subr.mxu0 %v1920
    %2077 = vmatpush1.msra.mxu0 %v1919
    %2078 = vmatprep.subr.mxu0 %v1916
    %2079 = vmatpush1.msra.mxu0 %v1915
    %2080 = vmatprep.subr.mxu0 0.0
    %2081 = vmatpush2.msra.mxu0 0.0
    %2082 = vmatprep.subr.mxu0 0.0
    %2083 = vmatpush2.msra.mxu0 0.0
    %2084 = vmatprep.subr.mxu0 0.0
    %2085 = vmatpush2.msra.mxu0 0.0
    %2086 = vmatprep.subr.mxu0 0.0
    %2087 = vmatpush2.msra.mxu0 0.0
    %2088 = vmatprep.subr.mxu0 0.0
    %2089 = vmatpush2.msra.mxu0 0.0
    %2090 = vmatprep.subr.mxu0 0.0
    %2091 = vmatpush2.msra.mxu0 0.0
    %2092 = vmatprep.subr.mxu0 0.0
    %2093 = vmatpush2.msra.mxu0 0.0
    %2094 = vmatprep.subr.mxu0 0.0
    %2095 = vmatpush2.msra.mxu0 0.0
    %2096 = vmatprep.subr.mxu0 0.0
    %2097 = vmatpush2.msra.mxu0 0.0
    %2098 = vmatprep.subr.mxu0 0.0
    %2099 = vmatpush2.msra.mxu0 0.0
    %2100 = vmatprep.subr.mxu0 0.0
    %2101 = vmatpush2.msra.mxu0 0.0
    %2102 = vmatprep.subr.mxu0 0.0
    %2103 = vmatpush2.msra.mxu0 0.0
    %2104 = vmatprep.subr.mxu0 0.0
    %2105 = vmatpush2.msra.mxu0 0.0
    %2106 = vmatprep.subr.mxu0 0.0
    %2107 = vmatpush2.msra.mxu0 0.0
    %2108 = vmatprep.subr.mxu0 0.0
    %2109 = vmatpush2.msra.mxu0 0.0
    %2110 = vmatprep.subr.mxu0 0.0
    %2111 = vmatpush2.msra.mxu0 0.0
    %2112 = vmatprep.mubr.f32.mxu0 0.0
    %2113 = vmatmul.mubr.f32.gmra.mxu0 %v1912
    %v2114 = vpop.f32.mrf.mxu0
    %v2115 = vadd.f32 0.0, %v2114
    %v2116 = vpop.f32.mrf.mxu0
    %v2117 = vadd.f32 0.0, %v2116
    %2118 = vdwg.mxu0
    %v2119 = vadd.f32 %v1908, %v2044
    %v2120 = vadd.f32 %v1909, %v2046
    %v2121 = vadd.f32 %v1910, %v2115
    %v2122 = vadd.f32 %v1911, %v2117
    %v2123 = vmul.f32 %v2119, 0.5
    %v2124 = vtanh.pop %v2123
    %v2125 = vmul.f32 %v2124, 0.5
    %v2126 = vadd.f32 %v2125, 0.5
    %v2127 = vmul.f32 %v2120, 0.5
    %v2128 = vtanh.pop %v2127
    %v2129 = vmul.f32 %v2128, 0.5
    %v2130 = vadd.f32 %v2129, 0.5
    %v2131 = vtanh.pop %v2121
    %v2132 = vmul.f32 %v2122, 0.5
    %v2133 = vtanh.pop %v2132
    %v2134 = vmul.f32 %v2133, 0.5
    %v2135 = vadd.f32 %v2134, 0.5
    %v2136 = vld [vmem:[#allocation5] sm:$0xff]
    %v2137 = vmul.f32 %v2130, %v2136
    %v2138 = vmul.f32 %v2126, %v2131
    %v2139 = vadd.f32 %v2137, %v2138
    %v2140 = vtanh.pop %v2139
    %v2141 = vmul.f32 %v2135, %v2140
    %2142 = vst [vmem:[#allocation5] sm:$0xff] %v2139
    %2143 = vst [vmem:[#allocation4] sm:$0xff] %v2141
    %s2144 = scalar_lea.vmem [#allocation2], 48
    %2145 = vst [vmem:[%s2144] sm:$0xff] %v2141
    %s2146 = smul.u32 7, 4
    %s2147 = smul.addr %s2146, 8
    %s2148 = scalar_lea.vmem [#allocation3], %s2147
    %v2149 = vld [vmem:[%s2148] sm:$0xff]
    %v2150 = vld [vmem:[%s2148 + $0x8] sm:$0xff]
    %v2151 = vld [vmem:[%s2148 + $0x10] sm:$0xff]
    %v2152 = vld [vmem:[%s2148 + $0x18] sm:$0xff]
    %v2153 = vld [vmem:[#allocation4] sm:$0xff]
    %v2154 = vld [vmem:[#allocation6] sm:$0xff]
    %v2155 = vld [vmem:[#allocation6 + $0x8] sm:$0xff]
    %v2156 = vld [vmem:[#allocation6 + $0x10] sm:$0xff]
    %v2157 = vld [vmem:[#allocation6 + $0x18] sm:$0xff]
    %v2158 = vld [vmem:[#allocation6 + $0x20] sm:$0xff]
    %v2159 = vld [vmem:[#allocation6 + $0x28] sm:$0xff]
    %v2160 = vld [vmem:[#allocation6 + $0x30] sm:$0xff]
    %v2161 = vld [vmem:[#allocation6 + $0x38] sm:$0xff]
    %v2162 = vld [vmem:[#allocation6 + $0x40] sm:$0xff]
    %v2163 = vld [vmem:[#allocation6 + $0x48] sm:$0xff]
    %v2164 = vld [vmem:[#allocation6 + $0x50] sm:$0xff]
    %v2165 = vld [vmem:[#allocation6 + $0x58] sm:$0xff]
    %v2166 = vld [vmem:[#allocation6 + $0x60] sm:$0xff]
    %v2167 = vld [vmem:[#allocation6 + $0x68] sm:$0xff]
    %v2168 = vld [vmem:[#allocation6 + $0x70] sm:$0xff]
    %v2169 = vld [vmem:[#allocation6 + $0x78] sm:$0xff]
    %v2170 = vld [vmem:[#allocation6 + $0x80] sm:$0xff]
    %v2171 = vld [vmem:[#allocation6 + $0x88] sm:$0xff]
    %v2172 = vld [vmem:[#allocation6 + $0x90] sm:$0xff]
    %v2173 = vld [vmem:[#allocation6 + $0x98] sm:$0xff]
    %v2174 = vld [vmem:[#allocation6 + $0xa0] sm:$0xff]
    %v2175 = vld [vmem:[#allocation6 + $0xa8] sm:$0xff]
    %v2176 = vld [vmem:[#allocation6 + $0xb0] sm:$0xff]
    %v2177 = vld [vmem:[#allocation6 + $0xb8] sm:$0xff]
    %v2178 = vld [vmem:[#allocation6 + $0xc0] sm:$0xff]
    %v2179 = vld [vmem:[#allocation6 + $0xc8] sm:$0xff]
    %v2180 = vld [vmem:[#allocation6 + $0xd0] sm:$0xff]
    %v2181 = vld [vmem:[#allocation6 + $0xd8] sm:$0xff]
    %v2182 = vld [vmem:[#allocation6 + $0xe0] sm:$0xff]
    %v2183 = vld [vmem:[#allocation6 + $0xe8] sm:$0xff]
    %v2184 = vld [vmem:[#allocation6 + $0xf0] sm:$0xff]
    %v2185 = vld [vmem:[#allocation6 + $0xf8] sm:$0xff]
    %v2186 = vld [vmem:[#allocation6 + $0x100] sm:$0xff]
    %v2187 = vld [vmem:[#allocation6 + $0x108] sm:$0xff]
    %v2188 = vld [vmem:[#allocation6 + $0x110] sm:$0xff]
    %v2189 = vld [vmem:[#allocation6 + $0x118] sm:$0xff]
    %v2190 = vld [vmem:[#allocation6 + $0x120] sm:$0xff]
    %v2191 = vld [vmem:[#allocation6 + $0x128] sm:$0xff]
    %v2192 = vld [vmem:[#allocation6 + $0x130] sm:$0xff]
    %v2193 = vld [vmem:[#allocation6 + $0x138] sm:$0xff]
    %v2194 = vld [vmem:[#allocation6 + $0x140] sm:$0xff]
    %v2195 = vld [vmem:[#allocation6 + $0x148] sm:$0xff]
    %v2196 = vld [vmem:[#allocation6 + $0x150] sm:$0xff]
    %v2197 = vld [vmem:[#allocation6 + $0x158] sm:$0xff]
    %v2198 = vld [vmem:[#allocation6 + $0x160] sm:$0xff]
    %v2199 = vld [vmem:[#allocation6 + $0x168] sm:$0xff]
    %v2200 = vld [vmem:[#allocation6 + $0x170] sm:$0xff]
    %v2201 = vld [vmem:[#allocation6 + $0x178] sm:$0xff]
    %v2202 = vld [vmem:[#allocation6 + $0x180] sm:$0xff]
    %v2203 = vld [vmem:[#allocation6 + $0x188] sm:$0xff]
    %v2204 = vld [vmem:[#allocation6 + $0x190] sm:$0xff]
    %v2205 = vld [vmem:[#allocation6 + $0x198] sm:$0xff]
    %v2206 = vld [vmem:[#allocation6 + $0x1a0] sm:$0xff]
    %v2207 = vld [vmem:[#allocation6 + $0x1a8] sm:$0xff]
    %v2208 = vld [vmem:[#allocation6 + $0x1b0] sm:$0xff]
    %v2209 = vld [vmem:[#allocation6 + $0x1b8] sm:$0xff]
    %v2210 = vld [vmem:[#allocation6 + $0x1c0] sm:$0xff]
    %v2211 = vld [vmem:[#allocation6 + $0x1c8] sm:$0xff]
    %v2212 = vld [vmem:[#allocation6 + $0x1d0] sm:$0xff]
    %v2213 = vld [vmem:[#allocation6 + $0x1d8] sm:$0xff]
    %v2214 = vld [vmem:[#allocation6 + $0x1e0] sm:$0xff]
    %v2215 = vld [vmem:[#allocation6 + $0x1e8] sm:$0xff]
    %v2216 = vld [vmem:[#allocation6 + $0x1f0] sm:$0xff]
    %v2217 = vld [vmem:[#allocation6 + $0x1f8] sm:$0xff]
    %2218 = vmatprep.subr.mxu0 %v2215
    %2219 = vmatpush1.msra.mxu0 %v2214
    %2220 = vmatprep.subr.mxu0 %v2211
    %2221 = vmatpush1.msra.mxu0 %v2210
    %2222 = vmatprep.subr.mxu0 %v2207
    %2223 = vmatpush1.msra.mxu0 %v2206
    %2224 = vmatprep.subr.mxu0 %v2203
    %2225 = vmatpush1.msra.mxu0 %v2202
    %2226 = vmatprep.subr.mxu0 %v2199
    %2227 = vmatpush1.msra.mxu0 %v2198
    %2228 = vmatprep.subr.mxu0 %v2195
    %2229 = vmatpush1.msra.mxu0 %v2194
    %2230 = vmatprep.subr.mxu0 %v2191
    %2231 = vmatpush1.msra.mxu0 %v2190
    %2232 = vmatprep.subr.mxu0 %v2187
    %2233 = vmatpush1.msra.mxu0 %v2186
    %2234 = vmatprep.subr.mxu0 %v2183
    %2235 = vmatpush1.msra.mxu0 %v2182
    %2236 = vmatprep.subr.mxu0 %v2179
    %2237 = vmatpush1.msra.mxu0 %v2178
    %2238 = vmatprep.subr.mxu0 %v2175
    %2239 = vmatpush1.msra.mxu0 %v2174
    %2240 = vmatprep.subr.mxu0 %v2171
    %2241 = vmatpush1.msra.mxu0 %v2170
    %2242 = vmatprep.subr.mxu0 %v2167
    %2243 = vmatpush1.msra.mxu0 %v2166
    %2244 = vmatprep.subr.mxu0 %v2163
    %2245 = vmatpush1.msra.mxu0 %v2162
    %2246 = vmatprep.subr.mxu0 %v2159
    %2247 = vmatpush1.msra.mxu0 %v2158
    %2248 = vmatprep.subr.mxu0 %v2155
    %2249 = vmatpush1.msra.mxu0 %v2154
    %2250 = vmatprep.subr.mxu0 0.0
    %2251 = vmatpush2.msra.mxu0 0.0
    %2252 = vmatprep.subr.mxu0 0.0
    %2253 = vmatpush2.msra.mxu0 0.0
    %2254 = vmatprep.subr.mxu0 0.0
    %2255 = vmatpush2.msra.mxu0 0.0
    %2256 = vmatprep.subr.mxu0 0.0
    %2257 = vmatpush2.msra.mxu0 0.0
    %2258 = vmatprep.subr.mxu0 0.0
    %2259 = vmatpush2.msra.mxu0 0.0
    %2260 = vmatprep.subr.mxu0 0.0
    %2261 = vmatpush2.msra.mxu0 0.0
    %2262 = vmatprep.subr.mxu0 0.0
    %2263 = vmatpush2.msra.mxu0 0.0
    %2264 = vmatprep.subr.mxu0 0.0
    %2265 = vmatpush2.msra.mxu0 0.0
    %2266 = vmatprep.subr.mxu0 0.0
    %2267 = vmatpush2.msra.mxu0 0.0
    %2268 = vmatprep.subr.mxu0 0.0
    %2269 = vmatpush2.msra.mxu0 0.0
    %2270 = vmatprep.subr.mxu0 0.0
    %2271 = vmatpush2.msra.mxu0 0.0
    %2272 = vmatprep.subr.mxu0 0.0
    %2273 = vmatpush2.msra.mxu0 0.0
    %2274 = vmatprep.subr.mxu0 0.0
    %2275 = vmatpush2.msra.mxu0 0.0
    %2276 = vmatprep.subr.mxu0 0.0
    %2277 = vmatpush2.msra.mxu0 0.0
    %2278 = vmatprep.subr.mxu0 0.0
    %2279 = vmatpush2.msra.mxu0 0.0
    %2280 = vmatprep.subr.mxu0 0.0
    %2281 = vmatpush2.msra.mxu0 0.0
    %2282 = vmatprep.mubr.f32.mxu0 0.0
    %2283 = vmatmul.mubr.f32.gmra.mxu0 %v2153
    %v2284 = vpop.f32.mrf.mxu0
    %v2285 = vadd.f32 0.0, %v2284
    %v2286 = vpop.f32.mrf.mxu0
    %v2287 = vadd.f32 0.0, %v2286
    %2288 = vdwg.mxu0
    %2289 = vmatprep.subr.mxu0 %v2217
    %2290 = vmatpush1.msra.mxu0 %v2216
    %2291 = vmatprep.subr.mxu0 %v2213
    %2292 = vmatpush1.msra.mxu0 %v2212
    %2293 = vmatprep.subr.mxu0 %v2209
    %2294 = vmatpush1.msra.mxu0 %v2208
    %2295 = vmatprep.subr.mxu0 %v2205
    %2296 = vmatpush1.msra.mxu0 %v2204
    %2297 = vmatprep.subr.mxu0 %v2201
    %2298 = vmatpush1.msra.mxu0 %v2200
    %2299 = vmatprep.subr.mxu0 %v2197
    %2300 = vmatpush1.msra.mxu0 %v2196
    %2301 = vmatprep.subr.mxu0 %v2193
    %2302 = vmatpush1.msra.mxu0 %v2192
    %2303 = vmatprep.subr.mxu0 %v2189
    %2304 = vmatpush1.msra.mxu0 %v2188
    %2305 = vmatprep.subr.mxu0 %v2185
    %2306 = vmatpush1.msra.mxu0 %v2184
    %2307 = vmatprep.subr.mxu0 %v2181
    %2308 = vmatpush1.msra.mxu0 %v2180
    %2309 = vmatprep.subr.mxu0 %v2177
    %2310 = vmatpush1.msra.mxu0 %v2176
    %2311 = vmatprep.subr.mxu0 %v2173
    %2312 = vmatpush1.msra.mxu0 %v2172
    %2313 = vmatprep.subr.mxu0 %v2169
    %2314 = vmatpush1.msra.mxu0 %v2168
    %2315 = vmatprep.subr.mxu0 %v2165
    %2316 = vmatpush1.msra.mxu0 %v2164
    %2317 = vmatprep.subr.mxu0 %v2161
    %2318 = vmatpush1.msra.mxu0 %v2160
    %2319 = vmatprep.subr.mxu0 %v2157
    %2320 = vmatpush1.msra.mxu0 %v2156
    %2321 = vmatprep.subr.mxu0 0.0
    %2322 = vmatpush2.msra.mxu0 0.0
    %2323 = vmatprep.subr.mxu0 0.0
    %2324 = vmatpush2.msra.mxu0 0.0
    %2325 = vmatprep.subr.mxu0 0.0
    %2326 = vmatpush2.msra.mxu0 0.0
    %2327 = vmatprep.subr.mxu0 0.0
    %2328 = vmatpush2.msra.mxu0 0.0
    %2329 = vmatprep.subr.mxu0 0.0
    %2330 = vmatpush2.msra.mxu0 0.0
    %2331 = vmatprep.subr.mxu0 0.0
    %2332 = vmatpush2.msra.mxu0 0.0
    %2333 = vmatprep.subr.mxu0 0.0
    %2334 = vmatpush2.msra.mxu0 0.0
    %2335 = vmatprep.subr.mxu0 0.0
    %2336 = vmatpush2.msra.mxu0 0.0
    %2337 = vmatprep.subr.mxu0 0.0
    %2338 = vmatpush2.msra.mxu0 0.0
    %2339 = vmatprep.subr.mxu0 0.0
    %2340 = vmatpush2.msra.mxu0 0.0
    %2341 = vmatprep.subr.mxu0 0.0
    %2342 = vmatpush2.msra.mxu0 0.0
    %2343 = vmatprep.subr.mxu0 0.0
    %2344 = vmatpush2.msra.mxu0 0.0
    %2345 = vmatprep.subr.mxu0 0.0
    %2346 = vmatpush2.msra.mxu0 0.0
    %2347 = vmatprep.subr.mxu0 0.0
    %2348 = vmatpush2.msra.mxu0 0.0
    %2349 = vmatprep.subr.mxu0 0.0
    %2350 = vmatpush2.msra.mxu0 0.0
    %2351 = vmatprep.subr.mxu0 0.0
    %2352 = vmatpush2.msra.mxu0 0.0
    %2353 = vmatprep.mubr.f32.mxu0 0.0
    %2354 = vmatmul.mubr.f32.gmra.mxu0 %v2153
    %v2355 = vpop.f32.mrf.mxu0
    %v2356 = vadd.f32 0.0, %v2355
    %v2357 = vpop.f32.mrf.mxu0
    %v2358 = vadd.f32 0.0, %v2357
    %2359 = vdwg.mxu0
    %v2360 = vadd.f32 %v2149, %v2285
    %v2361 = vadd.f32 %v2150, %v2287
    %v2362 = vadd.f32 %v2151, %v2356
    %v2363 = vadd.f32 %v2152, %v2358
    %v2364 = vmul.f32 %v2360, 0.5
    %v2365 = vtanh.pop %v2364
    %v2366 = vmul.f32 %v2365, 0.5
    %v2367 = vadd.f32 %v2366, 0.5
    %v2368 = vmul.f32 %v2361, 0.5
    %v2369 = vtanh.pop %v2368
    %v2370 = vmul.f32 %v2369, 0.5
    %v2371 = vadd.f32 %v2370, 0.5
    %v2372 = vtanh.pop %v2362
    %v2373 = vmul.f32 %v2363, 0.5
    %v2374 = vtanh.pop %v2373
    %v2375 = vmul.f32 %v2374, 0.5
    %v2376 = vadd.f32 %v2375, 0.5
    %v2377 = vld [vmem:[#allocation5] sm:$0xff]
    %v2378 = vmul.f32 %v2371, %v2377
    %v2379 = vmul.f32 %v2367, %v2372
    %v2380 = vadd.f32 %v2378, %v2379
    %v2381 = vtanh.pop %v2380
    %v2382 = vmul.f32 %v2376, %v2381
    %2383 = vst [vmem:[#allocation5] sm:$0xff] %v2380
    %2384 = vst [vmem:[#allocation4] sm:$0xff] %v2382
    %s2385 = scalar_lea.vmem [#allocation2], 56
    %2386 = vst [vmem:[%s2385] sm:$0xff] %v2382
    %v2387 = vld [vmem:[#allocation2] sm:$0xff]
    %v2388 = vld [vmem:[#allocation2 + $0x8] sm:$0xff]
    %v2389 = vld [vmem:[#allocation2 + $0x10] sm:$0xff]
    %v2390 = vld [vmem:[#allocation2 + $0x18] sm:$0xff]
    %v2391 = vld [vmem:[#allocation2 + $0x20] sm:$0xff]
    %v2392 = vld [vmem:[#allocation2 + $0x28] sm:$0xff]
    %v2393 = vld [vmem:[#allocation2 + $0x30] sm:$0xff]
    %v2394 = vld [vmem:[#allocation2 + $0x38] sm:$0xff]
    %v2395 = vld [vmem:[#allocation8] sm:$0xff]
    %v2396 = vld [vmem:[#allocation8 + $0x8] sm:$0xff]
    %v2397 = vld [vmem:[#allocation8 + $0x10] sm:$0xff]
    %v2398 = vld [vmem:[#allocation8 + $0x18] sm:$0xff]
    %v2399 = vld [vmem:[#allocation8 + $0x20] sm:$0xff]
    %v2400 = vld [vmem:[#allocation8 + $0x28] sm:$0xff]
    %v2401 = vld [vmem:[#allocation8 + $0x30] sm:$0xff]
    %v2402 = vld [vmem:[#allocation8 + $0x38] sm:$0xff]
    %v2403 = vld [vmem:[#allocation8 + $0x40] sm:$0xff]
    %v2404 = vld [vmem:[#allocation8 + $0x48] sm:$0xff]
    %v2405 = vld [vmem:[#allocation8 + $0x50] sm:$0xff]
    %v2406 = vld [vmem:[#allocation8 + $0x58] sm:$0xff]
    %v2407 = vld [vmem:[#allocation8 + $0x60] sm:$0xff]
    %v2408 = vld [vmem:[#allocation8 + $0x68] sm:$0xff]
    %v2409 = vld [vmem:[#allocation8 + $0x70] sm:$0xff]
    %v2410 = vld [vmem:[#allocation8 + $0x78] sm:$0xff]
    %v2411 = vld [vmem:[#allocation8 + $0x80] sm:$0xff]
    %v2412 = vld [vmem:[#allocation8 + $0x88] sm:$0xff]
    %v2413 = vld [vmem:[#allocation8 + $0x90] sm:$0xff]
    %v2414 = vld [vmem:[#allocation8 + $0x98] sm:$0xff]
    %v2415 = vld [vmem:[#allocation8 + $0xa0] sm:$0xff]
    %v2416 = vld [vmem:[#allocation8 + $0xa8] sm:$0xff]
    %v2417 = vld [vmem:[#allocation8 + $0xb0] sm:$0xff]
    %v2418 = vld [vmem:[#allocation8 + $0xb8] sm:$0xff]
    %v2419 = vld [vmem:[#allocation8 + $0xc0] sm:$0xff]
    %v2420 = vld [vmem:[#allocation8 + $0xc8] sm:$0xff]
    %v2421 = vld [vmem:[#allocation8 + $0xd0] sm:$0xff]
    %v2422 = vld [vmem:[#allocation8 + $0xd8] sm:$0xff]
    %v2423 = vld [vmem:[#allocation8 + $0xe0] sm:$0xff]
    %v2424 = vld [vmem:[#allocation8 + $0xe8] sm:$0xff]
    %v2425 = vld [vmem:[#allocation8 + $0xf0] sm:$0xff]
    %v2426 = vld [vmem:[#allocation8 + $0xf8] sm:$0xff]
    %v2427 = vpack.c.bf16 %v2388, %v2387
    %v2428 = vpack.c.bf16 %v2390, %v2389
    %v2429 = vpack.c.bf16 %v2392, %v2391
    %v2430 = vpack.c.bf16 %v2394, %v2393
    %v2431 = vld [vmem:[%s7] sm:$0xf]
    %v2433 = vlaneseq
    %v2434 = vshrl.u32 %v2433, 7
    %v2435 = vsub.s32 0, %v2434
    %v2436 = vrot.slane %v2431, %v2435
    %v2437 = vlaneseq
    %v2438 = vshrl.u32 %v2437, 7
    %v2439 = vsub.s32 1, %v2438
    %v2440 = vrot.slane %v2431, %v2439
    %v2441 = vlaneseq
    %v2442 = vshrl.u32 %v2441, 7
    %v2443 = vsub.s32 2, %v2442
    %v2444 = vrot.slane %v2431, %v2443
    %v2445 = vlaneseq
    %v2446 = vshrl.u32 %v2445, 7
    %v2447 = vsub.s32 3, %v2446
    %v2448 = vrot.slane %v2431, %v2447
    %v2485 = vunpack.c.l.b16 %v2395
    %v2486 = vunpack.c.h.b16 %v2395
    %v2487 = vunpack.c.l.b16 %v2396
    %v2488 = vunpack.c.h.b16 %v2396
    %v2489 = vunpack.c.l.b16 %v2397
    %v2490 = vunpack.c.h.b16 %v2397
    %v2491 = vunpack.c.l.b16 %v2398
    %v2492 = vunpack.c.h.b16 %v2398
    %v2493 = vunpack.c.l.b16 %v2399
    %v2494 = vunpack.c.h.b16 %v2399
    %v2495 = vunpack.c.l.b16 %v2400
    %v2496 = vunpack.c.h.b16 %v2400
    %v2497 = vunpack.c.l.b16 %v2401
    %v2498 = vunpack.c.h.b16 %v2401
    %v2499 = vunpack.c.l.b16 %v2402
    %v2500 = vunpack.c.h.b16 %v2402
    %v2501 = vunpack.c.l.b16 %v2403
    %v2502 = vunpack.c.h.b16 %v2403
    %v2503 = vunpack.c.l.b16 %v2404
    %v2504 = vunpack.c.h.b16 %v2404
    %v2505 = vunpack.c.l.b16 %v2405
    %v2506 = vunpack.c.h.b16 %v2405
    %v2507 = vunpack.c.l.b16 %v2406
    %v2508 = vunpack.c.h.b16 %v2406
    %v2509 = vunpack.c.l.b16 %v2407
    %v2510 = vunpack.c.h.b16 %v2407
    %v2511 = vunpack.c.l.b16 %v2408
    %v2512 = vunpack.c.h.b16 %v2408
    %v2513 = vunpack.c.l.b16 %v2409
    %v2514 = vunpack.c.h.b16 %v2409
    %v2515 = vunpack.c.l.b16 %v2410
    %v2516 = vunpack.c.h.b16 %v2410
    %v2517 = vunpack.c.l.b16 %v2411
    %v2518 = vunpack.c.h.b16 %v2411
    %v2519 = vunpack.c.l.b16 %v2412
    %v2520 = vunpack.c.h.b16 %v2412
    %v2521 = vunpack.c.l.b16 %v2413
    %v2522 = vunpack.c.h.b16 %v2413
    %v2523 = vunpack.c.l.b16 %v2414
    %v2524 = vunpack.c.h.b16 %v2414
    %v2525 = vunpack.c.l.b16 %v2415
    %v2526 = vunpack.c.h.b16 %v2415
    %v2527 = vunpack.c.l.b16 %v2416
    %v2528 = vunpack.c.h.b16 %v2416
    %v2529 = vunpack.c.l.b16 %v2417
    %v2530 = vunpack.c.h.b16 %v2417
    %v2531 = vunpack.c.l.b16 %v2418
    %v2532 = vunpack.c.h.b16 %v2418
    %v2533 = vunpack.c.l.b16 %v2419
    %v2534 = vunpack.c.h.b16 %v2419
    %v2535 = vunpack.c.l.b16 %v2420
    %v2536 = vunpack.c.h.b16 %v2420
    %v2537 = vunpack.c.l.b16 %v2421
    %v2538 = vunpack.c.h.b16 %v2421
    %v2539 = vunpack.c.l.b16 %v2422
    %v2540 = vunpack.c.h.b16 %v2422
    %v2541 = vunpack.c.l.b16 %v2423
    %v2542 = vunpack.c.h.b16 %v2423
    %v2543 = vunpack.c.l.b16 %v2424
    %v2544 = vunpack.c.h.b16 %v2424
    %v2545 = vunpack.c.l.b16 %v2425
    %v2546 = vunpack.c.h.b16 %v2425
    %v2547 = vunpack.c.l.b16 %v2426
    %v2548 = vunpack.c.h.b16 %v2426
    %v2549 = vpack.c.b16 %v2489, %v2485
    %v2550 = vpack.c.b16 %v2490, %v2486
    %v2551 = vpack.c.b16 %v2491, %v2487
    %v2552 = vpack.c.b16 %v2492, %v2488
    %v2553 = vpack.c.b16 %v2497, %v2493
    %v2554 = vpack.c.b16 %v2498, %v2494
    %v2555 = vpack.c.b16 %v2499, %v2495
    %v2556 = vpack.c.b16 %v2500, %v2496
    %v2557 = vpack.c.b16 %v2505, %v2501
    %v2558 = vpack.c.b16 %v2506, %v2502
    %v2559 = vpack.c.b16 %v2507, %v2503
    %v2560 = vpack.c.b16 %v2508, %v2504
    %v2561 = vpack.c.b16 %v2513, %v2509
    %v2562 = vpack.c.b16 %v2514, %v2510
    %v2563 = vpack.c.b16 %v2515, %v2511
    %v2564 = vpack.c.b16 %v2516, %v2512
    %v2565 = vpack.c.b16 %v2521, %v2517
    %v2566 = vpack.c.b16 %v2522, %v2518
    %v2567 = vpack.c.b16 %v2523, %v2519
    %v2568 = vpack.c.b16 %v2524, %v2520
    %v2569 = vpack.c.b16 %v2529, %v2525
    %v2570 = vpack.c.b16 %v2530, %v2526
    %v2571 = vpack.c.b16 %v2531, %v2527
    %v2572 = vpack.c.b16 %v2532, %v2528
    %v2573 = vpack.c.b16 %v2537, %v2533
    %v2574 = vpack.c.b16 %v2538, %v2534
    %v2575 = vpack.c.b16 %v2539, %v2535
    %v2576 = vpack.c.b16 %v2540, %v2536
    %v2577 = vpack.c.b16 %v2545, %v2541
    %v2578 = vpack.c.b16 %v2546, %v2542
    %v2579 = vpack.c.b16 %v2547, %v2543
    %v2580 = vpack.c.b16 %v2548, %v2544
    %2613 = vmatprep.subr.bf16.mxu0 %v2578
    %2614 = vmatpush1.bf16.msra.mxu0 %v2577
    %2615 = vmatprep.subr.bf16.mxu0 %v2574
    %2616 = vmatpush1.bf16.msra.mxu0 %v2573
    %2617 = vmatprep.subr.bf16.mxu0 %v2570
    %2618 = vmatpush1.bf16.msra.mxu0 %v2569
    %2619 = vmatprep.subr.bf16.mxu0 %v2566
    %2620 = vmatpush1.bf16.msra.mxu0 %v2565
    %2621 = vmatprep.subr.bf16.mxu0 %v2562
    %2622 = vmatpush1.bf16.msra.mxu0 %v2561
    %2623 = vmatprep.subr.bf16.mxu0 %v2558
    %2624 = vmatpush1.bf16.msra.mxu0 %v2557
    %2625 = vmatprep.subr.bf16.mxu0 %v2554
    %2626 = vmatpush1.bf16.msra.mxu0 %v2553
    %2627 = vmatprep.subr.bf16.mxu0 %v2550
    %2628 = vmatpush1.bf16.msra.mxu0 %v2549
    %2629 = vmatprep.subr.bf16.mxu0 0
    %2630 = vmatpush2.bf16.msra.mxu0 0
    %2631 = vmatprep.subr.bf16.mxu0 0
    %2632 = vmatpush2.bf16.msra.mxu0 0
    %2633 = vmatprep.subr.bf16.mxu0 0
    %2634 = vmatpush2.bf16.msra.mxu0 0
    %2635 = vmatprep.subr.bf16.mxu0 0
    %2636 = vmatpush2.bf16.msra.mxu0 0
    %2637 = vmatprep.subr.bf16.mxu0 0
    %2638 = vmatpush2.bf16.msra.mxu0 0
    %2639 = vmatprep.subr.bf16.mxu0 0
    %2640 = vmatpush2.bf16.msra.mxu0 0
    %2641 = vmatprep.subr.bf16.mxu0 0
    %2642 = vmatpush2.bf16.msra.mxu0 0
    %2643 = vmatprep.subr.bf16.mxu0 0
    %2644 = vmatpush2.bf16.msra.mxu0 0
    %2645 = vmatprep.mubr.bf16.mxu0 0
    %2646 = vmatmul.mubr.bf16.gmra.mxu0 %v2427
    %v2647 = vpop.f32.mrf.mxu0
    %v2648 = vadd.f32 %v2436, %v2647
    %v2649 = vpop.f32.mrf.mxu0
    %v2650 = vadd.f32 %v2440, %v2649
    %v2651 = vpop.f32.mrf.mxu0
    %v2652 = vadd.f32 %v2436, %v2651
    %v2653 = vpop.f32.mrf.mxu0
    %v2654 = vadd.f32 %v2440, %v2653
    %2655 = vmatprep.mubr.bf16.mxu0 0
    %2656 = vmatmul.mubr.bf16.gmra.mxu0 %v2428
    %v2657 = vpop.f32.mrf.mxu0
    %v2658 = vadd.f32 %v2436, %v2657
    %v2659 = vpop.f32.mrf.mxu0
    %v2660 = vadd.f32 %v2440, %v2659
    %v2661 = vpop.f32.mrf.mxu0
    %v2662 = vadd.f32 %v2436, %v2661
    %v2663 = vpop.f32.mrf.mxu0
    %v2664 = vadd.f32 %v2440, %v2663
    %2665 = vmatprep.mubr.bf16.mxu0 0
    %2666 = vmatmul.mubr.bf16.gmra.mxu0 %v2429
    %v2667 = vpop.f32.mrf.mxu0
    %v2668 = vadd.f32 %v2436, %v2667
    %v2669 = vpop.f32.mrf.mxu0
    %v2670 = vadd.f32 %v2440, %v2669
    %v2671 = vpop.f32.mrf.mxu0
    %v2672 = vadd.f32 %v2436, %v2671
    %v2673 = vpop.f32.mrf.mxu0
    %v2674 = vadd.f32 %v2440, %v2673
    %2675 = vmatprep.mubr.bf16.mxu0 0
    %2676 = vmatmul.mubr.bf16.gmra.mxu0 %v2430
    %v2677 = vpop.f32.mrf.mxu0
    %v2678 = vadd.f32 %v2436, %v2677
    %v2679 = vpop.f32.mrf.mxu0
    %v2680 = vadd.f32 %v2440, %v2679
    %v2681 = vpop.f32.mrf.mxu0
    %v2682 = vadd.f32 %v2436, %v2681
    %v2683 = vpop.f32.mrf.mxu0
    %v2684 = vadd.f32 %v2440, %v2683
    %2685 = vdwg.mxu0
    %2686 = vmatprep.subr.bf16.mxu0 %v2580
    %2687 = vmatpush1.bf16.msra.mxu0 %v2579
    %2688 = vmatprep.subr.bf16.mxu0 %v2576
    %2689 = vmatpush1.bf16.msra.mxu0 %v2575
    %2690 = vmatprep.subr.bf16.mxu0 %v2572
    %2691 = vmatpush1.bf16.msra.mxu0 %v2571
    %2692 = vmatprep.subr.bf16.mxu0 %v2568
    %2693 = vmatpush1.bf16.msra.mxu0 %v2567
    %2694 = vmatprep.subr.bf16.mxu0 %v2564
    %2695 = vmatpush1.bf16.msra.mxu0 %v2563
    %2696 = vmatprep.subr.bf16.mxu0 %v2560
    %2697 = vmatpush1.bf16.msra.mxu0 %v2559
    %2698 = vmatprep.subr.bf16.mxu0 %v2556
    %2699 = vmatpush1.bf16.msra.mxu0 %v2555
    %2700 = vmatprep.subr.bf16.mxu0 %v2552
    %2701 = vmatpush1.bf16.msra.mxu0 %v2551
    %2702 = vmatprep.subr.bf16.mxu0 0
    %2703 = vmatpush2.bf16.msra.mxu0 0
    %2704 = vmatprep.subr.bf16.mxu0 0
    %2705 = vmatpush2.bf16.msra.mxu0 0
    %2706 = vmatprep.subr.bf16.mxu0 0
    %2707 = vmatpush2.bf16.msra.mxu0 0
    %2708 = vmatprep.subr.bf16.mxu0 0
    %2709 = vmatpush2.bf16.msra.mxu0 0
    %2710 = vmatprep.subr.bf16.mxu0 0
    %2711 = vmatpush2.bf16.msra.mxu0 0
    %2712 = vmatprep.subr.bf16.mxu0 0
    %2713 = vmatpush2.bf16.msra.mxu0 0
    %2714 = vmatprep.subr.bf16.mxu0 0
    %2715 = vmatpush2.bf16.msra.mxu0 0
    %2716 = vmatprep.subr.bf16.mxu0 0
    %2717 = vmatpush2.bf16.msra.mxu0 0
    %2718 = vmatprep.mubr.bf16.mxu0 0
    %2719 = vmatmul.mubr.bf16.gmra.mxu0 %v2427
    %v2720 = vpop.f32.mrf.mxu0
    %v2721 = vadd.f32 %v2444, %v2720
    %v2722 = vpop.f32.mrf.mxu0
    %v2723 = vadd.f32 %v2448, %v2722
    %v2724 = vpop.f32.mrf.mxu0
    %v2725 = vadd.f32 %v2444, %v2724
    %v2726 = vpop.f32.mrf.mxu0
    %v2727 = vadd.f32 %v2448, %v2726
    %2728 = vmatprep.mubr.bf16.mxu0 0
    %2729 = vmatmul.mubr.bf16.gmra.mxu0 %v2428
    %v2730 = vpop.f32.mrf.mxu0
    %v2731 = vadd.f32 %v2444, %v2730
    %v2732 = vpop.f32.mrf.mxu0
    %v2733 = vadd.f32 %v2448, %v2732
    %v2734 = vpop.f32.mrf.mxu0
    %v2735 = vadd.f32 %v2444, %v2734
    %v2736 = vpop.f32.mrf.mxu0
    %v2737 = vadd.f32 %v2448, %v2736
    %2738 = vmatprep.mubr.bf16.mxu0 0
    %2739 = vmatmul.mubr.bf16.gmra.mxu0 %v2429
    %v2740 = vpop.f32.mrf.mxu0
    %v2741 = vadd.f32 %v2444, %v2740
    %v2742 = vpop.f32.mrf.mxu0
    %v2743 = vadd.f32 %v2448, %v2742
    %v2744 = vpop.f32.mrf.mxu0
    %v2745 = vadd.f32 %v2444, %v2744
    %v2746 = vpop.f32.mrf.mxu0
    %v2747 = vadd.f32 %v2448, %v2746
    %2748 = vmatprep.mubr.bf16.mxu0 0
    %2749 = vmatmul.mubr.bf16.gmra.mxu0 %v2430
    %v2750 = vpop.f32.mrf.mxu0
    %v2751 = vadd.f32 %v2444, %v2750
    %v2752 = vpop.f32.mrf.mxu0
    %v2753 = vadd.f32 %v2448, %v2752
    %v2754 = vpop.f32.mrf.mxu0
    %v2755 = vadd.f32 %v2444, %v2754
    %v2756 = vpop.f32.mrf.mxu0
    %v2757 = vadd.f32 %v2448, %v2756
    %2758 = vdwg.mxu0
    %2759 = vst [vmem:[#allocation3] sm:$0xff] %v2648
    %2760 = vst [vmem:[#allocation3 + $0x8] sm:$0xff] %v2650
    %2761 = vst [vmem:[#allocation3 + $0x10] sm:$0xff] %v2721
    %2762 = vst [vmem:[#allocation3 + $0x18] sm:$0xff] %v2723
    %2763 = vst [vmem:[#allocation3 + $0x20] sm:$0xff] %v2652
    %2764 = vst [vmem:[#allocation3 + $0x28] sm:$0xff] %v2654
    %2765 = vst [vmem:[#allocation3 + $0x30] sm:$0xff] %v2725
    %2766 = vst [vmem:[#allocation3 + $0x38] sm:$0xff] %v2727
    %2767 = vst [vmem:[#allocation3 + $0x40] sm:$0xff] %v2658
    %2768 = vst [vmem:[#allocation3 + $0x48] sm:$0xff] %v2660
    %2769 = vst [vmem:[#allocation3 + $0x50] sm:$0xff] %v2731
    %2770 = vst [vmem:[#allocation3 + $0x58] sm:$0xff] %v2733
    %2771 = vst [vmem:[#allocation3 + $0x60] sm:$0xff] %v2662
    %2772 = vst [vmem:[#allocation3 + $0x68] sm:$0xff] %v2664
    %2773 = vst [vmem:[#allocation3 + $0x70] sm:$0xff] %v2735
    %2774 = vst [vmem:[#allocation3 + $0x78] sm:$0xff] %v2737
    %2775 = vst [vmem:[#allocation3 + $0x80] sm:$0xff] %v2668
    %2776 = vst [vmem:[#allocation3 + $0x88] sm:$0xff] %v2670
    %2777 = vst [vmem:[#allocation3 + $0x90] sm:$0xff] %v2741
    %2778 = vst [vmem:[#allocation3 + $0x98] sm:$0xff] %v2743
    %2779 = vst [vmem:[#allocation3 + $0xa0] sm:$0xff] %v2672
    %2780 = vst [vmem:[#allocation3 + $0xa8] sm:$0xff] %v2674
    %2781 = vst [vmem:[#allocation3 + $0xb0] sm:$0xff] %v2745
    %2782 = vst [vmem:[#allocation3 + $0xb8] sm:$0xff] %v2747
    %2783 = vst [vmem:[#allocation3 + $0xc0] sm:$0xff] %v2678
    %2784 = vst [vmem:[#allocation3 + $0xc8] sm:$0xff] %v2680
    %2785 = vst [vmem:[#allocation3 + $0xd0] sm:$0xff] %v2751
    %2786 = vst [vmem:[#allocation3 + $0xd8] sm:$0xff] %v2753
    %2787 = vst [vmem:[#allocation3 + $0xe0] sm:$0xff] %v2682
    %2788 = vst [vmem:[#allocation3 + $0xe8] sm:$0xff] %v2684
    %2789 = vst [vmem:[#allocation3 + $0xf0] sm:$0xff] %v2755
    %2790 = vst [vmem:[#allocation3 + $0xf8] sm:$0xff] %v2757
    %v2791 = vld [vmem:[%s9] sm:$0xff]
    %2792 = vst [vmem:[#allocation4] sm:$0xff] %v2791
    %v2793 = vld [vmem:[%s10] sm:$0xff]
    %2794 = vst [vmem:[#allocation5] sm:$0xff] %v2793
    %v2795 = vld [vmem:[%s462] sm:$0xff]
    %v2796 = vld [vmem:[%s462 + $0x8] sm:$0xff]
    %v2797 = vld [vmem:[%s462 + $0x10] sm:$0xff]
    %v2798 = vld [vmem:[%s462 + $0x18] sm:$0xff]
    %v2799 = vld [vmem:[#allocation4] sm:$0xff]
    %v2800 = vld [vmem:[#allocation10] sm:$0xff]
    %v2801 = vld [vmem:[#allocation10 + $0x8] sm:$0xff]
    %v2802 = vld [vmem:[#allocation10 + $0x10] sm:$0xff]
    %v2803 = vld [vmem:[#allocation10 + $0x18] sm:$0xff]
    %v2804 = vld [vmem:[#allocation10 + $0x20] sm:$0xff]
    %v2805 = vld [vmem:[#allocation10 + $0x28] sm:$0xff]
    %v2806 = vld [vmem:[#allocation10 + $0x30] sm:$0xff]
    %v2807 = vld [vmem:[#allocation10 + $0x38] sm:$0xff]
    %v2808 = vld [vmem:[#allocation10 + $0x40] sm:$0xff]
    %v2809 = vld [vmem:[#allocation10 + $0x48] sm:$0xff]
    %v2810 = vld [vmem:[#allocation10 + $0x50] sm:$0xff]
    %v2811 = vld [vmem:[#allocation10 + $0x58] sm:$0xff]
    %v2812 = vld [vmem:[#allocation10 + $0x60] sm:$0xff]
    %v2813 = vld [vmem:[#allocation10 + $0x68] sm:$0xff]
    %v2814 = vld [vmem:[#allocation10 + $0x70] sm:$0xff]
    %v2815 = vld [vmem:[#allocation10 + $0x78] sm:$0xff]
    %v2816 = vld [vmem:[#allocation10 + $0x80] sm:$0xff]
    %v2817 = vld [vmem:[#allocation10 + $0x88] sm:$0xff]
    %v2818 = vld [vmem:[#allocation10 + $0x90] sm:$0xff]
    %v2819 = vld [vmem:[#allocation10 + $0x98] sm:$0xff]
    %v2820 = vld [vmem:[#allocation10 + $0xa0] sm:$0xff]
    %v2821 = vld [vmem:[#allocation10 + $0xa8] sm:$0xff]
    %v2822 = vld [vmem:[#allocation10 + $0xb0] sm:$0xff]
    %v2823 = vld [vmem:[#allocation10 + $0xb8] sm:$0xff]
    %v2824 = vld [vmem:[#allocation10 + $0xc0] sm:$0xff]
    %v2825 = vld [vmem:[#allocation10 + $0xc8] sm:$0xff]
    %v2826 = vld [vmem:[#allocation10 + $0xd0] sm:$0xff]
    %v2827 = vld [vmem:[#allocation10 + $0xd8] sm:$0xff]
    %v2828 = vld [vmem:[#allocation10 + $0xe0] sm:$0xff]
    %v2829 = vld [vmem:[#allocation10 + $0xe8] sm:$0xff]
    %v2830 = vld [vmem:[#allocation10 + $0xf0] sm:$0xff]
    %v2831 = vld [vmem:[#allocation10 + $0xf8] sm:$0xff]
    %v2832 = vld [vmem:[#allocation10 + $0x100] sm:$0xff]
    %v2833 = vld [vmem:[#allocation10 + $0x108] sm:$0xff]
    %v2834 = vld [vmem:[#allocation10 + $0x110] sm:$0xff]
    %v2835 = vld [vmem:[#allocation10 + $0x118] sm:$0xff]
    %v2836 = vld [vmem:[#allocation10 + $0x120] sm:$0xff]
    %v2837 = vld [vmem:[#allocation10 + $0x128] sm:$0xff]
    %v2838 = vld [vmem:[#allocation10 + $0x130] sm:$0xff]
    %v2839 = vld [vmem:[#allocation10 + $0x138] sm:$0xff]
    %v2840 = vld [vmem:[#allocation10 + $0x140] sm:$0xff]
    %v2841 = vld [vmem:[#allocation10 + $0x148] sm:$0xff]
    %v2842 = vld [vmem:[#allocation10 + $0x150] sm:$0xff]
    %v2843 = vld [vmem:[#allocation10 + $0x158] sm:$0xff]
    %v2844 = vld [vmem:[#allocation10 + $0x160] sm:$0xff]
    %v2845 = vld [vmem:[#allocation10 + $0x168] sm:$0xff]
    %v2846 = vld [vmem:[#allocation10 + $0x170] sm:$0xff]
    %v2847 = vld [vmem:[#allocation10 + $0x178] sm:$0xff]
    %v2848 = vld [vmem:[#allocation10 + $0x180] sm:$0xff]
    %v2849 = vld [vmem:[#allocation10 + $0x188] sm:$0xff]
    %v2850 = vld [vmem:[#allocation10 + $0x190] sm:$0xff]
    %v2851 = vld [vmem:[#allocation10 + $0x198] sm:$0xff]
    %v2852 = vld [vmem:[#allocation10 + $0x1a0] sm:$0xff]
    %v2853 = vld [vmem:[#allocation10 + $0x1a8] sm:$0xff]
    %v2854 = vld [vmem:[#allocation10 + $0x1b0] sm:$0xff]
    %v2855 = vld [vmem:[#allocation10 + $0x1b8] sm:$0xff]
    %v2856 = vld [vmem:[#allocation10 + $0x1c0] sm:$0xff]
    %v2857 = vld [vmem:[#allocation10 + $0x1c8] sm:$0xff]
    %v2858 = vld [vmem:[#allocation10 + $0x1d0] sm:$0xff]
    %v2859 = vld [vmem:[#allocation10 + $0x1d8] sm:$0xff]
    %v2860 = vld [vmem:[#allocation10 + $0x1e0] sm:$0xff]
    %v2861 = vld [vmem:[#allocation10 + $0x1e8] sm:$0xff]
    %v2862 = vld [vmem:[#allocation10 + $0x1f0] sm:$0xff]
    %v2863 = vld [vmem:[#allocation10 + $0x1f8] sm:$0xff]
    %2864 = vmatprep.subr.mxu0 %v2861
    %2865 = vmatpush1.msra.mxu0 %v2860
    %2866 = vmatprep.subr.mxu0 %v2857
    %2867 = vmatpush1.msra.mxu0 %v2856
    %2868 = vmatprep.subr.mxu0 %v2853
    %2869 = vmatpush1.msra.mxu0 %v2852
    %2870 = vmatprep.subr.mxu0 %v2849
    %2871 = vmatpush1.msra.mxu0 %v2848
    %2872 = vmatprep.subr.mxu0 %v2845
    %2873 = vmatpush1.msra.mxu0 %v2844
    %2874 = vmatprep.subr.mxu0 %v2841
    %2875 = vmatpush1.msra.mxu0 %v2840
    %2876 = vmatprep.subr.mxu0 %v2837
    %2877 = vmatpush1.msra.mxu0 %v2836
    %2878 = vmatprep.subr.mxu0 %v2833
    %2879 = vmatpush1.msra.mxu0 %v2832
    %2880 = vmatprep.subr.mxu0 %v2829
    %2881 = vmatpush1.msra.mxu0 %v2828
    %2882 = vmatprep.subr.mxu0 %v2825
    %2883 = vmatpush1.msra.mxu0 %v2824
    %2884 = vmatprep.subr.mxu0 %v2821
    %2885 = vmatpush1.msra.mxu0 %v2820
    %2886 = vmatprep.subr.mxu0 %v2817
    %2887 = vmatpush1.msra.mxu0 %v2816
    %2888 = vmatprep.subr.mxu0 %v2813
    %2889 = vmatpush1.msra.mxu0 %v2812
    %2890 = vmatprep.subr.mxu0 %v2809
    %2891 = vmatpush1.msra.mxu0 %v2808
    %2892 = vmatprep.subr.mxu0 %v2805
    %2893 = vmatpush1.msra.mxu0 %v2804
    %2894 = vmatprep.subr.mxu0 %v2801
    %2895 = vmatpush1.msra.mxu0 %v2800
    %2896 = vmatprep.subr.mxu0 0.0
    %2897 = vmatpush2.msra.mxu0 0.0
    %2898 = vmatprep.subr.mxu0 0.0
    %2899 = vmatpush2.msra.mxu0 0.0
    %2900 = vmatprep.subr.mxu0 0.0
    %2901 = vmatpush2.msra.mxu0 0.0
    %2902 = vmatprep.subr.mxu0 0.0
    %2903 = vmatpush2.msra.mxu0 0.0
    %2904 = vmatprep.subr.mxu0 0.0
    %2905 = vmatpush2.msra.mxu0 0.0
    %2906 = vmatprep.subr.mxu0 0.0
    %2907 = vmatpush2.msra.mxu0 0.0
    %2908 = vmatprep.subr.mxu0 0.0
    %2909 = vmatpush2.msra.mxu0 0.0
    %2910 = vmatprep.subr.mxu0 0.0
    %2911 = vmatpush2.msra.mxu0 0.0
    %2912 = vmatprep.subr.mxu0 0.0
    %2913 = vmatpush2.msra.mxu0 0.0
    %2914 = vmatprep.subr.mxu0 0.0
    %2915 = vmatpush2.msra.mxu0 0.0
    %2916 = vmatprep.subr.mxu0 0.0
    %2917 = vmatpush2.msra.mxu0 0.0
    %2918 = vmatprep.subr.mxu0 0.0
    %2919 = vmatpush2.msra.mxu0 0.0
    %2920 = vmatprep.subr.mxu0 0.0
    %2921 = vmatpush2.msra.mxu0 0.0
    %2922 = vmatprep.subr.mxu0 0.0
    %2923 = vmatpush2.msra.mxu0 0.0
    %2924 = vmatprep.subr.mxu0 0.0
    %2925 = vmatpush2.msra.mxu0 0.0
    %2926 = vmatprep.subr.mxu0 0.0
    %2927 = vmatpush2.msra.mxu0 0.0
    %2928 = vmatprep.mubr.f32.mxu0 0.0
    %2929 = vmatmul.mubr.f32.gmra.mxu0 %v2799
    %v2930 = vpop.f32.mrf.mxu0
    %v2931 = vadd.f32 0.0, %v2930
    %v2932 = vpop.f32.mrf.mxu0
    %v2933 = vadd.f32 0.0, %v2932
    %2934 = vdwg.mxu0
    %2935 = vmatprep.subr.mxu0 %v2863
    %2936 = vmatpush1.msra.mxu0 %v2862
    %2937 = vmatprep.subr.mxu0 %v2859
    %2938 = vmatpush1.msra.mxu0 %v2858
    %2939 = vmatprep.subr.mxu0 %v2855
    %2940 = vmatpush1.msra.mxu0 %v2854
    %2941 = vmatprep.subr.mxu0 %v2851
    %2942 = vmatpush1.msra.mxu0 %v2850
    %2943 = vmatprep.subr.mxu0 %v2847
    %2944 = vmatpush1.msra.mxu0 %v2846
    %2945 = vmatprep.subr.mxu0 %v2843
    %2946 = vmatpush1.msra.mxu0 %v2842
    %2947 = vmatprep.subr.mxu0 %v2839
    %2948 = vmatpush1.msra.mxu0 %v2838
    %2949 = vmatprep.subr.mxu0 %v2835
    %2950 = vmatpush1.msra.mxu0 %v2834
    %2951 = vmatprep.subr.mxu0 %v2831
    %2952 = vmatpush1.msra.mxu0 %v2830
    %2953 = vmatprep.subr.mxu0 %v2827
    %2954 = vmatpush1.msra.mxu0 %v2826
    %2955 = vmatprep.subr.mxu0 %v2823
    %2956 = vmatpush1.msra.mxu0 %v2822
    %2957 = vmatprep.subr.mxu0 %v2819
    %2958 = vmatpush1.msra.mxu0 %v2818
    %2959 = vmatprep.subr.mxu0 %v2815
    %2960 = vmatpush1.msra.mxu0 %v2814
    %2961 = vmatprep.subr.mxu0 %v2811
    %2962 = vmatpush1.msra.mxu0 %v2810
    %2963 = vmatprep.subr.mxu0 %v2807
    %2964 = vmatpush1.msra.mxu0 %v2806
    %2965 = vmatprep.subr.mxu0 %v2803
    %2966 = vmatpush1.msra.mxu0 %v2802
    %2967 = vmatprep.subr.mxu0 0.0
    %2968 = vmatpush2.msra.mxu0 0.0
    %2969 = vmatprep.subr.mxu0 0.0
    %2970 = vmatpush2.msra.mxu0 0.0
    %2971 = vmatprep.subr.mxu0 0.0
    %2972 = vmatpush2.msra.mxu0 0.0
    %2973 = vmatprep.subr.mxu0 0.0
    %2974 = vmatpush2.msra.mxu0 0.0
    %2975 = vmatprep.subr.mxu0 0.0
    %2976 = vmatpush2.msra.mxu0 0.0
    %2977 = vmatprep.subr.mxu0 0.0
    %2978 = vmatpush2.msra.mxu0 0.0
    %2979 = vmatprep.subr.mxu0 0.0
    %2980 = vmatpush2.msra.mxu0 0.0
    %2981 = vmatprep.subr.mxu0 0.0
    %2982 = vmatpush2.msra.mxu0 0.0
    %2983 = vmatprep.subr.mxu0 0.0
    %2984 = vmatpush2.msra.mxu0 0.0
    %2985 = vmatprep.subr.mxu0 0.0
    %2986 = vmatpush2.msra.mxu0 0.0
    %2987 = vmatprep.subr.mxu0 0.0
    %2988 = vmatpush2.msra.mxu0 0.0
    %2989 = vmatprep.subr.mxu0 0.0
    %2990 = vmatpush2.msra.mxu0 0.0
    %2991 = vmatprep.subr.mxu0 0.0
    %2992 = vmatpush2.msra.mxu0 0.0
    %2993 = vmatprep.subr.mxu0 0.0
    %2994 = vmatpush2.msra.mxu0 0.0
    %2995 = vmatprep.subr.mxu0 0.0
    %2996 = vmatpush2.msra.mxu0 0.0
    %2997 = vmatprep.subr.mxu0 0.0
    %2998 = vmatpush2.msra.mxu0 0.0
    %2999 = vmatprep.mubr.f32.mxu0 0.0
    %3000 = vmatmul.mubr.f32.gmra.mxu0 %v2799
    %v3001 = vpop.f32.mrf.mxu0
    %v3002 = vadd.f32 0.0, %v3001
    %v3003 = vpop.f32.mrf.mxu0
    %v3004 = vadd.f32 0.0, %v3003
    %3005 = vdwg.mxu0
    %v3006 = vadd.f32 %v2795, %v2931
    %v3007 = vadd.f32 %v2796, %v2933
    %v3008 = vadd.f32 %v2797, %v3002
    %v3009 = vadd.f32 %v2798, %v3004
    %v3010 = vmul.f32 %v3006, 0.5
    %v3011 = vtanh.pop %v3010
    %v3012 = vmul.f32 %v3011, 0.5
    %v3013 = vadd.f32 %v3012, 0.5
    %v3014 = vmul.f32 %v3007, 0.5
    %v3015 = vtanh.pop %v3014
    %v3016 = vmul.f32 %v3015, 0.5
    %v3017 = vadd.f32 %v3016, 0.5
    %v3018 = vtanh.pop %v3008
    %v3019 = vmul.f32 %v3009, 0.5
    %v3020 = vtanh.pop %v3019
    %v3021 = vmul.f32 %v3020, 0.5
    %v3022 = vadd.f32 %v3021, 0.5
    %v3023 = vld [vmem:[#allocation5] sm:$0xff]
    %v3024 = vmul.f32 %v3017, %v3023
    %v3025 = vmul.f32 %v3013, %v3018
    %v3026 = vadd.f32 %v3024, %v3025
    %v3027 = vtanh.pop %v3026
    %v3028 = vmul.f32 %v3022, %v3027
    %3029 = vst [vmem:[#allocation5] sm:$0xff] %v3026
    %3030 = vst [vmem:[#allocation4] sm:$0xff] %v3028
    %3031 = vst [vmem:[#allocation2] sm:$0xff] %v3028
    %v3032 = vld [vmem:[%s702] sm:$0xff]
    %v3033 = vld [vmem:[%s702 + $0x8] sm:$0xff]
    %v3034 = vld [vmem:[%s702 + $0x10] sm:$0xff]
    %v3035 = vld [vmem:[%s702 + $0x18] sm:$0xff]
    %v3036 = vld [vmem:[#allocation4] sm:$0xff]
    %v3037 = vld [vmem:[#allocation10] sm:$0xff]
    %v3038 = vld [vmem:[#allocation10 + $0x8] sm:$0xff]
    %v3039 = vld [vmem:[#allocation10 + $0x10] sm:$0xff]
    %v3040 = vld [vmem:[#allocation10 + $0x18] sm:$0xff]
    %v3041 = vld [vmem:[#allocation10 + $0x20] sm:$0xff]
    %v3042 = vld [vmem:[#allocation10 + $0x28] sm:$0xff]
    %v3043 = vld [vmem:[#allocation10 + $0x30] sm:$0xff]
    %v3044 = vld [vmem:[#allocation10 + $0x38] sm:$0xff]
    %v3045 = vld [vmem:[#allocation10 + $0x40] sm:$0xff]
    %v3046 = vld [vmem:[#allocation10 + $0x48] sm:$0xff]
    %v3047 = vld [vmem:[#allocation10 + $0x50] sm:$0xff]
    %v3048 = vld [vmem:[#allocation10 + $0x58] sm:$0xff]
    %v3049 = vld [vmem:[#allocation10 + $0x60] sm:$0xff]
    %v3050 = vld [vmem:[#allocation10 + $0x68] sm:$0xff]
    %v3051 = vld [vmem:[#allocation10 + $0x70] sm:$0xff]
    %v3052 = vld [vmem:[#allocation10 + $0x78] sm:$0xff]
    %v3053 = vld [vmem:[#allocation10 + $0x80] sm:$0xff]
    %v3054 = vld [vmem:[#allocation10 + $0x88] sm:$0xff]
    %v3055 = vld [vmem:[#allocation10 + $0x90] sm:$0xff]
    %v3056 = vld [vmem:[#allocation10 + $0x98] sm:$0xff]
    %v3057 = vld [vmem:[#allocation10 + $0xa0] sm:$0xff]
    %v3058 = vld [vmem:[#allocation10 + $0xa8] sm:$0xff]
    %v3059 = vld [vmem:[#allocation10 + $0xb0] sm:$0xff]
    %v3060 = vld [vmem:[#allocation10 + $0xb8] sm:$0xff]
    %v3061 = vld [vmem:[#allocation10 + $0xc0] sm:$0xff]
    %v3062 = vld [vmem:[#allocation10 + $0xc8] sm:$0xff]
    %v3063 = vld [vmem:[#allocation10 + $0xd0] sm:$0xff]
    %v3064 = vld [vmem:[#allocation10 + $0xd8] sm:$0xff]
    %v3065 = vld [vmem:[#allocation10 + $0xe0] sm:$0xff]
    %v3066 = vld [vmem:[#allocation10 + $0xe8] sm:$0xff]
    %v3067 = vld [vmem:[#allocation10 + $0xf0] sm:$0xff]
    %v3068 = vld [vmem:[#allocation10 + $0xf8] sm:$0xff]
    %v3069 = vld [vmem:[#allocation10 + $0x100] sm:$0xff]
    %v3070 = vld [vmem:[#allocation10 + $0x108] sm:$0xff]
    %v3071 = vld [vmem:[#allocation10 + $0x110] sm:$0xff]
    %v3072 = vld [vmem:[#allocation10 + $0x118] sm:$0xff]
    %v3073 = vld [vmem:[#allocation10 + $0x120] sm:$0xff]
    %v3074 = vld [vmem:[#allocation10 + $0x128] sm:$0xff]
    %v3075 = vld [vmem:[#allocation10 + $0x130] sm:$0xff]
    %v3076 = vld [vmem:[#allocation10 + $0x138] sm:$0xff]
    %v3077 = vld [vmem:[#allocation10 + $0x140] sm:$0xff]
    %v3078 = vld [vmem:[#allocation10 + $0x148] sm:$0xff]
    %v3079 = vld [vmem:[#allocation10 + $0x150] sm:$0xff]
    %v3080 = vld [vmem:[#allocation10 + $0x158] sm:$0xff]
    %v3081 = vld [vmem:[#allocation10 + $0x160] sm:$0xff]
    %v3082 = vld [vmem:[#allocation10 + $0x168] sm:$0xff]
    %v3083 = vld [vmem:[#allocation10 + $0x170] sm:$0xff]
    %v3084 = vld [vmem:[#allocation10 + $0x178] sm:$0xff]
    %v3085 = vld [vmem:[#allocation10 + $0x180] sm:$0xff]
    %v3086 = vld [vmem:[#allocation10 + $0x188] sm:$0xff]
    %v3087 = vld [vmem:[#allocation10 + $0x190] sm:$0xff]
    %v3088 = vld [vmem:[#allocation10 + $0x198] sm:$0xff]
    %v3089 = vld [vmem:[#allocation10 + $0x1a0] sm:$0xff]
    %v3090 = vld [vmem:[#allocation10 + $0x1a8] sm:$0xff]
    %v3091 = vld [vmem:[#allocation10 + $0x1b0] sm:$0xff]
    %v3092 = vld [vmem:[#allocation10 + $0x1b8] sm:$0xff]
    %v3093 = vld [vmem:[#allocation10 + $0x1c0] sm:$0xff]
    %v3094 = vld [vmem:[#allocation10 + $0x1c8] sm:$0xff]
    %v3095 = vld [vmem:[#allocation10 + $0x1d0] sm:$0xff]
    %v3096 = vld [vmem:[#allocation10 + $0x1d8] sm:$0xff]
    %v3097 = vld [vmem:[#allocation10 + $0x1e0] sm:$0xff]
    %v3098 = vld [vmem:[#allocation10 + $0x1e8] sm:$0xff]
    %v3099 = vld [vmem:[#allocation10 + $0x1f0] sm:$0xff]
    %v3100 = vld [vmem:[#allocation10 + $0x1f8] sm:$0xff]
    %3101 = vmatprep.subr.mxu0 %v3098
    %3102 = vmatpush1.msra.mxu0 %v3097
    %3103 = vmatprep.subr.mxu0 %v3094
    %3104 = vmatpush1.msra.mxu0 %v3093
    %3105 = vmatprep.subr.mxu0 %v3090
    %3106 = vmatpush1.msra.mxu0 %v3089
    %3107 = vmatprep.subr.mxu0 %v3086
    %3108 = vmatpush1.msra.mxu0 %v3085
    %3109 = vmatprep.subr.mxu0 %v3082
    %3110 = vmatpush1.msra.mxu0 %v3081
    %3111 = vmatprep.subr.mxu0 %v3078
    %3112 = vmatpush1.msra.mxu0 %v3077
    %3113 = vmatprep.subr.mxu0 %v3074
    %3114 = vmatpush1.msra.mxu0 %v3073
    %3115 = vmatprep.subr.mxu0 %v3070
    %3116 = vmatpush1.msra.mxu0 %v3069
    %3117 = vmatprep.subr.mxu0 %v3066
    %3118 = vmatpush1.msra.mxu0 %v3065
    %3119 = vmatprep.subr.mxu0 %v3062
    %3120 = vmatpush1.msra.mxu0 %v3061
    %3121 = vmatprep.subr.mxu0 %v3058
    %3122 = vmatpush1.msra.mxu0 %v3057
    %3123 = vmatprep.subr.mxu0 %v3054
    %3124 = vmatpush1.msra.mxu0 %v3053
    %3125 = vmatprep.subr.mxu0 %v3050
    %3126 = vmatpush1.msra.mxu0 %v3049
    %3127 = vmatprep.subr.mxu0 %v3046
    %3128 = vmatpush1.msra.mxu0 %v3045
    %3129 = vmatprep.subr.mxu0 %v3042
    %3130 = vmatpush1.msra.mxu0 %v3041
    %3131 = vmatprep.subr.mxu0 %v3038
    %3132 = vmatpush1.msra.mxu0 %v3037
    %3133 = vmatprep.subr.mxu0 0.0
    %3134 = vmatpush2.msra.mxu0 0.0
    %3135 = vmatprep.subr.mxu0 0.0
    %3136 = vmatpush2.msra.mxu0 0.0
    %3137 = vmatprep.subr.mxu0 0.0
    %3138 = vmatpush2.msra.mxu0 0.0
    %3139 = vmatprep.subr.mxu0 0.0
    %3140 = vmatpush2.msra.mxu0 0.0
    %3141 = vmatprep.subr.mxu0 0.0
    %3142 = vmatpush2.msra.mxu0 0.0
    %3143 = vmatprep.subr.mxu0 0.0
    %3144 = vmatpush2.msra.mxu0 0.0
    %3145 = vmatprep.subr.mxu0 0.0
    %3146 = vmatpush2.msra.mxu0 0.0
    %3147 = vmatprep.subr.mxu0 0.0
    %3148 = vmatpush2.msra.mxu0 0.0
    %3149 = vmatprep.subr.mxu0 0.0
    %3150 = vmatpush2.msra.mxu0 0.0
    %3151 = vmatprep.subr.mxu0 0.0
    %3152 = vmatpush2.msra.mxu0 0.0
    %3153 = vmatprep.subr.mxu0 0.0
    %3154 = vmatpush2.msra.mxu0 0.0
    %3155 = vmatprep.subr.mxu0 0.0
    %3156 = vmatpush2.msra.mxu0 0.0
    %3157 = vmatprep.subr.mxu0 0.0
    %3158 = vmatpush2.msra.mxu0 0.0
    %3159 = vmatprep.subr.mxu0 0.0
    %3160 = vmatpush2.msra.mxu0 0.0
    %3161 = vmatprep.subr.mxu0 0.0
    %3162 = vmatpush2.msra.mxu0 0.0
    %3163 = vmatprep.subr.mxu0 0.0
    %3164 = vmatpush2.msra.mxu0 0.0
    %3165 = vmatprep.mubr.f32.mxu0 0.0
    %3166 = vmatmul.mubr.f32.gmra.mxu0 %v3036
    %v3167 = vpop.f32.mrf.mxu0
    %v3168 = vadd.f32 0.0, %v3167
    %v3169 = vpop.f32.mrf.mxu0
    %v3170 = vadd.f32 0.0, %v3169
    %3171 = vdwg.mxu0
    %3172 = vmatprep.subr.mxu0 %v3100
    %3173 = vmatpush1.msra.mxu0 %v3099
    %3174 = vmatprep.subr.mxu0 %v3096
    %3175 = vmatpush1.msra.mxu0 %v3095
    %3176 = vmatprep.subr.mxu0 %v3092
    %3177 = vmatpush1.msra.mxu0 %v3091
    %3178 = vmatprep.subr.mxu0 %v3088
    %3179 = vmatpush1.msra.mxu0 %v3087
    %3180 = vmatprep.subr.mxu0 %v3084
    %3181 = vmatpush1.msra.mxu0 %v3083
    %3182 = vmatprep.subr.mxu0 %v3080
    %3183 = vmatpush1.msra.mxu0 %v3079
    %3184 = vmatprep.subr.mxu0 %v3076
    %3185 = vmatpush1.msra.mxu0 %v3075
    %3186 = vmatprep.subr.mxu0 %v3072
    %3187 = vmatpush1.msra.mxu0 %v3071
    %3188 = vmatprep.subr.mxu0 %v3068
    %3189 = vmatpush1.msra.mxu0 %v3067
    %3190 = vmatprep.subr.mxu0 %v3064
    %3191 = vmatpush1.msra.mxu0 %v3063
    %3192 = vmatprep.subr.mxu0 %v3060
    %3193 = vmatpush1.msra.mxu0 %v3059
    %3194 = vmatprep.subr.mxu0 %v3056
    %3195 = vmatpush1.msra.mxu0 %v3055
    %3196 = vmatprep.subr.mxu0 %v3052
    %3197 = vmatpush1.msra.mxu0 %v3051
    %3198 = vmatprep.subr.mxu0 %v3048
    %3199 = vmatpush1.msra.mxu0 %v3047
    %3200 = vmatprep.subr.mxu0 %v3044
    %3201 = vmatpush1.msra.mxu0 %v3043
    %3202 = vmatprep.subr.mxu0 %v3040
    %3203 = vmatpush1.msra.mxu0 %v3039
    %3204 = vmatprep.subr.mxu0 0.0
    %3205 = vmatpush2.msra.mxu0 0.0
    %3206 = vmatprep.subr.mxu0 0.0
    %3207 = vmatpush2.msra.mxu0 0.0
    %3208 = vmatprep.subr.mxu0 0.0
    %3209 = vmatpush2.msra.mxu0 0.0
    %3210 = vmatprep.subr.mxu0 0.0
    %3211 = vmatpush2.msra.mxu0 0.0
    %3212 = vmatprep.subr.mxu0 0.0
    %3213 = vmatpush2.msra.mxu0 0.0
    %3214 = vmatprep.subr.mxu0 0.0
    %3215 = vmatpush2.msra.mxu0 0.0
    %3216 = vmatprep.subr.mxu0 0.0
    %3217 = vmatpush2.msra.mxu0 0.0
    %3218 = vmatprep.subr.mxu0 0.0
    %3219 = vmatpush2.msra.mxu0 0.0
    %3220 = vmatprep.subr.mxu0 0.0
    %3221 = vmatpush2.msra.mxu0 0.0
    %3222 = vmatprep.subr.mxu0 0.0
    %3223 = vmatpush2.msra.mxu0 0.0
    %3224 = vmatprep.subr.mxu0 0.0
    %3225 = vmatpush2.msra.mxu0 0.0
    %3226 = vmatprep.subr.mxu0 0.0
    %3227 = vmatpush2.msra.mxu0 0.0
    %3228 = vmatprep.subr.mxu0 0.0
    %3229 = vmatpush2.msra.mxu0 0.0
    %3230 = vmatprep.subr.mxu0 0.0
    %3231 = vmatpush2.msra.mxu0 0.0
    %3232 = vmatprep.subr.mxu0 0.0
    %3233 = vmatpush2.msra.mxu0 0.0
    %3234 = vmatprep.subr.mxu0 0.0
    %3235 = vmatpush2.msra.mxu0 0.0
    %3236 = vmatprep.mubr.f32.mxu0 0.0
    %3237 = vmatmul.mubr.f32.gmra.mxu0 %v3036
    %v3238 = vpop.f32.mrf.mxu0
    %v3239 = vadd.f32 0.0, %v3238
    %v3240 = vpop.f32.mrf.mxu0
    %v3241 = vadd.f32 0.0, %v3240
    %3242 = vdwg.mxu0
    %v3243 = vadd.f32 %v3032, %v3168
    %v3244 = vadd.f32 %v3033, %v3170
    %v3245 = vadd.f32 %v3034, %v3239
    %v3246 = vadd.f32 %v3035, %v3241
    %v3247 = vmul.f32 %v3243, 0.5
    %v3248 = vtanh.pop %v3247
    %v3249 = vmul.f32 %v3248, 0.5
    %v3250 = vadd.f32 %v3249, 0.5
    %v3251 = vmul.f32 %v3244, 0.5
    %v3252 = vtanh.pop %v3251
    %v3253 = vmul.f32 %v3252, 0.5
    %v3254 = vadd.f32 %v3253, 0.5
    %v3255 = vtanh.pop %v3245
    %v3256 = vmul.f32 %v3246, 0.5
    %v3257 = vtanh.pop %v3256
    %v3258 = vmul.f32 %v3257, 0.5
    %v3259 = vadd.f32 %v3258, 0.5
    %v3260 = vld [vmem:[#allocation5] sm:$0xff]
    %v3261 = vmul.f32 %v3254, %v3260
    %v3262 = vmul.f32 %v3250, %v3255
    %v3263 = vadd.f32 %v3261, %v3262
    %v3264 = vtanh.pop %v3263
    %v3265 = vmul.f32 %v3259, %v3264
    %3266 = vst [vmem:[#allocation5] sm:$0xff] %v3263
    %3267 = vst [vmem:[#allocation4] sm:$0xff] %v3265
    %3268 = vst [vmem:[%s939] sm:$0xff] %v3265
    %v3269 = vld [vmem:[%s943] sm:$0xff]
    %v3270 = vld [vmem:[%s943 + $0x8] sm:$0xff]
    %v3271 = vld [vmem:[%s943 + $0x10] sm:$0xff]
    %v3272 = vld [vmem:[%s943 + $0x18] sm:$0xff]
    %v3273 = vld [vmem:[#allocation4] sm:$0xff]
    %v3274 = vld [vmem:[#allocation10] sm:$0xff]
    %v3275 = vld [vmem:[#allocation10 + $0x8] sm:$0xff]
    %v3276 = vld [vmem:[#allocation10 + $0x10] sm:$0xff]
    %v3277 = vld [vmem:[#allocation10 + $0x18] sm:$0xff]
    %v3278 = vld [vmem:[#allocation10 + $0x20] sm:$0xff]
    %v3279 = vld [vmem:[#allocation10 + $0x28] sm:$0xff]
    %v3280 = vld [vmem:[#allocation10 + $0x30] sm:$0xff]
    %v3281 = vld [vmem:[#allocation10 + $0x38] sm:$0xff]
    %v3282 = vld [vmem:[#allocation10 + $0x40] sm:$0xff]
    %v3283 = vld [vmem:[#allocation10 + $0x48] sm:$0xff]
    %v3284 = vld [vmem:[#allocation10 + $0x50] sm:$0xff]
    %v3285 = vld [vmem:[#allocation10 + $0x58] sm:$0xff]
    %v3286 = vld [vmem:[#allocation10 + $0x60] sm:$0xff]
    %v3287 = vld [vmem:[#allocation10 + $0x68] sm:$0xff]
    %v3288 = vld [vmem:[#allocation10 + $0x70] sm:$0xff]
    %v3289 = vld [vmem:[#allocation10 + $0x78] sm:$0xff]
    %v3290 = vld [vmem:[#allocation10 + $0x80] sm:$0xff]
    %v3291 = vld [vmem:[#allocation10 + $0x88] sm:$0xff]
    %v3292 = vld [vmem:[#allocation10 + $0x90] sm:$0xff]
    %v3293 = vld [vmem:[#allocation10 + $0x98] sm:$0xff]
    %v3294 = vld [vmem:[#allocation10 + $0xa0] sm:$0xff]
    %v3295 = vld [vmem:[#allocation10 + $0xa8] sm:$0xff]
    %v3296 = vld [vmem:[#allocation10 + $0xb0] sm:$0xff]
    %v3297 = vld [vmem:[#allocation10 + $0xb8] sm:$0xff]
    %v3298 = vld [vmem:[#allocation10 + $0xc0] sm:$0xff]
    %v3299 = vld [vmem:[#allocation10 + $0xc8] sm:$0xff]
    %v3300 = vld [vmem:[#allocation10 + $0xd0] sm:$0xff]
    %v3301 = vld [vmem:[#allocation10 + $0xd8] sm:$0xff]
    %v3302 = vld [vmem:[#allocation10 + $0xe0] sm:$0xff]
    %v3303 = vld [vmem:[#allocation10 + $0xe8] sm:$0xff]
    %v3304 = vld [vmem:[#allocation10 + $0xf0] sm:$0xff]
    %v3305 = vld [vmem:[#allocation10 + $0xf8] sm:$0xff]
    %v3306 = vld [vmem:[#allocation10 + $0x100] sm:$0xff]
    %v3307 = vld [vmem:[#allocation10 + $0x108] sm:$0xff]
    %v3308 = vld [vmem:[#allocation10 + $0x110] sm:$0xff]
    %v3309 = vld [vmem:[#allocation10 + $0x118] sm:$0xff]
    %v3310 = vld [vmem:[#allocation10 + $0x120] sm:$0xff]
    %v3311 = vld [vmem:[#allocation10 + $0x128] sm:$0xff]
    %v3312 = vld [vmem:[#allocation10 + $0x130] sm:$0xff]
    %v3313 = vld [vmem:[#allocation10 + $0x138] sm:$0xff]
    %v3314 = vld [vmem:[#allocation10 + $0x140] sm:$0xff]
    %v3315 = vld [vmem:[#allocation10 + $0x148] sm:$0xff]
    %v3316 = vld [vmem:[#allocation10 + $0x150] sm:$0xff]
    %v3317 = vld [vmem:[#allocation10 + $0x158] sm:$0xff]
    %v3318 = vld [vmem:[#allocation10 + $0x160] sm:$0xff]
    %v3319 = vld [vmem:[#allocation10 + $0x168] sm:$0xff]
    %v3320 = vld [vmem:[#allocation10 + $0x170] sm:$0xff]
    %v3321 = vld [vmem:[#allocation10 + $0x178] sm:$0xff]
    %v3322 = vld [vmem:[#allocation10 + $0x180] sm:$0xff]
    %v3323 = vld [vmem:[#allocation10 + $0x188] sm:$0xff]
    %v3324 = vld [vmem:[#allocation10 + $0x190] sm:$0xff]
    %v3325 = vld [vmem:[#allocation10 + $0x198] sm:$0xff]
    %v3326 = vld [vmem:[#allocation10 + $0x1a0] sm:$0xff]
    %v3327 = vld [vmem:[#allocation10 + $0x1a8] sm:$0xff]
    %v3328 = vld [vmem:[#allocation10 + $0x1b0] sm:$0xff]
    %v3329 = vld [vmem:[#allocation10 + $0x1b8] sm:$0xff]
    %v3330 = vld [vmem:[#allocation10 + $0x1c0] sm:$0xff]
    %v3331 = vld [vmem:[#allocation10 + $0x1c8] sm:$0xff]
    %v3332 = vld [vmem:[#allocation10 + $0x1d0] sm:$0xff]
    %v3333 = vld [vmem:[#allocation10 + $0x1d8] sm:$0xff]
    %v3334 = vld [vmem:[#allocation10 + $0x1e0] sm:$0xff]
    %v3335 = vld [vmem:[#allocation10 + $0x1e8] sm:$0xff]
    %v3336 = vld [vmem:[#allocation10 + $0x1f0] sm:$0xff]
    %v3337 = vld [vmem:[#allocation10 + $0x1f8] sm:$0xff]
    %3338 = vmatprep.subr.mxu0 %v3335
    %3339 = vmatpush1.msra.mxu0 %v3334
    %3340 = vmatprep.subr.mxu0 %v3331
    %3341 = vmatpush1.msra.mxu0 %v3330
    %3342 = vmatprep.subr.mxu0 %v3327
    %3343 = vmatpush1.msra.mxu0 %v3326
    %3344 = vmatprep.subr.mxu0 %v3323
    %3345 = vmatpush1.msra.mxu0 %v3322
    %3346 = vmatprep.subr.mxu0 %v3319
    %3347 = vmatpush1.msra.mxu0 %v3318
    %3348 = vmatprep.subr.mxu0 %v3315
    %3349 = vmatpush1.msra.mxu0 %v3314
    %3350 = vmatprep.subr.mxu0 %v3311
    %3351 = vmatpush1.msra.mxu0 %v3310
    %3352 = vmatprep.subr.mxu0 %v3307
    %3353 = vmatpush1.msra.mxu0 %v3306
    %3354 = vmatprep.subr.mxu0 %v3303
    %3355 = vmatpush1.msra.mxu0 %v3302
    %3356 = vmatprep.subr.mxu0 %v3299
    %3357 = vmatpush1.msra.mxu0 %v3298
    %3358 = vmatprep.subr.mxu0 %v3295
    %3359 = vmatpush1.msra.mxu0 %v3294
    %3360 = vmatprep.subr.mxu0 %v3291
    %3361 = vmatpush1.msra.mxu0 %v3290
    %3362 = vmatprep.subr.mxu0 %v3287
    %3363 = vmatpush1.msra.mxu0 %v3286
    %3364 = vmatprep.subr.mxu0 %v3283
    %3365 = vmatpush1.msra.mxu0 %v3282
    %3366 = vmatprep.subr.mxu0 %v3279
    %3367 = vmatpush1.msra.mxu0 %v3278
    %3368 = vmatprep.subr.mxu0 %v3275
    %3369 = vmatpush1.msra.mxu0 %v3274
    %3370 = vmatprep.subr.mxu0 0.0
    %3371 = vmatpush2.msra.mxu0 0.0
    %3372 = vmatprep.subr.mxu0 0.0
    %3373 = vmatpush2.msra.mxu0 0.0
    %3374 = vmatprep.subr.mxu0 0.0
    %3375 = vmatpush2.msra.mxu0 0.0
    %3376 = vmatprep.subr.mxu0 0.0
    %3377 = vmatpush2.msra.mxu0 0.0
    %3378 = vmatprep.subr.mxu0 0.0
    %3379 = vmatpush2.msra.mxu0 0.0
    %3380 = vmatprep.subr.mxu0 0.0
    %3381 = vmatpush2.msra.mxu0 0.0
    %3382 = vmatprep.subr.mxu0 0.0
    %3383 = vmatpush2.msra.mxu0 0.0
    %3384 = vmatprep.subr.mxu0 0.0
    %3385 = vmatpush2.msra.mxu0 0.0
    %3386 = vmatprep.subr.mxu0 0.0
    %3387 = vmatpush2.msra.mxu0 0.0
    %3388 = vmatprep.subr.mxu0 0.0
    %3389 = vmatpush2.msra.mxu0 0.0
    %3390 = vmatprep.subr.mxu0 0.0
    %3391 = vmatpush2.msra.mxu0 0.0
    %3392 = vmatprep.subr.mxu0 0.0
    %3393 = vmatpush2.msra.mxu0 0.0
    %3394 = vmatprep.subr.mxu0 0.0
    %3395 = vmatpush2.msra.mxu0 0.0
    %3396 = vmatprep.subr.mxu0 0.0
    %3397 = vmatpush2.msra.mxu0 0.0
    %3398 = vmatprep.subr.mxu0 0.0
    %3399 = vmatpush2.msra.mxu0 0.0
    %3400 = vmatprep.subr.mxu0 0.0
    %3401 = vmatpush2.msra.mxu0 0.0
    %3402 = vmatprep.mubr.f32.mxu0 0.0
    %3403 = vmatmul.mubr.f32.gmra.mxu0 %v3273
    %v3404 = vpop.f32.mrf.mxu0
    %v3405 = vadd.f32 0.0, %v3404
    %v3406 = vpop.f32.mrf.mxu0
    %v3407 = vadd.f32 0.0, %v3406
    %3408 = vdwg.mxu0
    %3409 = vmatprep.subr.mxu0 %v3337
    %3410 = vmatpush1.msra.mxu0 %v3336
    %3411 = vmatprep.subr.mxu0 %v3333
    %3412 = vmatpush1.msra.mxu0 %v3332
    %3413 = vmatprep.subr.mxu0 %v3329
    %3414 = vmatpush1.msra.mxu0 %v3328
    %3415 = vmatprep.subr.mxu0 %v3325
    %3416 = vmatpush1.msra.mxu0 %v3324
    %3417 = vmatprep.subr.mxu0 %v3321
    %3418 = vmatpush1.msra.mxu0 %v3320
    %3419 = vmatprep.subr.mxu0 %v3317
    %3420 = vmatpush1.msra.mxu0 %v3316
    %3421 = vmatprep.subr.mxu0 %v3313
    %3422 = vmatpush1.msra.mxu0 %v3312
    %3423 = vmatprep.subr.mxu0 %v3309
    %3424 = vmatpush1.msra.mxu0 %v3308
    %3425 = vmatprep.subr.mxu0 %v3305
    %3426 = vmatpush1.msra.mxu0 %v3304
    %3427 = vmatprep.subr.mxu0 %v3301
    %3428 = vmatpush1.msra.mxu0 %v3300
    %3429 = vmatprep.subr.mxu0 %v3297
    %3430 = vmatpush1.msra.mxu0 %v3296
    %3431 = vmatprep.subr.mxu0 %v3293
    %3432 = vmatpush1.msra.mxu0 %v3292
    %3433 = vmatprep.subr.mxu0 %v3289
    %3434 = vmatpush1.msra.mxu0 %v3288
    %3435 = vmatprep.subr.mxu0 %v3285
    %3436 = vmatpush1.msra.mxu0 %v3284
    %3437 = vmatprep.subr.mxu0 %v3281
    %3438 = vmatpush1.msra.mxu0 %v3280
    %3439 = vmatprep.subr.mxu0 %v3277
    %3440 = vmatpush1.msra.mxu0 %v3276
    %3441 = vmatprep.subr.mxu0 0.0
    %3442 = vmatpush2.msra.mxu0 0.0
    %3443 = vmatprep.subr.mxu0 0.0
    %3444 = vmatpush2.msra.mxu0 0.0
    %3445 = vmatprep.subr.mxu0 0.0
    %3446 = vmatpush2.msra.mxu0 0.0
    %3447 = vmatprep.subr.mxu0 0.0
    %3448 = vmatpush2.msra.mxu0 0.0
    %3449 = vmatprep.subr.mxu0 0.0
    %3450 = vmatpush2.msra.mxu0 0.0
    %3451 = vmatprep.subr.mxu0 0.0
    %3452 = vmatpush2.msra.mxu0 0.0
    %3453 = vmatprep.subr.mxu0 0.0
    %3454 = vmatpush2.msra.mxu0 0.0
    %3455 = vmatprep.subr.mxu0 0.0
    %3456 = vmatpush2.msra.mxu0 0.0
    %3457 = vmatprep.subr.mxu0 0.0
    %3458 = vmatpush2.msra.mxu0 0.0
    %3459 = vmatprep.subr.mxu0 0.0
    %3460 = vmatpush2.msra.mxu0 0.0
    %3461 = vmatprep.subr.mxu0 0.0
    %3462 = vmatpush2.msra.mxu0 0.0
    %3463 = vmatprep.subr.mxu0 0.0
    %3464 = vmatpush2.msra.mxu0 0.0
    %3465 = vmatprep.subr.mxu0 0.0
    %3466 = vmatpush2.msra.mxu0 0.0
    %3467 = vmatprep.subr.mxu0 0.0
    %3468 = vmatpush2.msra.mxu0 0.0
    %3469 = vmatprep.subr.mxu0 0.0
    %3470 = vmatpush2.msra.mxu0 0.0
    %3471 = vmatprep.subr.mxu0 0.0
    %3472 = vmatpush2.msra.mxu0 0.0
    %3473 = vmatprep.mubr.f32.mxu0 0.0
    %3474 = vmatmul.mubr.f32.gmra.mxu0 %v3273
    %v3475 = vpop.f32.mrf.mxu0
    %v3476 = vadd.f32 0.0, %v3475
    %v3477 = vpop.f32.mrf.mxu0
    %v3478 = vadd.f32 0.0, %v3477
    %3479 = vdwg.mxu0
    %v3480 = vadd.f32 %v3269, %v3405
    %v3481 = vadd.f32 %v3270, %v3407
    %v3482 = vadd.f32 %v3271, %v3476
    %v3483 = vadd.f32 %v3272, %v3478
    %v3484 = vmul.f32 %v3480, 0.5
    %v3485 = vtanh.pop %v3484
    %v3486 = vmul.f32 %v3485, 0.5
    %v3487 = vadd.f32 %v3486, 0.5
    %v3488 = vmul.f32 %v3481, 0.5
    %v3489 = vtanh.pop %v3488
    %v3490 = vmul.f32 %v3489, 0.5
    %v3491 = vadd.f32 %v3490, 0.5
    %v3492 = vtanh.pop %v3482
    %v3493 = vmul.f32 %v3483, 0.5
    %v3494 = vtanh.pop %v3493
    %v3495 = vmul.f32 %v3494, 0.5
    %v3496 = vadd.f32 %v3495, 0.5
    %v3497 = vld [vmem:[#allocation5] sm:$0xff]
    %v3498 = vmul.f32 %v3491, %v3497
    %v3499 = vmul.f32 %v3487, %v3492
    %v3500 = vadd.f32 %v3498, %v3499
    %v3501 = vtanh.pop %v3500
    %v3502 = vmul.f32 %v3496, %v3501
    %3503 = vst [vmem:[#allocation5] sm:$0xff] %v3500
    %3504 = vst [vmem:[#allocation4] sm:$0xff] %v3502
    %3505 = vst [vmem:[%s1180] sm:$0xff] %v3502
    %v3506 = vld [vmem:[%s1184] sm:$0xff]
    %v3507 = vld [vmem:[%s1184 + $0x8] sm:$0xff]
    %v3508 = vld [vmem:[%s1184 + $0x10] sm:$0xff]
    %v3509 = vld [vmem:[%s1184 + $0x18] sm:$0xff]
    %v3510 = vld [vmem:[#allocation4] sm:$0xff]
    %v3511 = vld [vmem:[#allocation10] sm:$0xff]
    %v3512 = vld [vmem:[#allocation10 + $0x8] sm:$0xff]
    %v3513 = vld [vmem:[#allocation10 + $0x10] sm:$0xff]
    %v3514 = vld [vmem:[#allocation10 + $0x18] sm:$0xff]
    %v3515 = vld [vmem:[#allocation10 + $0x20] sm:$0xff]
    %v3516 = vld [vmem:[#allocation10 + $0x28] sm:$0xff]
    %v3517 = vld [vmem:[#allocation10 + $0x30] sm:$0xff]
    %v3518 = vld [vmem:[#allocation10 + $0x38] sm:$0xff]
    %v3519 = vld [vmem:[#allocation10 + $0x40] sm:$0xff]
    %v3520 = vld [vmem:[#allocation10 + $0x48] sm:$0xff]
    %v3521 = vld [vmem:[#allocation10 + $0x50] sm:$0xff]
    %v3522 = vld [vmem:[#allocation10 + $0x58] sm:$0xff]
    %v3523 = vld [vmem:[#allocation10 + $0x60] sm:$0xff]
    %v3524 = vld [vmem:[#allocation10 + $0x68] sm:$0xff]
    %v3525 = vld [vmem:[#allocation10 + $0x70] sm:$0xff]
    %v3526 = vld [vmem:[#allocation10 + $0x78] sm:$0xff]
    %v3527 = vld [vmem:[#allocation10 + $0x80] sm:$0xff]
    %v3528 = vld [vmem:[#allocation10 + $0x88] sm:$0xff]
    %v3529 = vld [vmem:[#allocation10 + $0x90] sm:$0xff]
    %v3530 = vld [vmem:[#allocation10 + $0x98] sm:$0xff]
    %v3531 = vld [vmem:[#allocation10 + $0xa0] sm:$0xff]
    %v3532 = vld [vmem:[#allocation10 + $0xa8] sm:$0xff]
    %v3533 = vld [vmem:[#allocation10 + $0xb0] sm:$0xff]
    %v3534 = vld [vmem:[#allocation10 + $0xb8] sm:$0xff]
    %v3535 = vld [vmem:[#allocation10 + $0xc0] sm:$0xff]
    %v3536 = vld [vmem:[#allocation10 + $0xc8] sm:$0xff]
    %v3537 = vld [vmem:[#allocation10 + $0xd0] sm:$0xff]
    %v3538 = vld [vmem:[#allocation10 + $0xd8] sm:$0xff]
    %v3539 = vld [vmem:[#allocation10 + $0xe0] sm:$0xff]
    %v3540 = vld [vmem:[#allocation10 + $0xe8] sm:$0xff]
    %v3541 = vld [vmem:[#allocation10 + $0xf0] sm:$0xff]
    %v3542 = vld [vmem:[#allocation10 + $0xf8] sm:$0xff]
    %v3543 = vld [vmem:[#allocation10 + $0x100] sm:$0xff]
    %v3544 = vld [vmem:[#allocation10 + $0x108] sm:$0xff]
    %v3545 = vld [vmem:[#allocation10 + $0x110] sm:$0xff]
    %v3546 = vld [vmem:[#allocation10 + $0x118] sm:$0xff]
    %v3547 = vld [vmem:[#allocation10 + $0x120] sm:$0xff]
    %v3548 = vld [vmem:[#allocation10 + $0x128] sm:$0xff]
    %v3549 = vld [vmem:[#allocation10 + $0x130] sm:$0xff]
    %v3550 = vld [vmem:[#allocation10 + $0x138] sm:$0xff]
    %v3551 = vld [vmem:[#allocation10 + $0x140] sm:$0xff]
    %v3552 = vld [vmem:[#allocation10 + $0x148] sm:$0xff]
    %v3553 = vld [vmem:[#allocation10 + $0x150] sm:$0xff]
    %v3554 = vld [vmem:[#allocation10 + $0x158] sm:$0xff]
    %v3555 = vld [vmem:[#allocation10 + $0x160] sm:$0xff]
    %v3556 = vld [vmem:[#allocation10 + $0x168] sm:$0xff]
    %v3557 = vld [vmem:[#allocation10 + $0x170] sm:$0xff]
    %v3558 = vld [vmem:[#allocation10 + $0x178] sm:$0xff]
    %v3559 = vld [vmem:[#allocation10 + $0x180] sm:$0xff]
    %v3560 = vld [vmem:[#allocation10 + $0x188] sm:$0xff]
    %v3561 = vld [vmem:[#allocation10 + $0x190] sm:$0xff]
    %v3562 = vld [vmem:[#allocation10 + $0x198] sm:$0xff]
    %v3563 = vld [vmem:[#allocation10 + $0x1a0] sm:$0xff]
    %v3564 = vld [vmem:[#allocation10 + $0x1a8] sm:$0xff]
    %v3565 = vld [vmem:[#allocation10 + $0x1b0] sm:$0xff]
    %v3566 = vld [vmem:[#allocation10 + $0x1b8] sm:$0xff]
    %v3567 = vld [vmem:[#allocation10 + $0x1c0] sm:$0xff]
    %v3568 = vld [vmem:[#allocation10 + $0x1c8] sm:$0xff]
    %v3569 = vld [vmem:[#allocation10 + $0x1d0] sm:$0xff]
    %v3570 = vld [vmem:[#allocation10 + $0x1d8] sm:$0xff]
    %v3571 = vld [vmem:[#allocation10 + $0x1e0] sm:$0xff]
    %v3572 = vld [vmem:[#allocation10 + $0x1e8] sm:$0xff]
    %v3573 = vld [vmem:[#allocation10 + $0x1f0] sm:$0xff]
    %v3574 = vld [vmem:[#allocation10 + $0x1f8] sm:$0xff]
    %3575 = vmatprep.subr.mxu0 %v3572
    %3576 = vmatpush1.msra.mxu0 %v3571
    %3577 = vmatprep.subr.mxu0 %v3568
    %3578 = vmatpush1.msra.mxu0 %v3567
    %3579 = vmatprep.subr.mxu0 %v3564
    %3580 = vmatpush1.msra.mxu0 %v3563
    %3581 = vmatprep.subr.mxu0 %v3560
    %3582 = vmatpush1.msra.mxu0 %v3559
    %3583 = vmatprep.subr.mxu0 %v3556
    %3584 = vmatpush1.msra.mxu0 %v3555
    %3585 = vmatprep.subr.mxu0 %v3552
    %3586 = vmatpush1.msra.mxu0 %v3551
    %3587 = vmatprep.subr.mxu0 %v3548
    %3588 = vmatpush1.msra.mxu0 %v3547
    %3589 = vmatprep.subr.mxu0 %v3544
    %3590 = vmatpush1.msra.mxu0 %v3543
    %3591 = vmatprep.subr.mxu0 %v3540
    %3592 = vmatpush1.msra.mxu0 %v3539
    %3593 = vmatprep.subr.mxu0 %v3536
    %3594 = vmatpush1.msra.mxu0 %v3535
    %3595 = vmatprep.subr.mxu0 %v3532
    %3596 = vmatpush1.msra.mxu0 %v3531
    %3597 = vmatprep.subr.mxu0 %v3528
    %3598 = vmatpush1.msra.mxu0 %v3527
    %3599 = vmatprep.subr.mxu0 %v3524
    %3600 = vmatpush1.msra.mxu0 %v3523
    %3601 = vmatprep.subr.mxu0 %v3520
    %3602 = vmatpush1.msra.mxu0 %v3519
    %3603 = vmatprep.subr.mxu0 %v3516
    %3604 = vmatpush1.msra.mxu0 %v3515
    %3605 = vmatprep.subr.mxu0 %v3512
    %3606 = vmatpush1.msra.mxu0 %v3511
    %3607 = vmatprep.subr.mxu0 0.0
    %3608 = vmatpush2.msra.mxu0 0.0
    %3609 = vmatprep.subr.mxu0 0.0
    %3610 = vmatpush2.msra.mxu0 0.0
    %3611 = vmatprep.subr.mxu0 0.0
    %3612 = vmatpush2.msra.mxu0 0.0
    %3613 = vmatprep.subr.mxu0 0.0
    %3614 = vmatpush2.msra.mxu0 0.0
    %3615 = vmatprep.subr.mxu0 0.0
    %3616 = vmatpush2.msra.mxu0 0.0
    %3617 = vmatprep.subr.mxu0 0.0
    %3618 = vmatpush2.msra.mxu0 0.0
    %3619 = vmatprep.subr.mxu0 0.0
    %3620 = vmatpush2.msra.mxu0 0.0
    %3621 = vmatprep.subr.mxu0 0.0
    %3622 = vmatpush2.msra.mxu0 0.0
    %3623 = vmatprep.subr.mxu0 0.0
    %3624 = vmatpush2.msra.mxu0 0.0
    %3625 = vmatprep.subr.mxu0 0.0
    %3626 = vmatpush2.msra.mxu0 0.0
    %3627 = vmatprep.subr.mxu0 0.0
    %3628 = vmatpush2.msra.mxu0 0.0
    %3629 = vmatprep.subr.mxu0 0.0
    %3630 = vmatpush2.msra.mxu0 0.0
    %3631 = vmatprep.subr.mxu0 0.0
    %3632 = vmatpush2.msra.mxu0 0.0
    %3633 = vmatprep.subr.mxu0 0.0
    %3634 = vmatpush2.msra.mxu0 0.0
    %3635 = vmatprep.subr.mxu0 0.0
    %3636 = vmatpush2.msra.mxu0 0.0
    %3637 = vmatprep.subr.mxu0 0.0
    %3638 = vmatpush2.msra.mxu0 0.0
    %3639 = vmatprep.mubr.f32.mxu0 0.0
    %3640 = vmatmul.mubr.f32.gmra.mxu0 %v3510
    %v3641 = vpop.f32.mrf.mxu0
    %v3642 = vadd.f32 0.0, %v3641
    %v3643 = vpop.f32.mrf.mxu0
    %v3644 = vadd.f32 0.0, %v3643
    %3645 = vdwg.mxu0
    %3646 = vmatprep.subr.mxu0 %v3574
    %3647 = vmatpush1.msra.mxu0 %v3573
    %3648 = vmatprep.subr.mxu0 %v3570
    %3649 = vmatpush1.msra.mxu0 %v3569
    %3650 = vmatprep.subr.mxu0 %v3566
    %3651 = vmatpush1.msra.mxu0 %v3565
    %3652 = vmatprep.subr.mxu0 %v3562
    %3653 = vmatpush1.msra.mxu0 %v3561
    %3654 = vmatprep.subr.mxu0 %v3558
    %3655 = vmatpush1.msra.mxu0 %v3557
    %3656 = vmatprep.subr.mxu0 %v3554
    %3657 = vmatpush1.msra.mxu0 %v3553
    %3658 = vmatprep.subr.mxu0 %v3550
    %3659 = vmatpush1.msra.mxu0 %v3549
    %3660 = vmatprep.subr.mxu0 %v3546
    %3661 = vmatpush1.msra.mxu0 %v3545
    %3662 = vmatprep.subr.mxu0 %v3542
    %3663 = vmatpush1.msra.mxu0 %v3541
    %3664 = vmatprep.subr.mxu0 %v3538
    %3665 = vmatpush1.msra.mxu0 %v3537
    %3666 = vmatprep.subr.mxu0 %v3534
    %3667 = vmatpush1.msra.mxu0 %v3533
    %3668 = vmatprep.subr.mxu0 %v3530
    %3669 = vmatpush1.msra.mxu0 %v3529
    %3670 = vmatprep.subr.mxu0 %v3526
    %3671 = vmatpush1.msra.mxu0 %v3525
    %3672 = vmatprep.subr.mxu0 %v3522
    %3673 = vmatpush1.msra.mxu0 %v3521
    %3674 = vmatprep.subr.mxu0 %v3518
    %3675 = vmatpush1.msra.mxu0 %v3517
    %3676 = vmatprep.subr.mxu0 %v3514
    %3677 = vmatpush1.msra.mxu0 %v3513
    %3678 = vmatprep.subr.mxu0 0.0
    %3679 = vmatpush2.msra.mxu0 0.0
    %3680 = vmatprep.subr.mxu0 0.0
    %3681 = vmatpush2.msra.mxu0 0.0
    %3682 = vmatprep.subr.mxu0 0.0
    %3683 = vmatpush2.msra.mxu0 0.0
    %3684 = vmatprep.subr.mxu0 0.0
    %3685 = vmatpush2.msra.mxu0 0.0
    %3686 = vmatprep.subr.mxu0 0.0
    %3687 = vmatpush2.msra.mxu0 0.0
    %3688 = vmatprep.subr.mxu0 0.0
    %3689 = vmatpush2.msra.mxu0 0.0
    %3690 = vmatprep.subr.mxu0 0.0
    %3691 = vmatpush2.msra.mxu0 0.0
    %3692 = vmatprep.subr.mxu0 0.0
    %3693 = vmatpush2.msra.mxu0 0.0
    %3694 = vmatprep.subr.mxu0 0.0
    %3695 = vmatpush2.msra.mxu0 0.0
    %3696 = vmatprep.subr.mxu0 0.0
    %3697 = vmatpush2.msra.mxu0 0.0
    %3698 = vmatprep.subr.mxu0 0.0
    %3699 = vmatpush2.msra.mxu0 0.0
    %3700 = vmatprep.subr.mxu0 0.0
    %3701 = vmatpush2.msra.mxu0 0.0
    %3702 = vmatprep.subr.mxu0 0.0
    %3703 = vmatpush2.msra.mxu0 0.0
    %3704 = vmatprep.subr.mxu0 0.0
    %3705 = vmatpush2.msra.mxu0 0.0
    %3706 = vmatprep.subr.mxu0 0.0
    %3707 = vmatpush2.msra.mxu0 0.0
    %3708 = vmatprep.subr.mxu0 0.0
    %3709 = vmatpush2.msra.mxu0 0.0
    %3710 = vmatprep.mubr.f32.mxu0 0.0
    %3711 = vmatmul.mubr.f32.gmra.mxu0 %v3510
    %v3712 = vpop.f32.mrf.mxu0
    %v3713 = vadd.f32 0.0, %v3712
    %v3714 = vpop.f32.mrf.mxu0
    %v3715 = vadd.f32 0.0, %v3714
    %3716 = vdwg.mxu0
    %v3717 = vadd.f32 %v3506, %v3642
    %v3718 = vadd.f32 %v3507, %v3644
    %v3719 = vadd.f32 %v3508, %v3713
    %v3720 = vadd.f32 %v3509, %v3715
    %v3721 = vmul.f32 %v3717, 0.5
    %v3722 = vtanh.pop %v3721
    %v3723 = vmul.f32 %v3722, 0.5
    %v3724 = vadd.f32 %v3723, 0.5
    %v3725 = vmul.f32 %v3718, 0.5
    %v3726 = vtanh.pop %v3725
    %v3727 = vmul.f32 %v3726, 0.5
    %v3728 = vadd.f32 %v3727, 0.5
    %v3729 = vtanh.pop %v3719
    %v3730 = vmul.f32 %v3720, 0.5
    %v3731 = vtanh.pop %v3730
    %v3732 = vmul.f32 %v3731, 0.5
    %v3733 = vadd.f32 %v3732, 0.5
    %v3734 = vld [vmem:[#allocation5] sm:$0xff]
    %v3735 = vmul.f32 %v3728, %v3734
    %v3736 = vmul.f32 %v3724, %v3729
    %v3737 = vadd.f32 %v3735, %v3736
    %v3738 = vtanh.pop %v3737
    %v3739 = vmul.f32 %v3733, %v3738
    %3740 = vst [vmem:[#allocation5] sm:$0xff] %v3737
    %3741 = vst [vmem:[#allocation4] sm:$0xff] %v3739
    %3742 = vst [vmem:[%s1421] sm:$0xff] %v3739
    %v3743 = vld [vmem:[%s1425] sm:$0xff]
    %v3744 = vld [vmem:[%s1425 + $0x8] sm:$0xff]
    %v3745 = vld [vmem:[%s1425 + $0x10] sm:$0xff]
    %v3746 = vld [vmem:[%s1425 + $0x18] sm:$0xff]
    %v3747 = vld [vmem:[#allocation4] sm:$0xff]
    %v3748 = vld [vmem:[#allocation10] sm:$0xff]
    %v3749 = vld [vmem:[#allocation10 + $0x8] sm:$0xff]
    %v3750 = vld [vmem:[#allocation10 + $0x10] sm:$0xff]
    %v3751 = vld [vmem:[#allocation10 + $0x18] sm:$0xff]
    %v3752 = vld [vmem:[#allocation10 + $0x20] sm:$0xff]
    %v3753 = vld [vmem:[#allocation10 + $0x28] sm:$0xff]
    %v3754 = vld [vmem:[#allocation10 + $0x30] sm:$0xff]
    %v3755 = vld [vmem:[#allocation10 + $0x38] sm:$0xff]
    %v3756 = vld [vmem:[#allocation10 + $0x40] sm:$0xff]
    %v3757 = vld [vmem:[#allocation10 + $0x48] sm:$0xff]
    %v3758 = vld [vmem:[#allocation10 + $0x50] sm:$0xff]
    %v3759 = vld [vmem:[#allocation10 + $0x58] sm:$0xff]
    %v3760 = vld [vmem:[#allocation10 + $0x60] sm:$0xff]
    %v3761 = vld [vmem:[#allocation10 + $0x68] sm:$0xff]
    %v3762 = vld [vmem:[#allocation10 + $0x70] sm:$0xff]
    %v3763 = vld [vmem:[#allocation10 + $0x78] sm:$0xff]
    %v3764 = vld [vmem:[#allocation10 + $0x80] sm:$0xff]
    %v3765 = vld [vmem:[#allocation10 + $0x88] sm:$0xff]
    %v3766 = vld [vmem:[#allocation10 + $0x90] sm:$0xff]
    %v3767 = vld [vmem:[#allocation10 + $0x98] sm:$0xff]
    %v3768 = vld [vmem:[#allocation10 + $0xa0] sm:$0xff]
    %v3769 = vld [vmem:[#allocation10 + $0xa8] sm:$0xff]
    %v3770 = vld [vmem:[#allocation10 + $0xb0] sm:$0xff]
    %v3771 = vld [vmem:[#allocation10 + $0xb8] sm:$0xff]
    %v3772 = vld [vmem:[#allocation10 + $0xc0] sm:$0xff]
    %v3773 = vld [vmem:[#allocation10 + $0xc8] sm:$0xff]
    %v3774 = vld [vmem:[#allocation10 + $0xd0] sm:$0xff]
    %v3775 = vld [vmem:[#allocation10 + $0xd8] sm:$0xff]
    %v3776 = vld [vmem:[#allocation10 + $0xe0] sm:$0xff]
    %v3777 = vld [vmem:[#allocation10 + $0xe8] sm:$0xff]
    %v3778 = vld [vmem:[#allocation10 + $0xf0] sm:$0xff]
    %v3779 = vld [vmem:[#allocation10 + $0xf8] sm:$0xff]
    %v3780 = vld [vmem:[#allocation10 + $0x100] sm:$0xff]
    %v3781 = vld [vmem:[#allocation10 + $0x108] sm:$0xff]
    %v3782 = vld [vmem:[#allocation10 + $0x110] sm:$0xff]
    %v3783 = vld [vmem:[#allocation10 + $0x118] sm:$0xff]
    %v3784 = vld [vmem:[#allocation10 + $0x120] sm:$0xff]
    %v3785 = vld [vmem:[#allocation10 + $0x128] sm:$0xff]
    %v3786 = vld [vmem:[#allocation10 + $0x130] sm:$0xff]
    %v3787 = vld [vmem:[#allocation10 + $0x138] sm:$0xff]
    %v3788 = vld [vmem:[#allocation10 + $0x140] sm:$0xff]
    %v3789 = vld [vmem:[#allocation10 + $0x148] sm:$0xff]
    %v3790 = vld [vmem:[#allocation10 + $0x150] sm:$0xff]
    %v3791 = vld [vmem:[#allocation10 + $0x158] sm:$0xff]
    %v3792 = vld [vmem:[#allocation10 + $0x160] sm:$0xff]
    %v3793 = vld [vmem:[#allocation10 + $0x168] sm:$0xff]
    %v3794 = vld [vmem:[#allocation10 + $0x170] sm:$0xff]
    %v3795 = vld [vmem:[#allocation10 + $0x178] sm:$0xff]
    %v3796 = vld [vmem:[#allocation10 + $0x180] sm:$0xff]
    %v3797 = vld [vmem:[#allocation10 + $0x188] sm:$0xff]
    %v3798 = vld [vmem:[#allocation10 + $0x190] sm:$0xff]
    %v3799 = vld [vmem:[#allocation10 + $0x198] sm:$0xff]
    %v3800 = vld [vmem:[#allocation10 + $0x1a0] sm:$0xff]
    %v3801 = vld [vmem:[#allocation10 + $0x1a8] sm:$0xff]
    %v3802 = vld [vmem:[#allocation10 + $0x1b0] sm:$0xff]
    %v3803 = vld [vmem:[#allocation10 + $0x1b8] sm:$0xff]
    %v3804 = vld [vmem:[#allocation10 + $0x1c0] sm:$0xff]
    %v3805 = vld [vmem:[#allocation10 + $0x1c8] sm:$0xff]
    %v3806 = vld [vmem:[#allocation10 + $0x1d0] sm:$0xff]
    %v3807 = vld [vmem:[#allocation10 + $0x1d8] sm:$0xff]
    %v3808 = vld [vmem:[#allocation10 + $0x1e0] sm:$0xff]
    %v3809 = vld [vmem:[#allocation10 + $0x1e8] sm:$0xff]
    %v3810 = vld [vmem:[#allocation10 + $0x1f0] sm:$0xff]
    %v3811 = vld [vmem:[#allocation10 + $0x1f8] sm:$0xff]
    %3812 = vmatprep.subr.mxu0 %v3809
    %3813 = vmatpush1.msra.mxu0 %v3808
    %3814 = vmatprep.subr.mxu0 %v3805
    %3815 = vmatpush1.msra.mxu0 %v3804
    %3816 = vmatprep.subr.mxu0 %v3801
    %3817 = vmatpush1.msra.mxu0 %v3800
    %3818 = vmatprep.subr.mxu0 %v3797
    %3819 = vmatpush1.msra.mxu0 %v3796
    %3820 = vmatprep.subr.mxu0 %v3793
    %3821 = vmatpush1.msra.mxu0 %v3792
    %3822 = vmatprep.subr.mxu0 %v3789
    %3823 = vmatpush1.msra.mxu0 %v3788
    %3824 = vmatprep.subr.mxu0 %v3785
    %3825 = vmatpush1.msra.mxu0 %v3784
    %3826 = vmatprep.subr.mxu0 %v3781
    %3827 = vmatpush1.msra.mxu0 %v3780
    %3828 = vmatprep.subr.mxu0 %v3777
    %3829 = vmatpush1.msra.mxu0 %v3776
    %3830 = vmatprep.subr.mxu0 %v3773
    %3831 = vmatpush1.msra.mxu0 %v3772
    %3832 = vmatprep.subr.mxu0 %v3769
    %3833 = vmatpush1.msra.mxu0 %v3768
    %3834 = vmatprep.subr.mxu0 %v3765
    %3835 = vmatpush1.msra.mxu0 %v3764
    %3836 = vmatprep.subr.mxu0 %v3761
    %3837 = vmatpush1.msra.mxu0 %v3760
    %3838 = vmatprep.subr.mxu0 %v3757
    %3839 = vmatpush1.msra.mxu0 %v3756
    %3840 = vmatprep.subr.mxu0 %v3753
    %3841 = vmatpush1.msra.mxu0 %v3752
    %3842 = vmatprep.subr.mxu0 %v3749
    %3843 = vmatpush1.msra.mxu0 %v3748
    %3844 = vmatprep.subr.mxu0 0.0
    %3845 = vmatpush2.msra.mxu0 0.0
    %3846 = vmatprep.subr.mxu0 0.0
    %3847 = vmatpush2.msra.mxu0 0.0
    %3848 = vmatprep.subr.mxu0 0.0
    %3849 = vmatpush2.msra.mxu0 0.0
    %3850 = vmatprep.subr.mxu0 0.0
    %3851 = vmatpush2.msra.mxu0 0.0
    %3852 = vmatprep.subr.mxu0 0.0
    %3853 = vmatpush2.msra.mxu0 0.0
    %3854 = vmatprep.subr.mxu0 0.0
    %3855 = vmatpush2.msra.mxu0 0.0
    %3856 = vmatprep.subr.mxu0 0.0
    %3857 = vmatpush2.msra.mxu0 0.0
    %3858 = vmatprep.subr.mxu0 0.0
    %3859 = vmatpush2.msra.mxu0 0.0
    %3860 = vmatprep.subr.mxu0 0.0
    %3861 = vmatpush2.msra.mxu0 0.0
    %3862 = vmatprep.subr.mxu0 0.0
    %3863 = vmatpush2.msra.mxu0 0.0
    %3864 = vmatprep.subr.mxu0 0.0
    %3865 = vmatpush2.msra.mxu0 0.0
    %3866 = vmatprep.subr.mxu0 0.0
    %3867 = vmatpush2.msra.mxu0 0.0
    %3868 = vmatprep.subr.mxu0 0.0
    %3869 = vmatpush2.msra.mxu0 0.0
    %3870 = vmatprep.subr.mxu0 0.0
    %3871 = vmatpush2.msra.mxu0 0.0
    %3872 = vmatprep.subr.mxu0 0.0
    %3873 = vmatpush2.msra.mxu0 0.0
    %3874 = vmatprep.subr.mxu0 0.0
    %3875 = vmatpush2.msra.mxu0 0.0
    %3876 = vmatprep.mubr.f32.mxu0 0.0
    %3877 = vmatmul.mubr.f32.gmra.mxu0 %v3747
    %v3878 = vpop.f32.mrf.mxu0
    %v3879 = vadd.f32 0.0, %v3878
    %v3880 = vpop.f32.mrf.mxu0
    %v3881 = vadd.f32 0.0, %v3880
    %3882 = vdwg.mxu0
    %3883 = vmatprep.subr.mxu0 %v3811
    %3884 = vmatpush1.msra.mxu0 %v3810
    %3885 = vmatprep.subr.mxu0 %v3807
    %3886 = vmatpush1.msra.mxu0 %v3806
    %3887 = vmatprep.subr.mxu0 %v3803
    %3888 = vmatpush1.msra.mxu0 %v3802
    %3889 = vmatprep.subr.mxu0 %v3799
    %3890 = vmatpush1.msra.mxu0 %v3798
    %3891 = vmatprep.subr.mxu0 %v3795
    %3892 = vmatpush1.msra.mxu0 %v3794
    %3893 = vmatprep.subr.mxu0 %v3791
    %3894 = vmatpush1.msra.mxu0 %v3790
    %3895 = vmatprep.subr.mxu0 %v3787
    %3896 = vmatpush1.msra.mxu0 %v3786
    %3897 = vmatprep.subr.mxu0 %v3783
    %3898 = vmatpush1.msra.mxu0 %v3782
    %3899 = vmatprep.subr.mxu0 %v3779
    %3900 = vmatpush1.msra.mxu0 %v3778
    %3901 = vmatprep.subr.mxu0 %v3775
    %3902 = vmatpush1.msra.mxu0 %v3774
    %3903 = vmatprep.subr.mxu0 %v3771
    %3904 = vmatpush1.msra.mxu0 %v3770
    %3905 = vmatprep.subr.mxu0 %v3767
    %3906 = vmatpush1.msra.mxu0 %v3766
    %3907 = vmatprep.subr.mxu0 %v3763
    %3908 = vmatpush1.msra.mxu0 %v3762
    %3909 = vmatprep.subr.mxu0 %v3759
    %3910 = vmatpush1.msra.mxu0 %v3758
    %3911 = vmatprep.subr.mxu0 %v3755
    %3912 = vmatpush1.msra.mxu0 %v3754
    %3913 = vmatprep.subr.mxu0 %v3751
    %3914 = vmatpush1.msra.mxu0 %v3750
    %3915 = vmatprep.subr.mxu0 0.0
    %3916 = vmatpush2.msra.mxu0 0.0
    %3917 = vmatprep.subr.mxu0 0.0
    %3918 = vmatpush2.msra.mxu0 0.0
    %3919 = vmatprep.subr.mxu0 0.0
    %3920 = vmatpush2.msra.mxu0 0.0
    %3921 = vmatprep.subr.mxu0 0.0
    %3922 = vmatpush2.msra.mxu0 0.0
    %3923 = vmatprep.subr.mxu0 0.0
    %3924 = vmatpush2.msra.mxu0 0.0
    %3925 = vmatprep.subr.mxu0 0.0
    %3926 = vmatpush2.msra.mxu0 0.0
    %3927 = vmatprep.subr.mxu0 0.0
    %3928 = vmatpush2.msra.mxu0 0.0
    %3929 = vmatprep.subr.mxu0 0.0
    %3930 = vmatpush2.msra.mxu0 0.0
    %3931 = vmatprep.subr.mxu0 0.0
    %3932 = vmatpush2.msra.mxu0 0.0
    %3933 = vmatprep.subr.mxu0 0.0
    %3934 = vmatpush2.msra.mxu0 0.0
    %3935 = vmatprep.subr.mxu0 0.0
    %3936 = vmatpush2.msra.mxu0 0.0
    %3937 = vmatprep.subr.mxu0 0.0
    %3938 = vmatpush2.msra.mxu0 0.0
    %3939 = vmatprep.subr.mxu0 0.0
    %3940 = vmatpush2.msra.mxu0 0.0
    %3941 = vmatprep.subr.mxu0 0.0
    %3942 = vmatpush2.msra.mxu0 0.0
    %3943 = vmatprep.subr.mxu0 0.0
    %3944 = vmatpush2.msra.mxu0 0.0
    %3945 = vmatprep.subr.mxu0 0.0
    %3946 = vmatpush2.msra.mxu0 0.0
    %3947 = vmatprep.mubr.f32.mxu0 0.0
    %3948 = vmatmul.mubr.f32.gmra.mxu0 %v3747
    %v3949 = vpop.f32.mrf.mxu0
    %v3950 = vadd.f32 0.0, %v3949
    %v3951 = vpop.f32.mrf.mxu0
    %v3952 = vadd.f32 0.0, %v3951
    %3953 = vdwg.mxu0
    %v3954 = vadd.f32 %v3743, %v3879
    %v3955 = vadd.f32 %v3744, %v3881
    %v3956 = vadd.f32 %v3745, %v3950
    %v3957 = vadd.f32 %v3746, %v3952
    %v3958 = vmul.f32 %v3954, 0.5
    %v3959 = vtanh.pop %v3958
    %v3960 = vmul.f32 %v3959, 0.5
    %v3961 = vadd.f32 %v3960, 0.5
    %v3962 = vmul.f32 %v3955, 0.5
    %v3963 = vtanh.pop %v3962
    %v3964 = vmul.f32 %v3963, 0.5
    %v3965 = vadd.f32 %v3964, 0.5
    %v3966 = vtanh.pop %v3956
    %v3967 = vmul.f32 %v3957, 0.5
    %v3968 = vtanh.pop %v3967
    %v3969 = vmul.f32 %v3968, 0.5
    %v3970 = vadd.f32 %v3969, 0.5
    %v3971 = vld [vmem:[#allocation5] sm:$0xff]
    %v3972 = vmul.f32 %v3965, %v3971
    %v3973 = vmul.f32 %v3961, %v3966
    %v3974 = vadd.f32 %v3972, %v3973
    %v3975 = vtanh.pop %v3974
    %v3976 = vmul.f32 %v3970, %v3975
    %3977 = vst [vmem:[#allocation5] sm:$0xff] %v3974
    %3978 = vst [vmem:[#allocation4] sm:$0xff] %v3976
    %3979 = vst [vmem:[%s1662] sm:$0xff] %v3976
    %v3980 = vld [vmem:[%s1666] sm:$0xff]
    %v3981 = vld [vmem:[%s1666 + $0x8] sm:$0xff]
    %v3982 = vld [vmem:[%s1666 + $0x10] sm:$0xff]
    %v3983 = vld [vmem:[%s1666 + $0x18] sm:$0xff]
    %v3984 = vld [vmem:[#allocation4] sm:$0xff]
    %v3985 = vld [vmem:[#allocation10] sm:$0xff]
    %v3986 = vld [vmem:[#allocation10 + $0x8] sm:$0xff]
    %v3987 = vld [vmem:[#allocation10 + $0x10] sm:$0xff]
    %v3988 = vld [vmem:[#allocation10 + $0x18] sm:$0xff]
    %v3989 = vld [vmem:[#allocation10 + $0x20] sm:$0xff]
    %v3990 = vld [vmem:[#allocation10 + $0x28] sm:$0xff]
    %v3991 = vld [vmem:[#allocation10 + $0x30] sm:$0xff]
    %v3992 = vld [vmem:[#allocation10 + $0x38] sm:$0xff]
    %v3993 = vld [vmem:[#allocation10 + $0x40] sm:$0xff]
    %v3994 = vld [vmem:[#allocation10 + $0x48] sm:$0xff]
    %v3995 = vld [vmem:[#allocation10 + $0x50] sm:$0xff]
    %v3996 = vld [vmem:[#allocation10 + $0x58] sm:$0xff]
    %v3997 = vld [vmem:[#allocation10 + $0x60] sm:$0xff]
    %v3998 = vld [vmem:[#allocation10 + $0x68] sm:$0xff]
    %v3999 = vld [vmem:[#allocation10 + $0x70] sm:$0xff]
    %v4000 = vld [vmem:[#allocation10 + $0x78] sm:$0xff]
    %v4001 = vld [vmem:[#allocation10 + $0x80] sm:$0xff]
    %v4002 = vld [vmem:[#allocation10 + $0x88] sm:$0xff]
    %v4003 = vld [vmem:[#allocation10 + $0x90] sm:$0xff]
    %v4004 = vld [vmem:[#allocation10 + $0x98] sm:$0xff]
    %v4005 = vld [vmem:[#allocation10 + $0xa0] sm:$0xff]
    %v4006 = vld [vmem:[#allocation10 + $0xa8] sm:$0xff]
    %v4007 = vld [vmem:[#allocation10 + $0xb0] sm:$0xff]
    %v4008 = vld [vmem:[#allocation10 + $0xb8] sm:$0xff]
    %v4009 = vld [vmem:[#allocation10 + $0xc0] sm:$0xff]
    %v4010 = vld [vmem:[#allocation10 + $0xc8] sm:$0xff]
    %v4011 = vld [vmem:[#allocation10 + $0xd0] sm:$0xff]
    %v4012 = vld [vmem:[#allocation10 + $0xd8] sm:$0xff]
    %v4013 = vld [vmem:[#allocation10 + $0xe0] sm:$0xff]
    %v4014 = vld [vmem:[#allocation10 + $0xe8] sm:$0xff]
    %v4015 = vld [vmem:[#allocation10 + $0xf0] sm:$0xff]
    %v4016 = vld [vmem:[#allocation10 + $0xf8] sm:$0xff]
    %v4017 = vld [vmem:[#allocation10 + $0x100] sm:$0xff]
    %v4018 = vld [vmem:[#allocation10 + $0x108] sm:$0xff]
    %v4019 = vld [vmem:[#allocation10 + $0x110] sm:$0xff]
    %v4020 = vld [vmem:[#allocation10 + $0x118] sm:$0xff]
    %v4021 = vld [vmem:[#allocation10 + $0x120] sm:$0xff]
    %v4022 = vld [vmem:[#allocation10 + $0x128] sm:$0xff]
    %v4023 = vld [vmem:[#allocation10 + $0x130] sm:$0xff]
    %v4024 = vld [vmem:[#allocation10 + $0x138] sm:$0xff]
    %v4025 = vld [vmem:[#allocation10 + $0x140] sm:$0xff]
    %v4026 = vld [vmem:[#allocation10 + $0x148] sm:$0xff]
    %v4027 = vld [vmem:[#allocation10 + $0x150] sm:$0xff]
    %v4028 = vld [vmem:[#allocation10 + $0x158] sm:$0xff]
    %v4029 = vld [vmem:[#allocation10 + $0x160] sm:$0xff]
    %v4030 = vld [vmem:[#allocation10 + $0x168] sm:$0xff]
    %v4031 = vld [vmem:[#allocation10 + $0x170] sm:$0xff]
    %v4032 = vld [vmem:[#allocation10 + $0x178] sm:$0xff]
    %v4033 = vld [vmem:[#allocation10 + $0x180] sm:$0xff]
    %v4034 = vld [vmem:[#allocation10 + $0x188] sm:$0xff]
    %v4035 = vld [vmem:[#allocation10 + $0x190] sm:$0xff]
    %v4036 = vld [vmem:[#allocation10 + $0x198] sm:$0xff]
    %v4037 = vld [vmem:[#allocation10 + $0x1a0] sm:$0xff]
    %v4038 = vld [vmem:[#allocation10 + $0x1a8] sm:$0xff]
    %v4039 = vld [vmem:[#allocation10 + $0x1b0] sm:$0xff]
    %v4040 = vld [vmem:[#allocation10 + $0x1b8] sm:$0xff]
    %v4041 = vld [vmem:[#allocation10 + $0x1c0] sm:$0xff]
    %v4042 = vld [vmem:[#allocation10 + $0x1c8] sm:$0xff]
    %v4043 = vld [vmem:[#allocation10 + $0x1d0] sm:$0xff]
    %v4044 = vld [vmem:[#allocation10 + $0x1d8] sm:$0xff]
    %v4045 = vld [vmem:[#allocation10 + $0x1e0] sm:$0xff]
    %v4046 = vld [vmem:[#allocation10 + $0x1e8] sm:$0xff]
    %v4047 = vld [vmem:[#allocation10 + $0x1f0] sm:$0xff]
    %v4048 = vld [vmem:[#allocation10 + $0x1f8] sm:$0xff]
    %4049 = vmatprep.subr.mxu0 %v4046
    %4050 = vmatpush1.msra.mxu0 %v4045
    %4051 = vmatprep.subr.mxu0 %v4042
    %4052 = vmatpush1.msra.mxu0 %v4041
    %4053 = vmatprep.subr.mxu0 %v4038
    %4054 = vmatpush1.msra.mxu0 %v4037
    %4055 = vmatprep.subr.mxu0 %v4034
    %4056 = vmatpush1.msra.mxu0 %v4033
    %4057 = vmatprep.subr.mxu0 %v4030
    %4058 = vmatpush1.msra.mxu0 %v4029
    %4059 = vmatprep.subr.mxu0 %v4026
    %4060 = vmatpush1.msra.mxu0 %v4025
    %4061 = vmatprep.subr.mxu0 %v4022
    %4062 = vmatpush1.msra.mxu0 %v4021
    %4063 = vmatprep.subr.mxu0 %v4018
    %4064 = vmatpush1.msra.mxu0 %v4017
    %4065 = vmatprep.subr.mxu0 %v4014
    %4066 = vmatpush1.msra.mxu0 %v4013
    %4067 = vmatprep.subr.mxu0 %v4010
    %4068 = vmatpush1.msra.mxu0 %v4009
    %4069 = vmatprep.subr.mxu0 %v4006
    %4070 = vmatpush1.msra.mxu0 %v4005
    %4071 = vmatprep.subr.mxu0 %v4002
    %4072 = vmatpush1.msra.mxu0 %v4001
    %4073 = vmatprep.subr.mxu0 %v3998
    %4074 = vmatpush1.msra.mxu0 %v3997
    %4075 = vmatprep.subr.mxu0 %v3994
    %4076 = vmatpush1.msra.mxu0 %v3993
    %4077 = vmatprep.subr.mxu0 %v3990
    %4078 = vmatpush1.msra.mxu0 %v3989
    %4079 = vmatprep.subr.mxu0 %v3986
    %4080 = vmatpush1.msra.mxu0 %v3985
    %4081 = vmatprep.subr.mxu0 0.0
    %4082 = vmatpush2.msra.mxu0 0.0
    %4083 = vmatprep.subr.mxu0 0.0
    %4084 = vmatpush2.msra.mxu0 0.0
    %4085 = vmatprep.subr.mxu0 0.0
    %4086 = vmatpush2.msra.mxu0 0.0
    %4087 = vmatprep.subr.mxu0 0.0
    %4088 = vmatpush2.msra.mxu0 0.0
    %4089 = vmatprep.subr.mxu0 0.0
    %4090 = vmatpush2.msra.mxu0 0.0
    %4091 = vmatprep.subr.mxu0 0.0
    %4092 = vmatpush2.msra.mxu0 0.0
    %4093 = vmatprep.subr.mxu0 0.0
    %4094 = vmatpush2.msra.mxu0 0.0
    %4095 = vmatprep.subr.mxu0 0.0
    %4096 = vmatpush2.msra.mxu0 0.0
    %4097 = vmatprep.subr.mxu0 0.0
    %4098 = vmatpush2.msra.mxu0 0.0
    %4099 = vmatprep.subr.mxu0 0.0
    %4100 = vmatpush2.msra.mxu0 0.0
    %4101 = vmatprep.subr.mxu0 0.0
    %4102 = vmatpush2.msra.mxu0 0.0
    %4103 = vmatprep.subr.mxu0 0.0
    %4104 = vmatpush2.msra.mxu0 0.0
    %4105 = vmatprep.subr.mxu0 0.0
    %4106 = vmatpush2.msra.mxu0 0.0
    %4107 = vmatprep.subr.mxu0 0.0
    %4108 = vmatpush2.msra.mxu0 0.0
    %4109 = vmatprep.subr.mxu0 0.0
    %4110 = vmatpush2.msra.mxu0 0.0
    %4111 = vmatprep.subr.mxu0 0.0
    %4112 = vmatpush2.msra.mxu0 0.0
    %4113 = vmatprep.mubr.f32.mxu0 0.0
    %4114 = vmatmul.mubr.f32.gmra.mxu0 %v3984
    %v4115 = vpop.f32.mrf.mxu0
    %v4116 = vadd.f32 0.0, %v4115
    %v4117 = vpop.f32.mrf.mxu0
    %v4118 = vadd.f32 0.0, %v4117
    %4119 = vdwg.mxu0
    %4120 = vmatprep.subr.mxu0 %v4048
    %4121 = vmatpush1.msra.mxu0 %v4047
    %4122 = vmatprep.subr.mxu0 %v4044
    %4123 = vmatpush1.msra.mxu0 %v4043
    %4124 = vmatprep.subr.mxu0 %v4040
    %4125 = vmatpush1.msra.mxu0 %v4039
    %4126 = vmatprep.subr.mxu0 %v4036
    %4127 = vmatpush1.msra.mxu0 %v4035
    %4128 = vmatprep.subr.mxu0 %v4032
    %4129 = vmatpush1.msra.mxu0 %v4031
    %4130 = vmatprep.subr.mxu0 %v4028
    %4131 = vmatpush1.msra.mxu0 %v4027
    %4132 = vmatprep.subr.mxu0 %v4024
    %4133 = vmatpush1.msra.mxu0 %v4023
    %4134 = vmatprep.subr.mxu0 %v4020
    %4135 = vmatpush1.msra.mxu0 %v4019
    %4136 = vmatprep.subr.mxu0 %v4016
    %4137 = vmatpush1.msra.mxu0 %v4015
    %4138 = vmatprep.subr.mxu0 %v4012
    %4139 = vmatpush1.msra.mxu0 %v4011
    %4140 = vmatprep.subr.mxu0 %v4008
    %4141 = vmatpush1.msra.mxu0 %v4007
    %4142 = vmatprep.subr.mxu0 %v4004
    %4143 = vmatpush1.msra.mxu0 %v4003
    %4144 = vmatprep.subr.mxu0 %v4000
    %4145 = vmatpush1.msra.mxu0 %v3999
    %4146 = vmatprep.subr.mxu0 %v3996
    %4147 = vmatpush1.msra.mxu0 %v3995
    %4148 = vmatprep.subr.mxu0 %v3992
    %4149 = vmatpush1.msra.mxu0 %v3991
    %4150 = vmatprep.subr.mxu0 %v3988
    %4151 = vmatpush1.msra.mxu0 %v3987
    %4152 = vmatprep.subr.mxu0 0.0
    %4153 = vmatpush2.msra.mxu0 0.0
    %4154 = vmatprep.subr.mxu0 0.0
    %4155 = vmatpush2.msra.mxu0 0.0
    %4156 = vmatprep.subr.mxu0 0.0
    %4157 = vmatpush2.msra.mxu0 0.0
    %4158 = vmatprep.subr.mxu0 0.0
    %4159 = vmatpush2.msra.mxu0 0.0
    %4160 = vmatprep.subr.mxu0 0.0
    %4161 = vmatpush2.msra.mxu0 0.0
    %4162 = vmatprep.subr.mxu0 0.0
    %4163 = vmatpush2.msra.mxu0 0.0
    %4164 = vmatprep.subr.mxu0 0.0
    %4165 = vmatpush2.msra.mxu0 0.0
    %4166 = vmatprep.subr.mxu0 0.0
    %4167 = vmatpush2.msra.mxu0 0.0
    %4168 = vmatprep.subr.mxu0 0.0
    %4169 = vmatpush2.msra.mxu0 0.0
    %4170 = vmatprep.subr.mxu0 0.0
    %4171 = vmatpush2.msra.mxu0 0.0
    %4172 = vmatprep.subr.mxu0 0.0
    %4173 = vmatpush2.msra.mxu0 0.0
    %4174 = vmatprep.subr.mxu0 0.0
    %4175 = vmatpush2.msra.mxu0 0.0
    %4176 = vmatprep.subr.mxu0 0.0
    %4177 = vmatpush2.msra.mxu0 0.0
    %4178 = vmatprep.subr.mxu0 0.0
    %4179 = vmatpush2.msra.mxu0 0.0
    %4180 = vmatprep.subr.mxu0 0.0
    %4181 = vmatpush2.msra.mxu0 0.0
    %4182 = vmatprep.subr.mxu0 0.0
    %4183 = vmatpush2.msra.mxu0 0.0
    %4184 = vmatprep.mubr.f32.mxu0 0.0
    %4185 = vmatmul.mubr.f32.gmra.mxu0 %v3984
    %v4186 = vpop.f32.mrf.mxu0
    %v4187 = vadd.f32 0.0, %v4186
    %v4188 = vpop.f32.mrf.mxu0
    %v4189 = vadd.f32 0.0, %v4188
    %4190 = vdwg.mxu0
    %v4191 = vadd.f32 %v3980, %v4116
    %v4192 = vadd.f32 %v3981, %v4118
    %v4193 = vadd.f32 %v3982, %v4187
    %v4194 = vadd.f32 %v3983, %v4189
    %v4195 = vmul.f32 %v4191, 0.5
    %v4196 = vtanh.pop %v4195
    %v4197 = vmul.f32 %v4196, 0.5
    %v4198 = vadd.f32 %v4197, 0.5
    %v4199 = vmul.f32 %v4192, 0.5
    %v4200 = vtanh.pop %v4199
    %v4201 = vmul.f32 %v4200, 0.5
    %v4202 = vadd.f32 %v4201, 0.5
    %v4203 = vtanh.pop %v4193
    %v4204 = vmul.f32 %v4194, 0.5
    %v4205 = vtanh.pop %v4204
    %v4206 = vmul.f32 %v4205, 0.5
    %v4207 = vadd.f32 %v4206, 0.5
    %v4208 = vld [vmem:[#allocation5] sm:$0xff]
    %v4209 = vmul.f32 %v4202, %v4208
    %v4210 = vmul.f32 %v4198, %v4203
    %v4211 = vadd.f32 %v4209, %v4210
    %v4212 = vtanh.pop %v4211
    %v4213 = vmul.f32 %v4207, %v4212
    %4214 = vst [vmem:[#allocation5] sm:$0xff] %v4211
    %4215 = vst [vmem:[#allocation4] sm:$0xff] %v4213
    %4216 = vst [vmem:[%s1903] sm:$0xff] %v4213
    %v4217 = vld [vmem:[%s1907] sm:$0xff]
    %v4218 = vld [vmem:[%s1907 + $0x8] sm:$0xff]
    %v4219 = vld [vmem:[%s1907 + $0x10] sm:$0xff]
    %v4220 = vld [vmem:[%s1907 + $0x18] sm:$0xff]
    %v4221 = vld [vmem:[#allocation4] sm:$0xff]
    %v4222 = vld [vmem:[#allocation10] sm:$0xff]
    %v4223 = vld [vmem:[#allocation10 + $0x8] sm:$0xff]
    %v4224 = vld [vmem:[#allocation10 + $0x10] sm:$0xff]
    %v4225 = vld [vmem:[#allocation10 + $0x18] sm:$0xff]
    %v4226 = vld [vmem:[#allocation10 + $0x20] sm:$0xff]
    %v4227 = vld [vmem:[#allocation10 + $0x28] sm:$0xff]
    %v4228 = vld [vmem:[#allocation10 + $0x30] sm:$0xff]
    %v4229 = vld [vmem:[#allocation10 + $0x38] sm:$0xff]
    %v4230 = vld [vmem:[#allocation10 + $0x40] sm:$0xff]
    %v4231 = vld [vmem:[#allocation10 + $0x48] sm:$0xff]
    %v4232 = vld [vmem:[#allocation10 + $0x50] sm:$0xff]
    %v4233 = vld [vmem:[#allocation10 + $0x58] sm:$0xff]
    %v4234 = vld [vmem:[#allocation10 + $0x60] sm:$0xff]
    %v4235 = vld [vmem:[#allocation10 + $0x68] sm:$0xff]
    %v4236 = vld [vmem:[#allocation10 + $0x70] sm:$0xff]
    %v4237 = vld [vmem:[#allocation10 + $0x78] sm:$0xff]
    %v4238 = vld [vmem:[#allocation10 + $0x80] sm:$0xff]
    %v4239 = vld [vmem:[#allocation10 + $0x88] sm:$0xff]
    %v4240 = vld [vmem:[#allocation10 + $0x90] sm:$0xff]
    %v4241 = vld [vmem:[#allocation10 + $0x98] sm:$0xff]
    %v4242 = vld [vmem:[#allocation10 + $0xa0] sm:$0xff]
    %v4243 = vld [vmem:[#allocation10 + $0xa8] sm:$0xff]
    %v4244 = vld [vmem:[#allocation10 + $0xb0] sm:$0xff]
    %v4245 = vld [vmem:[#allocation10 + $0xb8] sm:$0xff]
    %v4246 = vld [vmem:[#allocation10 + $0xc0] sm:$0xff]
    %v4247 = vld [vmem:[#allocation10 + $0xc8] sm:$0xff]
    %v4248 = vld [vmem:[#allocation10 + $0xd0] sm:$0xff]
    %v4249 = vld [vmem:[#allocation10 + $0xd8] sm:$0xff]
    %v4250 = vld [vmem:[#allocation10 + $0xe0] sm:$0xff]
    %v4251 = vld [vmem:[#allocation10 + $0xe8] sm:$0xff]
    %v4252 = vld [vmem:[#allocation10 + $0xf0] sm:$0xff]
    %v4253 = vld [vmem:[#allocation10 + $0xf8] sm:$0xff]
    %v4254 = vld [vmem:[#allocation10 + $0x100] sm:$0xff]
    %v4255 = vld [vmem:[#allocation10 + $0x108] sm:$0xff]
    %v4256 = vld [vmem:[#allocation10 + $0x110] sm:$0xff]
    %v4257 = vld [vmem:[#allocation10 + $0x118] sm:$0xff]
    %v4258 = vld [vmem:[#allocation10 + $0x120] sm:$0xff]
    %v4259 = vld [vmem:[#allocation10 + $0x128] sm:$0xff]
    %v4260 = vld [vmem:[#allocation10 + $0x130] sm:$0xff]
    %v4261 = vld [vmem:[#allocation10 + $0x138] sm:$0xff]
    %v4262 = vld [vmem:[#allocation10 + $0x140] sm:$0xff]
    %v4263 = vld [vmem:[#allocation10 + $0x148] sm:$0xff]
    %v4264 = vld [vmem:[#allocation10 + $0x150] sm:$0xff]
    %v4265 = vld [vmem:[#allocation10 + $0x158] sm:$0xff]
    %v4266 = vld [vmem:[#allocation10 + $0x160] sm:$0xff]
    %v4267 = vld [vmem:[#allocation10 + $0x168] sm:$0xff]
    %v4268 = vld [vmem:[#allocation10 + $0x170] sm:$0xff]
    %v4269 = vld [vmem:[#allocation10 + $0x178] sm:$0xff]
    %v4270 = vld [vmem:[#allocation10 + $0x180] sm:$0xff]
    %v4271 = vld [vmem:[#allocation10 + $0x188] sm:$0xff]
    %v4272 = vld [vmem:[#allocation10 + $0x190] sm:$0xff]
    %v4273 = vld [vmem:[#allocation10 + $0x198] sm:$0xff]
    %v4274 = vld [vmem:[#allocation10 + $0x1a0] sm:$0xff]
    %v4275 = vld [vmem:[#allocation10 + $0x1a8] sm:$0xff]
    %v4276 = vld [vmem:[#allocation10 + $0x1b0] sm:$0xff]
    %v4277 = vld [vmem:[#allocation10 + $0x1b8] sm:$0xff]
    %v4278 = vld [vmem:[#allocation10 + $0x1c0] sm:$0xff]
    %v4279 = vld [vmem:[#allocation10 + $0x1c8] sm:$0xff]
    %v4280 = vld [vmem:[#allocation10 + $0x1d0] sm:$0xff]
    %v4281 = vld [vmem:[#allocation10 + $0x1d8] sm:$0xff]
    %v4282 = vld [vmem:[#allocation10 + $0x1e0] sm:$0xff]
    %v4283 = vld [vmem:[#allocation10 + $0x1e8] sm:$0xff]
    %v4284 = vld [vmem:[#allocation10 + $0x1f0] sm:$0xff]
    %v4285 = vld [vmem:[#allocation10 + $0x1f8] sm:$0xff]
    %4286 = vmatprep.subr.mxu0 %v4283
    %4287 = vmatpush1.msra.mxu0 %v4282
    %4288 = vmatprep.subr.mxu0 %v4279
    %4289 = vmatpush1.msra.mxu0 %v4278
    %4290 = vmatprep.subr.mxu0 %v4275
    %4291 = vmatpush1.msra.mxu0 %v4274
    %4292 = vmatprep.subr.mxu0 %v4271
    %4293 = vmatpush1.msra.mxu0 %v4270
    %4294 = vmatprep.subr.mxu0 %v4267
    %4295 = vmatpush1.msra.mxu0 %v4266
    %4296 = vmatprep.subr.mxu0 %v4263
    %4297 = vmatpush1.msra.mxu0 %v4262
    %4298 = vmatprep.subr.mxu0 %v4259
    %4299 = vmatpush1.msra.mxu0 %v4258
    %4300 = vmatprep.subr.mxu0 %v4255
    %4301 = vmatpush1.msra.mxu0 %v4254
    %4302 = vmatprep.subr.mxu0 %v4251
    %4303 = vmatpush1.msra.mxu0 %v4250
    %4304 = vmatprep.subr.mxu0 %v4247
    %4305 = vmatpush1.msra.mxu0 %v4246
    %4306 = vmatprep.subr.mxu0 %v4243
    %4307 = vmatpush1.msra.mxu0 %v4242
    %4308 = vmatprep.subr.mxu0 %v4239
    %4309 = vmatpush1.msra.mxu0 %v4238
    %4310 = vmatprep.subr.mxu0 %v4235
    %4311 = vmatpush1.msra.mxu0 %v4234
    %4312 = vmatprep.subr.mxu0 %v4231
    %4313 = vmatpush1.msra.mxu0 %v4230
    %4314 = vmatprep.subr.mxu0 %v4227
    %4315 = vmatpush1.msra.mxu0 %v4226
    %4316 = vmatprep.subr.mxu0 %v4223
    %4317 = vmatpush1.msra.mxu0 %v4222
    %4318 = vmatprep.subr.mxu0 0.0
    %4319 = vmatpush2.msra.mxu0 0.0
    %4320 = vmatprep.subr.mxu0 0.0
    %4321 = vmatpush2.msra.mxu0 0.0
    %4322 = vmatprep.subr.mxu0 0.0
    %4323 = vmatpush2.msra.mxu0 0.0
    %4324 = vmatprep.subr.mxu0 0.0
    %4325 = vmatpush2.msra.mxu0 0.0
    %4326 = vmatprep.subr.mxu0 0.0
    %4327 = vmatpush2.msra.mxu0 0.0
    %4328 = vmatprep.subr.mxu0 0.0
    %4329 = vmatpush2.msra.mxu0 0.0
    %4330 = vmatprep.subr.mxu0 0.0
    %4331 = vmatpush2.msra.mxu0 0.0
    %4332 = vmatprep.subr.mxu0 0.0
    %4333 = vmatpush2.msra.mxu0 0.0
    %4334 = vmatprep.subr.mxu0 0.0
    %4335 = vmatpush2.msra.mxu0 0.0
    %4336 = vmatprep.subr.mxu0 0.0
    %4337 = vmatpush2.msra.mxu0 0.0
    %4338 = vmatprep.subr.mxu0 0.0
    %4339 = vmatpush2.msra.mxu0 0.0
    %4340 = vmatprep.subr.mxu0 0.0
    %4341 = vmatpush2.msra.mxu0 0.0
    %4342 = vmatprep.subr.mxu0 0.0
    %4343 = vmatpush2.msra.mxu0 0.0
    %4344 = vmatprep.subr.mxu0 0.0
    %4345 = vmatpush2.msra.mxu0 0.0
    %4346 = vmatprep.subr.mxu0 0.0
    %4347 = vmatpush2.msra.mxu0 0.0
    %4348 = vmatprep.subr.mxu0 0.0
    %4349 = vmatpush2.msra.mxu0 0.0
    %4350 = vmatprep.mubr.f32.mxu0 0.0
    %4351 = vmatmul.mubr.f32.gmra.mxu0 %v4221
    %v4352 = vpop.f32.mrf.mxu0
    %v4353 = vadd.f32 0.0, %v4352
    %v4354 = vpop.f32.mrf.mxu0
    %v4355 = vadd.f32 0.0, %v4354
    %4356 = vdwg.mxu0
    %4357 = vmatprep.subr.mxu0 %v4285
    %4358 = vmatpush1.msra.mxu0 %v4284
    %4359 = vmatprep.subr.mxu0 %v4281
    %4360 = vmatpush1.msra.mxu0 %v4280
    %4361 = vmatprep.subr.mxu0 %v4277
    %4362 = vmatpush1.msra.mxu0 %v4276
    %4363 = vmatprep.subr.mxu0 %v4273
    %4364 = vmatpush1.msra.mxu0 %v4272
    %4365 = vmatprep.subr.mxu0 %v4269
    %4366 = vmatpush1.msra.mxu0 %v4268
    %4367 = vmatprep.subr.mxu0 %v4265
    %4368 = vmatpush1.msra.mxu0 %v4264
    %4369 = vmatprep.subr.mxu0 %v4261
    %4370 = vmatpush1.msra.mxu0 %v4260
    %4371 = vmatprep.subr.mxu0 %v4257
    %4372 = vmatpush1.msra.mxu0 %v4256
    %4373 = vmatprep.subr.mxu0 %v4253
    %4374 = vmatpush1.msra.mxu0 %v4252
    %4375 = vmatprep.subr.mxu0 %v4249
    %4376 = vmatpush1.msra.mxu0 %v4248
    %4377 = vmatprep.subr.mxu0 %v4245
    %4378 = vmatpush1.msra.mxu0 %v4244
    %4379 = vmatprep.subr.mxu0 %v4241
    %4380 = vmatpush1.msra.mxu0 %v4240
    %4381 = vmatprep.subr.mxu0 %v4237
    %4382 = vmatpush1.msra.mxu0 %v4236
    %4383 = vmatprep.subr.mxu0 %v4233
    %4384 = vmatpush1.msra.mxu0 %v4232
    %4385 = vmatprep.subr.mxu0 %v4229
    %4386 = vmatpush1.msra.mxu0 %v4228
    %4387 = vmatprep.subr.mxu0 %v4225
    %4388 = vmatpush1.msra.mxu0 %v4224
    %4389 = vmatprep.subr.mxu0 0.0
    %4390 = vmatpush2.msra.mxu0 0.0
    %4391 = vmatprep.subr.mxu0 0.0
    %4392 = vmatpush2.msra.mxu0 0.0
    %4393 = vmatprep.subr.mxu0 0.0
    %4394 = vmatpush2.msra.mxu0 0.0
    %4395 = vmatprep.subr.mxu0 0.0
    %4396 = vmatpush2.msra.mxu0 0.0
    %4397 = vmatprep.subr.mxu0 0.0
    %4398 = vmatpush2.msra.mxu0 0.0
    %4399 = vmatprep.subr.mxu0 0.0
    %4400 = vmatpush2.msra.mxu0 0.0
    %4401 = vmatprep.subr.mxu0 0.0
    %4402 = vmatpush2.msra.mxu0 0.0
    %4403 = vmatprep.subr.mxu0 0.0
    %4404 = vmatpush2.msra.mxu0 0.0
    %4405 = vmatprep.subr.mxu0 0.0
    %4406 = vmatpush2.msra.mxu0 0.0
    %4407 = vmatprep.subr.mxu0 0.0
    %4408 = vmatpush2.msra.mxu0 0.0
    %4409 = vmatprep.subr.mxu0 0.0
    %4410 = vmatpush2.msra.mxu0 0.0
    %4411 = vmatprep.subr.mxu0 0.0
    %4412 = vmatpush2.msra.mxu0 0.0
    %4413 = vmatprep.subr.mxu0 0.0
    %4414 = vmatpush2.msra.mxu0 0.0
    %4415 = vmatprep.subr.mxu0 0.0
    %4416 = vmatpush2.msra.mxu0 0.0
    %4417 = vmatprep.subr.mxu0 0.0
    %4418 = vmatpush2.msra.mxu0 0.0
    %4419 = vmatprep.subr.mxu0 0.0
    %4420 = vmatpush2.msra.mxu0 0.0
    %4421 = vmatprep.mubr.f32.mxu0 0.0
    %4422 = vmatmul.mubr.f32.gmra.mxu0 %v4221
    %v4423 = vpop.f32.mrf.mxu0
    %v4424 = vadd.f32 0.0, %v4423
    %v4425 = vpop.f32.mrf.mxu0
    %v4426 = vadd.f32 0.0, %v4425
    %4427 = vdwg.mxu0
    %v4428 = vadd.f32 %v4217, %v4353
    %v4429 = vadd.f32 %v4218, %v4355
    %v4430 = vadd.f32 %v4219, %v4424
    %v4431 = vadd.f32 %v4220, %v4426
    %v4432 = vmul.f32 %v4428, 0.5
    %v4433 = vtanh.pop %v4432
    %v4434 = vmul.f32 %v4433, 0.5
    %v4435 = vadd.f32 %v4434, 0.5
    %v4436 = vmul.f32 %v4429, 0.5
    %v4437 = vtanh.pop %v4436
    %v4438 = vmul.f32 %v4437, 0.5
    %v4439 = vadd.f32 %v4438, 0.5
    %v4440 = vtanh.pop %v4430
    %v4441 = vmul.f32 %v4431, 0.5
    %v4442 = vtanh.pop %v4441
    %v4443 = vmul.f32 %v4442, 0.5
    %v4444 = vadd.f32 %v4443, 0.5
    %v4445 = vld [vmem:[#allocation5] sm:$0xff]
    %v4446 = vmul.f32 %v4439, %v4445
    %v4447 = vmul.f32 %v4435, %v4440
    %v4448 = vadd.f32 %v4446, %v4447
    %v4449 = vtanh.pop %v4448
    %v4450 = vmul.f32 %v4444, %v4449
    %4451 = vst [vmem:[#allocation5] sm:$0xff] %v4448
    %4452 = vst [vmem:[#allocation4] sm:$0xff] %v4450
    %4453 = vst [vmem:[%s2144] sm:$0xff] %v4450
    %v4454 = vld [vmem:[%s2148] sm:$0xff]
    %v4455 = vld [vmem:[%s2148 + $0x8] sm:$0xff]
    %v4456 = vld [vmem:[%s2148 + $0x10] sm:$0xff]
    %v4457 = vld [vmem:[%s2148 + $0x18] sm:$0xff]
    %v4458 = vld [vmem:[#allocation4] sm:$0xff]
    %v4459 = vld [vmem:[#allocation10] sm:$0xff]
    %v4460 = vld [vmem:[#allocation10 + $0x8] sm:$0xff]
    %v4461 = vld [vmem:[#allocation10 + $0x10] sm:$0xff]
    %v4462 = vld [vmem:[#allocation10 + $0x18] sm:$0xff]
    %v4463 = vld [vmem:[#allocation10 + $0x20] sm:$0xff]
    %v4464 = vld [vmem:[#allocation10 + $0x28] sm:$0xff]
    %v4465 = vld [vmem:[#allocation10 + $0x30] sm:$0xff]
    %v4466 = vld [vmem:[#allocation10 + $0x38] sm:$0xff]
    %v4467 = vld [vmem:[#allocation10 + $0x40] sm:$0xff]
    %v4468 = vld [vmem:[#allocation10 + $0x48] sm:$0xff]
    %v4469 = vld [vmem:[#allocation10 + $0x50] sm:$0xff]
    %v4470 = vld [vmem:[#allocation10 + $0x58] sm:$0xff]
    %v4471 = vld [vmem:[#allocation10 + $0x60] sm:$0xff]
    %v4472 = vld [vmem:[#allocation10 + $0x68] sm:$0xff]
    %v4473 = vld [vmem:[#allocation10 + $0x70] sm:$0xff]
    %v4474 = vld [vmem:[#allocation10 + $0x78] sm:$0xff]
    %v4475 = vld [vmem:[#allocation10 + $0x80] sm:$0xff]
    %v4476 = vld [vmem:[#allocation10 + $0x88] sm:$0xff]
    %v4477 = vld [vmem:[#allocation10 + $0x90] sm:$0xff]
    %v4478 = vld [vmem:[#allocation10 + $0x98] sm:$0xff]
    %v4479 = vld [vmem:[#allocation10 + $0xa0] sm:$0xff]
    %v4480 = vld [vmem:[#allocation10 + $0xa8] sm:$0xff]
    %v4481 = vld [vmem:[#allocation10 + $0xb0] sm:$0xff]
    %v4482 = vld [vmem:[#allocation10 + $0xb8] sm:$0xff]
    %v4483 = vld [vmem:[#allocation10 + $0xc0] sm:$0xff]
    %v4484 = vld [vmem:[#allocation10 + $0xc8] sm:$0xff]
    %v4485 = vld [vmem:[#allocation10 + $0xd0] sm:$0xff]
    %v4486 = vld [vmem:[#allocation10 + $0xd8] sm:$0xff]
    %v4487 = vld [vmem:[#allocation10 + $0xe0] sm:$0xff]
    %v4488 = vld [vmem:[#allocation10 + $0xe8] sm:$0xff]
    %v4489 = vld [vmem:[#allocation10 + $0xf0] sm:$0xff]
    %v4490 = vld [vmem:[#allocation10 + $0xf8] sm:$0xff]
    %v4491 = vld [vmem:[#allocation10 + $0x100] sm:$0xff]
    %v4492 = vld [vmem:[#allocation10 + $0x108] sm:$0xff]
    %v4493 = vld [vmem:[#allocation10 + $0x110] sm:$0xff]
    %v4494 = vld [vmem:[#allocation10 + $0x118] sm:$0xff]
    %v4495 = vld [vmem:[#allocation10 + $0x120] sm:$0xff]
    %v4496 = vld [vmem:[#allocation10 + $0x128] sm:$0xff]
    %v4497 = vld [vmem:[#allocation10 + $0x130] sm:$0xff]
    %v4498 = vld [vmem:[#allocation10 + $0x138] sm:$0xff]
    %v4499 = vld [vmem:[#allocation10 + $0x140] sm:$0xff]
    %v4500 = vld [vmem:[#allocation10 + $0x148] sm:$0xff]
    %v4501 = vld [vmem:[#allocation10 + $0x150] sm:$0xff]
    %v4502 = vld [vmem:[#allocation10 + $0x158] sm:$0xff]
    %v4503 = vld [vmem:[#allocation10 + $0x160] sm:$0xff]
    %v4504 = vld [vmem:[#allocation10 + $0x168] sm:$0xff]
    %v4505 = vld [vmem:[#allocation10 + $0x170] sm:$0xff]
    %v4506 = vld [vmem:[#allocation10 + $0x178] sm:$0xff]
    %v4507 = vld [vmem:[#allocation10 + $0x180] sm:$0xff]
    %v4508 = vld [vmem:[#allocation10 + $0x188] sm:$0xff]
    %v4509 = vld [vmem:[#allocation10 + $0x190] sm:$0xff]
    %v4510 = vld [vmem:[#allocation10 + $0x198] sm:$0xff]
    %v4511 = vld [vmem:[#allocation10 + $0x1a0] sm:$0xff]
    %v4512 = vld [vmem:[#allocation10 + $0x1a8] sm:$0xff]
    %v4513 = vld [vmem:[#allocation10 + $0x1b0] sm:$0xff]
    %v4514 = vld [vmem:[#allocation10 + $0x1b8] sm:$0xff]
    %v4515 = vld [vmem:[#allocation10 + $0x1c0] sm:$0xff]
    %v4516 = vld [vmem:[#allocation10 + $0x1c8] sm:$0xff]
    %v4517 = vld [vmem:[#allocation10 + $0x1d0] sm:$0xff]
    %v4518 = vld [vmem:[#allocation10 + $0x1d8] sm:$0xff]
    %v4519 = vld [vmem:[#allocation10 + $0x1e0] sm:$0xff]
    %v4520 = vld [vmem:[#allocation10 + $0x1e8] sm:$0xff]
    %v4521 = vld [vmem:[#allocation10 + $0x1f0] sm:$0xff]
    %v4522 = vld [vmem:[#allocation10 + $0x1f8] sm:$0xff]
    %4523 = vmatprep.subr.mxu0 %v4520
    %4524 = vmatpush1.msra.mxu0 %v4519
    %4525 = vmatprep.subr.mxu0 %v4516
    %4526 = vmatpush1.msra.mxu0 %v4515
    %4527 = vmatprep.subr.mxu0 %v4512
    %4528 = vmatpush1.msra.mxu0 %v4511
    %4529 = vmatprep.subr.mxu0 %v4508
    %4530 = vmatpush1.msra.mxu0 %v4507
    %4531 = vmatprep.subr.mxu0 %v4504
    %4532 = vmatpush1.msra.mxu0 %v4503
    %4533 = vmatprep.subr.mxu0 %v4500
    %4534 = vmatpush1.msra.mxu0 %v4499
    %4535 = vmatprep.subr.mxu0 %v4496
    %4536 = vmatpush1.msra.mxu0 %v4495
    %4537 = vmatprep.subr.mxu0 %v4492
    %4538 = vmatpush1.msra.mxu0 %v4491
    %4539 = vmatprep.subr.mxu0 %v4488
    %4540 = vmatpush1.msra.mxu0 %v4487
    %4541 = vmatprep.subr.mxu0 %v4484
    %4542 = vmatpush1.msra.mxu0 %v4483
    %4543 = vmatprep.subr.mxu0 %v4480
    %4544 = vmatpush1.msra.mxu0 %v4479
    %4545 = vmatprep.subr.mxu0 %v4476
    %4546 = vmatpush1.msra.mxu0 %v4475
    %4547 = vmatprep.subr.mxu0 %v4472
    %4548 = vmatpush1.msra.mxu0 %v4471
    %4549 = vmatprep.subr.mxu0 %v4468
    %4550 = vmatpush1.msra.mxu0 %v4467
    %4551 = vmatprep.subr.mxu0 %v4464
    %4552 = vmatpush1.msra.mxu0 %v4463
    %4553 = vmatprep.subr.mxu0 %v4460
    %4554 = vmatpush1.msra.mxu0 %v4459
    %4555 = vmatprep.subr.mxu0 0.0
    %4556 = vmatpush2.msra.mxu0 0.0
    %4557 = vmatprep.subr.mxu0 0.0
    %4558 = vmatpush2.msra.mxu0 0.0
    %4559 = vmatprep.subr.mxu0 0.0
    %4560 = vmatpush2.msra.mxu0 0.0
    %4561 = vmatprep.subr.mxu0 0.0
    %4562 = vmatpush2.msra.mxu0 0.0
    %4563 = vmatprep.subr.mxu0 0.0
    %4564 = vmatpush2.msra.mxu0 0.0
    %4565 = vmatprep.subr.mxu0 0.0
    %4566 = vmatpush2.msra.mxu0 0.0
    %4567 = vmatprep.subr.mxu0 0.0
    %4568 = vmatpush2.msra.mxu0 0.0
    %4569 = vmatprep.subr.mxu0 0.0
    %4570 = vmatpush2.msra.mxu0 0.0
    %4571 = vmatprep.subr.mxu0 0.0
    %4572 = vmatpush2.msra.mxu0 0.0
    %4573 = vmatprep.subr.mxu0 0.0
    %4574 = vmatpush2.msra.mxu0 0.0
    %4575 = vmatprep.subr.mxu0 0.0
    %4576 = vmatpush2.msra.mxu0 0.0
    %4577 = vmatprep.subr.mxu0 0.0
    %4578 = vmatpush2.msra.mxu0 0.0
    %4579 = vmatprep.subr.mxu0 0.0
    %4580 = vmatpush2.msra.mxu0 0.0
    %4581 = vmatprep.subr.mxu0 0.0
    %4582 = vmatpush2.msra.mxu0 0.0
    %4583 = vmatprep.subr.mxu0 0.0
    %4584 = vmatpush2.msra.mxu0 0.0
    %4585 = vmatprep.subr.mxu0 0.0
    %4586 = vmatpush2.msra.mxu0 0.0
    %4587 = vmatprep.mubr.f32.mxu0 0.0
    %4588 = vmatmul.mubr.f32.gmra.mxu0 %v4458
    %v4589 = vpop.f32.mrf.mxu0
    %v4590 = vadd.f32 0.0, %v4589
    %v4591 = vpop.f32.mrf.mxu0
    %v4592 = vadd.f32 0.0, %v4591
    %4593 = vdwg.mxu0
    %4594 = vmatprep.subr.mxu0 %v4522
    %4595 = vmatpush1.msra.mxu0 %v4521
    %4596 = vmatprep.subr.mxu0 %v4518
    %4597 = vmatpush1.msra.mxu0 %v4517
    %4598 = vmatprep.subr.mxu0 %v4514
    %4599 = vmatpush1.msra.mxu0 %v4513
    %4600 = vmatprep.subr.mxu0 %v4510
    %4601 = vmatpush1.msra.mxu0 %v4509
    %4602 = vmatprep.subr.mxu0 %v4506
    %4603 = vmatpush1.msra.mxu0 %v4505
    %4604 = vmatprep.subr.mxu0 %v4502
    %4605 = vmatpush1.msra.mxu0 %v4501
    %4606 = vmatprep.subr.mxu0 %v4498
    %4607 = vmatpush1.msra.mxu0 %v4497
    %4608 = vmatprep.subr.mxu0 %v4494
    %4609 = vmatpush1.msra.mxu0 %v4493
    %4610 = vmatprep.subr.mxu0 %v4490
    %4611 = vmatpush1.msra.mxu0 %v4489
    %4612 = vmatprep.subr.mxu0 %v4486
    %4613 = vmatpush1.msra.mxu0 %v4485
    %4614 = vmatprep.subr.mxu0 %v4482
    %4615 = vmatpush1.msra.mxu0 %v4481
    %4616 = vmatprep.subr.mxu0 %v4478
    %4617 = vmatpush1.msra.mxu0 %v4477
    %4618 = vmatprep.subr.mxu0 %v4474
    %4619 = vmatpush1.msra.mxu0 %v4473
    %4620 = vmatprep.subr.mxu0 %v4470
    %4621 = vmatpush1.msra.mxu0 %v4469
    %4622 = vmatprep.subr.mxu0 %v4466
    %4623 = vmatpush1.msra.mxu0 %v4465
    %4624 = vmatprep.subr.mxu0 %v4462
    %4625 = vmatpush1.msra.mxu0 %v4461
    %4626 = vmatprep.subr.mxu0 0.0
    %4627 = vmatpush2.msra.mxu0 0.0
    %4628 = vmatprep.subr.mxu0 0.0
    %4629 = vmatpush2.msra.mxu0 0.0
    %4630 = vmatprep.subr.mxu0 0.0
    %4631 = vmatpush2.msra.mxu0 0.0
    %4632 = vmatprep.subr.mxu0 0.0
    %4633 = vmatpush2.msra.mxu0 0.0
    %4634 = vmatprep.subr.mxu0 0.0
    %4635 = vmatpush2.msra.mxu0 0.0
    %4636 = vmatprep.subr.mxu0 0.0
    %4637 = vmatpush2.msra.mxu0 0.0
    %4638 = vmatprep.subr.mxu0 0.0
    %4639 = vmatpush2.msra.mxu0 0.0
    %4640 = vmatprep.subr.mxu0 0.0
    %4641 = vmatpush2.msra.mxu0 0.0
    %4642 = vmatprep.subr.mxu0 0.0
    %4643 = vmatpush2.msra.mxu0 0.0
    %4644 = vmatprep.subr.mxu0 0.0
    %4645 = vmatpush2.msra.mxu0 0.0
    %4646 = vmatprep.subr.mxu0 0.0
    %4647 = vmatpush2.msra.mxu0 0.0
    %4648 = vmatprep.subr.mxu0 0.0
    %4649 = vmatpush2.msra.mxu0 0.0
    %4650 = vmatprep.subr.mxu0 0.0
    %4651 = vmatpush2.msra.mxu0 0.0
    %4652 = vmatprep.subr.mxu0 0.0
    %4653 = vmatpush2.msra.mxu0 0.0
    %4654 = vmatprep.subr.mxu0 0.0
    %4655 = vmatpush2.msra.mxu0 0.0
    %4656 = vmatprep.subr.mxu0 0.0
    %4657 = vmatpush2.msra.mxu0 0.0
    %4658 = vmatprep.mubr.f32.mxu0 0.0
    %4659 = vmatmul.mubr.f32.gmra.mxu0 %v4458
    %v4660 = vpop.f32.mrf.mxu0
    %v4661 = vadd.f32 0.0, %v4660
    %v4662 = vpop.f32.mrf.mxu0
    %v4663 = vadd.f32 0.0, %v4662
    %4664 = vdwg.mxu0
    %v4665 = vadd.f32 %v4454, %v4590
    %v4666 = vadd.f32 %v4455, %v4592
    %v4667 = vadd.f32 %v4456, %v4661
    %v4668 = vadd.f32 %v4457, %v4663
    %v4669 = vmul.f32 %v4665, 0.5
    %v4670 = vtanh.pop %v4669
    %v4671 = vmul.f32 %v4670, 0.5
    %v4672 = vadd.f32 %v4671, 0.5
    %v4673 = vmul.f32 %v4666, 0.5
    %v4674 = vtanh.pop %v4673
    %v4675 = vmul.f32 %v4674, 0.5
    %v4676 = vadd.f32 %v4675, 0.5
    %v4677 = vtanh.pop %v4667
    %v4678 = vmul.f32 %v4668, 0.5
    %v4679 = vtanh.pop %v4678
    %v4680 = vmul.f32 %v4679, 0.5
    %v4681 = vadd.f32 %v4680, 0.5
    %v4682 = vld [vmem:[#allocation5] sm:$0xff]
    %v4683 = vmul.f32 %v4676, %v4682
    %v4684 = vmul.f32 %v4672, %v4677
    %v4685 = vadd.f32 %v4683, %v4684
    %v4686 = vtanh.pop %v4685
    %v4687 = vmul.f32 %v4681, %v4686
    %4688 = vst [vmem:[#allocation5] sm:$0xff] %v4685
    %4689 = vst [vmem:[#allocation4] sm:$0xff] %v4687
    %4690 = vst [vmem:[%s2385] sm:$0xff] %v4687
    %v4691 = vld [vmem:[#allocation2] sm:$0xff]
    %v4692 = vld [vmem:[#allocation2 + $0x8] sm:$0xff]
    %v4693 = vld [vmem:[#allocation2 + $0x10] sm:$0xff]
    %v4694 = vld [vmem:[#allocation2 + $0x18] sm:$0xff]
    %v4695 = vld [vmem:[#allocation2 + $0x20] sm:$0xff]
    %v4696 = vld [vmem:[#allocation2 + $0x28] sm:$0xff]
    %v4697 = vld [vmem:[#allocation2 + $0x30] sm:$0xff]
    %v4698 = vld [vmem:[#allocation2 + $0x38] sm:$0xff]
    %v4699 = vld [vmem:[#allocation11] sm:$0xff]
    %v4700 = vld [vmem:[#allocation11 + $0x8] sm:$0xff]
    %v4701 = vld [vmem:[#allocation11 + $0x10] sm:$0xff]
    %v4702 = vld [vmem:[#allocation11 + $0x18] sm:$0xff]
    %v4703 = vld [vmem:[#allocation11 + $0x20] sm:$0xff]
    %v4704 = vld [vmem:[#allocation11 + $0x28] sm:$0xff]
    %v4705 = vld [vmem:[#allocation11 + $0x30] sm:$0xff]
    %v4706 = vld [vmem:[#allocation11 + $0x38] sm:$0xff]
    %v4707 = vld [vmem:[#allocation11 + $0x40] sm:$0xff]
    %v4708 = vld [vmem:[#allocation11 + $0x48] sm:$0xff]
    %v4709 = vld [vmem:[#allocation11 + $0x50] sm:$0xff]
    %v4710 = vld [vmem:[#allocation11 + $0x58] sm:$0xff]
    %v4711 = vld [vmem:[#allocation11 + $0x60] sm:$0xff]
    %v4712 = vld [vmem:[#allocation11 + $0x68] sm:$0xff]
    %v4713 = vld [vmem:[#allocation11 + $0x70] sm:$0xff]
    %v4714 = vld [vmem:[#allocation11 + $0x78] sm:$0xff]
    %v4715 = vld [vmem:[#allocation11 + $0x80] sm:$0xff]
    %v4716 = vld [vmem:[#allocation11 + $0x88] sm:$0xff]
    %v4717 = vld [vmem:[#allocation11 + $0x90] sm:$0xff]
    %v4718 = vld [vmem:[#allocation11 + $0x98] sm:$0xff]
    %v4719 = vld [vmem:[#allocation11 + $0xa0] sm:$0xff]
    %v4720 = vld [vmem:[#allocation11 + $0xa8] sm:$0xff]
    %v4721 = vld [vmem:[#allocation11 + $0xb0] sm:$0xff]
    %v4722 = vld [vmem:[#allocation11 + $0xb8] sm:$0xff]
    %v4723 = vld [vmem:[#allocation11 + $0xc0] sm:$0xff]
    %v4724 = vld [vmem:[#allocation11 + $0xc8] sm:$0xff]
    %v4725 = vld [vmem:[#allocation11 + $0xd0] sm:$0xff]
    %v4726 = vld [vmem:[#allocation11 + $0xd8] sm:$0xff]
    %v4727 = vld [vmem:[#allocation11 + $0xe0] sm:$0xff]
    %v4728 = vld [vmem:[#allocation11 + $0xe8] sm:$0xff]
    %v4729 = vld [vmem:[#allocation11 + $0xf0] sm:$0xff]
    %v4730 = vld [vmem:[#allocation11 + $0xf8] sm:$0xff]
    %v4731 = vpack.c.bf16 %v4692, %v4691
    %v4732 = vpack.c.bf16 %v4694, %v4693
    %v4733 = vpack.c.bf16 %v4696, %v4695
    %v4734 = vpack.c.bf16 %v4698, %v4697
    %v4735 = vld [vmem:[%s12] sm:$0xf]
    %v4737 = vlaneseq
    %v4738 = vshrl.u32 %v4737, 7
    %v4739 = vsub.s32 0, %v4738
    %v4740 = vrot.slane %v4735, %v4739
    %v4741 = vlaneseq
    %v4742 = vshrl.u32 %v4741, 7
    %v4743 = vsub.s32 1, %v4742
    %v4744 = vrot.slane %v4735, %v4743
    %v4745 = vlaneseq
    %v4746 = vshrl.u32 %v4745, 7
    %v4747 = vsub.s32 2, %v4746
    %v4748 = vrot.slane %v4735, %v4747
    %v4749 = vlaneseq
    %v4750 = vshrl.u32 %v4749, 7
    %v4751 = vsub.s32 3, %v4750
    %v4752 = vrot.slane %v4735, %v4751
    %v4789 = vunpack.c.l.b16 %v4699
    %v4790 = vunpack.c.h.b16 %v4699
    %v4791 = vunpack.c.l.b16 %v4700
    %v4792 = vunpack.c.h.b16 %v4700
    %v4793 = vunpack.c.l.b16 %v4701
    %v4794 = vunpack.c.h.b16 %v4701
    %v4795 = vunpack.c.l.b16 %v4702
    %v4796 = vunpack.c.h.b16 %v4702
    %v4797 = vunpack.c.l.b16 %v4703
    %v4798 = vunpack.c.h.b16 %v4703
    %v4799 = vunpack.c.l.b16 %v4704
    %v4800 = vunpack.c.h.b16 %v4704
    %v4801 = vunpack.c.l.b16 %v4705
    %v4802 = vunpack.c.h.b16 %v4705
    %v4803 = vunpack.c.l.b16 %v4706
    %v4804 = vunpack.c.h.b16 %v4706
    %v4805 = vunpack.c.l.b16 %v4707
    %v4806 = vunpack.c.h.b16 %v4707
    %v4807 = vunpack.c.l.b16 %v4708
    %v4808 = vunpack.c.h.b16 %v4708
    %v4809 = vunpack.c.l.b16 %v4709
    %v4810 = vunpack.c.h.b16 %v4709
    %v4811 = vunpack.c.l.b16 %v4710
    %v4812 = vunpack.c.h.b16 %v4710
    %v4813 = vunpack.c.l.b16 %v4711
    %v4814 = vunpack.c.h.b16 %v4711
    %v4815 = vunpack.c.l.b16 %v4712
    %v4816 = vunpack.c.h.b16 %v4712
    %v4817 = vunpack.c.l.b16 %v4713
    %v4818 = vunpack.c.h.b16 %v4713
    %v4819 = vunpack.c.l.b16 %v4714
    %v4820 = vunpack.c.h.b16 %v4714
    %v4821 = vunpack.c.l.b16 %v4715
    %v4822 = vunpack.c.h.b16 %v4715
    %v4823 = vunpack.c.l.b16 %v4716
    %v4824 = vunpack.c.h.b16 %v4716
    %v4825 = vunpack.c.l.b16 %v4717
    %v4826 = vunpack.c.h.b16 %v4717
    %v4827 = vunpack.c.l.b16 %v4718
    %v4828 = vunpack.c.h.b16 %v4718
    %v4829 = vunpack.c.l.b16 %v4719
    %v4830 = vunpack.c.h.b16 %v4719
    %v4831 = vunpack.c.l.b16 %v4720
    %v4832 = vunpack.c.h.b16 %v4720
    %v4833 = vunpack.c.l.b16 %v4721
    %v4834 = vunpack.c.h.b16 %v4721
    %v4835 = vunpack.c.l.b16 %v4722
    %v4836 = vunpack.c.h.b16 %v4722
    %v4837 = vunpack.c.l.b16 %v4723
    %v4838 = vunpack.c.h.b16 %v4723
    %v4839 = vunpack.c.l.b16 %v4724
    %v4840 = vunpack.c.h.b16 %v4724
    %v4841 = vunpack.c.l.b16 %v4725
    %v4842 = vunpack.c.h.b16 %v4725
    %v4843 = vunpack.c.l.b16 %v4726
    %v4844 = vunpack.c.h.b16 %v4726
    %v4845 = vunpack.c.l.b16 %v4727
    %v4846 = vunpack.c.h.b16 %v4727
    %v4847 = vunpack.c.l.b16 %v4728
    %v4848 = vunpack.c.h.b16 %v4728
    %v4849 = vunpack.c.l.b16 %v4729
    %v4850 = vunpack.c.h.b16 %v4729
    %v4851 = vunpack.c.l.b16 %v4730
    %v4852 = vunpack.c.h.b16 %v4730
    %v4853 = vpack.c.b16 %v4793, %v4789
    %v4854 = vpack.c.b16 %v4794, %v4790
    %v4855 = vpack.c.b16 %v4795, %v4791
    %v4856 = vpack.c.b16 %v4796, %v4792
    %v4857 = vpack.c.b16 %v4801, %v4797
    %v4858 = vpack.c.b16 %v4802, %v4798
    %v4859 = vpack.c.b16 %v4803, %v4799
    %v4860 = vpack.c.b16 %v4804, %v4800
    %v4861 = vpack.c.b16 %v4809, %v4805
    %v4862 = vpack.c.b16 %v4810, %v4806
    %v4863 = vpack.c.b16 %v4811, %v4807
    %v4864 = vpack.c.b16 %v4812, %v4808
    %v4865 = vpack.c.b16 %v4817, %v4813
    %v4866 = vpack.c.b16 %v4818, %v4814
    %v4867 = vpack.c.b16 %v4819, %v4815
    %v4868 = vpack.c.b16 %v4820, %v4816
    %v4869 = vpack.c.b16 %v4825, %v4821
    %v4870 = vpack.c.b16 %v4826, %v4822
    %v4871 = vpack.c.b16 %v4827, %v4823
    %v4872 = vpack.c.b16 %v4828, %v4824
    %v4873 = vpack.c.b16 %v4833, %v4829
    %v4874 = vpack.c.b16 %v4834, %v4830
    %v4875 = vpack.c.b16 %v4835, %v4831
    %v4876 = vpack.c.b16 %v4836, %v4832
    %v4877 = vpack.c.b16 %v4841, %v4837
    %v4878 = vpack.c.b16 %v4842, %v4838
    %v4879 = vpack.c.b16 %v4843, %v4839
    %v4880 = vpack.c.b16 %v4844, %v4840
    %v4881 = vpack.c.b16 %v4849, %v4845
    %v4882 = vpack.c.b16 %v4850, %v4846
    %v4883 = vpack.c.b16 %v4851, %v4847
    %v4884 = vpack.c.b16 %v4852, %v4848
    %4917 = vmatprep.subr.bf16.mxu0 %v4882
    %4918 = vmatpush1.bf16.msra.mxu0 %v4881
    %4919 = vmatprep.subr.bf16.mxu0 %v4878
    %4920 = vmatpush1.bf16.msra.mxu0 %v4877
    %4921 = vmatprep.subr.bf16.mxu0 %v4874
    %4922 = vmatpush1.bf16.msra.mxu0 %v4873
    %4923 = vmatprep.subr.bf16.mxu0 %v4870
    %4924 = vmatpush1.bf16.msra.mxu0 %v4869
    %4925 = vmatprep.subr.bf16.mxu0 %v4866
    %4926 = vmatpush1.bf16.msra.mxu0 %v4865
    %4927 = vmatprep.subr.bf16.mxu0 %v4862
    %4928 = vmatpush1.bf16.msra.mxu0 %v4861
    %4929 = vmatprep.subr.bf16.mxu0 %v4858
    %4930 = vmatpush1.bf16.msra.mxu0 %v4857
    %4931 = vmatprep.subr.bf16.mxu0 %v4854
    %4932 = vmatpush1.bf16.msra.mxu0 %v4853
    %4933 = vmatprep.subr.bf16.mxu0 0
    %4934 = vmatpush2.bf16.msra.mxu0 0
    %4935 = vmatprep.subr.bf16.mxu0 0
    %4936 = vmatpush2.bf16.msra.mxu0 0
    %4937 = vmatprep.subr.bf16.mxu0 0
    %4938 = vmatpush2.bf16.msra.mxu0 0
    %4939 = vmatprep.subr.bf16.mxu0 0
    %4940 = vmatpush2.bf16.msra.mxu0 0
    %4941 = vmatprep.subr.bf16.mxu0 0
    %4942 = vmatpush2.bf16.msra.mxu0 0
    %4943 = vmatprep.subr.bf16.mxu0 0
    %4944 = vmatpush2.bf16.msra.mxu0 0
    %4945 = vmatprep.subr.bf16.mxu0 0
    %4946 = vmatpush2.bf16.msra.mxu0 0
    %4947 = vmatprep.subr.bf16.mxu0 0
    %4948 = vmatpush2.bf16.msra.mxu0 0
    %4949 = vmatprep.mubr.bf16.mxu0 0
    %4950 = vmatmul.mubr.bf16.gmra.mxu0 %v4731
    %v4951 = vpop.f32.mrf.mxu0
    %v4952 = vadd.f32 %v4740, %v4951
    %v4953 = vpop.f32.mrf.mxu0
    %v4954 = vadd.f32 %v4744, %v4953
    %v4955 = vpop.f32.mrf.mxu0
    %v4956 = vadd.f32 %v4740, %v4955
    %v4957 = vpop.f32.mrf.mxu0
    %v4958 = vadd.f32 %v4744, %v4957
    %4959 = vmatprep.mubr.bf16.mxu0 0
    %4960 = vmatmul.mubr.bf16.gmra.mxu0 %v4732
    %v4961 = vpop.f32.mrf.mxu0
    %v4962 = vadd.f32 %v4740, %v4961
    %v4963 = vpop.f32.mrf.mxu0
    %v4964 = vadd.f32 %v4744, %v4963
    %v4965 = vpop.f32.mrf.mxu0
    %v4966 = vadd.f32 %v4740, %v4965
    %v4967 = vpop.f32.mrf.mxu0
    %v4968 = vadd.f32 %v4744, %v4967
    %4969 = vmatprep.mubr.bf16.mxu0 0
    %4970 = vmatmul.mubr.bf16.gmra.mxu0 %v4733
    %v4971 = vpop.f32.mrf.mxu0
    %v4972 = vadd.f32 %v4740, %v4971
    %v4973 = vpop.f32.mrf.mxu0
    %v4974 = vadd.f32 %v4744, %v4973
    %v4975 = vpop.f32.mrf.mxu0
    %v4976 = vadd.f32 %v4740, %v4975
    %v4977 = vpop.f32.mrf.mxu0
    %v4978 = vadd.f32 %v4744, %v4977
    %4979 = vmatprep.mubr.bf16.mxu0 0
    %4980 = vmatmul.mubr.bf16.gmra.mxu0 %v4734
    %v4981 = vpop.f32.mrf.mxu0
    %v4982 = vadd.f32 %v4740, %v4981
    %v4983 = vpop.f32.mrf.mxu0
    %v4984 = vadd.f32 %v4744, %v4983
    %v4985 = vpop.f32.mrf.mxu0
    %v4986 = vadd.f32 %v4740, %v4985
    %v4987 = vpop.f32.mrf.mxu0
    %v4988 = vadd.f32 %v4744, %v4987
    %4989 = vdwg.mxu0
    %4990 = vmatprep.subr.bf16.mxu0 %v4884
    %4991 = vmatpush1.bf16.msra.mxu0 %v4883
    %4992 = vmatprep.subr.bf16.mxu0 %v4880
    %4993 = vmatpush1.bf16.msra.mxu0 %v4879
    %4994 = vmatprep.subr.bf16.mxu0 %v4876
    %4995 = vmatpush1.bf16.msra.mxu0 %v4875
    %4996 = vmatprep.subr.bf16.mxu0 %v4872
    %4997 = vmatpush1.bf16.msra.mxu0 %v4871
    %4998 = vmatprep.subr.bf16.mxu0 %v4868
    %4999 = vmatpush1.bf16.msra.mxu0 %v4867
    %5000 = vmatprep.subr.bf16.mxu0 %v4864
    %5001 = vmatpush1.bf16.msra.mxu0 %v4863
    %5002 = vmatprep.subr.bf16.mxu0 %v4860
    %5003 = vmatpush1.bf16.msra.mxu0 %v4859
    %5004 = vmatprep.subr.bf16.mxu0 %v4856
    %5005 = vmatpush1.bf16.msra.mxu0 %v4855
    %5006 = vmatprep.subr.bf16.mxu0 0
    %5007 = vmatpush2.bf16.msra.mxu0 0
    %5008 = vmatprep.subr.bf16.mxu0 0
    %5009 = vmatpush2.bf16.msra.mxu0 0
    %5010 = vmatprep.subr.bf16.mxu0 0
    %5011 = vmatpush2.bf16.msra.mxu0 0
    %5012 = vmatprep.subr.bf16.mxu0 0
    %5013 = vmatpush2.bf16.msra.mxu0 0
    %5014 = vmatprep.subr.bf16.mxu0 0
    %5015 = vmatpush2.bf16.msra.mxu0 0
    %5016 = vmatprep.subr.bf16.mxu0 0
    %5017 = vmatpush2.bf16.msra.mxu0 0
    %5018 = vmatprep.subr.bf16.mxu0 0
    %5019 = vmatpush2.bf16.msra.mxu0 0
    %5020 = vmatprep.subr.bf16.mxu0 0
    %5021 = vmatpush2.bf16.msra.mxu0 0
    %5022 = vmatprep.mubr.bf16.mxu0 0
    %5023 = vmatmul.mubr.bf16.gmra.mxu0 %v4731
    %v5024 = vpop.f32.mrf.mxu0
    %v5025 = vadd.f32 %v4748, %v5024
    %v5026 = vpop.f32.mrf.mxu0
    %v5027 = vadd.f32 %v4752, %v5026
    %v5028 = vpop.f32.mrf.mxu0
    %v5029 = vadd.f32 %v4748, %v5028
    %v5030 = vpop.f32.mrf.mxu0
    %v5031 = vadd.f32 %v4752, %v5030
    %5032 = vmatprep.mubr.bf16.mxu0 0
    %5033 = vmatmul.mubr.bf16.gmra.mxu0 %v4732
    %v5034 = vpop.f32.mrf.mxu0
    %v5035 = vadd.f32 %v4748, %v5034
    %v5036 = vpop.f32.mrf.mxu0
    %v5037 = vadd.f32 %v4752, %v5036
    %v5038 = vpop.f32.mrf.mxu0
    %v5039 = vadd.f32 %v4748, %v5038
    %v5040 = vpop.f32.mrf.mxu0
    %v5041 = vadd.f32 %v4752, %v5040
    %5042 = vmatprep.mubr.bf16.mxu0 0
    %5043 = vmatmul.mubr.bf16.gmra.mxu0 %v4733
    %v5044 = vpop.f32.mrf.mxu0
    %v5045 = vadd.f32 %v4748, %v5044
    %v5046 = vpop.f32.mrf.mxu0
    %v5047 = vadd.f32 %v4752, %v5046
    %v5048 = vpop.f32.mrf.mxu0
    %v5049 = vadd.f32 %v4748, %v5048
    %v5050 = vpop.f32.mrf.mxu0
    %v5051 = vadd.f32 %v4752, %v5050
    %5052 = vmatprep.mubr.bf16.mxu0 0
    %5053 = vmatmul.mubr.bf16.gmra.mxu0 %v4734
    %v5054 = vpop.f32.mrf.mxu0
    %v5055 = vadd.f32 %v4748, %v5054
    %v5056 = vpop.f32.mrf.mxu0
    %v5057 = vadd.f32 %v4752, %v5056
    %v5058 = vpop.f32.mrf.mxu0
    %v5059 = vadd.f32 %v4748, %v5058
    %v5060 = vpop.f32.mrf.mxu0
    %v5061 = vadd.f32 %v4752, %v5060
    %5062 = vdwg.mxu0
    %5063 = vst [vmem:[#allocation3] sm:$0xff] %v4952
    %5064 = vst [vmem:[#allocation3 + $0x8] sm:$0xff] %v4954
    %5065 = vst [vmem:[#allocation3 + $0x10] sm:$0xff] %v5025
    %5066 = vst [vmem:[#allocation3 + $0x18] sm:$0xff] %v5027
    %5067 = vst [vmem:[#allocation3 + $0x20] sm:$0xff] %v4956
    %5068 = vst [vmem:[#allocation3 + $0x28] sm:$0xff] %v4958
    %5069 = vst [vmem:[#allocation3 + $0x30] sm:$0xff] %v5029
    %5070 = vst [vmem:[#allocation3 + $0x38] sm:$0xff] %v5031
    %5071 = vst [vmem:[#allocation3 + $0x40] sm:$0xff] %v4962
    %5072 = vst [vmem:[#allocation3 + $0x48] sm:$0xff] %v4964
    %5073 = vst [vmem:[#allocation3 + $0x50] sm:$0xff] %v5035
    %5074 = vst [vmem:[#allocation3 + $0x58] sm:$0xff] %v5037
    %5075 = vst [vmem:[#allocation3 + $0x60] sm:$0xff] %v4966
    %5076 = vst [vmem:[#allocation3 + $0x68] sm:$0xff] %v4968
    %5077 = vst [vmem:[#allocation3 + $0x70] sm:$0xff] %v5039
    %5078 = vst [vmem:[#allocation3 + $0x78] sm:$0xff] %v5041
    %5079 = vst [vmem:[#allocation3 + $0x80] sm:$0xff] %v4972
    %5080 = vst [vmem:[#allocation3 + $0x88] sm:$0xff] %v4974
    %5081 = vst [vmem:[#allocation3 + $0x90] sm:$0xff] %v5045
    %5082 = vst [vmem:[#allocation3 + $0x98] sm:$0xff] %v5047
    %5083 = vst [vmem:[#allocation3 + $0xa0] sm:$0xff] %v4976
    %5084 = vst [vmem:[#allocation3 + $0xa8] sm:$0xff] %v4978
    %5085 = vst [vmem:[#allocation3 + $0xb0] sm:$0xff] %v5049
    %5086 = vst [vmem:[#allocation3 + $0xb8] sm:$0xff] %v5051
    %5087 = vst [vmem:[#allocation3 + $0xc0] sm:$0xff] %v4982
    %5088 = vst [vmem:[#allocation3 + $0xc8] sm:$0xff] %v4984
    %5089 = vst [vmem:[#allocation3 + $0xd0] sm:$0xff] %v5055
    %5090 = vst [vmem:[#allocation3 + $0xd8] sm:$0xff] %v5057
    %5091 = vst [vmem:[#allocation3 + $0xe0] sm:$0xff] %v4986
    %5092 = vst [vmem:[#allocation3 + $0xe8] sm:$0xff] %v4988
    %5093 = vst [vmem:[#allocation3 + $0xf0] sm:$0xff] %v5059
    %5094 = vst [vmem:[#allocation3 + $0xf8] sm:$0xff] %v5061
    %v5095 = vld [vmem:[%s14] sm:$0xff]
    %5096 = vst [vmem:[#allocation4] sm:$0xff] %v5095
    %v5097 = vld [vmem:[%s15] sm:$0xff]
    %5098 = vst [vmem:[#allocation5] sm:$0xff] %v5097
    %v5099 = vld [vmem:[%s462] sm:$0xff]
    %v5100 = vld [vmem:[%s462 + $0x8] sm:$0xff]
    %v5101 = vld [vmem:[%s462 + $0x10] sm:$0xff]
    %v5102 = vld [vmem:[%s462 + $0x18] sm:$0xff]
    %v5103 = vld [vmem:[#allocation4] sm:$0xff]
    %v5104 = vld [vmem:[#allocation13] sm:$0xff]
    %v5105 = vld [vmem:[#allocation13 + $0x8] sm:$0xff]
    %v5106 = vld [vmem:[#allocation13 + $0x10] sm:$0xff]
    %v5107 = vld [vmem:[#allocation13 + $0x18] sm:$0xff]
    %v5108 = vld [vmem:[#allocation13 + $0x20] sm:$0xff]
    %v5109 = vld [vmem:[#allocation13 + $0x28] sm:$0xff]
    %v5110 = vld [vmem:[#allocation13 + $0x30] sm:$0xff]
    %v5111 = vld [vmem:[#allocation13 + $0x38] sm:$0xff]
    %v5112 = vld [vmem:[#allocation13 + $0x40] sm:$0xff]
    %v5113 = vld [vmem:[#allocation13 + $0x48] sm:$0xff]
    %v5114 = vld [vmem:[#allocation13 + $0x50] sm:$0xff]
    %v5115 = vld [vmem:[#allocation13 + $0x58] sm:$0xff]
    %v5116 = vld [vmem:[#allocation13 + $0x60] sm:$0xff]
    %v5117 = vld [vmem:[#allocation13 + $0x68] sm:$0xff]
    %v5118 = vld [vmem:[#allocation13 + $0x70] sm:$0xff]
    %v5119 = vld [vmem:[#allocation13 + $0x78] sm:$0xff]
    %v5120 = vld [vmem:[#allocation13 + $0x80] sm:$0xff]
    %v5121 = vld [vmem:[#allocation13 + $0x88] sm:$0xff]
    %v5122 = vld [vmem:[#allocation13 + $0x90] sm:$0xff]
    %v5123 = vld [vmem:[#allocation13 + $0x98] sm:$0xff]
    %v5124 = vld [vmem:[#allocation13 + $0xa0] sm:$0xff]
    %v5125 = vld [vmem:[#allocation13 + $0xa8] sm:$0xff]
    %v5126 = vld [vmem:[#allocation13 + $0xb0] sm:$0xff]
    %v5127 = vld [vmem:[#allocation13 + $0xb8] sm:$0xff]
    %v5128 = vld [vmem:[#allocation13 + $0xc0] sm:$0xff]
    %v5129 = vld [vmem:[#allocation13 + $0xc8] sm:$0xff]
    %v5130 = vld [vmem:[#allocation13 + $0xd0] sm:$0xff]
    %v5131 = vld [vmem:[#allocation13 + $0xd8] sm:$0xff]
    %v5132 = vld [vmem:[#allocation13 + $0xe0] sm:$0xff]
    %v5133 = vld [vmem:[#allocation13 + $0xe8] sm:$0xff]
    %v5134 = vld [vmem:[#allocation13 + $0xf0] sm:$0xff]
    %v5135 = vld [vmem:[#allocation13 + $0xf8] sm:$0xff]
    %v5136 = vld [vmem:[#allocation13 + $0x100] sm:$0xff]
    %v5137 = vld [vmem:[#allocation13 + $0x108] sm:$0xff]
    %v5138 = vld [vmem:[#allocation13 + $0x110] sm:$0xff]
    %v5139 = vld [vmem:[#allocation13 + $0x118] sm:$0xff]
    %v5140 = vld [vmem:[#allocation13 + $0x120] sm:$0xff]
    %v5141 = vld [vmem:[#allocation13 + $0x128] sm:$0xff]
    %v5142 = vld [vmem:[#allocation13 + $0x130] sm:$0xff]
    %v5143 = vld [vmem:[#allocation13 + $0x138] sm:$0xff]
    %v5144 = vld [vmem:[#allocation13 + $0x140] sm:$0xff]
    %v5145 = vld [vmem:[#allocation13 + $0x148] sm:$0xff]
    %v5146 = vld [vmem:[#allocation13 + $0x150] sm:$0xff]
    %v5147 = vld [vmem:[#allocation13 + $0x158] sm:$0xff]
    %v5148 = vld [vmem:[#allocation13 + $0x160] sm:$0xff]
    %v5149 = vld [vmem:[#allocation13 + $0x168] sm:$0xff]
    %v5150 = vld [vmem:[#allocation13 + $0x170] sm:$0xff]
    %v5151 = vld [vmem:[#allocation13 + $0x178] sm:$0xff]
    %v5152 = vld [vmem:[#allocation13 + $0x180] sm:$0xff]
    %v5153 = vld [vmem:[#allocation13 + $0x188] sm:$0xff]
    %v5154 = vld [vmem:[#allocation13 + $0x190] sm:$0xff]
    %v5155 = vld [vmem:[#allocation13 + $0x198] sm:$0xff]
    %v5156 = vld [vmem:[#allocation13 + $0x1a0] sm:$0xff]
    %v5157 = vld [vmem:[#allocation13 + $0x1a8] sm:$0xff]
    %v5158 = vld [vmem:[#allocation13 + $0x1b0] sm:$0xff]
    %v5159 = vld [vmem:[#allocation13 + $0x1b8] sm:$0xff]
    %v5160 = vld [vmem:[#allocation13 + $0x1c0] sm:$0xff]
    %v5161 = vld [vmem:[#allocation13 + $0x1c8] sm:$0xff]
    %v5162 = vld [vmem:[#allocation13 + $0x1d0] sm:$0xff]
    %v5163 = vld [vmem:[#allocation13 + $0x1d8] sm:$0xff]
    %v5164 = vld [vmem:[#allocation13 + $0x1e0] sm:$0xff]
    %v5165 = vld [vmem:[#allocation13 + $0x1e8] sm:$0xff]
    %v5166 = vld [vmem:[#allocation13 + $0x1f0] sm:$0xff]
    %v5167 = vld [vmem:[#allocation13 + $0x1f8] sm:$0xff]
    %5168 = vmatprep.subr.mxu0 %v5165
    %5169 = vmatpush1.msra.mxu0 %v5164
    %5170 = vmatprep.subr.mxu0 %v5161
    %5171 = vmatpush1.msra.mxu0 %v5160
    %5172 = vmatprep.subr.mxu0 %v5157
    %5173 = vmatpush1.msra.mxu0 %v5156
    %5174 = vmatprep.subr.mxu0 %v5153
    %5175 = vmatpush1.msra.mxu0 %v5152
    %5176 = vmatprep.subr.mxu0 %v5149
    %5177 = vmatpush1.msra.mxu0 %v5148
    %5178 = vmatprep.subr.mxu0 %v5145
    %5179 = vmatpush1.msra.mxu0 %v5144
    %5180 = vmatprep.subr.mxu0 %v5141
    %5181 = vmatpush1.msra.mxu0 %v5140
    %5182 = vmatprep.subr.mxu0 %v5137
    %5183 = vmatpush1.msra.mxu0 %v5136
    %5184 = vmatprep.subr.mxu0 %v5133
    %5185 = vmatpush1.msra.mxu0 %v5132
    %5186 = vmatprep.subr.mxu0 %v5129
    %5187 = vmatpush1.msra.mxu0 %v5128
    %5188 = vmatprep.subr.mxu0 %v5125
    %5189 = vmatpush1.msra.mxu0 %v5124
    %5190 = vmatprep.subr.mxu0 %v5121
    %5191 = vmatpush1.msra.mxu0 %v5120
    %5192 = vmatprep.subr.mxu0 %v5117
    %5193 = vmatpush1.msra.mxu0 %v5116
    %5194 = vmatprep.subr.mxu0 %v5113
    %5195 = vmatpush1.msra.mxu0 %v5112
    %5196 = vmatprep.subr.mxu0 %v5109
    %5197 = vmatpush1.msra.mxu0 %v5108
    %5198 = vmatprep.subr.mxu0 %v5105
    %5199 = vmatpush1.msra.mxu0 %v5104
    %5200 = vmatprep.subr.mxu0 0.0
    %5201 = vmatpush2.msra.mxu0 0.0
    %5202 = vmatprep.subr.mxu0 0.0
    %5203 = vmatpush2.msra.mxu0 0.0
    %5204 = vmatprep.subr.mxu0 0.0
    %5205 = vmatpush2.msra.mxu0 0.0
    %5206 = vmatprep.subr.mxu0 0.0
    %5207 = vmatpush2.msra.mxu0 0.0
    %5208 = vmatprep.subr.mxu0 0.0
    %5209 = vmatpush2.msra.mxu0 0.0
    %5210 = vmatprep.subr.mxu0 0.0
    %5211 = vmatpush2.msra.mxu0 0.0
    %5212 = vmatprep.subr.mxu0 0.0
    %5213 = vmatpush2.msra.mxu0 0.0
    %5214 = vmatprep.subr.mxu0 0.0
    %5215 = vmatpush2.msra.mxu0 0.0
    %5216 = vmatprep.subr.mxu0 0.0
    %5217 = vmatpush2.msra.mxu0 0.0
    %5218 = vmatprep.subr.mxu0 0.0
    %5219 = vmatpush2.msra.mxu0 0.0
    %5220 = vmatprep.subr.mxu0 0.0
    %5221 = vmatpush2.msra.mxu0 0.0
    %5222 = vmatprep.subr.mxu0 0.0
    %5223 = vmatpush2.msra.mxu0 0.0
    %5224 = vmatprep.subr.mxu0 0.0
    %5225 = vmatpush2.msra.mxu0 0.0
    %5226 = vmatprep.subr.mxu0 0.0
    %5227 = vmatpush2.msra.mxu0 0.0
    %5228 = vmatprep.subr.mxu0 0.0
    %5229 = vmatpush2.msra.mxu0 0.0
    %5230 = vmatprep.subr.mxu0 0.0
    %5231 = vmatpush2.msra.mxu0 0.0
    %5232 = vmatprep.mubr.f32.mxu0 0.0
    %5233 = vmatmul.mubr.f32.gmra.mxu0 %v5103
    %v5234 = vpop.f32.mrf.mxu0
    %v5235 = vadd.f32 0.0, %v5234
    %v5236 = vpop.f32.mrf.mxu0
    %v5237 = vadd.f32 0.0, %v5236
    %5238 = vdwg.mxu0
    %5239 = vmatprep.subr.mxu0 %v5167
    %5240 = vmatpush1.msra.mxu0 %v5166
    %5241 = vmatprep.subr.mxu0 %v5163
    %5242 = vmatpush1.msra.mxu0 %v5162
    %5243 = vmatprep.subr.mxu0 %v5159
    %5244 = vmatpush1.msra.mxu0 %v5158
    %5245 = vmatprep.subr.mxu0 %v5155
    %5246 = vmatpush1.msra.mxu0 %v5154
    %5247 = vmatprep.subr.mxu0 %v5151
    %5248 = vmatpush1.msra.mxu0 %v5150
    %5249 = vmatprep.subr.mxu0 %v5147
    %5250 = vmatpush1.msra.mxu0 %v5146
    %5251 = vmatprep.subr.mxu0 %v5143
    %5252 = vmatpush1.msra.mxu0 %v5142
    %5253 = vmatprep.subr.mxu0 %v5139
    %5254 = vmatpush1.msra.mxu0 %v5138
    %5255 = vmatprep.subr.mxu0 %v5135
    %5256 = vmatpush1.msra.mxu0 %v5134
    %5257 = vmatprep.subr.mxu0 %v5131
    %5258 = vmatpush1.msra.mxu0 %v5130
    %5259 = vmatprep.subr.mxu0 %v5127
    %5260 = vmatpush1.msra.mxu0 %v5126
    %5261 = vmatprep.subr.mxu0 %v5123
    %5262 = vmatpush1.msra.mxu0 %v5122
    %5263 = vmatprep.subr.mxu0 %v5119
    %5264 = vmatpush1.msra.mxu0 %v5118
    %5265 = vmatprep.subr.mxu0 %v5115
    %5266 = vmatpush1.msra.mxu0 %v5114
    %5267 = vmatprep.subr.mxu0 %v5111
    %5268 = vmatpush1.msra.mxu0 %v5110
    %5269 = vmatprep.subr.mxu0 %v5107
    %5270 = vmatpush1.msra.mxu0 %v5106
    %5271 = vmatprep.subr.mxu0 0.0
    %5272 = vmatpush2.msra.mxu0 0.0
    %5273 = vmatprep.subr.mxu0 0.0
    %5274 = vmatpush2.msra.mxu0 0.0
    %5275 = vmatprep.subr.mxu0 0.0
    %5276 = vmatpush2.msra.mxu0 0.0
    %5277 = vmatprep.subr.mxu0 0.0
    %5278 = vmatpush2.msra.mxu0 0.0
    %5279 = vmatprep.subr.mxu0 0.0
    %5280 = vmatpush2.msra.mxu0 0.0
    %5281 = vmatprep.subr.mxu0 0.0
    %5282 = vmatpush2.msra.mxu0 0.0
    %5283 = vmatprep.subr.mxu0 0.0
    %5284 = vmatpush2.msra.mxu0 0.0
    %5285 = vmatprep.subr.mxu0 0.0
    %5286 = vmatpush2.msra.mxu0 0.0
    %5287 = vmatprep.subr.mxu0 0.0
    %5288 = vmatpush2.msra.mxu0 0.0
    %5289 = vmatprep.subr.mxu0 0.0
    %5290 = vmatpush2.msra.mxu0 0.0
    %5291 = vmatprep.subr.mxu0 0.0
    %5292 = vmatpush2.msra.mxu0 0.0
    %5293 = vmatprep.subr.mxu0 0.0
    %5294 = vmatpush2.msra.mxu0 0.0
    %5295 = vmatprep.subr.mxu0 0.0
    %5296 = vmatpush2.msra.mxu0 0.0
    %5297 = vmatprep.subr.mxu0 0.0
    %5298 = vmatpush2.msra.mxu0 0.0
    %5299 = vmatprep.subr.mxu0 0.0
    %5300 = vmatpush2.msra.mxu0 0.0
    %5301 = vmatprep.subr.mxu0 0.0
    %5302 = vmatpush2.msra.mxu0 0.0
    %5303 = vmatprep.mubr.f32.mxu0 0.0
    %5304 = vmatmul.mubr.f32.gmra.mxu0 %v5103
    %v5305 = vpop.f32.mrf.mxu0
    %v5306 = vadd.f32 0.0, %v5305
    %v5307 = vpop.f32.mrf.mxu0
    %v5308 = vadd.f32 0.0, %v5307
    %5309 = vdwg.mxu0
    %v5310 = vadd.f32 %v5099, %v5235
    %v5311 = vadd.f32 %v5100, %v5237
    %v5312 = vadd.f32 %v5101, %v5306
    %v5313 = vadd.f32 %v5102, %v5308
    %v5314 = vmul.f32 %v5310, 0.5
    %v5315 = vtanh.pop %v5314
    %v5316 = vmul.f32 %v5315, 0.5
    %v5317 = vadd.f32 %v5316, 0.5
    %v5318 = vmul.f32 %v5311, 0.5
    %v5319 = vtanh.pop %v5318
    %v5320 = vmul.f32 %v5319, 0.5
    %v5321 = vadd.f32 %v5320, 0.5
    %v5322 = vtanh.pop %v5312
    %v5323 = vmul.f32 %v5313, 0.5
    %v5324 = vtanh.pop %v5323
    %v5325 = vmul.f32 %v5324, 0.5
    %v5326 = vadd.f32 %v5325, 0.5
    %v5327 = vld [vmem:[#allocation5] sm:$0xff]
    %v5328 = vmul.f32 %v5321, %v5327
    %v5329 = vmul.f32 %v5317, %v5322
    %v5330 = vadd.f32 %v5328, %v5329
    %v5331 = vtanh.pop %v5330
    %v5332 = vmul.f32 %v5326, %v5331
    %5333 = vst [vmem:[#allocation5] sm:$0xff] %v5330
    %5334 = vst [vmem:[#allocation4] sm:$0xff] %v5332
    %5335 = vst [vmem:[#allocation2] sm:$0xff] %v5332
    %v5336 = vld [vmem:[%s702] sm:$0xff]
    %v5337 = vld [vmem:[%s702 + $0x8] sm:$0xff]
    %v5338 = vld [vmem:[%s702 + $0x10] sm:$0xff]
    %v5339 = vld [vmem:[%s702 + $0x18] sm:$0xff]
    %v5340 = vld [vmem:[#allocation4] sm:$0xff]
    %v5341 = vld [vmem:[#allocation13] sm:$0xff]
    %v5342 = vld [vmem:[#allocation13 + $0x8] sm:$0xff]
    %v5343 = vld [vmem:[#allocation13 + $0x10] sm:$0xff]
    %v5344 = vld [vmem:[#allocation13 + $0x18] sm:$0xff]
    %v5345 = vld [vmem:[#allocation13 + $0x20] sm:$0xff]
    %v5346 = vld [vmem:[#allocation13 + $0x28] sm:$0xff]
    %v5347 = vld [vmem:[#allocation13 + $0x30] sm:$0xff]
    %v5348 = vld [vmem:[#allocation13 + $0x38] sm:$0xff]
    %v5349 = vld [vmem:[#allocation13 + $0x40] sm:$0xff]
    %v5350 = vld [vmem:[#allocation13 + $0x48] sm:$0xff]
    %v5351 = vld [vmem:[#allocation13 + $0x50] sm:$0xff]
    %v5352 = vld [vmem:[#allocation13 + $0x58] sm:$0xff]
    %v5353 = vld [vmem:[#allocation13 + $0x60] sm:$0xff]
    %v5354 = vld [vmem:[#allocation13 + $0x68] sm:$0xff]
    %v5355 = vld [vmem:[#allocation13 + $0x70] sm:$0xff]
    %v5356 = vld [vmem:[#allocation13 + $0x78] sm:$0xff]
    %v5357 = vld [vmem:[#allocation13 + $0x80] sm:$0xff]
    %v5358 = vld [vmem:[#allocation13 + $0x88] sm:$0xff]
    %v5359 = vld [vmem:[#allocation13 + $0x90] sm:$0xff]
    %v5360 = vld [vmem:[#allocation13 + $0x98] sm:$0xff]
    %v5361 = vld [vmem:[#allocation13 + $0xa0] sm:$0xff]
    %v5362 = vld [vmem:[#allocation13 + $0xa8] sm:$0xff]
    %v5363 = vld [vmem:[#allocation13 + $0xb0] sm:$0xff]
    %v5364 = vld [vmem:[#allocation13 + $0xb8] sm:$0xff]
    %v5365 = vld [vmem:[#allocation13 + $0xc0] sm:$0xff]
    %v5366 = vld [vmem:[#allocation13 + $0xc8] sm:$0xff]
    %v5367 = vld [vmem:[#allocation13 + $0xd0] sm:$0xff]
    %v5368 = vld [vmem:[#allocation13 + $0xd8] sm:$0xff]
    %v5369 = vld [vmem:[#allocation13 + $0xe0] sm:$0xff]
    %v5370 = vld [vmem:[#allocation13 + $0xe8] sm:$0xff]
    %v5371 = vld [vmem:[#allocation13 + $0xf0] sm:$0xff]
    %v5372 = vld [vmem:[#allocation13 + $0xf8] sm:$0xff]
    %v5373 = vld [vmem:[#allocation13 + $0x100] sm:$0xff]
    %v5374 = vld [vmem:[#allocation13 + $0x108] sm:$0xff]
    %v5375 = vld [vmem:[#allocation13 + $0x110] sm:$0xff]
    %v5376 = vld [vmem:[#allocation13 + $0x118] sm:$0xff]
    %v5377 = vld [vmem:[#allocation13 + $0x120] sm:$0xff]
    %v5378 = vld [vmem:[#allocation13 + $0x128] sm:$0xff]
    %v5379 = vld [vmem:[#allocation13 + $0x130] sm:$0xff]
    %v5380 = vld [vmem:[#allocation13 + $0x138] sm:$0xff]
    %v5381 = vld [vmem:[#allocation13 + $0x140] sm:$0xff]
    %v5382 = vld [vmem:[#allocation13 + $0x148] sm:$0xff]
    %v5383 = vld [vmem:[#allocation13 + $0x150] sm:$0xff]
    %v5384 = vld [vmem:[#allocation13 + $0x158] sm:$0xff]
    %v5385 = vld [vmem:[#allocation13 + $0x160] sm:$0xff]
    %v5386 = vld [vmem:[#allocation13 + $0x168] sm:$0xff]
    %v5387 = vld [vmem:[#allocation13 + $0x170] sm:$0xff]
    %v5388 = vld [vmem:[#allocation13 + $0x178] sm:$0xff]
    %v5389 = vld [vmem:[#allocation13 + $0x180] sm:$0xff]
    %v5390 = vld [vmem:[#allocation13 + $0x188] sm:$0xff]
    %v5391 = vld [vmem:[#allocation13 + $0x190] sm:$0xff]
    %v5392 = vld [vmem:[#allocation13 + $0x198] sm:$0xff]
    %v5393 = vld [vmem:[#allocation13 + $0x1a0] sm:$0xff]
    %v5394 = vld [vmem:[#allocation13 + $0x1a8] sm:$0xff]
    %v5395 = vld [vmem:[#allocation13 + $0x1b0] sm:$0xff]
    %v5396 = vld [vmem:[#allocation13 + $0x1b8] sm:$0xff]
    %v5397 = vld [vmem:[#allocation13 + $0x1c0] sm:$0xff]
    %v5398 = vld [vmem:[#allocation13 + $0x1c8] sm:$0xff]
    %v5399 = vld [vmem:[#allocation13 + $0x1d0] sm:$0xff]
    %v5400 = vld [vmem:[#allocation13 + $0x1d8] sm:$0xff]
    %v5401 = vld [vmem:[#allocation13 + $0x1e0] sm:$0xff]
    %v5402 = vld [vmem:[#allocation13 + $0x1e8] sm:$0xff]
    %v5403 = vld [vmem:[#allocation13 + $0x1f0] sm:$0xff]
    %v5404 = vld [vmem:[#allocation13 + $0x1f8] sm:$0xff]
    %5405 = vmatprep.subr.mxu0 %v5402
    %5406 = vmatpush1.msra.mxu0 %v5401
    %5407 = vmatprep.subr.mxu0 %v5398
    %5408 = vmatpush1.msra.mxu0 %v5397
    %5409 = vmatprep.subr.mxu0 %v5394
    %5410 = vmatpush1.msra.mxu0 %v5393
    %5411 = vmatprep.subr.mxu0 %v5390
    %5412 = vmatpush1.msra.mxu0 %v5389
    %5413 = vmatprep.subr.mxu0 %v5386
    %5414 = vmatpush1.msra.mxu0 %v5385
    %5415 = vmatprep.subr.mxu0 %v5382
    %5416 = vmatpush1.msra.mxu0 %v5381
    %5417 = vmatprep.subr.mxu0 %v5378
    %5418 = vmatpush1.msra.mxu0 %v5377
    %5419 = vmatprep.subr.mxu0 %v5374
    %5420 = vmatpush1.msra.mxu0 %v5373
    %5421 = vmatprep.subr.mxu0 %v5370
    %5422 = vmatpush1.msra.mxu0 %v5369
    %5423 = vmatprep.subr.mxu0 %v5366
    %5424 = vmatpush1.msra.mxu0 %v5365
    %5425 = vmatprep.subr.mxu0 %v5362
    %5426 = vmatpush1.msra.mxu0 %v5361
    %5427 = vmatprep.subr.mxu0 %v5358
    %5428 = vmatpush1.msra.mxu0 %v5357
    %5429 = vmatprep.subr.mxu0 %v5354
    %5430 = vmatpush1.msra.mxu0 %v5353
    %5431 = vmatprep.subr.mxu0 %v5350
    %5432 = vmatpush1.msra.mxu0 %v5349
    %5433 = vmatprep.subr.mxu0 %v5346
    %5434 = vmatpush1.msra.mxu0 %v5345
    %5435 = vmatprep.subr.mxu0 %v5342
    %5436 = vmatpush1.msra.mxu0 %v5341
    %5437 = vmatprep.subr.mxu0 0.0
    %5438 = vmatpush2.msra.mxu0 0.0
    %5439 = vmatprep.subr.mxu0 0.0
    %5440 = vmatpush2.msra.mxu0 0.0
    %5441 = vmatprep.subr.mxu0 0.0
    %5442 = vmatpush2.msra.mxu0 0.0
    %5443 = vmatprep.subr.mxu0 0.0
    %5444 = vmatpush2.msra.mxu0 0.0
    %5445 = vmatprep.subr.mxu0 0.0
    %5446 = vmatpush2.msra.mxu0 0.0
    %5447 = vmatprep.subr.mxu0 0.0
    %5448 = vmatpush2.msra.mxu0 0.0
    %5449 = vmatprep.subr.mxu0 0.0
    %5450 = vmatpush2.msra.mxu0 0.0
    %5451 = vmatprep.subr.mxu0 0.0
    %5452 = vmatpush2.msra.mxu0 0.0
    %5453 = vmatprep.subr.mxu0 0.0
    %5454 = vmatpush2.msra.mxu0 0.0
    %5455 = vmatprep.subr.mxu0 0.0
    %5456 = vmatpush2.msra.mxu0 0.0
    %5457 = vmatprep.subr.mxu0 0.0
    %5458 = vmatpush2.msra.mxu0 0.0
    %5459 = vmatprep.subr.mxu0 0.0
    %5460 = vmatpush2.msra.mxu0 0.0
    %5461 = vmatprep.subr.mxu0 0.0
    %5462 = vmatpush2.msra.mxu0 0.0
    %5463 = vmatprep.subr.mxu0 0.0
    %5464 = vmatpush2.msra.mxu0 0.0
    %5465 = vmatprep.subr.mxu0 0.0
    %5466 = vmatpush2.msra.mxu0 0.0
    %5467 = vmatprep.subr.mxu0 0.0
    %5468 = vmatpush2.msra.mxu0 0.0
    %5469 = vmatprep.mubr.f32.mxu0 0.0
    %5470 = vmatmul.mubr.f32.gmra.mxu0 %v5340
    %v5471 = vpop.f32.mrf.mxu0
    %v5472 = vadd.f32 0.0, %v5471
    %v5473 = vpop.f32.mrf.mxu0
    %v5474 = vadd.f32 0.0, %v5473
    %5475 = vdwg.mxu0
    %5476 = vmatprep.subr.mxu0 %v5404
    %5477 = vmatpush1.msra.mxu0 %v5403
    %5478 = vmatprep.subr.mxu0 %v5400
    %5479 = vmatpush1.msra.mxu0 %v5399
    %5480 = vmatprep.subr.mxu0 %v5396
    %5481 = vmatpush1.msra.mxu0 %v5395
    %5482 = vmatprep.subr.mxu0 %v5392
    %5483 = vmatpush1.msra.mxu0 %v5391
    %5484 = vmatprep.subr.mxu0 %v5388
    %5485 = vmatpush1.msra.mxu0 %v5387
    %5486 = vmatprep.subr.mxu0 %v5384
    %5487 = vmatpush1.msra.mxu0 %v5383
    %5488 = vmatprep.subr.mxu0 %v5380
    %5489 = vmatpush1.msra.mxu0 %v5379
    %5490 = vmatprep.subr.mxu0 %v5376
    %5491 = vmatpush1.msra.mxu0 %v5375
    %5492 = vmatprep.subr.mxu0 %v5372
    %5493 = vmatpush1.msra.mxu0 %v5371
    %5494 = vmatprep.subr.mxu0 %v5368
    %5495 = vmatpush1.msra.mxu0 %v5367
    %5496 = vmatprep.subr.mxu0 %v5364
    %5497 = vmatpush1.msra.mxu0 %v5363
    %5498 = vmatprep.subr.mxu0 %v5360
    %5499 = vmatpush1.msra.mxu0 %v5359
    %5500 = vmatprep.subr.mxu0 %v5356
    %5501 = vmatpush1.msra.mxu0 %v5355
    %5502 = vmatprep.subr.mxu0 %v5352
    %5503 = vmatpush1.msra.mxu0 %v5351
    %5504 = vmatprep.subr.mxu0 %v5348
    %5505 = vmatpush1.msra.mxu0 %v5347
    %5506 = vmatprep.subr.mxu0 %v5344
    %5507 = vmatpush1.msra.mxu0 %v5343
    %5508 = vmatprep.subr.mxu0 0.0
    %5509 = vmatpush2.msra.mxu0 0.0
    %5510 = vmatprep.subr.mxu0 0.0
    %5511 = vmatpush2.msra.mxu0 0.0
    %5512 = vmatprep.subr.mxu0 0.0
    %5513 = vmatpush2.msra.mxu0 0.0
    %5514 = vmatprep.subr.mxu0 0.0
    %5515 = vmatpush2.msra.mxu0 0.0
    %5516 = vmatprep.subr.mxu0 0.0
    %5517 = vmatpush2.msra.mxu0 0.0
    %5518 = vmatprep.subr.mxu0 0.0
    %5519 = vmatpush2.msra.mxu0 0.0
    %5520 = vmatprep.subr.mxu0 0.0
    %5521 = vmatpush2.msra.mxu0 0.0
    %5522 = vmatprep.subr.mxu0 0.0
    %5523 = vmatpush2.msra.mxu0 0.0
    %5524 = vmatprep.subr.mxu0 0.0
    %5525 = vmatpush2.msra.mxu0 0.0
    %5526 = vmatprep.subr.mxu0 0.0
    %5527 = vmatpush2.msra.mxu0 0.0
    %5528 = vmatprep.subr.mxu0 0.0
    %5529 = vmatpush2.msra.mxu0 0.0
    %5530 = vmatprep.subr.mxu0 0.0
    %5531 = vmatpush2.msra.mxu0 0.0
    %5532 = vmatprep.subr.mxu0 0.0
    %5533 = vmatpush2.msra.mxu0 0.0
    %5534 = vmatprep.subr.mxu0 0.0
    %5535 = vmatpush2.msra.mxu0 0.0
    %5536 = vmatprep.subr.mxu0 0.0
    %5537 = vmatpush2.msra.mxu0 0.0
    %5538 = vmatprep.subr.mxu0 0.0
    %5539 = vmatpush2.msra.mxu0 0.0
    %5540 = vmatprep.mubr.f32.mxu0 0.0
    %5541 = vmatmul.mubr.f32.gmra.mxu0 %v5340
    %v5542 = vpop.f32.mrf.mxu0
    %v5543 = vadd.f32 0.0, %v5542
    %v5544 = vpop.f32.mrf.mxu0
    %v5545 = vadd.f32 0.0, %v5544
    %5546 = vdwg.mxu0
    %v5547 = vadd.f32 %v5336, %v5472
    %v5548 = vadd.f32 %v5337, %v5474
    %v5549 = vadd.f32 %v5338, %v5543
    %v5550 = vadd.f32 %v5339, %v5545
    %v5551 = vmul.f32 %v5547, 0.5
    %v5552 = vtanh.pop %v5551
    %v5553 = vmul.f32 %v5552, 0.5
    %v5554 = vadd.f32 %v5553, 0.5
    %v5555 = vmul.f32 %v5548, 0.5
    %v5556 = vtanh.pop %v5555
    %v5557 = vmul.f32 %v5556, 0.5
    %v5558 = vadd.f32 %v5557, 0.5
    %v5559 = vtanh.pop %v5549
    %v5560 = vmul.f32 %v5550, 0.5
    %v5561 = vtanh.pop %v5560
    %v5562 = vmul.f32 %v5561, 0.5
    %v5563 = vadd.f32 %v5562, 0.5
    %v5564 = vld [vmem:[#allocation5] sm:$0xff]
    %v5565 = vmul.f32 %v5558, %v5564
    %v5566 = vmul.f32 %v5554, %v5559
    %v5567 = vadd.f32 %v5565, %v5566
    %v5568 = vtanh.pop %v5567
    %v5569 = vmul.f32 %v5563, %v5568
    %5570 = vst [vmem:[#allocation5] sm:$0xff] %v5567
    %5571 = vst [vmem:[#allocation4] sm:$0xff] %v5569
    %5572 = vst [vmem:[%s939] sm:$0xff] %v5569
    %v5573 = vld [vmem:[%s943] sm:$0xff]
    %v5574 = vld [vmem:[%s943 + $0x8] sm:$0xff]
    %v5575 = vld [vmem:[%s943 + $0x10] sm:$0xff]
    %v5576 = vld [vmem:[%s943 + $0x18] sm:$0xff]
    %v5577 = vld [vmem:[#allocation4] sm:$0xff]
    %v5578 = vld [vmem:[#allocation13] sm:$0xff]
    %v5579 = vld [vmem:[#allocation13 + $0x8] sm:$0xff]
    %v5580 = vld [vmem:[#allocation13 + $0x10] sm:$0xff]
    %v5581 = vld [vmem:[#allocation13 + $0x18] sm:$0xff]
    %v5582 = vld [vmem:[#allocation13 + $0x20] sm:$0xff]
    %v5583 = vld [vmem:[#allocation13 + $0x28] sm:$0xff]
    %v5584 = vld [vmem:[#allocation13 + $0x30] sm:$0xff]
    %v5585 = vld [vmem:[#allocation13 + $0x38] sm:$0xff]
    %v5586 = vld [vmem:[#allocation13 + $0x40] sm:$0xff]
    %v5587 = vld [vmem:[#allocation13 + $0x48] sm:$0xff]
    %v5588 = vld [vmem:[#allocation13 + $0x50] sm:$0xff]
    %v5589 = vld [vmem:[#allocation13 + $0x58] sm:$0xff]
    %v5590 = vld [vmem:[#allocation13 + $0x60] sm:$0xff]
    %v5591 = vld [vmem:[#allocation13 + $0x68] sm:$0xff]
    %v5592 = vld [vmem:[#allocation13 + $0x70] sm:$0xff]
    %v5593 = vld [vmem:[#allocation13 + $0x78] sm:$0xff]
    %v5594 = vld [vmem:[#allocation13 + $0x80] sm:$0xff]
    %v5595 = vld [vmem:[#allocation13 + $0x88] sm:$0xff]
    %v5596 = vld [vmem:[#allocation13 + $0x90] sm:$0xff]
    %v5597 = vld [vmem:[#allocation13 + $0x98] sm:$0xff]
    %v5598 = vld [vmem:[#allocation13 + $0xa0] sm:$0xff]
    %v5599 = vld [vmem:[#allocation13 + $0xa8] sm:$0xff]
    %v5600 = vld [vmem:[#allocation13 + $0xb0] sm:$0xff]
    %v5601 = vld [vmem:[#allocation13 + $0xb8] sm:$0xff]
    %v5602 = vld [vmem:[#allocation13 + $0xc0] sm:$0xff]
    %v5603 = vld [vmem:[#allocation13 + $0xc8] sm:$0xff]
    %v5604 = vld [vmem:[#allocation13 + $0xd0] sm:$0xff]
    %v5605 = vld [vmem:[#allocation13 + $0xd8] sm:$0xff]
    %v5606 = vld [vmem:[#allocation13 + $0xe0] sm:$0xff]
    %v5607 = vld [vmem:[#allocation13 + $0xe8] sm:$0xff]
    %v5608 = vld [vmem:[#allocation13 + $0xf0] sm:$0xff]
    %v5609 = vld [vmem:[#allocation13 + $0xf8] sm:$0xff]
    %v5610 = vld [vmem:[#allocation13 + $0x100] sm:$0xff]
    %v5611 = vld [vmem:[#allocation13 + $0x108] sm:$0xff]
    %v5612 = vld [vmem:[#allocation13 + $0x110] sm:$0xff]
    %v5613 = vld [vmem:[#allocation13 + $0x118] sm:$0xff]
    %v5614 = vld [vmem:[#allocation13 + $0x120] sm:$0xff]
    %v5615 = vld [vmem:[#allocation13 + $0x128] sm:$0xff]
    %v5616 = vld [vmem:[#allocation13 + $0x130] sm:$0xff]
    %v5617 = vld [vmem:[#allocation13 + $0x138] sm:$0xff]
    %v5618 = vld [vmem:[#allocation13 + $0x140] sm:$0xff]
    %v5619 = vld [vmem:[#allocation13 + $0x148] sm:$0xff]
    %v5620 = vld [vmem:[#allocation13 + $0x150] sm:$0xff]
    %v5621 = vld [vmem:[#allocation13 + $0x158] sm:$0xff]
    %v5622 = vld [vmem:[#allocation13 + $0x160] sm:$0xff]
    %v5623 = vld [vmem:[#allocation13 + $0x168] sm:$0xff]
    %v5624 = vld [vmem:[#allocation13 + $0x170] sm:$0xff]
    %v5625 = vld [vmem:[#allocation13 + $0x178] sm:$0xff]
    %v5626 = vld [vmem:[#allocation13 + $0x180] sm:$0xff]
    %v5627 = vld [vmem:[#allocation13 + $0x188] sm:$0xff]
    %v5628 = vld [vmem:[#allocation13 + $0x190] sm:$0xff]
    %v5629 = vld [vmem:[#allocation13 + $0x198] sm:$0xff]
    %v5630 = vld [vmem:[#allocation13 + $0x1a0] sm:$0xff]
    %v5631 = vld [vmem:[#allocation13 + $0x1a8] sm:$0xff]
    %v5632 = vld [vmem:[#allocation13 + $0x1b0] sm:$0xff]
    %v5633 = vld [vmem:[#allocation13 + $0x1b8] sm:$0xff]
    %v5634 = vld [vmem:[#allocation13 + $0x1c0] sm:$0xff]
    %v5635 = vld [vmem:[#allocation13 + $0x1c8] sm:$0xff]
    %v5636 = vld [vmem:[#allocation13 + $0x1d0] sm:$0xff]
    %v5637 = vld [vmem:[#allocation13 + $0x1d8] sm:$0xff]
    %v5638 = vld [vmem:[#allocation13 + $0x1e0] sm:$0xff]
    %v5639 = vld [vmem:[#allocation13 + $0x1e8] sm:$0xff]
    %v5640 = vld [vmem:[#allocation13 + $0x1f0] sm:$0xff]
    %v5641 = vld [vmem:[#allocation13 + $0x1f8] sm:$0xff]
    %5642 = vmatprep.subr.mxu0 %v5639
    %5643 = vmatpush1.msra.mxu0 %v5638
    %5644 = vmatprep.subr.mxu0 %v5635
    %5645 = vmatpush1.msra.mxu0 %v5634
    %5646 = vmatprep.subr.mxu0 %v5631
    %5647 = vmatpush1.msra.mxu0 %v5630
    %5648 = vmatprep.subr.mxu0 %v5627
    %5649 = vmatpush1.msra.mxu0 %v5626
    %5650 = vmatprep.subr.mxu0 %v5623
    %5651 = vmatpush1.msra.mxu0 %v5622
    %5652 = vmatprep.subr.mxu0 %v5619
    %5653 = vmatpush1.msra.mxu0 %v5618
    %5654 = vmatprep.subr.mxu0 %v5615
    %5655 = vmatpush1.msra.mxu0 %v5614
    %5656 = vmatprep.subr.mxu0 %v5611
    %5657 = vmatpush1.msra.mxu0 %v5610
    %5658 = vmatprep.subr.mxu0 %v5607
    %5659 = vmatpush1.msra.mxu0 %v5606
    %5660 = vmatprep.subr.mxu0 %v5603
    %5661 = vmatpush1.msra.mxu0 %v5602
    %5662 = vmatprep.subr.mxu0 %v5599
    %5663 = vmatpush1.msra.mxu0 %v5598
    %5664 = vmatprep.subr.mxu0 %v5595
    %5665 = vmatpush1.msra.mxu0 %v5594
    %5666 = vmatprep.subr.mxu0 %v5591
    %5667 = vmatpush1.msra.mxu0 %v5590
    %5668 = vmatprep.subr.mxu0 %v5587
    %5669 = vmatpush1.msra.mxu0 %v5586
    %5670 = vmatprep.subr.mxu0 %v5583
    %5671 = vmatpush1.msra.mxu0 %v5582
    %5672 = vmatprep.subr.mxu0 %v5579
    %5673 = vmatpush1.msra.mxu0 %v5578
    %5674 = vmatprep.subr.mxu0 0.0
    %5675 = vmatpush2.msra.mxu0 0.0
    %5676 = vmatprep.subr.mxu0 0.0
    %5677 = vmatpush2.msra.mxu0 0.0
    %5678 = vmatprep.subr.mxu0 0.0
    %5679 = vmatpush2.msra.mxu0 0.0
    %5680 = vmatprep.subr.mxu0 0.0
    %5681 = vmatpush2.msra.mxu0 0.0
    %5682 = vmatprep.subr.mxu0 0.0
    %5683 = vmatpush2.msra.mxu0 0.0
    %5684 = vmatprep.subr.mxu0 0.0
    %5685 = vmatpush2.msra.mxu0 0.0
    %5686 = vmatprep.subr.mxu0 0.0
    %5687 = vmatpush2.msra.mxu0 0.0
    %5688 = vmatprep.subr.mxu0 0.0
    %5689 = vmatpush2.msra.mxu0 0.0
    %5690 = vmatprep.subr.mxu0 0.0
    %5691 = vmatpush2.msra.mxu0 0.0
    %5692 = vmatprep.subr.mxu0 0.0
    %5693 = vmatpush2.msra.mxu0 0.0
    %5694 = vmatprep.subr.mxu0 0.0
    %5695 = vmatpush2.msra.mxu0 0.0
    %5696 = vmatprep.subr.mxu0 0.0
    %5697 = vmatpush2.msra.mxu0 0.0
    %5698 = vmatprep.subr.mxu0 0.0
    %5699 = vmatpush2.msra.mxu0 0.0
    %5700 = vmatprep.subr.mxu0 0.0
    %5701 = vmatpush2.msra.mxu0 0.0
    %5702 = vmatprep.subr.mxu0 0.0
    %5703 = vmatpush2.msra.mxu0 0.0
    %5704 = vmatprep.subr.mxu0 0.0
    %5705 = vmatpush2.msra.mxu0 0.0
    %5706 = vmatprep.mubr.f32.mxu0 0.0
    %5707 = vmatmul.mubr.f32.gmra.mxu0 %v5577
    %v5708 = vpop.f32.mrf.mxu0
    %v5709 = vadd.f32 0.0, %v5708
    %v5710 = vpop.f32.mrf.mxu0
    %v5711 = vadd.f32 0.0, %v5710
    %5712 = vdwg.mxu0
    %5713 = vmatprep.subr.mxu0 %v5641
    %5714 = vmatpush1.msra.mxu0 %v5640
    %5715 = vmatprep.subr.mxu0 %v5637
    %5716 = vmatpush1.msra.mxu0 %v5636
    %5717 = vmatprep.subr.mxu0 %v5633
    %5718 = vmatpush1.msra.mxu0 %v5632
    %5719 = vmatprep.subr.mxu0 %v5629
    %5720 = vmatpush1.msra.mxu0 %v5628
    %5721 = vmatprep.subr.mxu0 %v5625
    %5722 = vmatpush1.msra.mxu0 %v5624
    %5723 = vmatprep.subr.mxu0 %v5621
    %5724 = vmatpush1.msra.mxu0 %v5620
    %5725 = vmatprep.subr.mxu0 %v5617
    %5726 = vmatpush1.msra.mxu0 %v5616
    %5727 = vmatprep.subr.mxu0 %v5613
    %5728 = vmatpush1.msra.mxu0 %v5612
    %5729 = vmatprep.subr.mxu0 %v5609
    %5730 = vmatpush1.msra.mxu0 %v5608
    %5731 = vmatprep.subr.mxu0 %v5605
    %5732 = vmatpush1.msra.mxu0 %v5604
    %5733 = vmatprep.subr.mxu0 %v5601
    %5734 = vmatpush1.msra.mxu0 %v5600
    %5735 = vmatprep.subr.mxu0 %v5597
    %5736 = vmatpush1.msra.mxu0 %v5596
    %5737 = vmatprep.subr.mxu0 %v5593
    %5738 = vmatpush1.msra.mxu0 %v5592
    %5739 = vmatprep.subr.mxu0 %v5589
    %5740 = vmatpush1.msra.mxu0 %v5588
    %5741 = vmatprep.subr.mxu0 %v5585
    %5742 = vmatpush1.msra.mxu0 %v5584
    %5743 = vmatprep.subr.mxu0 %v5581
    %5744 = vmatpush1.msra.mxu0 %v5580
    %5745 = vmatprep.subr.mxu0 0.0
    %5746 = vmatpush2.msra.mxu0 0.0
    %5747 = vmatprep.subr.mxu0 0.0
    %5748 = vmatpush2.msra.mxu0 0.0
    %5749 = vmatprep.subr.mxu0 0.0
    %5750 = vmatpush2.msra.mxu0 0.0
    %5751 = vmatprep.subr.mxu0 0.0
    %5752 = vmatpush2.msra.mxu0 0.0
    %5753 = vmatprep.subr.mxu0 0.0
    %5754 = vmatpush2.msra.mxu0 0.0
    %5755 = vmatprep.subr.mxu0 0.0
    %5756 = vmatpush2.msra.mxu0 0.0
    %5757 = vmatprep.subr.mxu0 0.0
    %5758 = vmatpush2.msra.mxu0 0.0
    %5759 = vmatprep.subr.mxu0 0.0
    %5760 = vmatpush2.msra.mxu0 0.0
    %5761 = vmatprep.subr.mxu0 0.0
    %5762 = vmatpush2.msra.mxu0 0.0
    %5763 = vmatprep.subr.mxu0 0.0
    %5764 = vmatpush2.msra.mxu0 0.0
    %5765 = vmatprep.subr.mxu0 0.0
    %5766 = vmatpush2.msra.mxu0 0.0
    %5767 = vmatprep.subr.mxu0 0.0
    %5768 = vmatpush2.msra.mxu0 0.0
    %5769 = vmatprep.subr.mxu0 0.0
    %5770 = vmatpush2.msra.mxu0 0.0
    %5771 = vmatprep.subr.mxu0 0.0
    %5772 = vmatpush2.msra.mxu0 0.0
    %5773 = vmatprep.subr.mxu0 0.0
    %5774 = vmatpush2.msra.mxu0 0.0
    %5775 = vmatprep.subr.mxu0 0.0
    %5776 = vmatpush2.msra.mxu0 0.0
    %5777 = vmatprep.mubr.f32.mxu0 0.0
    %5778 = vmatmul.mubr.f32.gmra.mxu0 %v5577
    %v5779 = vpop.f32.mrf.mxu0
    %v5780 = vadd.f32 0.0, %v5779
    %v5781 = vpop.f32.mrf.mxu0
    %v5782 = vadd.f32 0.0, %v5781
    %5783 = vdwg.mxu0
    %v5784 = vadd.f32 %v5573, %v5709
    %v5785 = vadd.f32 %v5574, %v5711
    %v5786 = vadd.f32 %v5575, %v5780
    %v5787 = vadd.f32 %v5576, %v5782
    %v5788 = vmul.f32 %v5784, 0.5
    %v5789 = vtanh.pop %v5788
    %v5790 = vmul.f32 %v5789, 0.5
    %v5791 = vadd.f32 %v5790, 0.5
    %v5792 = vmul.f32 %v5785, 0.5
    %v5793 = vtanh.pop %v5792
    %v5794 = vmul.f32 %v5793, 0.5
    %v5795 = vadd.f32 %v5794, 0.5
    %v5796 = vtanh.pop %v5786
    %v5797 = vmul.f32 %v5787, 0.5
    %v5798 = vtanh.pop %v5797
    %v5799 = vmul.f32 %v5798, 0.5
    %v5800 = vadd.f32 %v5799, 0.5
    %v5801 = vld [vmem:[#allocation5] sm:$0xff]
    %v5802 = vmul.f32 %v5795, %v5801
    %v5803 = vmul.f32 %v5791, %v5796
    %v5804 = vadd.f32 %v5802, %v5803
    %v5805 = vtanh.pop %v5804
    %v5806 = vmul.f32 %v5800, %v5805
    %5807 = vst [vmem:[#allocation5] sm:$0xff] %v5804
    %5808 = vst [vmem:[#allocation4] sm:$0xff] %v5806
    %5809 = vst [vmem:[%s1180] sm:$0xff] %v5806
    %v5810 = vld [vmem:[%s1184] sm:$0xff]
    %v5811 = vld [vmem:[%s1184 + $0x8] sm:$0xff]
    %v5812 = vld [vmem:[%s1184 + $0x10] sm:$0xff]
    %v5813 = vld [vmem:[%s1184 + $0x18] sm:$0xff]
    %v5814 = vld [vmem:[#allocation4] sm:$0xff]
    %v5815 = vld [vmem:[#allocation13] sm:$0xff]
    %v5816 = vld [vmem:[#allocation13 + $0x8] sm:$0xff]
    %v5817 = vld [vmem:[#allocation13 + $0x10] sm:$0xff]
    %v5818 = vld [vmem:[#allocation13 + $0x18] sm:$0xff]
    %v5819 = vld [vmem:[#allocation13 + $0x20] sm:$0xff]
    %v5820 = vld [vmem:[#allocation13 + $0x28] sm:$0xff]
    %v5821 = vld [vmem:[#allocation13 + $0x30] sm:$0xff]
    %v5822 = vld [vmem:[#allocation13 + $0x38] sm:$0xff]
    %v5823 = vld [vmem:[#allocation13 + $0x40] sm:$0xff]
    %v5824 = vld [vmem:[#allocation13 + $0x48] sm:$0xff]
    %v5825 = vld [vmem:[#allocation13 + $0x50] sm:$0xff]
    %v5826 = vld [vmem:[#allocation13 + $0x58] sm:$0xff]
    %v5827 = vld [vmem:[#allocation13 + $0x60] sm:$0xff]
    %v5828 = vld [vmem:[#allocation13 + $0x68] sm:$0xff]
    %v5829 = vld [vmem:[#allocation13 + $0x70] sm:$0xff]
    %v5830 = vld [vmem:[#allocation13 + $0x78] sm:$0xff]
    %v5831 = vld [vmem:[#allocation13 + $0x80] sm:$0xff]
    %v5832 = vld [vmem:[#allocation13 + $0x88] sm:$0xff]
    %v5833 = vld [vmem:[#allocation13 + $0x90] sm:$0xff]
    %v5834 = vld [vmem:[#allocation13 + $0x98] sm:$0xff]
    %v5835 = vld [vmem:[#allocation13 + $0xa0] sm:$0xff]
    %v5836 = vld [vmem:[#allocation13 + $0xa8] sm:$0xff]
    %v5837 = vld [vmem:[#allocation13 + $0xb0] sm:$0xff]
    %v5838 = vld [vmem:[#allocation13 + $0xb8] sm:$0xff]
    %v5839 = vld [vmem:[#allocation13 + $0xc0] sm:$0xff]
    %v5840 = vld [vmem:[#allocation13 + $0xc8] sm:$0xff]
    %v5841 = vld [vmem:[#allocation13 + $0xd0] sm:$0xff]
    %v5842 = vld [vmem:[#allocation13 + $0xd8] sm:$0xff]
    %v5843 = vld [vmem:[#allocation13 + $0xe0] sm:$0xff]
    %v5844 = vld [vmem:[#allocation13 + $0xe8] sm:$0xff]
    %v5845 = vld [vmem:[#allocation13 + $0xf0] sm:$0xff]
    %v5846 = vld [vmem:[#allocation13 + $0xf8] sm:$0xff]
    %v5847 = vld [vmem:[#allocation13 + $0x100] sm:$0xff]
    %v5848 = vld [vmem:[#allocation13 + $0x108] sm:$0xff]
    %v5849 = vld [vmem:[#allocation13 + $0x110] sm:$0xff]
    %v5850 = vld [vmem:[#allocation13 + $0x118] sm:$0xff]
    %v5851 = vld [vmem:[#allocation13 + $0x120] sm:$0xff]
    %v5852 = vld [vmem:[#allocation13 + $0x128] sm:$0xff]
    %v5853 = vld [vmem:[#allocation13 + $0x130] sm:$0xff]
    %v5854 = vld [vmem:[#allocation13 + $0x138] sm:$0xff]
    %v5855 = vld [vmem:[#allocation13 + $0x140] sm:$0xff]
    %v5856 = vld [vmem:[#allocation13 + $0x148] sm:$0xff]
    %v5857 = vld [vmem:[#allocation13 + $0x150] sm:$0xff]
    %v5858 = vld [vmem:[#allocation13 + $0x158] sm:$0xff]
    %v5859 = vld [vmem:[#allocation13 + $0x160] sm:$0xff]
    %v5860 = vld [vmem:[#allocation13 + $0x168] sm:$0xff]
    %v5861 = vld [vmem:[#allocation13 + $0x170] sm:$0xff]
    %v5862 = vld [vmem:[#allocation13 + $0x178] sm:$0xff]
    %v5863 = vld [vmem:[#allocation13 + $0x180] sm:$0xff]
    %v5864 = vld [vmem:[#allocation13 + $0x188] sm:$0xff]
    %v5865 = vld [vmem:[#allocation13 + $0x190] sm:$0xff]
    %v5866 = vld [vmem:[#allocation13 + $0x198] sm:$0xff]
    %v5867 = vld [vmem:[#allocation13 + $0x1a0] sm:$0xff]
    %v5868 = vld [vmem:[#allocation13 + $0x1a8] sm:$0xff]
    %v5869 = vld [vmem:[#allocation13 + $0x1b0] sm:$0xff]
    %v5870 = vld [vmem:[#allocation13 + $0x1b8] sm:$0xff]
    %v5871 = vld [vmem:[#allocation13 + $0x1c0] sm:$0xff]
    %v5872 = vld [vmem:[#allocation13 + $0x1c8] sm:$0xff]
    %v5873 = vld [vmem:[#allocation13 + $0x1d0] sm:$0xff]
    %v5874 = vld [vmem:[#allocation13 + $0x1d8] sm:$0xff]
    %v5875 = vld [vmem:[#allocation13 + $0x1e0] sm:$0xff]
    %v5876 = vld [vmem:[#allocation13 + $0x1e8] sm:$0xff]
    %v5877 = vld [vmem:[#allocation13 + $0x1f0] sm:$0xff]
    %v5878 = vld [vmem:[#allocation13 + $0x1f8] sm:$0xff]
    %5879 = vmatprep.subr.mxu0 %v5876
    %5880 = vmatpush1.msra.mxu0 %v5875
    %5881 = vmatprep.subr.mxu0 %v5872
    %5882 = vmatpush1.msra.mxu0 %v5871
    %5883 = vmatprep.subr.mxu0 %v5868
    %5884 = vmatpush1.msra.mxu0 %v5867
    %5885 = vmatprep.subr.mxu0 %v5864
    %5886 = vmatpush1.msra.mxu0 %v5863
    %5887 = vmatprep.subr.mxu0 %v5860
    %5888 = vmatpush1.msra.mxu0 %v5859
    %5889 = vmatprep.subr.mxu0 %v5856
    %5890 = vmatpush1.msra.mxu0 %v5855
    %5891 = vmatprep.subr.mxu0 %v5852
    %5892 = vmatpush1.msra.mxu0 %v5851
    %5893 = vmatprep.subr.mxu0 %v5848
    %5894 = vmatpush1.msra.mxu0 %v5847
    %5895 = vmatprep.subr.mxu0 %v5844
    %5896 = vmatpush1.msra.mxu0 %v5843
    %5897 = vmatprep.subr.mxu0 %v5840
    %5898 = vmatpush1.msra.mxu0 %v5839
    %5899 = vmatprep.subr.mxu0 %v5836
    %5900 = vmatpush1.msra.mxu0 %v5835
    %5901 = vmatprep.subr.mxu0 %v5832
    %5902 = vmatpush1.msra.mxu0 %v5831
    %5903 = vmatprep.subr.mxu0 %v5828
    %5904 = vmatpush1.msra.mxu0 %v5827
    %5905 = vmatprep.subr.mxu0 %v5824
    %5906 = vmatpush1.msra.mxu0 %v5823
    %5907 = vmatprep.subr.mxu0 %v5820
    %5908 = vmatpush1.msra.mxu0 %v5819
    %5909 = vmatprep.subr.mxu0 %v5816
    %5910 = vmatpush1.msra.mxu0 %v5815
    %5911 = vmatprep.subr.mxu0 0.0
    %5912 = vmatpush2.msra.mxu0 0.0
    %5913 = vmatprep.subr.mxu0 0.0
    %5914 = vmatpush2.msra.mxu0 0.0
    %5915 = vmatprep.subr.mxu0 0.0
    %5916 = vmatpush2.msra.mxu0 0.0
    %5917 = vmatprep.subr.mxu0 0.0
    %5918 = vmatpush2.msra.mxu0 0.0
    %5919 = vmatprep.subr.mxu0 0.0
    %5920 = vmatpush2.msra.mxu0 0.0
    %5921 = vmatprep.subr.mxu0 0.0
    %5922 = vmatpush2.msra.mxu0 0.0
    %5923 = vmatprep.subr.mxu0 0.0
    %5924 = vmatpush2.msra.mxu0 0.0
    %5925 = vmatprep.subr.mxu0 0.0
    %5926 = vmatpush2.msra.mxu0 0.0
    %5927 = vmatprep.subr.mxu0 0.0
    %5928 = vmatpush2.msra.mxu0 0.0
    %5929 = vmatprep.subr.mxu0 0.0
    %5930 = vmatpush2.msra.mxu0 0.0
    %5931 = vmatprep.subr.mxu0 0.0
    %5932 = vmatpush2.msra.mxu0 0.0
    %5933 = vmatprep.subr.mxu0 0.0
    %5934 = vmatpush2.msra.mxu0 0.0
    %5935 = vmatprep.subr.mxu0 0.0
    %5936 = vmatpush2.msra.mxu0 0.0
    %5937 = vmatprep.subr.mxu0 0.0
    %5938 = vmatpush2.msra.mxu0 0.0
    %5939 = vmatprep.subr.mxu0 0.0
    %5940 = vmatpush2.msra.mxu0 0.0
    %5941 = vmatprep.subr.mxu0 0.0
    %5942 = vmatpush2.msra.mxu0 0.0
    %5943 = vmatprep.mubr.f32.mxu0 0.0
    %5944 = vmatmul.mubr.f32.gmra.mxu0 %v5814
    %v5945 = vpop.f32.mrf.mxu0
    %v5946 = vadd.f32 0.0, %v5945
    %v5947 = vpop.f32.mrf.mxu0
    %v5948 = vadd.f32 0.0, %v5947
    %5949 = vdwg.mxu0
    %5950 = vmatprep.subr.mxu0 %v5878
    %5951 = vmatpush1.msra.mxu0 %v5877
    %5952 = vmatprep.subr.mxu0 %v5874
    %5953 = vmatpush1.msra.mxu0 %v5873
    %5954 = vmatprep.subr.mxu0 %v5870
    %5955 = vmatpush1.msra.mxu0 %v5869
    %5956 = vmatprep.subr.mxu0 %v5866
    %5957 = vmatpush1.msra.mxu0 %v5865
    %5958 = vmatprep.subr.mxu0 %v5862
    %5959 = vmatpush1.msra.mxu0 %v5861
    %5960 = vmatprep.subr.mxu0 %v5858
    %5961 = vmatpush1.msra.mxu0 %v5857
    %5962 = vmatprep.subr.mxu0 %v5854
    %5963 = vmatpush1.msra.mxu0 %v5853
    %5964 = vmatprep.subr.mxu0 %v5850
    %5965 = vmatpush1.msra.mxu0 %v5849
    %5966 = vmatprep.subr.mxu0 %v5846
    %5967 = vmatpush1.msra.mxu0 %v5845
    %5968 = vmatprep.subr.mxu0 %v5842
    %5969 = vmatpush1.msra.mxu0 %v5841
    %5970 = vmatprep.subr.mxu0 %v5838
    %5971 = vmatpush1.msra.mxu0 %v5837
    %5972 = vmatprep.subr.mxu0 %v5834
    %5973 = vmatpush1.msra.mxu0 %v5833
    %5974 = vmatprep.subr.mxu0 %v5830
    %5975 = vmatpush1.msra.mxu0 %v5829
    %5976 = vmatprep.subr.mxu0 %v5826
    %5977 = vmatpush1.msra.mxu0 %v5825
    %5978 = vmatprep.subr.mxu0 %v5822
    %5979 = vmatpush1.msra.mxu0 %v5821
    %5980 = vmatprep.subr.mxu0 %v5818
    %5981 = vmatpush1.msra.mxu0 %v5817
    %5982 = vmatprep.subr.mxu0 0.0
    %5983 = vmatpush2.msra.mxu0 0.0
    %5984 = vmatprep.subr.mxu0 0.0
    %5985 = vmatpush2.msra.mxu0 0.0
    %5986 = vmatprep.subr.mxu0 0.0
    %5987 = vmatpush2.msra.mxu0 0.0
    %5988 = vmatprep.subr.mxu0 0.0
    %5989 = vmatpush2.msra.mxu0 0.0
    %5990 = vmatprep.subr.mxu0 0.0
    %5991 = vmatpush2.msra.mxu0 0.0
    %5992 = vmatprep.subr.mxu0 0.0
    %5993 = vmatpush2.msra.mxu0 0.0
    %5994 = vmatprep.subr.mxu0 0.0
    %5995 = vmatpush2.msra.mxu0 0.0
    %5996 = vmatprep.subr.mxu0 0.0
    %5997 = vmatpush2.msra.mxu0 0.0
    %5998 = vmatprep.subr.mxu0 0.0
    %5999 = vmatpush2.msra.mxu0 0.0
    %6000 = vmatprep.subr.mxu0 0.0
    %6001 = vmatpush2.msra.mxu0 0.0
    %6002 = vmatprep.subr.mxu0 0.0
    %6003 = vmatpush2.msra.mxu0 0.0
    %6004 = vmatprep.subr.mxu0 0.0
    %6005 = vmatpush2.msra.mxu0 0.0
    %6006 = vmatprep.subr.mxu0 0.0
    %6007 = vmatpush2.msra.mxu0 0.0
    %6008 = vmatprep.subr.mxu0 0.0
    %6009 = vmatpush2.msra.mxu0 0.0
    %6010 = vmatprep.subr.mxu0 0.0
    %6011 = vmatpush2.msra.mxu0 0.0
    %6012 = vmatprep.subr.mxu0 0.0
    %6013 = vmatpush2.msra.mxu0 0.0
    %6014 = vmatprep.mubr.f32.mxu0 0.0
    %6015 = vmatmul.mubr.f32.gmra.mxu0 %v5814
    %v6016 = vpop.f32.mrf.mxu0
    %v6017 = vadd.f32 0.0, %v6016
    %v6018 = vpop.f32.mrf.mxu0
    %v6019 = vadd.f32 0.0, %v6018
    %6020 = vdwg.mxu0
    %v6021 = vadd.f32 %v5810, %v5946
    %v6022 = vadd.f32 %v5811, %v5948
    %v6023 = vadd.f32 %v5812, %v6017
    %v6024 = vadd.f32 %v5813, %v6019
    %v6025 = vmul.f32 %v6021, 0.5
    %v6026 = vtanh.pop %v6025
    %v6027 = vmul.f32 %v6026, 0.5
    %v6028 = vadd.f32 %v6027, 0.5
    %v6029 = vmul.f32 %v6022, 0.5
    %v6030 = vtanh.pop %v6029
    %v6031 = vmul.f32 %v6030, 0.5
    %v6032 = vadd.f32 %v6031, 0.5
    %v6033 = vtanh.pop %v6023
    %v6034 = vmul.f32 %v6024, 0.5
    %v6035 = vtanh.pop %v6034
    %v6036 = vmul.f32 %v6035, 0.5
    %v6037 = vadd.f32 %v6036, 0.5
    %v6038 = vld [vmem:[#allocation5] sm:$0xff]
    %v6039 = vmul.f32 %v6032, %v6038
    %v6040 = vmul.f32 %v6028, %v6033
    %v6041 = vadd.f32 %v6039, %v6040
    %v6042 = vtanh.pop %v6041
    %v6043 = vmul.f32 %v6037, %v6042
    %6044 = vst [vmem:[#allocation5] sm:$0xff] %v6041
    %6045 = vst [vmem:[#allocation4] sm:$0xff] %v6043
    %6046 = vst [vmem:[%s1421] sm:$0xff] %v6043
    %v6047 = vld [vmem:[%s1425] sm:$0xff]
    %v6048 = vld [vmem:[%s1425 + $0x8] sm:$0xff]
    %v6049 = vld [vmem:[%s1425 + $0x10] sm:$0xff]
    %v6050 = vld [vmem:[%s1425 + $0x18] sm:$0xff]
    %v6051 = vld [vmem:[#allocation4] sm:$0xff]
    %v6052 = vld [vmem:[#allocation13] sm:$0xff]
    %v6053 = vld [vmem:[#allocation13 + $0x8] sm:$0xff]
    %v6054 = vld [vmem:[#allocation13 + $0x10] sm:$0xff]
    %v6055 = vld [vmem:[#allocation13 + $0x18] sm:$0xff]
    %v6056 = vld [vmem:[#allocation13 + $0x20] sm:$0xff]
    %v6057 = vld [vmem:[#allocation13 + $0x28] sm:$0xff]
    %v6058 = vld [vmem:[#allocation13 + $0x30] sm:$0xff]
    %v6059 = vld [vmem:[#allocation13 + $0x38] sm:$0xff]
    %v6060 = vld [vmem:[#allocation13 + $0x40] sm:$0xff]
    %v6061 = vld [vmem:[#allocation13 + $0x48] sm:$0xff]
    %v6062 = vld [vmem:[#allocation13 + $0x50] sm:$0xff]
    %v6063 = vld [vmem:[#allocation13 + $0x58] sm:$0xff]
    %v6064 = vld [vmem:[#allocation13 + $0x60] sm:$0xff]
    %v6065 = vld [vmem:[#allocation13 + $0x68] sm:$0xff]
    %v6066 = vld [vmem:[#allocation13 + $0x70] sm:$0xff]
    %v6067 = vld [vmem:[#allocation13 + $0x78] sm:$0xff]
    %v6068 = vld [vmem:[#allocation13 + $0x80] sm:$0xff]
    %v6069 = vld [vmem:[#allocation13 + $0x88] sm:$0xff]
    %v6070 = vld [vmem:[#allocation13 + $0x90] sm:$0xff]
    %v6071 = vld [vmem:[#allocation13 + $0x98] sm:$0xff]
    %v6072 = vld [vmem:[#allocation13 + $0xa0] sm:$0xff]
    %v6073 = vld [vmem:[#allocation13 + $0xa8] sm:$0xff]
    %v6074 = vld [vmem:[#allocation13 + $0xb0] sm:$0xff]
    %v6075 = vld [vmem:[#allocation13 + $0xb8] sm:$0xff]
    %v6076 = vld [vmem:[#allocation13 + $0xc0] sm:$0xff]
    %v6077 = vld [vmem:[#allocation13 + $0xc8] sm:$0xff]
    %v6078 = vld [vmem:[#allocation13 + $0xd0] sm:$0xff]
    %v6079 = vld [vmem:[#allocation13 + $0xd8] sm:$0xff]
    %v6080 = vld [vmem:[#allocation13 + $0xe0] sm:$0xff]
    %v6081 = vld [vmem:[#allocation13 + $0xe8] sm:$0xff]
    %v6082 = vld [vmem:[#allocation13 + $0xf0] sm:$0xff]
    %v6083 = vld [vmem:[#allocation13 + $0xf8] sm:$0xff]
    %v6084 = vld [vmem:[#allocation13 + $0x100] sm:$0xff]
    %v6085 = vld [vmem:[#allocation13 + $0x108] sm:$0xff]
    %v6086 = vld [vmem:[#allocation13 + $0x110] sm:$0xff]
    %v6087 = vld [vmem:[#allocation13 + $0x118] sm:$0xff]
    %v6088 = vld [vmem:[#allocation13 + $0x120] sm:$0xff]
    %v6089 = vld [vmem:[#allocation13 + $0x128] sm:$0xff]
    %v6090 = vld [vmem:[#allocation13 + $0x130] sm:$0xff]
    %v6091 = vld [vmem:[#allocation13 + $0x138] sm:$0xff]
    %v6092 = vld [vmem:[#allocation13 + $0x140] sm:$0xff]
    %v6093 = vld [vmem:[#allocation13 + $0x148] sm:$0xff]
    %v6094 = vld [vmem:[#allocation13 + $0x150] sm:$0xff]
    %v6095 = vld [vmem:[#allocation13 + $0x158] sm:$0xff]
    %v6096 = vld [vmem:[#allocation13 + $0x160] sm:$0xff]
    %v6097 = vld [vmem:[#allocation13 + $0x168] sm:$0xff]
    %v6098 = vld [vmem:[#allocation13 + $0x170] sm:$0xff]
    %v6099 = vld [vmem:[#allocation13 + $0x178] sm:$0xff]
    %v6100 = vld [vmem:[#allocation13 + $0x180] sm:$0xff]
    %v6101 = vld [vmem:[#allocation13 + $0x188] sm:$0xff]
    %v6102 = vld [vmem:[#allocation13 + $0x190] sm:$0xff]
    %v6103 = vld [vmem:[#allocation13 + $0x198] sm:$0xff]
    %v6104 = vld [vmem:[#allocation13 + $0x1a0] sm:$0xff]
    %v6105 = vld [vmem:[#allocation13 + $0x1a8] sm:$0xff]
    %v6106 = vld [vmem:[#allocation13 + $0x1b0] sm:$0xff]
    %v6107 = vld [vmem:[#allocation13 + $0x1b8] sm:$0xff]
    %v6108 = vld [vmem:[#allocation13 + $0x1c0] sm:$0xff]
    %v6109 = vld [vmem:[#allocation13 + $0x1c8] sm:$0xff]
    %v6110 = vld [vmem:[#allocation13 + $0x1d0] sm:$0xff]
    %v6111 = vld [vmem:[#allocation13 + $0x1d8] sm:$0xff]
    %v6112 = vld [vmem:[#allocation13 + $0x1e0] sm:$0xff]
    %v6113 = vld [vmem:[#allocation13 + $0x1e8] sm:$0xff]
    %v6114 = vld [vmem:[#allocation13 + $0x1f0] sm:$0xff]
    %v6115 = vld [vmem:[#allocation13 + $0x1f8] sm:$0xff]
    %6116 = vmatprep.subr.mxu0 %v6113
    %6117 = vmatpush1.msra.mxu0 %v6112
    %6118 = vmatprep.subr.mxu0 %v6109
    %6119 = vmatpush1.msra.mxu0 %v6108
    %6120 = vmatprep.subr.mxu0 %v6105
    %6121 = vmatpush1.msra.mxu0 %v6104
    %6122 = vmatprep.subr.mxu0 %v6101
    %6123 = vmatpush1.msra.mxu0 %v6100
    %6124 = vmatprep.subr.mxu0 %v6097
    %6125 = vmatpush1.msra.mxu0 %v6096
    %6126 = vmatprep.subr.mxu0 %v6093
    %6127 = vmatpush1.msra.mxu0 %v6092
    %6128 = vmatprep.subr.mxu0 %v6089
    %6129 = vmatpush1.msra.mxu0 %v6088
    %6130 = vmatprep.subr.mxu0 %v6085
    %6131 = vmatpush1.msra.mxu0 %v6084
    %6132 = vmatprep.subr.mxu0 %v6081
    %6133 = vmatpush1.msra.mxu0 %v6080
    %6134 = vmatprep.subr.mxu0 %v6077
    %6135 = vmatpush1.msra.mxu0 %v6076
    %6136 = vmatprep.subr.mxu0 %v6073
    %6137 = vmatpush1.msra.mxu0 %v6072
    %6138 = vmatprep.subr.mxu0 %v6069
    %6139 = vmatpush1.msra.mxu0 %v6068
    %6140 = vmatprep.subr.mxu0 %v6065
    %6141 = vmatpush1.msra.mxu0 %v6064
    %6142 = vmatprep.subr.mxu0 %v6061
    %6143 = vmatpush1.msra.mxu0 %v6060
    %6144 = vmatprep.subr.mxu0 %v6057
    %6145 = vmatpush1.msra.mxu0 %v6056
    %6146 = vmatprep.subr.mxu0 %v6053
    %6147 = vmatpush1.msra.mxu0 %v6052
    %6148 = vmatprep.subr.mxu0 0.0
    %6149 = vmatpush2.msra.mxu0 0.0
    %6150 = vmatprep.subr.mxu0 0.0
    %6151 = vmatpush2.msra.mxu0 0.0
    %6152 = vmatprep.subr.mxu0 0.0
    %6153 = vmatpush2.msra.mxu0 0.0
    %6154 = vmatprep.subr.mxu0 0.0
    %6155 = vmatpush2.msra.mxu0 0.0
    %6156 = vmatprep.subr.mxu0 0.0
    %6157 = vmatpush2.msra.mxu0 0.0
    %6158 = vmatprep.subr.mxu0 0.0
    %6159 = vmatpush2.msra.mxu0 0.0
    %6160 = vmatprep.subr.mxu0 0.0
    %6161 = vmatpush2.msra.mxu0 0.0
    %6162 = vmatprep.subr.mxu0 0.0
    %6163 = vmatpush2.msra.mxu0 0.0
    %6164 = vmatprep.subr.mxu0 0.0
    %6165 = vmatpush2.msra.mxu0 0.0
    %6166 = vmatprep.subr.mxu0 0.0
    %6167 = vmatpush2.msra.mxu0 0.0
    %6168 = vmatprep.subr.mxu0 0.0
    %6169 = vmatpush2.msra.mxu0 0.0
    %6170 = vmatprep.subr.mxu0 0.0
    %6171 = vmatpush2.msra.mxu0 0.0
    %6172 = vmatprep.subr.mxu0 0.0
    %6173 = vmatpush2.msra.mxu0 0.0
    %6174 = vmatprep.subr.mxu0 0.0
    %6175 = vmatpush2.msra.mxu0 0.0
    %6176 = vmatprep.subr.mxu0 0.0
    %6177 = vmatpush2.msra.mxu0 0.0
    %6178 = vmatprep.subr.mxu0 0.0
    %6179 = vmatpush2.msra.mxu0 0.0
    %6180 = vmatprep.mubr.f32.mxu0 0.0
    %6181 = vmatmul.mubr.f32.gmra.mxu0 %v6051
    %v6182 = vpop.f32.mrf.mxu0
    %v6183 = vadd.f32 0.0, %v6182
    %v6184 = vpop.f32.mrf.mxu0
    %v6185 = vadd.f32 0.0, %v6184
    %6186 = vdwg.mxu0
    %6187 = vmatprep.subr.mxu0 %v6115
    %6188 = vmatpush1.msra.mxu0 %v6114
    %6189 = vmatprep.subr.mxu0 %v6111
    %6190 = vmatpush1.msra.mxu0 %v6110
    %6191 = vmatprep.subr.mxu0 %v6107
    %6192 = vmatpush1.msra.mxu0 %v6106
    %6193 = vmatprep.subr.mxu0 %v6103
    %6194 = vmatpush1.msra.mxu0 %v6102
    %6195 = vmatprep.subr.mxu0 %v6099
    %6196 = vmatpush1.msra.mxu0 %v6098
    %6197 = vmatprep.subr.mxu0 %v6095
    %6198 = vmatpush1.msra.mxu0 %v6094
    %6199 = vmatprep.subr.mxu0 %v6091
    %6200 = vmatpush1.msra.mxu0 %v6090
    %6201 = vmatprep.subr.mxu0 %v6087
    %6202 = vmatpush1.msra.mxu0 %v6086
    %6203 = vmatprep.subr.mxu0 %v6083
    %6204 = vmatpush1.msra.mxu0 %v6082
    %6205 = vmatprep.subr.mxu0 %v6079
    %6206 = vmatpush1.msra.mxu0 %v6078
    %6207 = vmatprep.subr.mxu0 %v6075
    %6208 = vmatpush1.msra.mxu0 %v6074
    %6209 = vmatprep.subr.mxu0 %v6071
    %6210 = vmatpush1.msra.mxu0 %v6070
    %6211 = vmatprep.subr.mxu0 %v6067
    %6212 = vmatpush1.msra.mxu0 %v6066
    %6213 = vmatprep.subr.mxu0 %v6063
    %6214 = vmatpush1.msra.mxu0 %v6062
    %6215 = vmatprep.subr.mxu0 %v6059
    %6216 = vmatpush1.msra.mxu0 %v6058
    %6217 = vmatprep.subr.mxu0 %v6055
    %6218 = vmatpush1.msra.mxu0 %v6054
    %6219 = vmatprep.subr.mxu0 0.0
    %6220 = vmatpush2.msra.mxu0 0.0
    %6221 = vmatprep.subr.mxu0 0.0
    %6222 = vmatpush2.msra.mxu0 0.0
    %6223 = vmatprep.subr.mxu0 0.0
    %6224 = vmatpush2.msra.mxu0 0.0
    %6225 = vmatprep.subr.mxu0 0.0
    %6226 = vmatpush2.msra.mxu0 0.0
    %6227 = vmatprep.subr.mxu0 0.0
    %6228 = vmatpush2.msra.mxu0 0.0
    %6229 = vmatprep.subr.mxu0 0.0
    %6230 = vmatpush2.msra.mxu0 0.0
    %6231 = vmatprep.subr.mxu0 0.0
    %6232 = vmatpush2.msra.mxu0 0.0
    %6233 = vmatprep.subr.mxu0 0.0
    %6234 = vmatpush2.msra.mxu0 0.0
    %6235 = vmatprep.subr.mxu0 0.0
    %6236 = vmatpush2.msra.mxu0 0.0
    %6237 = vmatprep.subr.mxu0 0.0
    %6238 = vmatpush2.msra.mxu0 0.0
    %6239 = vmatprep.subr.mxu0 0.0
    %6240 = vmatpush2.msra.mxu0 0.0
    %6241 = vmatprep.subr.mxu0 0.0
    %6242 = vmatpush2.msra.mxu0 0.0
    %6243 = vmatprep.subr.mxu0 0.0
    %6244 = vmatpush2.msra.mxu0 0.0
    %6245 = vmatprep.subr.mxu0 0.0
    %6246 = vmatpush2.msra.mxu0 0.0
    %6247 = vmatprep.subr.mxu0 0.0
    %6248 = vmatpush2.msra.mxu0 0.0
    %6249 = vmatprep.subr.mxu0 0.0
    %6250 = vmatpush2.msra.mxu0 0.0
    %6251 = vmatprep.mubr.f32.mxu0 0.0
    %6252 = vmatmul.mubr.f32.gmra.mxu0 %v6051
    %v6253 = vpop.f32.mrf.mxu0
    %v6254 = vadd.f32 0.0, %v6253
    %v6255 = vpop.f32.mrf.mxu0
    %v6256 = vadd.f32 0.0, %v6255
    %6257 = vdwg.mxu0
    %v6258 = vadd.f32 %v6047, %v6183
    %v6259 = vadd.f32 %v6048, %v6185
    %v6260 = vadd.f32 %v6049, %v6254
    %v6261 = vadd.f32 %v6050, %v6256
    %v6262 = vmul.f32 %v6258, 0.5
    %v6263 = vtanh.pop %v6262
    %v6264 = vmul.f32 %v6263, 0.5
    %v6265 = vadd.f32 %v6264, 0.5
    %v6266 = vmul.f32 %v6259, 0.5
    %v6267 = vtanh.pop %v6266
    %v6268 = vmul.f32 %v6267, 0.5
    %v6269 = vadd.f32 %v6268, 0.5
    %v6270 = vtanh.pop %v6260
    %v6271 = vmul.f32 %v6261, 0.5
    %v6272 = vtanh.pop %v6271
    %v6273 = vmul.f32 %v6272, 0.5
    %v6274 = vadd.f32 %v6273, 0.5
    %v6275 = vld [vmem:[#allocation5] sm:$0xff]
    %v6276 = vmul.f32 %v6269, %v6275
    %v6277 = vmul.f32 %v6265, %v6270
    %v6278 = vadd.f32 %v6276, %v6277
    %v6279 = vtanh.pop %v6278
    %v6280 = vmul.f32 %v6274, %v6279
    %6281 = vst [vmem:[#allocation5] sm:$0xff] %v6278
    %6282 = vst [vmem:[#allocation4] sm:$0xff] %v6280
    %6283 = vst [vmem:[%s1662] sm:$0xff] %v6280
    %v6284 = vld [vmem:[%s1666] sm:$0xff]
    %v6285 = vld [vmem:[%s1666 + $0x8] sm:$0xff]
    %v6286 = vld [vmem:[%s1666 + $0x10] sm:$0xff]
    %v6287 = vld [vmem:[%s1666 + $0x18] sm:$0xff]
    %v6288 = vld [vmem:[#allocation4] sm:$0xff]
    %v6289 = vld [vmem:[#allocation13] sm:$0xff]
    %v6290 = vld [vmem:[#allocation13 + $0x8] sm:$0xff]
    %v6291 = vld [vmem:[#allocation13 + $0x10] sm:$0xff]
    %v6292 = vld [vmem:[#allocation13 + $0x18] sm:$0xff]
    %v6293 = vld [vmem:[#allocation13 + $0x20] sm:$0xff]
    %v6294 = vld [vmem:[#allocation13 + $0x28] sm:$0xff]
    %v6295 = vld [vmem:[#allocation13 + $0x30] sm:$0xff]
    %v6296 = vld [vmem:[#allocation13 + $0x38] sm:$0xff]
    %v6297 = vld [vmem:[#allocation13 + $0x40] sm:$0xff]
    %v6298 = vld [vmem:[#allocation13 + $0x48] sm:$0xff]
    %v6299 = vld [vmem:[#allocation13 + $0x50] sm:$0xff]
    %v6300 = vld [vmem:[#allocation13 + $0x58] sm:$0xff]
    %v6301 = vld [vmem:[#allocation13 + $0x60] sm:$0xff]
    %v6302 = vld [vmem:[#allocation13 + $0x68] sm:$0xff]
    %v6303 = vld [vmem:[#allocation13 + $0x70] sm:$0xff]
    %v6304 = vld [vmem:[#allocation13 + $0x78] sm:$0xff]
    %v6305 = vld [vmem:[#allocation13 + $0x80] sm:$0xff]
    %v6306 = vld [vmem:[#allocation13 + $0x88] sm:$0xff]
    %v6307 = vld [vmem:[#allocation13 + $0x90] sm:$0xff]
    %v6308 = vld [vmem:[#allocation13 + $0x98] sm:$0xff]
    %v6309 = vld [vmem:[#allocation13 + $0xa0] sm:$0xff]
    %v6310 = vld [vmem:[#allocation13 + $0xa8] sm:$0xff]
    %v6311 = vld [vmem:[#allocation13 + $0xb0] sm:$0xff]
    %v6312 = vld [vmem:[#allocation13 + $0xb8] sm:$0xff]
    %v6313 = vld [vmem:[#allocation13 + $0xc0] sm:$0xff]
    %v6314 = vld [vmem:[#allocation13 + $0xc8] sm:$0xff]
    %v6315 = vld [vmem:[#allocation13 + $0xd0] sm:$0xff]
    %v6316 = vld [vmem:[#allocation13 + $0xd8] sm:$0xff]
    %v6317 = vld [vmem:[#allocation13 + $0xe0] sm:$0xff]
    %v6318 = vld [vmem:[#allocation13 + $0xe8] sm:$0xff]
    %v6319 = vld [vmem:[#allocation13 + $0xf0] sm:$0xff]
    %v6320 = vld [vmem:[#allocation13 + $0xf8] sm:$0xff]
    %v6321 = vld [vmem:[#allocation13 + $0x100] sm:$0xff]
    %v6322 = vld [vmem:[#allocation13 + $0x108] sm:$0xff]
    %v6323 = vld [vmem:[#allocation13 + $0x110] sm:$0xff]
    %v6324 = vld [vmem:[#allocation13 + $0x118] sm:$0xff]
    %v6325 = vld [vmem:[#allocation13 + $0x120] sm:$0xff]
    %v6326 = vld [vmem:[#allocation13 + $0x128] sm:$0xff]
    %v6327 = vld [vmem:[#allocation13 + $0x130] sm:$0xff]
    %v6328 = vld [vmem:[#allocation13 + $0x138] sm:$0xff]
    %v6329 = vld [vmem:[#allocation13 + $0x140] sm:$0xff]
    %v6330 = vld [vmem:[#allocation13 + $0x148] sm:$0xff]
    %v6331 = vld [vmem:[#allocation13 + $0x150] sm:$0xff]
    %v6332 = vld [vmem:[#allocation13 + $0x158] sm:$0xff]
    %v6333 = vld [vmem:[#allocation13 + $0x160] sm:$0xff]
    %v6334 = vld [vmem:[#allocation13 + $0x168] sm:$0xff]
    %v6335 = vld [vmem:[#allocation13 + $0x170] sm:$0xff]
    %v6336 = vld [vmem:[#allocation13 + $0x178] sm:$0xff]
    %v6337 = vld [vmem:[#allocation13 + $0x180] sm:$0xff]
    %v6338 = vld [vmem:[#allocation13 + $0x188] sm:$0xff]
    %v6339 = vld [vmem:[#allocation13 + $0x190] sm:$0xff]
    %v6340 = vld [vmem:[#allocation13 + $0x198] sm:$0xff]
    %v6341 = vld [vmem:[#allocation13 + $0x1a0] sm:$0xff]
    %v6342 = vld [vmem:[#allocation13 + $0x1a8] sm:$0xff]
    %v6343 = vld [vmem:[#allocation13 + $0x1b0] sm:$0xff]
    %v6344 = vld [vmem:[#allocation13 + $0x1b8] sm:$0xff]
    %v6345 = vld [vmem:[#allocation13 + $0x1c0] sm:$0xff]
    %v6346 = vld [vmem:[#allocation13 + $0x1c8] sm:$0xff]
    %v6347 = vld [vmem:[#allocation13 + $0x1d0] sm:$0xff]
    %v6348 = vld [vmem:[#allocation13 + $0x1d8] sm:$0xff]
    %v6349 = vld [vmem:[#allocation13 + $0x1e0] sm:$0xff]
    %v6350 = vld [vmem:[#allocation13 + $0x1e8] sm:$0xff]
    %v6351 = vld [vmem:[#allocation13 + $0x1f0] sm:$0xff]
    %v6352 = vld [vmem:[#allocation13 + $0x1f8] sm:$0xff]
    %6353 = vmatprep.subr.mxu0 %v6350
    %6354 = vmatpush1.msra.mxu0 %v6349
    %6355 = vmatprep.subr.mxu0 %v6346
    %6356 = vmatpush1.msra.mxu0 %v6345
    %6357 = vmatprep.subr.mxu0 %v6342
    %6358 = vmatpush1.msra.mxu0 %v6341
    %6359 = vmatprep.subr.mxu0 %v6338
    %6360 = vmatpush1.msra.mxu0 %v6337
    %6361 = vmatprep.subr.mxu0 %v6334
    %6362 = vmatpush1.msra.mxu0 %v6333
    %6363 = vmatprep.subr.mxu0 %v6330
    %6364 = vmatpush1.msra.mxu0 %v6329
    %6365 = vmatprep.subr.mxu0 %v6326
    %6366 = vmatpush1.msra.mxu0 %v6325
    %6367 = vmatprep.subr.mxu0 %v6322
    %6368 = vmatpush1.msra.mxu0 %v6321
    %6369 = vmatprep.subr.mxu0 %v6318
    %6370 = vmatpush1.msra.mxu0 %v6317
    %6371 = vmatprep.subr.mxu0 %v6314
    %6372 = vmatpush1.msra.mxu0 %v6313
    %6373 = vmatprep.subr.mxu0 %v6310
    %6374 = vmatpush1.msra.mxu0 %v6309
    %6375 = vmatprep.subr.mxu0 %v6306
    %6376 = vmatpush1.msra.mxu0 %v6305
    %6377 = vmatprep.subr.mxu0 %v6302
    %6378 = vmatpush1.msra.mxu0 %v6301
    %6379 = vmatprep.subr.mxu0 %v6298
    %6380 = vmatpush1.msra.mxu0 %v6297
    %6381 = vmatprep.subr.mxu0 %v6294
    %6382 = vmatpush1.msra.mxu0 %v6293
    %6383 = vmatprep.subr.mxu0 %v6290
    %6384 = vmatpush1.msra.mxu0 %v6289
    %6385 = vmatprep.subr.mxu0 0.0
    %6386 = vmatpush2.msra.mxu0 0.0
    %6387 = vmatprep.subr.mxu0 0.0
    %6388 = vmatpush2.msra.mxu0 0.0
    %6389 = vmatprep.subr.mxu0 0.0
    %6390 = vmatpush2.msra.mxu0 0.0
    %6391 = vmatprep.subr.mxu0 0.0
    %6392 = vmatpush2.msra.mxu0 0.0
    %6393 = vmatprep.subr.mxu0 0.0
    %6394 = vmatpush2.msra.mxu0 0.0
    %6395 = vmatprep.subr.mxu0 0.0
    %6396 = vmatpush2.msra.mxu0 0.0
    %6397 = vmatprep.subr.mxu0 0.0
    %6398 = vmatpush2.msra.mxu0 0.0
    %6399 = vmatprep.subr.mxu0 0.0
    %6400 = vmatpush2.msra.mxu0 0.0
    %6401 = vmatprep.subr.mxu0 0.0
    %6402 = vmatpush2.msra.mxu0 0.0
    %6403 = vmatprep.subr.mxu0 0.0
    %6404 = vmatpush2.msra.mxu0 0.0
    %6405 = vmatprep.subr.mxu0 0.0
    %6406 = vmatpush2.msra.mxu0 0.0
    %6407 = vmatprep.subr.mxu0 0.0
    %6408 = vmatpush2.msra.mxu0 0.0
    %6409 = vmatprep.subr.mxu0 0.0
    %6410 = vmatpush2.msra.mxu0 0.0
    %6411 = vmatprep.subr.mxu0 0.0
    %6412 = vmatpush2.msra.mxu0 0.0
    %6413 = vmatprep.subr.mxu0 0.0
    %6414 = vmatpush2.msra.mxu0 0.0
    %6415 = vmatprep.subr.mxu0 0.0
    %6416 = vmatpush2.msra.mxu0 0.0
    %6417 = vmatprep.mubr.f32.mxu0 0.0
    %6418 = vmatmul.mubr.f32.gmra.mxu0 %v6288
    %v6419 = vpop.f32.mrf.mxu0
    %v6420 = vadd.f32 0.0, %v6419
    %v6421 = vpop.f32.mrf.mxu0
    %v6422 = vadd.f32 0.0, %v6421
    %6423 = vdwg.mxu0
    %6424 = vmatprep.subr.mxu0 %v6352
    %6425 = vmatpush1.msra.mxu0 %v6351
    %6426 = vmatprep.subr.mxu0 %v6348
    %6427 = vmatpush1.msra.mxu0 %v6347
    %6428 = vmatprep.subr.mxu0 %v6344
    %6429 = vmatpush1.msra.mxu0 %v6343
    %6430 = vmatprep.subr.mxu0 %v6340
    %6431 = vmatpush1.msra.mxu0 %v6339
    %6432 = vmatprep.subr.mxu0 %v6336
    %6433 = vmatpush1.msra.mxu0 %v6335
    %6434 = vmatprep.subr.mxu0 %v6332
    %6435 = vmatpush1.msra.mxu0 %v6331
    %6436 = vmatprep.subr.mxu0 %v6328
    %6437 = vmatpush1.msra.mxu0 %v6327
    %6438 = vmatprep.subr.mxu0 %v6324
    %6439 = vmatpush1.msra.mxu0 %v6323
    %6440 = vmatprep.subr.mxu0 %v6320
    %6441 = vmatpush1.msra.mxu0 %v6319
    %6442 = vmatprep.subr.mxu0 %v6316
    %6443 = vmatpush1.msra.mxu0 %v6315
    %6444 = vmatprep.subr.mxu0 %v6312
    %6445 = vmatpush1.msra.mxu0 %v6311
    %6446 = vmatprep.subr.mxu0 %v6308
    %6447 = vmatpush1.msra.mxu0 %v6307
    %6448 = vmatprep.subr.mxu0 %v6304
    %6449 = vmatpush1.msra.mxu0 %v6303
    %6450 = vmatprep.subr.mxu0 %v6300
    %6451 = vmatpush1.msra.mxu0 %v6299
    %6452 = vmatprep.subr.mxu0 %v6296
    %6453 = vmatpush1.msra.mxu0 %v6295
    %6454 = vmatprep.subr.mxu0 %v6292
    %6455 = vmatpush1.msra.mxu0 %v6291
    %6456 = vmatprep.subr.mxu0 0.0
    %6457 = vmatpush2.msra.mxu0 0.0
    %6458 = vmatprep.subr.mxu0 0.0
    %6459 = vmatpush2.msra.mxu0 0.0
    %6460 = vmatprep.subr.mxu0 0.0
    %6461 = vmatpush2.msra.mxu0 0.0
    %6462 = vmatprep.subr.mxu0 0.0
    %6463 = vmatpush2.msra.mxu0 0.0
    %6464 = vmatprep.subr.mxu0 0.0
    %6465 = vmatpush2.msra.mxu0 0.0
    %6466 = vmatprep.subr.mxu0 0.0
    %6467 = vmatpush2.msra.mxu0 0.0
    %6468 = vmatprep.subr.mxu0 0.0
    %6469 = vmatpush2.msra.mxu0 0.0
    %6470 = vmatprep.subr.mxu0 0.0
    %6471 = vmatpush2.msra.mxu0 0.0
    %6472 = vmatprep.subr.mxu0 0.0
    %6473 = vmatpush2.msra.mxu0 0.0
    %6474 = vmatprep.subr.mxu0 0.0
    %6475 = vmatpush2.msra.mxu0 0.0
    %6476 = vmatprep.subr.mxu0 0.0
    %6477 = vmatpush2.msra.mxu0 0.0
    %6478 = vmatprep.subr.mxu0 0.0
    %6479 = vmatpush2.msra.mxu0 0.0
    %6480 = vmatprep.subr.mxu0 0.0
    %6481 = vmatpush2.msra.mxu0 0.0
    %6482 = vmatprep.subr.mxu0 0.0
    %6483 = vmatpush2.msra.mxu0 0.0
    %6484 = vmatprep.subr.mxu0 0.0
    %6485 = vmatpush2.msra.mxu0 0.0
    %6486 = vmatprep.subr.mxu0 0.0
    %6487 = vmatpush2.msra.mxu0 0.0
    %6488 = vmatprep.mubr.f32.mxu0 0.0
    %6489 = vmatmul.mubr.f32.gmra.mxu0 %v6288
    %v6490 = vpop.f32.mrf.mxu0
    %v6491 = vadd.f32 0.0, %v6490
    %v6492 = vpop.f32.mrf.mxu0
    %v6493 = vadd.f32 0.0, %v6492
    %6494 = vdwg.mxu0
    %v6495 = vadd.f32 %v6284, %v6420
    %v6496 = vadd.f32 %v6285, %v6422
    %v6497 = vadd.f32 %v6286, %v6491
    %v6498 = vadd.f32 %v6287, %v6493
    %v6499 = vmul.f32 %v6495, 0.5
    %v6500 = vtanh.pop %v6499
    %v6501 = vmul.f32 %v6500, 0.5
    %v6502 = vadd.f32 %v6501, 0.5
    %v6503 = vmul.f32 %v6496, 0.5
    %v6504 = vtanh.pop %v6503
    %v6505 = vmul.f32 %v6504, 0.5
    %v6506 = vadd.f32 %v6505, 0.5
    %v6507 = vtanh.pop %v6497
    %v6508 = vmul.f32 %v6498, 0.5
    %v6509 = vtanh.pop %v6508
    %v6510 = vmul.f32 %v6509, 0.5
    %v6511 = vadd.f32 %v6510, 0.5
    %v6512 = vld [vmem:[#allocation5] sm:$0xff]
    %v6513 = vmul.f32 %v6506, %v6512
    %v6514 = vmul.f32 %v6502, %v6507
    %v6515 = vadd.f32 %v6513, %v6514
    %v6516 = vtanh.pop %v6515
    %v6517 = vmul.f32 %v6511, %v6516
    %6518 = vst [vmem:[#allocation5] sm:$0xff] %v6515
    %6519 = vst [vmem:[#allocation4] sm:$0xff] %v6517
    %6520 = vst [vmem:[%s1903] sm:$0xff] %v6517
    %v6521 = vld [vmem:[%s1907] sm:$0xff]
    %v6522 = vld [vmem:[%s1907 + $0x8] sm:$0xff]
    %v6523 = vld [vmem:[%s1907 + $0x10] sm:$0xff]
    %v6524 = vld [vmem:[%s1907 + $0x18] sm:$0xff]
    %v6525 = vld [vmem:[#allocation4] sm:$0xff]
    %v6526 = vld [vmem:[#allocation13] sm:$0xff]
    %v6527 = vld [vmem:[#allocation13 + $0x8] sm:$0xff]
    %v6528 = vld [vmem:[#allocation13 + $0x10] sm:$0xff]
    %v6529 = vld [vmem:[#allocation13 + $0x18] sm:$0xff]
    %v6530 = vld [vmem:[#allocation13 + $0x20] sm:$0xff]
    %v6531 = vld [vmem:[#allocation13 + $0x28] sm:$0xff]
    %v6532 = vld [vmem:[#allocation13 + $0x30] sm:$0xff]
    %v6533 = vld [vmem:[#allocation13 + $0x38] sm:$0xff]
    %v6534 = vld [vmem:[#allocation13 + $0x40] sm:$0xff]
    %v6535 = vld [vmem:[#allocation13 + $0x48] sm:$0xff]
    %v6536 = vld [vmem:[#allocation13 + $0x50] sm:$0xff]
    %v6537 = vld [vmem:[#allocation13 + $0x58] sm:$0xff]
    %v6538 = vld [vmem:[#allocation13 + $0x60] sm:$0xff]
    %v6539 = vld [vmem:[#allocation13 + $0x68] sm:$0xff]
    %v6540 = vld [vmem:[#allocation13 + $0x70] sm:$0xff]
    %v6541 = vld [vmem:[#allocation13 + $0x78] sm:$0xff]
    %v6542 = vld [vmem:[#allocation13 + $0x80] sm:$0xff]
    %v6543 = vld [vmem:[#allocation13 + $0x88] sm:$0xff]
    %v6544 = vld [vmem:[#allocation13 + $0x90] sm:$0xff]
    %v6545 = vld [vmem:[#allocation13 + $0x98] sm:$0xff]
    %v6546 = vld [vmem:[#allocation13 + $0xa0] sm:$0xff]
    %v6547 = vld [vmem:[#allocation13 + $0xa8] sm:$0xff]
    %v6548 = vld [vmem:[#allocation13 + $0xb0] sm:$0xff]
    %v6549 = vld [vmem:[#allocation13 + $0xb8] sm:$0xff]
    %v6550 = vld [vmem:[#allocation13 + $0xc0] sm:$0xff]
    %v6551 = vld [vmem:[#allocation13 + $0xc8] sm:$0xff]
    %v6552 = vld [vmem:[#allocation13 + $0xd0] sm:$0xff]
    %v6553 = vld [vmem:[#allocation13 + $0xd8] sm:$0xff]
    %v6554 = vld [vmem:[#allocation13 + $0xe0] sm:$0xff]
    %v6555 = vld [vmem:[#allocation13 + $0xe8] sm:$0xff]
    %v6556 = vld [vmem:[#allocation13 + $0xf0] sm:$0xff]
    %v6557 = vld [vmem:[#allocation13 + $0xf8] sm:$0xff]
    %v6558 = vld [vmem:[#allocation13 + $0x100] sm:$0xff]
    %v6559 = vld [vmem:[#allocation13 + $0x108] sm:$0xff]
    %v6560 = vld [vmem:[#allocation13 + $0x110] sm:$0xff]
    %v6561 = vld [vmem:[#allocation13 + $0x118] sm:$0xff]
    %v6562 = vld [vmem:[#allocation13 + $0x120] sm:$0xff]
    %v6563 = vld [vmem:[#allocation13 + $0x128] sm:$0xff]
    %v6564 = vld [vmem:[#allocation13 + $0x130] sm:$0xff]
    %v6565 = vld [vmem:[#allocation13 + $0x138] sm:$0xff]
    %v6566 = vld [vmem:[#allocation13 + $0x140] sm:$0xff]
    %v6567 = vld [vmem:[#allocation13 + $0x148] sm:$0xff]
    %v6568 = vld [vmem:[#allocation13 + $0x150] sm:$0xff]
    %v6569 = vld [vmem:[#allocation13 + $0x158] sm:$0xff]
    %v6570 = vld [vmem:[#allocation13 + $0x160] sm:$0xff]
    %v6571 = vld [vmem:[#allocation13 + $0x168] sm:$0xff]
    %v6572 = vld [vmem:[#allocation13 + $0x170] sm:$0xff]
    %v6573 = vld [vmem:[#allocation13 + $0x178] sm:$0xff]
    %v6574 = vld [vmem:[#allocation13 + $0x180] sm:$0xff]
    %v6575 = vld [vmem:[#allocation13 + $0x188] sm:$0xff]
    %v6576 = vld [vmem:[#allocation13 + $0x190] sm:$0xff]
    %v6577 = vld [vmem:[#allocation13 + $0x198] sm:$0xff]
    %v6578 = vld [vmem:[#allocation13 + $0x1a0] sm:$0xff]
    %v6579 = vld [vmem:[#allocation13 + $0x1a8] sm:$0xff]
    %v6580 = vld [vmem:[#allocation13 + $0x1b0] sm:$0xff]
    %v6581 = vld [vmem:[#allocation13 + $0x1b8] sm:$0xff]
    %v6582 = vld [vmem:[#allocation13 + $0x1c0] sm:$0xff]
    %v6583 = vld [vmem:[#allocation13 + $0x1c8] sm:$0xff]
    %v6584 = vld [vmem:[#allocation13 + $0x1d0] sm:$0xff]
    %v6585 = vld [vmem:[#allocation13 + $0x1d8] sm:$0xff]
    %v6586 = vld [vmem:[#allocation13 + $0x1e0] sm:$0xff]
    %v6587 = vld [vmem:[#allocation13 + $0x1e8] sm:$0xff]
    %v6588 = vld [vmem:[#allocation13 + $0x1f0] sm:$0xff]
    %v6589 = vld [vmem:[#allocation13 + $0x1f8] sm:$0xff]
    %6590 = vmatprep.subr.mxu0 %v6587
    %6591 = vmatpush1.msra.mxu0 %v6586
    %6592 = vmatprep.subr.mxu0 %v6583
    %6593 = vmatpush1.msra.mxu0 %v6582
    %6594 = vmatprep.subr.mxu0 %v6579
    %6595 = vmatpush1.msra.mxu0 %v6578
    %6596 = vmatprep.subr.mxu0 %v6575
    %6597 = vmatpush1.msra.mxu0 %v6574
    %6598 = vmatprep.subr.mxu0 %v6571
    %6599 = vmatpush1.msra.mxu0 %v6570
    %6600 = vmatprep.subr.mxu0 %v6567
    %6601 = vmatpush1.msra.mxu0 %v6566
    %6602 = vmatprep.subr.mxu0 %v6563
    %6603 = vmatpush1.msra.mxu0 %v6562
    %6604 = vmatprep.subr.mxu0 %v6559
    %6605 = vmatpush1.msra.mxu0 %v6558
    %6606 = vmatprep.subr.mxu0 %v6555
    %6607 = vmatpush1.msra.mxu0 %v6554
    %6608 = vmatprep.subr.mxu0 %v6551
    %6609 = vmatpush1.msra.mxu0 %v6550
    %6610 = vmatprep.subr.mxu0 %v6547
    %6611 = vmatpush1.msra.mxu0 %v6546
    %6612 = vmatprep.subr.mxu0 %v6543
    %6613 = vmatpush1.msra.mxu0 %v6542
    %6614 = vmatprep.subr.mxu0 %v6539
    %6615 = vmatpush1.msra.mxu0 %v6538
    %6616 = vmatprep.subr.mxu0 %v6535
    %6617 = vmatpush1.msra.mxu0 %v6534
    %6618 = vmatprep.subr.mxu0 %v6531
    %6619 = vmatpush1.msra.mxu0 %v6530
    %6620 = vmatprep.subr.mxu0 %v6527
    %6621 = vmatpush1.msra.mxu0 %v6526
    %6622 = vmatprep.subr.mxu0 0.0
    %6623 = vmatpush2.msra.mxu0 0.0
    %6624 = vmatprep.subr.mxu0 0.0
    %6625 = vmatpush2.msra.mxu0 0.0
    %6626 = vmatprep.subr.mxu0 0.0
    %6627 = vmatpush2.msra.mxu0 0.0
    %6628 = vmatprep.subr.mxu0 0.0
    %6629 = vmatpush2.msra.mxu0 0.0
    %6630 = vmatprep.subr.mxu0 0.0
    %6631 = vmatpush2.msra.mxu0 0.0
    %6632 = vmatprep.subr.mxu0 0.0
    %6633 = vmatpush2.msra.mxu0 0.0
    %6634 = vmatprep.subr.mxu0 0.0
    %6635 = vmatpush2.msra.mxu0 0.0
    %6636 = vmatprep.subr.mxu0 0.0
    %6637 = vmatpush2.msra.mxu0 0.0
    %6638 = vmatprep.subr.mxu0 0.0
    %6639 = vmatpush2.msra.mxu0 0.0
    %6640 = vmatprep.subr.mxu0 0.0
    %6641 = vmatpush2.msra.mxu0 0.0
    %6642 = vmatprep.subr.mxu0 0.0
    %6643 = vmatpush2.msra.mxu0 0.0
    %6644 = vmatprep.subr.mxu0 0.0
    %6645 = vmatpush2.msra.mxu0 0.0
    %6646 = vmatprep.subr.mxu0 0.0
    %6647 = vmatpush2.msra.mxu0 0.0
    %6648 = vmatprep.subr.mxu0 0.0
    %6649 = vmatpush2.msra.mxu0 0.0
    %6650 = vmatprep.subr.mxu0 0.0
    %6651 = vmatpush2.msra.mxu0 0.0
    %6652 = vmatprep.subr.mxu0 0.0
    %6653 = vmatpush2.msra.mxu0 0.0
    %6654 = vmatprep.mubr.f32.mxu0 0.0
    %6655 = vmatmul.mubr.f32.gmra.mxu0 %v6525
    %v6656 = vpop.f32.mrf.mxu0
    %v6657 = vadd.f32 0.0, %v6656
    %v6658 = vpop.f32.mrf.mxu0
    %v6659 = vadd.f32 0.0, %v6658
    %6660 = vdwg.mxu0
    %6661 = vmatprep.subr.mxu0 %v6589
    %6662 = vmatpush1.msra.mxu0 %v6588
    %6663 = vmatprep.subr.mxu0 %v6585
    %6664 = vmatpush1.msra.mxu0 %v6584
    %6665 = vmatprep.subr.mxu0 %v6581
    %6666 = vmatpush1.msra.mxu0 %v6580
    %6667 = vmatprep.subr.mxu0 %v6577
    %6668 = vmatpush1.msra.mxu0 %v6576
    %6669 = vmatprep.subr.mxu0 %v6573
    %6670 = vmatpush1.msra.mxu0 %v6572
    %6671 = vmatprep.subr.mxu0 %v6569
    %6672 = vmatpush1.msra.mxu0 %v6568
    %6673 = vmatprep.subr.mxu0 %v6565
    %6674 = vmatpush1.msra.mxu0 %v6564
    %6675 = vmatprep.subr.mxu0 %v6561
    %6676 = vmatpush1.msra.mxu0 %v6560
    %6677 = vmatprep.subr.mxu0 %v6557
    %6678 = vmatpush1.msra.mxu0 %v6556
    %6679 = vmatprep.subr.mxu0 %v6553
    %6680 = vmatpush1.msra.mxu0 %v6552
    %6681 = vmatprep.subr.mxu0 %v6549
    %6682 = vmatpush1.msra.mxu0 %v6548
    %6683 = vmatprep.subr.mxu0 %v6545
    %6684 = vmatpush1.msra.mxu0 %v6544
    %6685 = vmatprep.subr.mxu0 %v6541
    %6686 = vmatpush1.msra.mxu0 %v6540
    %6687 = vmatprep.subr.mxu0 %v6537
    %6688 = vmatpush1.msra.mxu0 %v6536
    %6689 = vmatprep.subr.mxu0 %v6533
    %6690 = vmatpush1.msra.mxu0 %v6532
    %6691 = vmatprep.subr.mxu0 %v6529
    %6692 = vmatpush1.msra.mxu0 %v6528
    %6693 = vmatprep.subr.mxu0 0.0
    %6694 = vmatpush2.msra.mxu0 0.0
    %6695 = vmatprep.subr.mxu0 0.0
    %6696 = vmatpush2.msra.mxu0 0.0
    %6697 = vmatprep.subr.mxu0 0.0
    %6698 = vmatpush2.msra.mxu0 0.0
    %6699 = vmatprep.subr.mxu0 0.0
    %6700 = vmatpush2.msra.mxu0 0.0
    %6701 = vmatprep.subr.mxu0 0.0
    %6702 = vmatpush2.msra.mxu0 0.0
    %6703 = vmatprep.subr.mxu0 0.0
    %6704 = vmatpush2.msra.mxu0 0.0
    %6705 = vmatprep.subr.mxu0 0.0
    %6706 = vmatpush2.msra.mxu0 0.0
    %6707 = vmatprep.subr.mxu0 0.0
    %6708 = vmatpush2.msra.mxu0 0.0
    %6709 = vmatprep.subr.mxu0 0.0
    %6710 = vmatpush2.msra.mxu0 0.0
    %6711 = vmatprep.subr.mxu0 0.0
    %6712 = vmatpush2.msra.mxu0 0.0
    %6713 = vmatprep.subr.mxu0 0.0
    %6714 = vmatpush2.msra.mxu0 0.0
    %6715 = vmatprep.subr.mxu0 0.0
    %6716 = vmatpush2.msra.mxu0 0.0
    %6717 = vmatprep.subr.mxu0 0.0
    %6718 = vmatpush2.msra.mxu0 0.0
    %6719 = vmatprep.subr.mxu0 0.0
    %6720 = vmatpush2.msra.mxu0 0.0
    %6721 = vmatprep.subr.mxu0 0.0
    %6722 = vmatpush2.msra.mxu0 0.0
    %6723 = vmatprep.subr.mxu0 0.0
    %6724 = vmatpush2.msra.mxu0 0.0
    %6725 = vmatprep.mubr.f32.mxu0 0.0
    %6726 = vmatmul.mubr.f32.gmra.mxu0 %v6525
    %v6727 = vpop.f32.mrf.mxu0
    %v6728 = vadd.f32 0.0, %v6727
    %v6729 = vpop.f32.mrf.mxu0
    %v6730 = vadd.f32 0.0, %v6729
    %6731 = vdwg.mxu0
    %v6732 = vadd.f32 %v6521, %v6657
    %v6733 = vadd.f32 %v6522, %v6659
    %v6734 = vadd.f32 %v6523, %v6728
    %v6735 = vadd.f32 %v6524, %v6730
    %v6736 = vmul.f32 %v6732, 0.5
    %v6737 = vtanh.pop %v6736
    %v6738 = vmul.f32 %v6737, 0.5
    %v6739 = vadd.f32 %v6738, 0.5
    %v6740 = vmul.f32 %v6733, 0.5
    %v6741 = vtanh.pop %v6740
    %v6742 = vmul.f32 %v6741, 0.5
    %v6743 = vadd.f32 %v6742, 0.5
    %v6744 = vtanh.pop %v6734
    %v6745 = vmul.f32 %v6735, 0.5
    %v6746 = vtanh.pop %v6745
    %v6747 = vmul.f32 %v6746, 0.5
    %v6748 = vadd.f32 %v6747, 0.5
    %v6749 = vld [vmem:[#allocation5] sm:$0xff]
    %v6750 = vmul.f32 %v6743, %v6749
    %v6751 = vmul.f32 %v6739, %v6744
    %v6752 = vadd.f32 %v6750, %v6751
    %v6753 = vtanh.pop %v6752
    %v6754 = vmul.f32 %v6748, %v6753
    %6755 = vst [vmem:[#allocation5] sm:$0xff] %v6752
    %6756 = vst [vmem:[#allocation4] sm:$0xff] %v6754
    %6757 = vst [vmem:[%s2144] sm:$0xff] %v6754
    %v6758 = vld [vmem:[%s2148] sm:$0xff]
    %v6759 = vld [vmem:[%s2148 + $0x8] sm:$0xff]
    %v6760 = vld [vmem:[%s2148 + $0x10] sm:$0xff]
    %v6761 = vld [vmem:[%s2148 + $0x18] sm:$0xff]
    %v6762 = vld [vmem:[#allocation4] sm:$0xff]
    %v6763 = vld [vmem:[#allocation13] sm:$0xff]
    %v6764 = vld [vmem:[#allocation13 + $0x8] sm:$0xff]
    %v6765 = vld [vmem:[#allocation13 + $0x10] sm:$0xff]
    %v6766 = vld [vmem:[#allocation13 + $0x18] sm:$0xff]
    %v6767 = vld [vmem:[#allocation13 + $0x20] sm:$0xff]
    %v6768 = vld [vmem:[#allocation13 + $0x28] sm:$0xff]
    %v6769 = vld [vmem:[#allocation13 + $0x30] sm:$0xff]
    %v6770 = vld [vmem:[#allocation13 + $0x38] sm:$0xff]
    %v6771 = vld [vmem:[#allocation13 + $0x40] sm:$0xff]
    %v6772 = vld [vmem:[#allocation13 + $0x48] sm:$0xff]
    %v6773 = vld [vmem:[#allocation13 + $0x50] sm:$0xff]
    %v6774 = vld [vmem:[#allocation13 + $0x58] sm:$0xff]
    %v6775 = vld [vmem:[#allocation13 + $0x60] sm:$0xff]
    %v6776 = vld [vmem:[#allocation13 + $0x68] sm:$0xff]
    %v6777 = vld [vmem:[#allocation13 + $0x70] sm:$0xff]
    %v6778 = vld [vmem:[#allocation13 + $0x78] sm:$0xff]
    %v6779 = vld [vmem:[#allocation13 + $0x80] sm:$0xff]
    %v6780 = vld [vmem:[#allocation13 + $0x88] sm:$0xff]
    %v6781 = vld [vmem:[#allocation13 + $0x90] sm:$0xff]
    %v6782 = vld [vmem:[#allocation13 + $0x98] sm:$0xff]
    %v6783 = vld [vmem:[#allocation13 + $0xa0] sm:$0xff]
    %v6784 = vld [vmem:[#allocation13 + $0xa8] sm:$0xff]
    %v6785 = vld [vmem:[#allocation13 + $0xb0] sm:$0xff]
    %v6786 = vld [vmem:[#allocation13 + $0xb8] sm:$0xff]
    %v6787 = vld [vmem:[#allocation13 + $0xc0] sm:$0xff]
    %v6788 = vld [vmem:[#allocation13 + $0xc8] sm:$0xff]
    %v6789 = vld [vmem:[#allocation13 + $0xd0] sm:$0xff]
    %v6790 = vld [vmem:[#allocation13 + $0xd8] sm:$0xff]
    %v6791 = vld [vmem:[#allocation13 + $0xe0] sm:$0xff]
    %v6792 = vld [vmem:[#allocation13 + $0xe8] sm:$0xff]
    %v6793 = vld [vmem:[#allocation13 + $0xf0] sm:$0xff]
    %v6794 = vld [vmem:[#allocation13 + $0xf8] sm:$0xff]
    %v6795 = vld [vmem:[#allocation13 + $0x100] sm:$0xff]
    %v6796 = vld [vmem:[#allocation13 + $0x108] sm:$0xff]
    %v6797 = vld [vmem:[#allocation13 + $0x110] sm:$0xff]
    %v6798 = vld [vmem:[#allocation13 + $0x118] sm:$0xff]
    %v6799 = vld [vmem:[#allocation13 + $0x120] sm:$0xff]
    %v6800 = vld [vmem:[#allocation13 + $0x128] sm:$0xff]
    %v6801 = vld [vmem:[#allocation13 + $0x130] sm:$0xff]
    %v6802 = vld [vmem:[#allocation13 + $0x138] sm:$0xff]
    %v6803 = vld [vmem:[#allocation13 + $0x140] sm:$0xff]
    %v6804 = vld [vmem:[#allocation13 + $0x148] sm:$0xff]
    %v6805 = vld [vmem:[#allocation13 + $0x150] sm:$0xff]
    %v6806 = vld [vmem:[#allocation13 + $0x158] sm:$0xff]
    %v6807 = vld [vmem:[#allocation13 + $0x160] sm:$0xff]
    %v6808 = vld [vmem:[#allocation13 + $0x168] sm:$0xff]
    %v6809 = vld [vmem:[#allocation13 + $0x170] sm:$0xff]
    %v6810 = vld [vmem:[#allocation13 + $0x178] sm:$0xff]
    %v6811 = vld [vmem:[#allocation13 + $0x180] sm:$0xff]
    %v6812 = vld [vmem:[#allocation13 + $0x188] sm:$0xff]
    %v6813 = vld [vmem:[#allocation13 + $0x190] sm:$0xff]
    %v6814 = vld [vmem:[#allocation13 + $0x198] sm:$0xff]
    %v6815 = vld [vmem:[#allocation13 + $0x1a0] sm:$0xff]
    %v6816 = vld [vmem:[#allocation13 + $0x1a8] sm:$0xff]
    %v6817 = vld [vmem:[#allocation13 + $0x1b0] sm:$0xff]
    %v6818 = vld [vmem:[#allocation13 + $0x1b8] sm:$0xff]
    %v6819 = vld [vmem:[#allocation13 + $0x1c0] sm:$0xff]
    %v6820 = vld [vmem:[#allocation13 + $0x1c8] sm:$0xff]
    %v6821 = vld [vmem:[#allocation13 + $0x1d0] sm:$0xff]
    %v6822 = vld [vmem:[#allocation13 + $0x1d8] sm:$0xff]
    %v6823 = vld [vmem:[#allocation13 + $0x1e0] sm:$0xff]
    %v6824 = vld [vmem:[#allocation13 + $0x1e8] sm:$0xff]
    %v6825 = vld [vmem:[#allocation13 + $0x1f0] sm:$0xff]
    %v6826 = vld [vmem:[#allocation13 + $0x1f8] sm:$0xff]
    %6827 = vmatprep.subr.mxu0 %v6824
    %6828 = vmatpush1.msra.mxu0 %v6823
    %6829 = vmatprep.subr.mxu0 %v6820
    %6830 = vmatpush1.msra.mxu0 %v6819
    %6831 = vmatprep.subr.mxu0 %v6816
    %6832 = vmatpush1.msra.mxu0 %v6815
    %6833 = vmatprep.subr.mxu0 %v6812
    %6834 = vmatpush1.msra.mxu0 %v6811
    %6835 = vmatprep.subr.mxu0 %v6808
    %6836 = vmatpush1.msra.mxu0 %v6807
    %6837 = vmatprep.subr.mxu0 %v6804
    %6838 = vmatpush1.msra.mxu0 %v6803
    %6839 = vmatprep.subr.mxu0 %v6800
    %6840 = vmatpush1.msra.mxu0 %v6799
    %6841 = vmatprep.subr.mxu0 %v6796
    %6842 = vmatpush1.msra.mxu0 %v6795
    %6843 = vmatprep.subr.mxu0 %v6792
    %6844 = vmatpush1.msra.mxu0 %v6791
    %6845 = vmatprep.subr.mxu0 %v6788
    %6846 = vmatpush1.msra.mxu0 %v6787
    %6847 = vmatprep.subr.mxu0 %v6784
    %6848 = vmatpush1.msra.mxu0 %v6783
    %6849 = vmatprep.subr.mxu0 %v6780
    %6850 = vmatpush1.msra.mxu0 %v6779
    %6851 = vmatprep.subr.mxu0 %v6776
    %6852 = vmatpush1.msra.mxu0 %v6775
    %6853 = vmatprep.subr.mxu0 %v6772
    %6854 = vmatpush1.msra.mxu0 %v6771
    %6855 = vmatprep.subr.mxu0 %v6768
    %6856 = vmatpush1.msra.mxu0 %v6767
    %6857 = vmatprep.subr.mxu0 %v6764
    %6858 = vmatpush1.msra.mxu0 %v6763
    %6859 = vmatprep.subr.mxu0 0.0
    %6860 = vmatpush2.msra.mxu0 0.0
    %6861 = vmatprep.subr.mxu0 0.0
    %6862 = vmatpush2.msra.mxu0 0.0
    %6863 = vmatprep.subr.mxu0 0.0
    %6864 = vmatpush2.msra.mxu0 0.0
    %6865 = vmatprep.subr.mxu0 0.0
    %6866 = vmatpush2.msra.mxu0 0.0
    %6867 = vmatprep.subr.mxu0 0.0
    %6868 = vmatpush2.msra.mxu0 0.0
    %6869 = vmatprep.subr.mxu0 0.0
    %6870 = vmatpush2.msra.mxu0 0.0
    %6871 = vmatprep.subr.mxu0 0.0
    %6872 = vmatpush2.msra.mxu0 0.0
    %6873 = vmatprep.subr.mxu0 0.0
    %6874 = vmatpush2.msra.mxu0 0.0
    %6875 = vmatprep.subr.mxu0 0.0
    %6876 = vmatpush2.msra.mxu0 0.0
    %6877 = vmatprep.subr.mxu0 0.0
    %6878 = vmatpush2.msra.mxu0 0.0
    %6879 = vmatprep.subr.mxu0 0.0
    %6880 = vmatpush2.msra.mxu0 0.0
    %6881 = vmatprep.subr.mxu0 0.0
    %6882 = vmatpush2.msra.mxu0 0.0
    %6883 = vmatprep.subr.mxu0 0.0
    %6884 = vmatpush2.msra.mxu0 0.0
    %6885 = vmatprep.subr.mxu0 0.0
    %6886 = vmatpush2.msra.mxu0 0.0
    %6887 = vmatprep.subr.mxu0 0.0
    %6888 = vmatpush2.msra.mxu0 0.0
    %6889 = vmatprep.subr.mxu0 0.0
    %6890 = vmatpush2.msra.mxu0 0.0
    %6891 = vmatprep.mubr.f32.mxu0 0.0
    %6892 = vmatmul.mubr.f32.gmra.mxu0 %v6762
    %v6893 = vpop.f32.mrf.mxu0
    %v6894 = vadd.f32 0.0, %v6893
    %v6895 = vpop.f32.mrf.mxu0
    %v6896 = vadd.f32 0.0, %v6895
    %6897 = vdwg.mxu0
    %6898 = vmatprep.subr.mxu0 %v6826
    %6899 = vmatpush1.msra.mxu0 %v6825
    %6900 = vmatprep.subr.mxu0 %v6822
    %6901 = vmatpush1.msra.mxu0 %v6821
    %6902 = vmatprep.subr.mxu0 %v6818
    %6903 = vmatpush1.msra.mxu0 %v6817
    %6904 = vmatprep.subr.mxu0 %v6814
    %6905 = vmatpush1.msra.mxu0 %v6813
    %6906 = vmatprep.subr.mxu0 %v6810
    %6907 = vmatpush1.msra.mxu0 %v6809
    %6908 = vmatprep.subr.mxu0 %v6806
    %6909 = vmatpush1.msra.mxu0 %v6805
    %6910 = vmatprep.subr.mxu0 %v6802
    %6911 = vmatpush1.msra.mxu0 %v6801
    %6912 = vmatprep.subr.mxu0 %v6798
    %6913 = vmatpush1.msra.mxu0 %v6797
    %6914 = vmatprep.subr.mxu0 %v6794
    %6915 = vmatpush1.msra.mxu0 %v6793
    %6916 = vmatprep.subr.mxu0 %v6790
    %6917 = vmatpush1.msra.mxu0 %v6789
    %6918 = vmatprep.subr.mxu0 %v6786
    %6919 = vmatpush1.msra.mxu0 %v6785
    %6920 = vmatprep.subr.mxu0 %v6782
    %6921 = vmatpush1.msra.mxu0 %v6781
    %6922 = vmatprep.subr.mxu0 %v6778
    %6923 = vmatpush1.msra.mxu0 %v6777
    %6924 = vmatprep.subr.mxu0 %v6774
    %6925 = vmatpush1.msra.mxu0 %v6773
    %6926 = vmatprep.subr.mxu0 %v6770
    %6927 = vmatpush1.msra.mxu0 %v6769
    %6928 = vmatprep.subr.mxu0 %v6766
    %6929 = vmatpush1.msra.mxu0 %v6765
    %6930 = vmatprep.subr.mxu0 0.0
    %6931 = vmatpush2.msra.mxu0 0.0
    %6932 = vmatprep.subr.mxu0 0.0
    %6933 = vmatpush2.msra.mxu0 0.0
    %6934 = vmatprep.subr.mxu0 0.0
    %6935 = vmatpush2.msra.mxu0 0.0
    %6936 = vmatprep.subr.mxu0 0.0
    %6937 = vmatpush2.msra.mxu0 0.0
    %6938 = vmatprep.subr.mxu0 0.0
    %6939 = vmatpush2.msra.mxu0 0.0
    %6940 = vmatprep.subr.mxu0 0.0
    %6941 = vmatpush2.msra.mxu0 0.0
    %6942 = vmatprep.subr.mxu0 0.0
    %6943 = vmatpush2.msra.mxu0 0.0
    %6944 = vmatprep.subr.mxu0 0.0
    %6945 = vmatpush2.msra.mxu0 0.0
    %6946 = vmatprep.subr.mxu0 0.0
    %6947 = vmatpush2.msra.mxu0 0.0
    %6948 = vmatprep.subr.mxu0 0.0
    %6949 = vmatpush2.msra.mxu0 0.0
    %6950 = vmatprep.subr.mxu0 0.0
    %6951 = vmatpush2.msra.mxu0 0.0
    %6952 = vmatprep.subr.mxu0 0.0
    %6953 = vmatpush2.msra.mxu0 0.0
    %6954 = vmatprep.subr.mxu0 0.0
    %6955 = vmatpush2.msra.mxu0 0.0
    %6956 = vmatprep.subr.mxu0 0.0
    %6957 = vmatpush2.msra.mxu0 0.0
    %6958 = vmatprep.subr.mxu0 0.0
    %6959 = vmatpush2.msra.mxu0 0.0
    %6960 = vmatprep.subr.mxu0 0.0
    %6961 = vmatpush2.msra.mxu0 0.0
    %6962 = vmatprep.mubr.f32.mxu0 0.0
    %6963 = vmatmul.mubr.f32.gmra.mxu0 %v6762
    %v6964 = vpop.f32.mrf.mxu0
    %v6965 = vadd.f32 0.0, %v6964
    %v6966 = vpop.f32.mrf.mxu0
    %v6967 = vadd.f32 0.0, %v6966
    %6968 = vdwg.mxu0
    %v6969 = vadd.f32 %v6758, %v6894
    %v6970 = vadd.f32 %v6759, %v6896
    %v6971 = vadd.f32 %v6760, %v6965
    %v6972 = vadd.f32 %v6761, %v6967
    %v6973 = vmul.f32 %v6969, 0.5
    %v6974 = vtanh.pop %v6973
    %v6975 = vmul.f32 %v6974, 0.5
    %v6976 = vadd.f32 %v6975, 0.5
    %v6977 = vmul.f32 %v6970, 0.5
    %v6978 = vtanh.pop %v6977
    %v6979 = vmul.f32 %v6978, 0.5
    %v6980 = vadd.f32 %v6979, 0.5
    %v6981 = vtanh.pop %v6971
    %v6982 = vmul.f32 %v6972, 0.5
    %v6983 = vtanh.pop %v6982
    %v6984 = vmul.f32 %v6983, 0.5
    %v6985 = vadd.f32 %v6984, 0.5
    %v6986 = vld [vmem:[#allocation5] sm:$0xff]
    %v6987 = vmul.f32 %v6980, %v6986
    %v6988 = vmul.f32 %v6976, %v6981
    %v6989 = vadd.f32 %v6987, %v6988
    %v6990 = vtanh.pop %v6989
    %v6991 = vmul.f32 %v6985, %v6990
    %6992 = vst [vmem:[#allocation5] sm:$0xff] %v6989
    %6993 = vst [vmem:[#allocation4] sm:$0xff] %v6991
    %6994 = vst [vmem:[%s2385] sm:$0xff] %v6991
    %v6995 = vld [vmem:[#allocation2] sm:$0xff]
    %v6996 = vld [vmem:[#allocation2 + $0x8] sm:$0xff]
    %v6997 = vld [vmem:[#allocation2 + $0x10] sm:$0xff]
    %v6998 = vld [vmem:[#allocation2 + $0x18] sm:$0xff]
    %v6999 = vld [vmem:[#allocation2 + $0x20] sm:$0xff]
    %v7000 = vld [vmem:[#allocation2 + $0x28] sm:$0xff]
    %v7001 = vld [vmem:[#allocation2 + $0x30] sm:$0xff]
    %v7002 = vld [vmem:[#allocation2 + $0x38] sm:$0xff]
    %v7003 = vld [vmem:[%s16] sm:$0xf]
    %v7004 = vld [vmem:[%s16 + $0x4] sm:$0xf]
    %v7005 = vld [vmem:[%s16 + $0x8] sm:$0xf]
    %v7006 = vld [vmem:[%s16 + $0xc] sm:$0xf]
    %v7007 = vld [vmem:[%s16 + $0x10] sm:$0xf]
    %v7008 = vld [vmem:[%s16 + $0x14] sm:$0xf]
    %v7009 = vld [vmem:[%s16 + $0x18] sm:$0xf]
    %v7010 = vld [vmem:[%s16 + $0x1c] sm:$0xf]
    %v7011 = vld [vmem:[%s16 + $0x20] sm:$0xf]
    %v7012 = vld [vmem:[%s16 + $0x24] sm:$0xf]
    %v7013 = vld [vmem:[%s16 + $0x28] sm:$0xf]
    %v7014 = vld [vmem:[%s16 + $0x2c] sm:$0xf]
    %v7015 = vld [vmem:[%s16 + $0x30] sm:$0xf]
    %v7016 = vld [vmem:[%s16 + $0x34] sm:$0xf]
    %v7017 = vld [vmem:[%s16 + $0x38] sm:$0xf]
    %v7018 = vld [vmem:[%s16 + $0x3c] sm:$0xf]
    %v7019 = vpack.c.bf16 %v6996, %v6995
    %v7020 = vpack.c.bf16 %v6998, %v6997
    %v7021 = vpack.c.bf16 %v7000, %v6999
    %v7022 = vpack.c.bf16 %v7002, %v7001
    %v7023 = vld [vmem:[%s17] sm:$0x1]
    %v7025 = vlaneseq
    %v7026 = vshrl.u32 %v7025, 7
    %v7027 = vsub.s32 0, %v7026
    %v7028 = vrot.slane %v7023, %v7027
    %v7046 = vunpack.c.l.b16 %v7003
    %v7047 = vunpack.c.l.b16 %v7004
    %v7048 = vunpack.c.l.b16 %v7005
    %v7049 = vunpack.c.l.b16 %v7006
    %v7050 = vunpack.c.l.b16 %v7007
    %v7051 = vunpack.c.l.b16 %v7008
    %v7052 = vunpack.c.l.b16 %v7009
    %v7053 = vunpack.c.l.b16 %v7010
    %v7054 = vunpack.c.l.b16 %v7011
    %v7055 = vunpack.c.l.b16 %v7012
    %v7056 = vunpack.c.l.b16 %v7013
    %v7057 = vunpack.c.l.b16 %v7014
    %v7058 = vunpack.c.l.b16 %v7015
    %v7059 = vunpack.c.l.b16 %v7016
    %v7060 = vunpack.c.l.b16 %v7017
    %v7061 = vunpack.c.l.b16 %v7018
    %v7062 = vpack.c.b16 %v7047, %v7046
    %v7063 = vpack.c.b16 %v7049, %v7048
    %v7064 = vpack.c.b16 %v7051, %v7050
    %v7065 = vpack.c.b16 %v7053, %v7052
    %v7066 = vpack.c.b16 %v7055, %v7054
    %v7067 = vpack.c.b16 %v7057, %v7056
    %v7068 = vpack.c.b16 %v7059, %v7058
    %v7069 = vpack.c.b16 %v7061, %v7060
    %7078 = vmatprep.subr.bf16.mxu0 0
    %7079 = vmatpush1.bf16.msra.mxu0 %v7069
    %7080 = vmatprep.subr.bf16.mxu0 0
    %7081 = vmatpush1.bf16.msra.mxu0 %v7068
    %7082 = vmatprep.subr.bf16.mxu0 0
    %7083 = vmatpush1.bf16.msra.mxu0 %v7067
    %7084 = vmatprep.subr.bf16.mxu0 0
    %7085 = vmatpush1.bf16.msra.mxu0 %v7066
    %7086 = vmatprep.subr.bf16.mxu0 0
    %7087 = vmatpush1.bf16.msra.mxu0 %v7065
    %7088 = vmatprep.subr.bf16.mxu0 0
    %7089 = vmatpush1.bf16.msra.mxu0 %v7064
    %7090 = vmatprep.subr.bf16.mxu0 0
    %7091 = vmatpush1.bf16.msra.mxu0 %v7063
    %7092 = vmatprep.subr.bf16.mxu0 0
    %7093 = vmatpush1.bf16.msra.mxu0 %v7062
    %7094 = vmatprep.subr.bf16.mxu0 0
    %7095 = vmatpush2.bf16.msra.mxu0 0
    %7096 = vmatprep.subr.bf16.mxu0 0
    %7097 = vmatpush2.bf16.msra.mxu0 0
    %7098 = vmatprep.subr.bf16.mxu0 0
    %7099 = vmatpush2.bf16.msra.mxu0 0
    %7100 = vmatprep.subr.bf16.mxu0 0
    %7101 = vmatpush2.bf16.msra.mxu0 0
    %7102 = vmatprep.subr.bf16.mxu0 0
    %7103 = vmatpush2.bf16.msra.mxu0 0
    %7104 = vmatprep.subr.bf16.mxu0 0
    %7105 = vmatpush2.bf16.msra.mxu0 0
    %7106 = vmatprep.subr.bf16.mxu0 0
    %7107 = vmatpush2.bf16.msra.mxu0 0
    %7108 = vmatprep.subr.bf16.mxu0 0
    %7109 = vmatpush2.bf16.msra.mxu0 0
    %7110 = vmatprep.mubr.bf16.mxu0 0
    %7111 = vmatmul.mubr.bf16.gmra.mxu0 %v7019
    %v7112 = vpop.f32.mrf.mxu0
    %v7113 = vadd.f32 %v7028, %v7112
    %v7114 = vpop.f32.mrf.mxu0
    %v7115 = vpop.f32.mrf.mxu0
    %v7116 = vadd.f32 %v7028, %v7115
    %v7117 = vpop.f32.mrf.mxu0
    %7118 = vmatprep.mubr.bf16.mxu0 0
    %7119 = vmatmul.mubr.bf16.gmra.mxu0 %v7020
    %v7120 = vpop.f32.mrf.mxu0
    %v7121 = vadd.f32 %v7028, %v7120
    %v7122 = vpop.f32.mrf.mxu0
    %v7123 = vpop.f32.mrf.mxu0
    %v7124 = vadd.f32 %v7028, %v7123
    %v7125 = vpop.f32.mrf.mxu0
    %7126 = vmatprep.mubr.bf16.mxu0 0
    %7127 = vmatmul.mubr.bf16.gmra.mxu0 %v7021
    %v7128 = vpop.f32.mrf.mxu0
    %v7129 = vadd.f32 %v7028, %v7128
    %v7130 = vpop.f32.mrf.mxu0
    %v7131 = vpop.f32.mrf.mxu0
    %v7132 = vadd.f32 %v7028, %v7131
    %v7133 = vpop.f32.mrf.mxu0
    %7134 = vmatprep.mubr.bf16.mxu0 0
    %7135 = vmatmul.mubr.bf16.gmra.mxu0 %v7022
    %v7136 = vpop.f32.mrf.mxu0
    %v7137 = vadd.f32 %v7028, %v7136
    %v7138 = vpop.f32.mrf.mxu0
    %v7139 = vpop.f32.mrf.mxu0
    %v7140 = vadd.f32 %v7028, %v7139
    %v7141 = vpop.f32.mrf.mxu0
    %7142 = vdwg.mxu0
    %v7143 = vmax.f32 %v7113, 0.0
    %v7144 = vmax.f32 %v7116, 0.0
    %v7145 = vmax.f32 %v7121, 0.0
    %v7146 = vmax.f32 %v7124, 0.0
    %v7147 = vmax.f32 %v7129, 0.0
    %v7148 = vmax.f32 %v7132, 0.0
    %v7149 = vmax.f32 %v7137, 0.0
    %v7150 = vmax.f32 %v7140, 0.0
    %7151 = vst [vmem:[%s18] sm:$0xff] %v7143
    %7152 = vst [vmem:[%s18 + $0x8] sm:$0xff] %v7144
    %7153 = vst [vmem:[%s18 + $0x10] sm:$0xff] %v7145
    %7154 = vst [vmem:[%s18 + $0x18] sm:$0xff] %v7146
    %7155 = vst [vmem:[%s18 + $0x20] sm:$0xff] %v7147
    %7156 = vst [vmem:[%s18 + $0x28] sm:$0xff] %v7148
    %7157 = vst [vmem:[%s18 + $0x30] sm:$0xff] %v7149
    %7158 = vst [vmem:[%s18 + $0x38] sm:$0xff] %v7150
    // Predicated region
    $region94: #{eeg_lstm_v3_forward.1} parent=1 // pred_check
      _
    $region95: #{eeg_lstm_v3_forward.1} parent=1 // pred_check_branch
      %7160 = sbr.rel (0) target = $region97
    $region96: #{eeg_lstm_v3_forward.1} parent=1 // pred_region
      _
    $region97: #{eeg_lstm_v3_forward.1} parent=1 // pred_fallthru
      _
    // Predicated region
    $region98: #{eeg_lstm_v3_forward.1} parent=1 // pred_check
      _
    $region99: #{eeg_lstm_v3_forward.1} parent=1 // pred_check_branch
      %7162 = sbr.rel (0) target = $region101
    $region100: #{eeg_lstm_v3_forward.1} parent=1 // pred_region
      _
    $region101: #{eeg_lstm_v3_forward.1} parent=1 // pred_fallthru
      _
    %7163 = vsyncpa [#allocation7], 1
    %7164 = vsyncpa [#allocation9], 1
    %7165 = vsyncpa [#allocation12], 1

</llo_original>
